<compile_context>
chip_gen: v5e
topology: v5e:2x2
jax: 0.10.0
libtpu: 0.0.40
codegen_flags: <defaults>
</compile_context>

<pallas_src>
import functools

import jax
import jax.numpy as jnp
import numpy as np
from jax.experimental import pallas as pl
from jax.experimental.pallas import tpu as pltpu

BN_EPS = 1e-5
LANE = 128
_MAX_TILE_ROWS = 4096                 # cap on GEMM M per grid step
_DEFAULT_VMEM = 64 * 1024 * 1024      # conservative fallback (v7x per-core)


def _round_up(x, m):
    return (x + m - 1) // m * m


def _cdiv(a, b):
    return -(-a // b)


def _vmem_limit_bytes():
    """Generation-aware scoped-VMEM limit (v7x: 64 MiB/TC, v5e/v6e: 128 MiB)."""
    cap = None
    try:
        cap = getattr(pltpu.get_tpu_info(), "vmem_capacity_bytes", None)
    except Exception:
        cap = None
    if not cap or cap <= 0:
        cap = _DEFAULT_VMEM
    return min(int(cap) * 3 // 4, 112 * 1024 * 1024)


def _derive_tile_m(R, halo, cpad, coutp, vmem_limit):
    """Largest halo-multiple row tile that (a) fits the per-step VMEM budget,
    (b) keeps the GEMM M dim reasonable and (c) leaves >= 2 grid steps so the
    'parallel' axis can split across v7x's two TensorCores."""
    budget = int(vmem_limit * 0.6)
    bytes_per_row = (2 * cpad * 2      # double-buffered input stream (bf16)
                     + 2 * coutp * 2   # double-buffered conv output (bf16)
                     + cpad * 2        # halo'd window scratch (bf16)
                     + 9 * cpad * 2    # tap-packed im2col slab scratch (bf16)
                     + coutp * 4       # f32 accumulator temp
                     + cpad * 4)       # f32 transform temp
    fixed = 2 * 9 * cpad * coutp * 2 + (2 << 20)   # weights (dbl-buf) + slack
    tile = max((budget - fixed) // bytes_per_row, halo)
    tile = min(tile, _MAX_TILE_ROWS, _round_up(_cdiv(R, 2), halo))
    return max((tile // halo) * halo, halo)


def _row_mask(base, rows, *, wp, hp, n_rows):
    """f32 (rows, 1) mask: 1.0 where flat row `base + s` is a real (non-padding)
    spatial position.  The divisions by the static pitches use the exact
    float-reciprocal trick (valid for flat indices < 2**22, asserted in the
    wrapper) so no vector integer div/rem is needed in the kernel."""
    idx = base + jax.lax.broadcasted_iota(jnp.int32, (rows, 1), 0)
    f = idx.astype(jnp.float32) + 0.5
    x = f - wp * jnp.floor(f * (1.0 / wp))                # (idx % wp) + 0.5
    r = f - (hp * wp) * jnp.floor(f * (1.0 / (hp * wp)))  # (idx % hp*wp) + 0.5
    valid = ((idx >= 0) & (idx < n_rows)
             & (x > 1.0) & (x < float(wp - 1))
             & (r > float(wp)) & (r < float((hp - 1) * wp)))
    return valid.astype(jnp.float32)


# --------------------------------------------------------------------------- #
# Conv kernel: fused (previous-layer BN+PReLU+mask) -> 3x3 conv -> BN stats
# --------------------------------------------------------------------------- #
def _conv_stats_kernel(xtop_ref, xmid_ref, xbot_ref, w_ref,
                       scale_ref, shift_ref, alpha_ref,
                       y_ref, stats_ref, win_ref, slab_ref,
                       *, tile_m, halo, cpad, wp, hp, n_rows, tap_offsets):
    """
    xtop_ref : (halo, cpad)        bf16  flat rows [i*tile_m - halo, i*tile_m)
    xmid_ref : (tile_m, cpad)      bf16  flat rows [i*tile_m, (i+1)*tile_m)
    xbot_ref : (halo, cpad)        bf16  flat rows [(i+1)*tile_m, +halo)
    w_ref    : (9*cpad, coutp)     bf16  tap-packed weight (K-major)
    scale/shift/alpha_ref : (1, cpad) f32  previous layer's folded BN + PReLU
    y_ref    : (tile_m, coutp)     bf16  raw conv output tile
    stats_ref: (8, coutp)          f32   row0 = sum(m*y), row1 = sum(m*y*y)
    win_ref  : (tile_m+2*halo, cpad) bf16 scratch: transformed halo'd window
    slab_ref : (tile_m, 9*cpad)    bf16 scratch: tap-packed im2col slab
    """
    i = pl.program_id(0)
    rows_w = tile_m + 2 * halo
    # Per-row validity of the halo'd window (computed in-kernel, no mask DMA).
    wmask = _row_mask(i * tile_m - halo, rows_w, wp=wp, hp=hp, n_rows=n_rows)

    scale = scale_ref[...]
    shift = shift_ref[...]
    alpha = alpha_ref[...]

    # Stitch the halo'd window while applying the fused input transform
    # (previous layer's folded BatchNorm + PReLU) and the zero-pad mask.
    # For the first layer the transform is the identity (scale=1, shift=0,
    # alpha=1) and the input is already zero at padding rows.
    def put(lo, hi, piece):
        z = piece.astype(jnp.float32) * scale + shift
        z = jnp.where(z >= 0.0, z, alpha * z)
        win_ref[lo:hi, :] = (z * wmask[lo:hi, :]).astype(win_ref.dtype)

    put(0, halo, xtop_ref[...])
    put(halo, halo + tile_m, xmid_ref[...])
    put(halo + tile_m, rows_w, xbot_ref[...])

    # im2col in VMEM: tap t of the 3x3 stencil is the window row-shifted by
    # tap_offsets[t]; packing the 9 taps along K turns the whole conv into a
    # single MXU GEMM with hardware accumulation across K (no per-tap f32
    # accumulator read-modify-write; far better fill of the 256-wide MXU).
    for t, off in enumerate(tap_offsets):            # static 9-way unroll
        s0 = halo + off
        slab_ref[:, t * cpad:(t + 1) * cpad] = win_ref[s0:s0 + tile_m, :]

    acc = jnp.dot(slab_ref[...], w_ref[...], preferred_element_type=jnp.float32)
    yq = acc.astype(y_ref.dtype)
    y_ref[...] = yq

    # Partial BatchNorm statistics over the valid rows of this tile, taken
    # from the same (bf16-rounded) values that get normalized downstream.
    yf = yq.astype(jnp.float32)
    ym = yf * wmask[halo:halo + tile_m, :]
    stats_ref[...] = jnp.zeros_like(stats_ref)
    stats_ref[0:1, :] = jnp.sum(ym, axis=0, keepdims=True)
    stats_ref[1:2, :] = jnp.sum(ym * yf, axis=0, keepdims=True)


# --------------------------------------------------------------------------- #
# Final standalone pass: folded BatchNorm (scale/shift) + PReLU (streaming)
# --------------------------------------------------------------------------- #
def _bn_prelu_kernel(y_ref, scale_ref, shift_ref, alpha_ref, o_ref):
    z = y_ref[...].astype(jnp.float32) * scale_ref[...] + shift_ref[...]
    o_ref[...] = jnp.where(z >= 0.0, z, alpha_ref[...] * z).astype(o_ref.dtype)


# --------------------------------------------------------------------------- #
# pallas_call drivers
# --------------------------------------------------------------------------- #
def _conv_stats_pass(x_flat, w_packed, in_scale, in_shift, in_alpha, *,
                     tile_m, halo, wp, hp, n_rows, vmem_limit):
    rp, cpad = x_flat.shape
    kdim, coutp = w_packed.shape
    num_tiles = rp // tile_m
    tpb = tile_m // halo                       # halo-sized blocks per tile
    n_halo_blocks = rp // halo
    # flat-row offsets of the 9 taps (dy, dx), dy/dx in {-1, 0, +1}
    tap_offsets = tuple(dy * wp + dx for dy in (-1, 0, 1) for dx in (-1, 0, 1))

    kernel = functools.partial(_conv_stats_kernel, tile_m=tile_m, halo=halo,
                               cpad=cpad, wp=wp, hp=hp, n_rows=n_rows,
                               tap_offsets=tap_offsets)
    y, stats = pl.pallas_call(
        kernel,
        grid=(num_tiles,),
        in_specs=[
            pl.BlockSpec((halo, cpad),
                         lambda i: (jnp.maximum(i * tpb - 1, 0), 0)),
            pl.BlockSpec((tile_m, cpad), lambda i: (i, 0)),
            pl.BlockSpec((halo, cpad),
                         lambda i: (jnp.minimum((i + 1) * tpb,
                                                n_halo_blocks - 1), 0)),
            pl.BlockSpec((kdim, coutp), lambda i: (0, 0)),
            pl.BlockSpec((1, cpad), lambda i: (0, 0)),
            pl.BlockSpec((1, cpad), lambda i: (0, 0)),
            pl.BlockSpec((1, cpad), lambda i: (0, 0)),
        ],
        out_specs=(
            pl.BlockSpec((tile_m, coutp), lambda i: (i, 0)),
            pl.BlockSpec((8, coutp), lambda i: (i, 0)),
        ),
        out_shape=(
            jax.ShapeDtypeStruct((rp, coutp), jnp.bfloat16),
            jax.ShapeDtypeStruct((num_tiles * 8, coutp), jnp.float32),
        ),
        scratch_shapes=[
            pltpu.VMEM((tile_m + 2 * halo, cpad), jnp.bfloat16),
            pltpu.VMEM((tile_m, 9 * cpad), jnp.bfloat16),
        ],
        compiler_params=pltpu.CompilerParams(
            dimension_semantics=("parallel",),
            vmem_limit_bytes=vmem_limit),
    )(x_flat, x_flat, x_flat, w_packed, in_scale, in_shift, in_alpha)
    return y, stats


def _bn_prelu_pass(y, scale, shift, alpha, *, tile_m, vmem_limit):
    rp, coutp = y.shape
    num_tiles = rp // tile_m
    return pl.pallas_call(
        _bn_prelu_kernel,
        grid=(num_tiles,),
        in_specs=[
            pl.BlockSpec((tile_m, coutp), lambda i: (i, 0)),
            pl.BlockSpec((1, coutp), lambda i: (0, 0)),
            pl.BlockSpec((1, coutp), lambda i: (0, 0)),
            pl.BlockSpec((1, coutp), lambda i: (0, 0)),
        ],
        out_specs=pl.BlockSpec((tile_m, coutp), lambda i: (i, 0)),
        out_shape=jax.ShapeDtypeStruct((rp, coutp), jnp.bfloat16),
        input_output_aliases={0: 0},           # write in place over y
        compiler_params=pltpu.CompilerParams(
            dimension_semantics=("parallel",),
            vmem_limit_bytes=vmem_limit),
    )(y, scale, shift, alpha)


# ------------------------------- JAX glue ---------------------------------- #
def _fold_bn(stats, gamma, beta, n_valid):
    """Global training-mode BN statistics folded into per-channel scale/shift."""
    c = stats.shape[-1]
    stats = stats.reshape(-1, 8, c)
    s1 = jnp.sum(stats[:, 0, :], axis=0)
    s2 = jnp.sum(stats[:, 1, :], axis=0)
    mu = s1 / n_valid
    var = jnp.maximum(s2 / n_valid - mu * mu, 0.0)
    scale = gamma * jax.lax.rsqrt(var + BN_EPS)
    shift = beta - mu * scale
    return (scale.reshape(1, c).astype(jnp.float32),
            shift.reshape(1, c).astype(jnp.float32))


def _prep_conv_weight(w_pt, cin_p, cout_p):
    """(Cout, Cin, 3, 3) torch conv weight -> (9*Cin_pad, Cout_pad) bf16,
    taps packed along the contraction dim in (dy, dx) order."""
    cout, cin = w_pt.shape[0], w_pt.shape[1]
    w = jnp.transpose(w_pt, (2, 3, 1, 0)).reshape(9, cin, cout)
    w = jnp.pad(w, ((0, 0), (0, cin_p - cin), (0, cout_p - cout)))
    return w.reshape(9 * cin_p, cout_p).astype(jnp.bfloat16)


def _prep_alpha(a, cout_p):
    a = a.astype(jnp.float32).reshape(-1)
    if a.shape[0] == 1:
        return jnp.broadcast_to(a[0], (1, cout_p))
    return jnp.pad(a, (0, cout_p - a.shape[0])).reshape(1, cout_p)


def conv_block_nd_forward(x_nchw, params):
    """ConvBlockND(dim=2).forward (training-mode BN, dropout p=0). NCHW in/out."""
    N, Cin, H, W = x_nchw.shape
    Cout = params["l1"]["conv_w"].shape[0]
    hp, wp = H + 2, W + 2
    R = N * hp * wp                            # real flat padded rows
    halo = _round_up(wp + 1, 16)               # halo rows per side
    assert halo >= wp + 1                      # every 3x3 tap stays in-window

    cin_p = _round_up(Cin, LANE)
    cout_p = _round_up(Cout, LANE)

    vmem_limit = _vmem_limit_bytes()
    tile_m = _derive_tile_m(R, halo, max(cin_p, cout_p), cout_p, vmem_limit)
    rp = _round_up(R, tile_m)
    # In-kernel row decomposition uses the exact float-reciprocal trick.
    assert rp + 2 * halo < 2 ** 22, "flat row count too large for f32 row mask"
    # TODO(synk): for >2**22 flat rows switch the in-kernel mask to a
    # precomputed per-window mask input.

    # Flat, spatially zero-padded, lane-padded bf16 activation (row-major NHWC).
    x = jnp.transpose(x_nchw, (0, 2, 3, 1))
    x = jnp.pad(x, ((0, 0), (1, 1), (1, 1), (0, cin_p - Cin)))
    x_flat = jnp.pad(x.reshape(R, cin_p), ((0, rp - R), (0, 0)))
    x_flat = x_flat.astype(jnp.bfloat16)

    n_valid = float(N * H * W)

    p1, p2 = params["l1"], params["l2"]
    w1 = _prep_conv_weight(p1["conv_w"], cin_p, cout_p)
    w2 = _prep_conv_weight(p2["conv_w"], cout_p, cout_p)
    # NOTE: conv biases are intentionally unused in the kernels: a per-channel
    # constant bias followed by training-mode BatchNorm cancels exactly.

    common = dict(tile_m=tile_m, halo=halo, wp=wp, hp=hp, n_rows=R,
                  vmem_limit=vmem_limit)
    ones_in = jnp.ones((1, cin_p), jnp.float32)
    zeros_in = jnp.zeros((1, cin_p), jnp.float32)

    # Layer 1: conv (identity input transform) + partial BN statistics.
    y1, stats1 = _conv_stats_pass(x_flat, w1, ones_in, zeros_in, ones_in,
                                  **common)
    scale1, shift1 = _fold_bn(stats1,
                              jnp.pad(p1["bn_gamma"], (0, cout_p - Cout)),
                              jnp.pad(p1["bn_beta"], (0, cout_p - Cout)),
                              n_valid)
    alpha1 = _prep_alpha(p1["prelu_a"], cout_p)

    # Layer 2: conv with layer-1's folded BN + PReLU (+ pad mask) fused into
    # the window load -- the intermediate activation makes no extra HBM round
    # trip.  nn.Dropout(p=0.0) between the layers is the identity.
    y2, stats2 = _conv_stats_pass(y1, w2, scale1, shift1, alpha1, **common)
    scale2, shift2 = _fold_bn(stats2,
                              jnp.pad(p2["bn_gamma"], (0, cout_p - Cout)),
                              jnp.pad(p2["bn_beta"], (0, cout_p - Cout)),
                              n_valid)
    alpha2 = _prep_alpha(p2["prelu_a"], cout_p)

    # Final folded BN + PReLU: pure streaming pass, lane-dense bf16, in place.
    out_flat = _bn_prelu_pass(y2, scale2, shift2, alpha2,
                              tile_m=tile_m, vmem_limit=vmem_limit)

    out = out_flat[:R].reshape(N, hp, wp, cout_p)[:, 1:H + 1, 1:W + 1, :Cout]
    return jnp.transpose(out, (0, 3, 1, 2)).astype(jnp.float32)
    # TODO(synk): dim=3 variant = same kernels with 27 tap offsets over a
    # (D+2)*(H+2)*(W+2)-row flat layout; Dropout with p>0 not implemented.


def init_params(key, in_channels, out_channels):
    ks = jax.random.split(key, 8)

    def layer(kw, kb, kg, kbt, cin, cout):
        return dict(
            conv_w=0.1 * jax.random.normal(kw, (cout, cin, 3, 3), jnp.float32),
            conv_b=0.1 * jax.random.normal(kb, (cout,), jnp.float32),
            bn_gamma=1.0 + 0.1 * jax.random.normal(kg, (cout,), jnp.float32),
            bn_beta=0.1 * jax.random.normal(kbt, (cout,), jnp.float32),
            prelu_a=jnp.full((1,), 0.25, jnp.float32),  # PyTorch PReLU default
        )

    return dict(
        l1=layer(ks[0], ks[1], ks[2], ks[3], in_channels, out_channels),
        l2=layer(ks[4], ks[5], ks[6], ks[7], out_channels, out_channels),
    )


# --------------------------- pure-JAX reference ----------------------------- #
def _reference_forward(x_nchw, params):
    h = jnp.transpose(x_nchw, (0, 2, 3, 1))
    for layer in ("l1", "l2"):
        p = params[layer]
        w_hwio = jnp.transpose(p["conv_w"], (2, 3, 1, 0))
        y = jax.lax.conv_general_dilated(
            h, w_hwio, window_strides=(1, 1), padding="SAME",
            dimension_numbers=("NHWC", "HWIO", "NHWC"),
            precision=jax.lax.Precision.HIGHEST)
        y = y + p["conv_b"][None, None, None, :]
        mu = jnp.mean(y, axis=(0, 1, 2), keepdims=True)
        var = jnp.mean((y - mu) ** 2, axis=(0, 1, 2), keepdims=True)
        z = p["bn_gamma"] * (y - mu) * jax.lax.rsqrt(var + BN_EPS) + p["bn_beta"]
        h = jnp.where(z >= 0, z, p["prelu_a"][0] * z)
    return jnp.transpose(h, (0, 3, 1, 2))


# ---------------------------------- main ------------------------------------ #
if __name__ == "__main__":
    key = jax.random.PRNGKey(0)
    k_x, k_p = jax.random.split(key)

    N, Cin, Cout, H, W = 2, 4, 8, 16, 16
    x = jax.random.normal(k_x, (N, Cin, H, W), jnp.float32)   # NCHW like PyTorch
    params = init_params(k_p, Cin, Cout)

    fwd = jax.jit(conv_block_nd_forward)
    out = jax.block_until_ready(fwd(x, params))

    ref = jax.block_until_ready(_reference_forward(x, params))
    assert out.shape == (N, Cout, H, W), out.shape
    np.testing.assert_allclose(np.asarray(out), np.asarray(ref),
                               rtol=3e-2, atol=3e-2)

    print("KERNEL_OK")
</pallas_src>

<mosaic_0001>
module attributes {stable_mosaic.version = 11 : i64} {
  func.func @_conv_stats_kernel(%arg0: i32, %arg1: memref<32x128xbf16, #tpu.memory_space<vmem>>, %arg2: memref<352x128xbf16, #tpu.memory_space<vmem>>, %arg3: memref<32x128xbf16, #tpu.memory_space<vmem>>, %arg4: memref<1152x128xbf16, #tpu.memory_space<vmem>>, %arg5: memref<1x128xf32, #tpu.memory_space<vmem>>, %arg6: memref<1x128xf32, #tpu.memory_space<vmem>>, %arg7: memref<1x128xf32, #tpu.memory_space<vmem>>, %arg8: memref<352x128xbf16, #tpu.memory_space<vmem>>, %arg9: memref<8x128xf32, #tpu.memory_space<vmem>>, %arg10: memref<416x128xbf16, #tpu.memory_space<vmem>>, %arg11: memref<352x1152xbf16, #tpu.memory_space<vmem>>) attributes {dimension_semantics = [#tpu.dimension_semantics<parallel>], iteration_bounds = array<i64: 2>, scalar_prefetch = 0 : i64, scratch_operands = 2 : i64, tpu.core_type = #tpu.core_type<tc>, window_params = [{transform_indices = @transform_0, window_bounds = array<i64: 32, 128>}, {transform_indices = @transform_1, window_bounds = array<i64: 352, 128>}, {transform_indices = @transform_2, window_bounds = array<i64: 32, 128>}, {pipeline_mode = #tpu.pipeline_mode<synchronous>, transform_indices = @transform_3, window_bounds = array<i64: 1152, 128>}, {pipeline_mode = #tpu.pipeline_mode<synchronous>, transform_indices = @transform_4, window_bounds = array<i64: 1, 128>}, {pipeline_mode = #tpu.pipeline_mode<synchronous>, transform_indices = @transform_5, window_bounds = array<i64: 1, 128>}, {pipeline_mode = #tpu.pipeline_mode<synchronous>, transform_indices = @transform_6, window_bounds = array<i64: 1, 128>}, {transform_indices = @transform_7, window_bounds = array<i64: 352, 128>}, {transform_indices = @transform_8, window_bounds = array<i64: 8, 128>}]} {
    %c352_i32 = arith.constant 352 : i32
    %0 = arith.muli %arg0, %c352_i32 : i32
    %c32_i32 = arith.constant 32 : i32
    %1 = arith.subi %0, %c32_i32 : i32
    %2 = tpu.iota {dimensions = array<i32: 0>} : vector<416x1xi32>
    %3 = vector.broadcast %1 : i32 to vector<416x1xi32>
    %4 = arith.addi %3, %2 : vector<416x1xi32>
    %5 = arith.sitofp %4 : vector<416x1xi32> to vector<416x1xf32>
    %cst = arith.constant 5.000000e-01 : f32
    %6 = vector.broadcast %cst : f32 to vector<416x1xf32>
    %7 = arith.addf %5, %6 : vector<416x1xf32>
    %cst_0 = arith.constant 0.055555556 : f32
    %8 = vector.broadcast %cst_0 : f32 to vector<416x1xf32>
    %9 = arith.mulf %7, %8 : vector<416x1xf32>
    %10 = math.floor %9 : vector<416x1xf32>
    %cst_1 = arith.constant 1.800000e+01 : f32
    %11 = vector.broadcast %cst_1 : f32 to vector<416x1xf32>
    %12 = arith.mulf %11, %10 : vector<416x1xf32>
    %13 = arith.subf %7, %12 : vector<416x1xf32>
    %cst_2 = arith.constant 0.00308641978 : f32
    %14 = vector.broadcast %cst_2 : f32 to vector<416x1xf32>
    %15 = arith.mulf %7, %14 : vector<416x1xf32>
    %16 = math.floor %15 : vector<416x1xf32>
    %cst_3 = arith.constant 3.240000e+02 : f32
    %17 = vector.broadcast %cst_3 : f32 to vector<416x1xf32>
    %18 = arith.mulf %17, %16 : vector<416x1xf32>
    %19 = arith.subf %7, %18 : vector<416x1xf32>
    %c0_i32 = arith.constant 0 : i32
    %20 = vector.broadcast %c0_i32 : i32 to vector<416x1xi32>
    %21 = arith.cmpi sge, %4, %20 : vector<416x1xi32>
    %c648_i32 = arith.constant 648 : i32
    %22 = vector.broadcast %c648_i32 : i32 to vector<416x1xi32>
    %23 = arith.cmpi slt, %4, %22 : vector<416x1xi32>
    %24 = arith.andi %21, %23 : vector<416x1xi1>
    %cst_4 = arith.constant 1.000000e+00 : f32
    %25 = vector.broadcast %cst_4 : f32 to vector<416x1xf32>
    %26 = arith.cmpf ogt, %13, %25 : vector<416x1xf32>
    %27 = arith.andi %24, %26 : vector<416x1xi1>
    %cst_5 = arith.constant 1.700000e+01 : f32
    %28 = vector.broadcast %cst_5 : f32 to vector<416x1xf32>
    %29 = arith.cmpf olt, %13, %28 : vector<416x1xf32>
    %30 = arith.andi %27, %29 : vector<416x1xi1>
    %cst_6 = arith.constant 1.800000e+01 : f32
    %31 = vector.broadcast %cst_6 : f32 to vector<416x1xf32>
    %32 = arith.cmpf ogt, %19, %31 : vector<416x1xf32>
    %33 = arith.andi %30, %32 : vector<416x1xi1>
    %cst_7 = arith.constant 3.060000e+02 : f32
    %34 = vector.broadcast %cst_7 : f32 to vector<416x1xf32>
    %35 = arith.cmpf olt, %19, %34 : vector<416x1xf32>
    %36 = arith.andi %33, %35 : vector<416x1xi1>
    %37 = arith.extui %36 : vector<416x1xi1> to vector<416x1xi32>
    %38 = arith.sitofp %37 : vector<416x1xi32> to vector<416x1xf32>
    %c0 = arith.constant 0 : index
    %c0_8 = arith.constant 0 : index
    %39 = vector.load %arg5[%c0, %c0_8] : memref<1x128xf32, #tpu.memory_space<vmem>>, vector<1x128xf32>
    %c0_9 = arith.constant 0 : index
    %c0_10 = arith.constant 0 : index
    %40 = vector.load %arg6[%c0_9, %c0_10] : memref<1x128xf32, #tpu.memory_space<vmem>>, vector<1x128xf32>
    %c0_11 = arith.constant 0 : index
    %c0_12 = arith.constant 0 : index
    %41 = vector.load %arg7[%c0_11, %c0_12] : memref<1x128xf32, #tpu.memory_space<vmem>>, vector<1x128xf32>
    %c0_13 = arith.constant 0 : index
    %c0_14 = arith.constant 0 : index
    %42 = vector.load %arg1[%c0_13, %c0_14] : memref<32x128xbf16, #tpu.memory_space<vmem>>, vector<32x128xbf16>
    %43 = arith.extf %42 : vector<32x128xbf16> to vector<32x128xf32>
    %44 = vector.broadcast %39 : vector<1x128xf32> to vector<32x128xf32>
    %45 = arith.mulf %43, %44 : vector<32x128xf32>
    %46 = vector.broadcast %40 : vector<1x128xf32> to vector<32x128xf32>
    %47 = arith.addf %45, %46 : vector<32x128xf32>
    %cst_15 = arith.constant 0.000000e+00 : f32
    %48 = vector.broadcast %cst_15 : f32 to vector<32x128xf32>
    %49 = arith.cmpf oge, %47, %48 : vector<32x128xf32>
    %50 = vector.broadcast %41 : vector<1x128xf32> to vector<32x128xf32>
    %51 = arith.mulf %50, %47 : vector<32x128xf32>
    %52 = arith.select %49, %47, %51 : vector<32x128xi1>, vector<32x128xf32>
    %53 = vector.extract_strided_slice %38 {offsets = [0, 0], sizes = [32, 1], strides = [1, 1]} : vector<416x1xf32> to vector<32x1xf32>
    %54 = vector.broadcast %53 : vector<32x1xf32> to vector<32x128xf32>
    %55 = arith.mulf %52, %54 : vector<32x128xf32>
    %56 = arith.truncf %55 : vector<32x128xf32> to vector<32x128xbf16>
    %c0_16 = arith.constant 0 : index
    %c0_17 = arith.constant 0 : index
    %57 = vector.load %arg10[%c0_16, %c0_17] : memref<416x128xbf16, #tpu.memory_space<vmem>>, vector<32x128xbf16>
    tpu.vector_store %arg10[%c0_16, %c0_17], %56 {strides = array<i32>} : memref<416x128xbf16, #tpu.memory_space<vmem>>, vector<32x128xbf16>,
    %c0_18 = arith.constant 0 : index
    %c0_19 = arith.constant 0 : index
    %58 = vector.load %arg2[%c0_18, %c0_19] : memref<352x128xbf16, #tpu.memory_space<vmem>>, vector<352x128xbf16>
    %59 = arith.extf %58 : vector<352x128xbf16> to vector<352x128xf32>
    %60 = vector.broadcast %39 : vector<1x128xf32> to vector<352x128xf32>
    %61 = arith.mulf %59, %60 : vector<352x128xf32>
    %62 = vector.broadcast %40 : vector<1x128xf32> to vector<352x128xf32>
    %63 = arith.addf %61, %62 : vector<352x128xf32>
    %cst_20 = arith.constant 0.000000e+00 : f32
    %64 = vector.broadcast %cst_20 : f32 to vector<352x128xf32>
    %65 = arith.cmpf oge, %63, %64 : vector<352x128xf32>
    %66 = vector.broadcast %41 : vector<1x128xf32> to vector<352x128xf32>
    %67 = arith.mulf %66, %63 : vector<352x128xf32>
    %68 = arith.select %65, %63, %67 : vector<352x128xi1>, vector<352x128xf32>
    %69 = vector.extract_strided_slice %38 {offsets = [32, 0], sizes = [352, 1], strides = [1, 1]} : vector<416x1xf32> to vector<352x1xf32>
    %70 = vector.broadcast %69 : vector<352x1xf32> to vector<352x128xf32>
    %71 = arith.mulf %68, %70 : vector<352x128xf32>
    %72 = arith.truncf %71 : vector<352x128xf32> to vector<352x128xbf16>
    %c32 = arith.constant 32 : index
    %c0_21 = arith.constant 0 : index
    %73 = vector.load %arg10[%c32, %c0_21] : memref<416x128xbf16, #tpu.memory_space<vmem>>, vector<352x128xbf16>
    tpu.vector_store %arg10[%c32, %c0_21], %72 {strides = array<i32>} : memref<416x128xbf16, #tpu.memory_space<vmem>>, vector<352x128xbf16>,
    %c0_22 = arith.constant 0 : index
    %c0_23 = arith.constant 0 : index
    %74 = vector.load %arg3[%c0_22, %c0_23] : memref<32x128xbf16, #tpu.memory_space<vmem>>, vector<32x128xbf16>
    %75 = arith.extf %74 : vector<32x128xbf16> to vector<32x128xf32>
    %76 = vector.broadcast %39 : vector<1x128xf32> to vector<32x128xf32>
    %77 = arith.mulf %75, %76 : vector<32x128xf32>
    %78 = vector.broadcast %40 : vector<1x128xf32> to vector<32x128xf32>
    %79 = arith.addf %77, %78 : vector<32x128xf32>
    %cst_24 = arith.constant 0.000000e+00 : f32
    %80 = vector.broadcast %cst_24 : f32 to vector<32x128xf32>
    %81 = arith.cmpf oge, %79, %80 : vector<32x128xf32>
    %82 = vector.broadcast %41 : vector<1x128xf32> to vector<32x128xf32>
    %83 = arith.mulf %82, %79 : vector<32x128xf32>
    %84 = arith.select %81, %79, %83 : vector<32x128xi1>, vector<32x128xf32>
    %85 = vector.extract_strided_slice %38 {offsets = [384, 0], sizes = [32, 1], strides = [1, 1]} : vector<416x1xf32> to vector<32x1xf32>
    %86 = vector.broadcast %85 : vector<32x1xf32> to vector<32x128xf32>
    %87 = arith.mulf %84, %86 : vector<32x128xf32>
    %88 = arith.truncf %87 : vector<32x128xf32> to vector<32x128xbf16>
    %c384 = arith.constant 384 : index
    %c0_25 = arith.constant 0 : index
    %89 = vector.load %arg10[%c384, %c0_25] : memref<416x128xbf16, #tpu.memory_space<vmem>>, vector<32x128xbf16>
    tpu.vector_store %arg10[%c384, %c0_25], %88 {strides = array<i32>} : memref<416x128xbf16, #tpu.memory_space<vmem>>, vector<32x128xbf16>,
    %c13 = arith.constant 13 : index
    %c0_26 = arith.constant 0 : index
    %90 = vector.load %arg10[%c13, %c0_26] : memref<416x128xbf16, #tpu.memory_space<vmem>>, vector<352x128xbf16>
    %c0_27 = arith.constant 0 : index
    %c0_28 = arith.constant 0 : index
    %91 = vector.load %arg11[%c0_27, %c0_28] : memref<352x1152xbf16, #tpu.memory_space<vmem>>, vector<352x128xbf16>
    tpu.vector_store %arg11[%c0_27, %c0_28], %90 {strides = array<i32>} : memref<352x1152xbf16, #tpu.memory_space<vmem>>, vector<352x128xbf16>,
    %c14 = arith.constant 14 : index
    %c0_29 = arith.constant 0 : index
    %92 = vector.load %arg10[%c14, %c0_29] : memref<416x128xbf16, #tpu.memory_space<vmem>>, vector<352x128xbf16>
    %c0_30 = arith.constant 0 : index
    %c128 = arith.constant 128 : index
    %93 = vector.load %arg11[%c0_30, %c128] : memref<352x1152xbf16, #tpu.memory_space<vmem>>, vector<352x128xbf16>
    tpu.vector_store %arg11[%c0_30, %c128], %92 {strides = array<i32>} : memref<352x1152xbf16, #tpu.memory_space<vmem>>, vector<352x128xbf16>,
    %c15 = arith.constant 15 : index
    %c0_31 = arith.constant 0 : index
    %94 = vector.load %arg10[%c15, %c0_31] : memref<416x128xbf16, #tpu.memory_space<vmem>>, vector<352x128xbf16>
    %c0_32 = arith.constant 0 : index
    %c256 = arith.constant 256 : index
    %95 = vector.load %arg11[%c0_32, %c256] : memref<352x1152xbf16, #tpu.memory_space<vmem>>, vector<352x128xbf16>
    tpu.vector_store %arg11[%c0_32, %c256], %94 {strides = array<i32>} : memref<352x1152xbf16, #tpu.memory_space<vmem>>, vector<352x128xbf16>,
    %c31 = arith.constant 31 : index
    %c0_33 = arith.constant 0 : index
    %96 = vector.load %arg10[%c31, %c0_33] : memref<416x128xbf16, #tpu.memory_space<vmem>>, vector<352x128xbf16>
    %c0_34 = arith.constant 0 : index
    %c384_35 = arith.constant 384 : index
    %97 = vector.load %arg11[%c0_34, %c384_35] : memref<352x1152xbf16, #tpu.memory_space<vmem>>, vector<352x128xbf16>
    tpu.vector_store %arg11[%c0_34, %c384_35], %96 {strides = array<i32>} : memref<352x1152xbf16, #tpu.memory_space<vmem>>, vector<352x128xbf16>,
    %c32_36 = arith.constant 32 : index
    %c0_37 = arith.constant 0 : index
    %98 = vector.load %arg10[%c32_36, %c0_37] : memref<416x128xbf16, #tpu.memory_space<vmem>>, vector<352x128xbf16>
    %c0_38 = arith.constant 0 : index
    %c512 = arith.constant 512 : index
    %99 = vector.load %arg11[%c0_38, %c512] : memref<352x1152xbf16, #tpu.memory_space<vmem>>, vector<352x128xbf16>
    tpu.vector_store %arg11[%c0_38, %c512], %98 {strides = array<i32>} : memref<352x1152xbf16, #tpu.memory_space<vmem>>, vector<352x128xbf16>,
    %c33 = arith.constant 33 : index
    %c0_39 = arith.constant 0 : index
    %100 = vector.load %arg10[%c33, %c0_39] : memref<416x128xbf16, #tpu.memory_space<vmem>>, vector<352x128xbf16>
    %c0_40 = arith.constant 0 : index
    %c640 = arith.constant 640 : index
    %101 = vector.load %arg11[%c0_40, %c640] : memref<352x1152xbf16, #tpu.memory_space<vmem>>, vector<352x128xbf16>
    tpu.vector_store %arg11[%c0_40, %c640], %100 {strides = array<i32>} : memref<352x1152xbf16, #tpu.memory_space<vmem>>, vector<352x128xbf16>,
    %c49 = arith.constant 49 : index
    %c0_41 = arith.constant 0 : index
    %102 = vector.load %arg10[%c49, %c0_41] : memref<416x128xbf16, #tpu.memory_space<vmem>>, vector<352x128xbf16>
    %c0_42 = arith.constant 0 : index
    %c768 = arith.constant 768 : index
    %103 = vector.load %arg11[%c0_42, %c768] : memref<352x1152xbf16, #tpu.memory_space<vmem>>, vector<352x128xbf16>
    tpu.vector_store %arg11[%c0_42, %c768], %102 {strides = array<i32>} : memref<352x1152xbf16, #tpu.memory_space<vmem>>, vector<352x128xbf16>,
    %c50 = arith.constant 50 : index
    %c0_43 = arith.constant 0 : index
    %104 = vector.load %arg10[%c50, %c0_43] : memref<416x128xbf16, #tpu.memory_space<vmem>>, vector<352x128xbf16>
    %c0_44 = arith.constant 0 : index
    %c896 = arith.constant 896 : index
    %105 = vector.load %arg11[%c0_44, %c896] : memref<352x1152xbf16, #tpu.memory_space<vmem>>, vector<352x128xbf16>
    tpu.vector_store %arg11[%c0_44, %c896], %104 {strides = array<i32>} : memref<352x1152xbf16, #tpu.memory_space<vmem>>, vector<352x128xbf16>,
    %c51 = arith.constant 51 : index
    %c0_45 = arith.constant 0 : index
    %106 = vector.load %arg10[%c51, %c0_45] : memref<416x128xbf16, #tpu.memory_space<vmem>>, vector<352x128xbf16>
    %c0_46 = arith.constant 0 : index
    %c1024 = arith.constant 1024 : index
    %107 = vector.load %arg11[%c0_46, %c1024] : memref<352x1152xbf16, #tpu.memory_space<vmem>>, vector<352x128xbf16>
    tpu.vector_store %arg11[%c0_46, %c1024], %106 {strides = array<i32>} : memref<352x1152xbf16, #tpu.memory_space<vmem>>, vector<352x128xbf16>,
    %c0_47 = arith.constant 0 : index
    %c0_48 = arith.constant 0 : index
    %108 = vector.load %arg11[%c0_47, %c0_48] : memref<352x1152xbf16, #tpu.memory_space<vmem>>, vector<352x1152xbf16>
    %c0_49 = arith.constant 0 : index
    %c0_50 = arith.constant 0 : index
    %109 = vector.load %arg4[%c0_49, %c0_50] : memref<1152x128xbf16, #tpu.memory_space<vmem>>, vector<1152x128xbf16>
    %cst_51 = arith.constant dense<0.000000e+00> : vector<352x128xf32>
    %110 = tpu.matmul %108, %109, %cst_51 {dimension_numbers = #tpu.dot_dimension_numbers<[1], [0], [0], [1], [0, 0, 1, 1], [], []>} : vector<352x1152xbf16>, vector<1152x128xbf16>, vector<352x128xf32> -> vector<352x128xf32>
    %111 = arith.truncf %110 : vector<352x128xf32> to vector<352x128xbf16>
    %c0_52 = arith.constant 0 : index
    %c0_53 = arith.constant 0 : index
    %112 = vector.load %arg8[%c0_52, %c0_53] : memref<352x128xbf16, #tpu.memory_space<vmem>>, vector<352x128xbf16>
    tpu.vector_store %arg8[%c0_52, %c0_53], %111 {strides = array<i32>} : memref<352x128xbf16, #tpu.memory_space<vmem>>, vector<352x128xbf16>,
    %113 = arith.extf %111 : vector<352x128xbf16> to vector<352x128xf32>
    %114 = vector.extract_strided_slice %38 {offsets = [32, 0], sizes = [352, 1], strides = [1, 1]} : vector<416x1xf32> to vector<352x1xf32>
    %115 = vector.broadcast %114 : vector<352x1xf32> to vector<352x128xf32>
    %116 = arith.mulf %113, %115 : vector<352x128xf32>
    %cst_54 = arith.constant 0.000000e+00 : f32
    %117 = vector.broadcast %cst_54 : f32 to vector<8x128xf32>
    %c0_55 = arith.constant 0 : index
    %c0_56 = arith.constant 0 : index
    %118 = vector.load %arg9[%c0_55, %c0_56] : memref<8x128xf32, #tpu.memory_space<vmem>>, vector<8x128xf32>
    tpu.vector_store %arg9[%c0_55, %c0_56], %117 {strides = array<i32>} : memref<8x128xf32, #tpu.memory_space<vmem>>, vector<8x128xf32>,
    %cst_57 = arith.constant dense<0.000000e+00> : vector<128xf32>
    %119 = vector.multi_reduction <add>, %116, %cst_57 [0] : vector<352x128xf32> to vector<128xf32>
    %120 = vector.shape_cast %119 : vector<128xf32> to vector<1x128xf32>
    %c0_58 = arith.constant 0 : index
    %c0_59 = arith.constant 0 : index
    %121 = vector.load %arg9[%c0_58, %c0_59] : memref<8x128xf32, #tpu.memory_space<vmem>>, vector<1x128xf32>
    tpu.vector_store %arg9[%c0_58, %c0_59], %120 {strides = array<i32>} : memref<8x128xf32, #tpu.memory_space<vmem>>, vector<1x128xf32>,
    %122 = arith.mulf %116, %113 : vector<352x128xf32>
    %cst_60 = arith.constant dense<0.000000e+00> : vector<128xf32>
    %123 = vector.multi_reduction <add>, %122, %cst_60 [0] : vector<352x128xf32> to vector<128xf32>
    %124 = vector.shape_cast %123 : vector<128xf32> to vector<1x128xf32>
    %c1 = arith.constant 1 : index
    %c0_61 = arith.constant 0 : index
    %125 = vector.load %arg9[%c1, %c0_61] : memref<8x128xf32, #tpu.memory_space<vmem>>, vector<1x128xf32>
    tpu.vector_store %arg9[%c1, %c0_61], %124 {strides = array<i32>} : memref<8x128xf32, #tpu.memory_space<vmem>>, vector<1x128xf32>,
    return
  }
  func.func @transform_0(%arg0: i32) -> (i32, i32) {
    %c11_i32 = arith.constant 11 : i32
    %0 = arith.muli %arg0, %c11_i32 : i32
    %c1_i32 = arith.constant 1 : i32
    %1 = arith.subi %0, %c1_i32 : i32
    %c0_i32 = arith.constant 0 : i32
    %2 = arith.maxsi %1, %c0_i32 : i32
    %c0_i32_0 = arith.constant 0 : i32
    %c0_i32_1 = arith.constant 0 : i32
    return %2, %c0_i32_0 : i32, i32
  }
  func.func @transform_1(%arg0: i32) -> (i32, i32) {
    %c0_i32 = arith.constant 0 : i32
    %c0_i32_0 = arith.constant 0 : i32
    return %arg0, %c0_i32 : i32, i32
  }
  func.func @transform_2(%arg0: i32) -> (i32, i32) {
    %c1_i32 = arith.constant 1 : i32
    %0 = arith.addi %arg0, %c1_i32 : i32
    %c11_i32 = arith.constant 11 : i32
    %1 = arith.muli %0, %c11_i32 : i32
    %c21_i32 = arith.constant 21 : i32
    %2 = arith.minsi %1, %c21_i32 : i32
    %c0_i32 = arith.constant 0 : i32
    %c0_i32_0 = arith.constant 0 : i32
    return %2, %c0_i32 : i32, i32
  }
  func.func @transform_3(%arg0: i32) -> (i32, i32) {
    %c0_i32 = arith.constant 0 : i32
    %c0_i32_0 = arith.constant 0 : i32
    %c0_i32_1 = arith.constant 0 : i32
    return %c0_i32, %c0_i32_0 : i32, i32
  }
  func.func @transform_4(%arg0: i32) -> (i32, i32) {
    %c0_i32 = arith.constant 0 : i32
    %c0_i32_0 = arith.constant 0 : i32
    %c0_i32_1 = arith.constant 0 : i32
    return %c0_i32, %c0_i32_0 : i32, i32
  }
  func.func @transform_5(%arg0: i32) -> (i32, i32) {
    %c0_i32 = arith.constant 0 : i32
    %c0_i32_0 = arith.constant 0 : i32
    %c0_i32_1 = arith.constant 0 : i32
    return %c0_i32, %c0_i32_0 : i32, i32
  }
  func.func @transform_6(%arg0: i32) -> (i32, i32) {
    %c0_i32 = arith.constant 0 : i32
    %c0_i32_0 = arith.constant 0 : i32
    %c0_i32_1 = arith.constant 0 : i32
    return %c0_i32, %c0_i32_0 : i32, i32
  }
  func.func @transform_7(%arg0: i32) -> (i32, i32) {
    %c0_i32 = arith.constant 0 : i32
    %c0_i32_0 = arith.constant 0 : i32
    return %arg0, %c0_i32 : i32, i32
  }
  func.func @transform_8(%arg0: i32) -> (i32, i32) {
    %c0_i32 = arith.constant 0 : i32
    %c0_i32_0 = arith.constant 0 : i32
    return %arg0, %c0_i32 : i32, i32
  }
}

module attributes {stable_mosaic.version = 11 : i64} {
  func.func @_bn_prelu_kernel(%arg0: i32, %arg1: memref<352x128xbf16, #tpu.memory_space<vmem>>, %arg2: memref<1x128xf32, #tpu.memory_space<vmem>>, %arg3: memref<1x128xf32, #tpu.memory_space<vmem>>, %arg4: memref<1x128xf32, #tpu.memory_space<vmem>>, %arg5: memref<352x128xbf16, #tpu.memory_space<vmem>>) attributes {dimension_semantics = [#tpu.dimension_semantics<parallel>], iteration_bounds = array<i64: 2>, scalar_prefetch = 0 : i64, scratch_operands = 0 : i64, tpu.core_type = #tpu.core_type<tc>, window_params = [{transform_indices = @transform_0, window_bounds = array<i64: 352, 128>}, {pipeline_mode = #tpu.pipeline_mode<synchronous>, transform_indices = @transform_1, window_bounds = array<i64: 1, 128>}, {pipeline_mode = #tpu.pipeline_mode<synchronous>, transform_indices = @transform_2, window_bounds = array<i64: 1, 128>}, {pipeline_mode = #tpu.pipeline_mode<synchronous>, transform_indices = @transform_3, window_bounds = array<i64: 1, 128>}, {transform_indices = @transform_4, window_bounds = array<i64: 352, 128>}]} {
    %c0 = arith.constant 0 : index
    %c0_0 = arith.constant 0 : index
    %0 = vector.load %arg1[%c0, %c0_0] : memref<352x128xbf16, #tpu.memory_space<vmem>>, vector<352x128xbf16>
    %1 = arith.extf %0 : vector<352x128xbf16> to vector<352x128xf32>
    %c0_1 = arith.constant 0 : index
    %c0_2 = arith.constant 0 : index
    %2 = vector.load %arg2[%c0_1, %c0_2] : memref<1x128xf32, #tpu.memory_space<vmem>>, vector<1x128xf32>
    %3 = vector.broadcast %2 : vector<1x128xf32> to vector<352x128xf32>
    %4 = arith.mulf %1, %3 : vector<352x128xf32>
    %c0_3 = arith.constant 0 : index
    %c0_4 = arith.constant 0 : index
    %5 = vector.load %arg3[%c0_3, %c0_4] : memref<1x128xf32, #tpu.memory_space<vmem>>, vector<1x128xf32>
    %6 = vector.broadcast %5 : vector<1x128xf32> to vector<352x128xf32>
    %7 = arith.addf %4, %6 : vector<352x128xf32>
    %cst = arith.constant 0.000000e+00 : f32
    %8 = vector.broadcast %cst : f32 to vector<352x128xf32>
    %9 = arith.cmpf oge, %7, %8 : vector<352x128xf32>
    %c0_5 = arith.constant 0 : index
    %c0_6 = arith.constant 0 : index
    %10 = vector.load %arg4[%c0_5, %c0_6] : memref<1x128xf32, #tpu.memory_space<vmem>>, vector<1x128xf32>
    %11 = vector.broadcast %10 : vector<1x128xf32> to vector<352x128xf32>
    %12 = arith.mulf %11, %7 : vector<352x128xf32>
    %13 = arith.select %9, %7, %12 : vector<352x128xi1>, vector<352x128xf32>
    %14 = arith.truncf %13 : vector<352x128xf32> to vector<352x128xbf16>
    %c0_7 = arith.constant 0 : index
    %c0_8 = arith.constant 0 : index
    %15 = vector.load %arg5[%c0_7, %c0_8] : memref<352x128xbf16, #tpu.memory_space<vmem>>, vector<352x128xbf16>
    tpu.vector_store %arg5[%c0_7, %c0_8], %14 {strides = array<i32>} : memref<352x128xbf16, #tpu.memory_space<vmem>>, vector<352x128xbf16>,
    return
  }
  func.func @transform_0(%arg0: i32) -> (i32, i32) {
    %c0_i32 = arith.constant 0 : i32
    %c0_i32_0 = arith.constant 0 : i32
    return %arg0, %c0_i32 : i32, i32
  }
  func.func @transform_1(%arg0: i32) -> (i32, i32) {
    %c0_i32 = arith.constant 0 : i32
    %c0_i32_0 = arith.constant 0 : i32
    %c0_i32_1 = arith.constant 0 : i32
    return %c0_i32, %c0_i32_0 : i32, i32
  }
  func.func @transform_2(%arg0: i32) -> (i32, i32) {
    %c0_i32 = arith.constant 0 : i32
    %c0_i32_0 = arith.constant 0 : i32
    %c0_i32_1 = arith.constant 0 : i32
    return %c0_i32, %c0_i32_0 : i32, i32
  }
  func.func @transform_3(%arg0: i32) -> (i32, i32) {
    %c0_i32 = arith.constant 0 : i32
    %c0_i32_0 = arith.constant 0 : i32
    %c0_i32_1 = arith.constant 0 : i32
    return %c0_i32, %c0_i32_0 : i32, i32
  }
  func.func @transform_4(%arg0: i32) -> (i32, i32) {
    %c0_i32 = arith.constant 0 : i32
    %c0_i32_0 = arith.constant 0 : i32
    return %arg0, %c0_i32 : i32, i32
  }
}

</mosaic_0001>

<llo_original>
// kernel: conv_block_nd_forward.5
$region0: #{conv_block_nd_forward.5}
  #allocation0 [shape = 'u32[]', space=smem, size = 0x4, offset = 0x4, fixed_abs, tag = 'smem constant byte address 0x4 - core index']
  #allocation1 [shape = 'u32[72,128]{1,0:T(1,128)}', space=vmem, size = 0x9000, scoped, tag = 'internal scratch']
  %s0 = inlined_call_operand.vmem [shape: bf16[704,128], index: 0, kind: input, shape index: {}, may-alias: {0,4}]
  %s1 = inlined_call_operand.vmem [shape: f32[1,128], index: 1, kind: input, shape index: {}]
  %s2 = inlined_call_operand.vmem [shape: f32[1,128], index: 2, kind: input, shape index: {}]
  %s3 = inlined_call_operand.vmem [shape: f32[1,128], index: 3, kind: input, shape index: {}]
  %s4 = inlined_call_operand.vmem [shape: bf16[704,128], index: 4, kind: output, shape index: {}, may-alias: {0,4}]
  %s5 = sld [smem:[#allocation0]]
  $region49: #{conv_block_nd_forward.5} parent=0
    _
  %s7 = ssub.s32 1, %s5
  %s8 = scalar_select 0, %s7, %s5
  loop: start=0, step=1, limit=4
  $region2: #{conv_block_nd_forward.5} parent=0 // loop_pre_header
    _
  $region3: #{conv_block_nd_forward.5} parent=0 // loop_header
    %s10 = sphi 0, %s14
    %p11 = scmp.ge.s32.totalorder %s10, 4
    %s20 = sphi 0, %s22
    %s23 = sphi 0, %s20
    %s24 = sphi 0, %s23
    %s40 = sphi 0, %s24
    %s44 = sphi 0, %s44
    %s46 = sphi 0, %s44
    %s47 = sphi 0, %s46
    %s61 = sphi 0, %s47
    %s65 = sphi 0, %s65
    %s67 = sphi 0, %s65
    %s68 = sphi 0, %s67
    %s82 = sphi 0, %s68
    %s86 = sphi 0, %s86
    %s88 = sphi 0, %s86
    %s89 = sphi 0, %s88
    %s103 = sphi 0, %s89
    %s109 = sphi 0, %s111
    %s112 = sphi 0, %s109
    %s113 = sphi 0, %s112
    %s129 = sphi 0, %s113
  $region4: #{conv_block_nd_forward.5} parent=0 // loop_header_branch
    %13 = sbr.rel (%p11) target = $region8
  $region5: #{conv_block_nd_forward.5} parent=0 // loop_body
    %s15 = ssub.s32 %s10, 1
    %s16 = ssub.s32 %s10, 2
    %s17 = sadd.s32 %s10, 1
    %s18 = ssub.s32 %s10, %s17
    %p19 = scmp.eq.s32.totalorder %s18, 0
    %s21 = sadd.s32 %s20, 1
    %s22 = scalar_select %p19, %s20, %s21
    %p25 = pneg %p19
    %p26 = scmp.eq.s32.totalorder %s10, 1
    %p27 = por %p25, %p26
    %p28 = scmp.ne.s32.totalorder %s20, %s23
    %p29 = scmp.eq.s32.totalorder %s10, 0
    %p30 = por %p28, %p29
    %p31 = scmp.ne.s32.totalorder %s20, %s23
    %p32 = scmp.eq.s32.totalorder %s15, 1
    %p33 = por %p31, %p32
    %p34 = scmp.ne.s32.totalorder %s23, %s24
    %p35 = scmp.eq.s32.totalorder %s15, 0
    %p36 = por %p34, %p35
    %p37 = scmp.ne.s32.totalorder %s23, %s24
    %p38 = scmp.eq.s32.totalorder %s16, 1
    %p39 = por %p37, %p38
    %p41 = scmp.ne.s32.totalorder %s24, %s40
    %p42 = scmp.eq.s32.totalorder %s16, 0
    %p43 = por %p41, %p42
    %s45 = sadd.s32 %s44, 1
    %p48 = scmp.eq.s32.totalorder %s10, 1
    %p49 = scmp.ne.s32.totalorder %s44, %s46
    %p50 = scmp.eq.s32.totalorder %s10, 0
    %p51 = por %p49, %p50
    %p52 = scmp.ne.s32.totalorder %s44, %s46
    %p53 = scmp.eq.s32.totalorder %s15, 1
    %p54 = por %p52, %p53
    %p55 = scmp.ne.s32.totalorder %s46, %s47
    %p56 = scmp.eq.s32.totalorder %s15, 0
    %p57 = por %p55, %p56
    %p58 = scmp.ne.s32.totalorder %s46, %s47
    %p59 = scmp.eq.s32.totalorder %s16, 1
    %p60 = por %p58, %p59
    %p62 = scmp.ne.s32.totalorder %s47, %s61
    %p63 = scmp.eq.s32.totalorder %s16, 0
    %p64 = por %p62, %p63
    %s66 = sadd.s32 %s65, 1
    %p69 = scmp.eq.s32.totalorder %s10, 1
    %p70 = scmp.ne.s32.totalorder %s65, %s67
    %p71 = scmp.eq.s32.totalorder %s10, 0
    %p72 = por %p70, %p71
    %p73 = scmp.ne.s32.totalorder %s65, %s67
    %p74 = scmp.eq.s32.totalorder %s15, 1
    %p75 = por %p73, %p74
    %p76 = scmp.ne.s32.totalorder %s67, %s68
    %p77 = scmp.eq.s32.totalorder %s15, 0
    %p78 = por %p76, %p77
    %p79 = scmp.ne.s32.totalorder %s67, %s68
    %p80 = scmp.eq.s32.totalorder %s16, 1
    %p81 = por %p79, %p80
    %p83 = scmp.ne.s32.totalorder %s68, %s82
    %p84 = scmp.eq.s32.totalorder %s16, 0
    %p85 = por %p83, %p84
    %s87 = sadd.s32 %s86, 1
    %p90 = scmp.eq.s32.totalorder %s10, 1
    %p91 = scmp.ne.s32.totalorder %s86, %s88
    %p92 = scmp.eq.s32.totalorder %s10, 0
    %p93 = por %p91, %p92
    %p94 = scmp.ne.s32.totalorder %s86, %s88
    %p95 = scmp.eq.s32.totalorder %s15, 1
    %p96 = por %p94, %p95
    %p97 = scmp.ne.s32.totalorder %s88, %s89
    %p98 = scmp.eq.s32.totalorder %s15, 0
    %p99 = por %p97, %p98
    %p100 = scmp.ne.s32.totalorder %s88, %s89
    %p101 = scmp.eq.s32.totalorder %s16, 1
    %p102 = por %p100, %p101
    %p104 = scmp.ne.s32.totalorder %s89, %s103
    %p105 = scmp.eq.s32.totalorder %s16, 0
    %p106 = por %p104, %p105
    %s107 = ssub.s32 %s10, %s17
    %p108 = scmp.eq.s32.totalorder %s107, 0
    %s110 = sadd.s32 %s109, 1
    %s111 = scalar_select %p108, %s109, %s110
    %p114 = pneg %p108
    %p115 = scmp.eq.s32.totalorder %s10, 1
    %p116 = por %p114, %p115
    %p117 = scmp.ne.s32.totalorder %s109, %s112
    %p118 = scmp.eq.s32.totalorder %s10, 0
    %p119 = por %p117, %p118
    %p120 = scmp.ne.s32.totalorder %s109, %s112
    %p121 = scmp.eq.s32.totalorder %s15, 1
    %p122 = por %p120, %p121
    %p123 = scmp.ne.s32.totalorder %s112, %s113
    %p124 = scmp.eq.s32.totalorder %s15, 0
    %p125 = por %p123, %p124
    %p126 = scmp.ne.s32.totalorder %s112, %s113
    %p127 = scmp.eq.s32.totalorder %s16, 1
    %p128 = por %p126, %p127
    %p130 = scmp.ne.s32.totalorder %s113, %s129
    %p131 = scmp.eq.s32.totalorder %s16, 0
    %p132 = por %p130, %p131
    %p133 = scmp.le.s32.totalorder 1, %s10
    %p134 = scmp.lt.s32.totalorder %s10, 3
    %p135 = pnand %p133, %p134
    %p136 = pneg %p135
    // Predicated region
    $region9: #{conv_block_nd_forward.5} parent=5 // pred_check
      _
    $region10: #{conv_block_nd_forward.5} parent=5 // pred_check_branch
      %138 = sbr.rel (%p135) target = $region12
    $region11: #{conv_block_nd_forward.5} parent=5 // pred_region
      %s139 = ssub.s32 %s10, 1
      // Predicated region
      $region13: #{conv_block_nd_forward.5} parent=11 // pred_check
        %p140 = pneg %p57
      $region14: #{conv_block_nd_forward.5} parent=11 // pred_check_branch
        %142 = sbr.rel (%p140) target = $region16
      $region15: #{conv_block_nd_forward.5} parent=11 // pred_region
        _
      $region16: #{conv_block_nd_forward.5} parent=11 // pred_fallthru
        _
      // Predicated region
      $region17: #{conv_block_nd_forward.5} parent=11 // pred_check
        %p143 = pneg %p78
      $region18: #{conv_block_nd_forward.5} parent=11 // pred_check_branch
        %145 = sbr.rel (%p143) target = $region20
      $region19: #{conv_block_nd_forward.5} parent=11 // pred_region
        _
      $region20: #{conv_block_nd_forward.5} parent=11 // pred_fallthru
        _
      // Predicated region
      $region21: #{conv_block_nd_forward.5} parent=11 // pred_check
        %p146 = pneg %p99
      $region22: #{conv_block_nd_forward.5} parent=11 // pred_check_branch
        %148 = sbr.rel (%p146) target = $region24
      $region23: #{conv_block_nd_forward.5} parent=11 // pred_region
        _
      $region24: #{conv_block_nd_forward.5} parent=11 // pred_fallthru
        _
    $region12: #{conv_block_nd_forward.5} parent=5 // pred_fallthru
      _
    %p149 = scmp.lt.s32.totalorder %s10, 2
    // Predicated region
    $region25: #{conv_block_nd_forward.5} parent=5 // pred_check
      %p150 = pneg %p149
    $region26: #{conv_block_nd_forward.5} parent=5 // pred_check_branch
      %152 = sbr.rel (%p150) target = $region28
    $region27: #{conv_block_nd_forward.5} parent=5 // pred_region
      // Predicated region
      $region29: #{conv_block_nd_forward.5} parent=27 // pred_check
        %p153 = pneg %p30
      $region30: #{conv_block_nd_forward.5} parent=27 // pred_check_branch
        %155 = sbr.rel (%p153) target = $region32
      $region31: #{conv_block_nd_forward.5} parent=27 // pred_region
        %s156 = smul.u32 44, %s10
        %p157 = scmp.lt.s32.totalorder %s156, 87
        %s158 = scalar_select %p157, %s156, 87
        %s159 = smul.addr %s158, 4
        %s160 = scalar_lea.vmem %s0, %s159
        %s161 = smul.u32 44, %s10
      $region32: #{conv_block_nd_forward.5} parent=27 // pred_fallthru
        _
    $region28: #{conv_block_nd_forward.5} parent=5 // pred_fallthru
      _
    %p162 = scmp.le.s32.totalorder 1, %s10
    %p163 = scmp.lt.s32.totalorder %s10, 3
    %p164 = pnand %p162, %p163
    %p165 = pneg %p164
    // Predicated region
    $region33: #{conv_block_nd_forward.5} parent=5 // pred_check
      _
    $region34: #{conv_block_nd_forward.5} parent=5 // pred_check_branch
      %167 = sbr.rel (%p164) target = $region36
    $region35: #{conv_block_nd_forward.5} parent=5 // pred_region
      %s168 = ssub.s32 %s10, 1
      %s169 = smul.u32 44, %s15
      %p170 = scmp.lt.s32.totalorder %s169, 87
      %s171 = scalar_select %p170, %s169, 87
      %s172 = smul.addr %s171, 4
      %s173 = scalar_lea.vmem %s0, %s172
      %p174 = pneg %p36
      %p175 = pneg %p33
      %p176 = pneg %p57
      %p177 = pneg %p54
      %p178 = pneg %p78
      %p179 = pneg %p75
      %p180 = pneg %p99
      %p181 = pneg %p96
      %p182 = pneg %p125
      %p183 = pneg %p122
      %s184 = smul.u32 44, %s15
      %p185 = scmp.lt.s32.totalorder %s184, 87
      %s186 = scalar_select %p185, %s184, 87
      %s187 = smul.addr %s186, 4
      %s188 = scalar_lea.vmem %s4, %s187
      %s189 = smul.u32 44, %s15
      %p190 = scmp.lt.s32.totalorder %s189, 87
      %s191 = scalar_select %p190, %s189, 87
      %s192 = smul.addr %s191, 4
      %s193 = scalar_lea.vmem %s0, %s192
      %s194 = smul.u32 44, %s15
      %s195 = smul.u32 44, %s15
      %p196 = scmp.lt.s32.totalorder %s195, 87
      %s197 = scalar_select %p196, %s195, 87
      %s198 = smul.addr %s197, 4
      %s199 = scalar_lea.vmem %s4, %s198
      %s200 = smul.u32 44, %s15
      %v201 = vld [vmem:[%s193] sm:$0xf]
      %v202 = vld [vmem:[%s193 + $0x4] sm:$0xf]
      %v203 = vld [vmem:[%s193 + $0x8] sm:$0xf]
      %v204 = vld [vmem:[%s193 + $0xc] sm:$0xf]
      %v205 = vld [vmem:[%s193 + $0x10] sm:$0xf]
      %v206 = vld [vmem:[%s193 + $0x14] sm:$0xf]
      %v207 = vld [vmem:[%s193 + $0x18] sm:$0xf]
      %v208 = vld [vmem:[%s193 + $0x1c] sm:$0xf]
      %v209 = vld [vmem:[%s193 + $0x20] sm:$0xf]
      %v210 = vld [vmem:[%s193 + $0x24] sm:$0xf]
      %v211 = vld [vmem:[%s193 + $0x28] sm:$0xf]
      %v212 = vld [vmem:[%s193 + $0x2c] sm:$0xf]
      %v213 = vld [vmem:[%s193 + $0x30] sm:$0xf]
      %v214 = vld [vmem:[%s193 + $0x34] sm:$0xf]
      %v215 = vld [vmem:[%s193 + $0x38] sm:$0xf]
      %v216 = vld [vmem:[%s193 + $0x3c] sm:$0xf]
      %v217 = vld [vmem:[%s193 + $0x40] sm:$0xf]
      %v218 = vld [vmem:[%s193 + $0x44] sm:$0xf]
      %v219 = vld [vmem:[%s193 + $0x48] sm:$0xf]
      %v220 = vld [vmem:[%s193 + $0x4c] sm:$0xf]
      %v221 = vld [vmem:[%s193 + $0x50] sm:$0xf]
      %v222 = vld [vmem:[%s193 + $0x54] sm:$0xf]
      %v223 = vld [vmem:[%s193 + $0x58] sm:$0xf]
      %v224 = vld [vmem:[%s193 + $0x5c] sm:$0xf]
      %v225 = vld [vmem:[%s193 + $0x60] sm:$0xf]
      %v226 = vld [vmem:[%s193 + $0x64] sm:$0xf]
      %v227 = vld [vmem:[%s193 + $0x68] sm:$0xf]
      %v228 = vld [vmem:[%s193 + $0x6c] sm:$0xf]
      %v229 = vld [vmem:[%s193 + $0x70] sm:$0xf]
      %v230 = vld [vmem:[%s193 + $0x74] sm:$0xf]
      %v231 = vld [vmem:[%s193 + $0x78] sm:$0xf]
      %v232 = vld [vmem:[%s193 + $0x7c] sm:$0xf]
      %v233 = vld [vmem:[%s193 + $0x80] sm:$0xf]
      %v234 = vld [vmem:[%s193 + $0x84] sm:$0xf]
      %v235 = vld [vmem:[%s193 + $0x88] sm:$0xf]
      %v236 = vld [vmem:[%s193 + $0x8c] sm:$0xf]
      %v237 = vld [vmem:[%s193 + $0x90] sm:$0xf]
      %v238 = vld [vmem:[%s193 + $0x94] sm:$0xf]
      %v239 = vld [vmem:[%s193 + $0x98] sm:$0xf]
      %v240 = vld [vmem:[%s193 + $0x9c] sm:$0xf]
      %v241 = vld [vmem:[%s193 + $0xa0] sm:$0xf]
      %v242 = vld [vmem:[%s193 + $0xa4] sm:$0xf]
      %v243 = vld [vmem:[%s193 + $0xa8] sm:$0xf]
      %v244 = vld [vmem:[%s193 + $0xac] sm:$0xf]
      %v245 = vunpack.c.l.bf16 %v201
      %v246 = vunpack.c.l.bf16 %v202
      %v247 = vunpack.c.l.bf16 %v203
      %v248 = vunpack.c.l.bf16 %v204
      %v249 = vunpack.c.l.bf16 %v205
      %v250 = vunpack.c.l.bf16 %v206
      %v251 = vunpack.c.l.bf16 %v207
      %v252 = vunpack.c.l.bf16 %v208
      %v253 = vunpack.c.l.bf16 %v209
      %v254 = vunpack.c.l.bf16 %v210
      %v255 = vunpack.c.l.bf16 %v211
      %v256 = vunpack.c.l.bf16 %v212
      %v257 = vunpack.c.l.bf16 %v213
      %v258 = vunpack.c.l.bf16 %v214
      %v259 = vunpack.c.l.bf16 %v215
      %v260 = vunpack.c.l.bf16 %v216
      %v261 = vunpack.c.l.bf16 %v217
      %v262 = vunpack.c.l.bf16 %v218
      %v263 = vunpack.c.l.bf16 %v219
      %v264 = vunpack.c.l.bf16 %v220
      %v265 = vunpack.c.l.bf16 %v221
      %v266 = vunpack.c.l.bf16 %v222
      %v267 = vunpack.c.l.bf16 %v223
      %v268 = vunpack.c.l.bf16 %v224
      %v269 = vunpack.c.l.bf16 %v225
      %v270 = vunpack.c.l.bf16 %v226
      %v271 = vunpack.c.l.bf16 %v227
      %v272 = vunpack.c.l.bf16 %v228
      %v273 = vunpack.c.l.bf16 %v229
      %v274 = vunpack.c.l.bf16 %v230
      %v275 = vunpack.c.l.bf16 %v231
      %v276 = vunpack.c.l.bf16 %v232
      %v277 = vunpack.c.l.bf16 %v233
      %v278 = vunpack.c.l.bf16 %v234
      %v279 = vunpack.c.l.bf16 %v235
      %v280 = vunpack.c.l.bf16 %v236
      %v281 = vunpack.c.l.bf16 %v237
      %v282 = vunpack.c.l.bf16 %v238
      %v283 = vunpack.c.l.bf16 %v239
      %v284 = vunpack.c.l.bf16 %v240
      %v285 = vunpack.c.l.bf16 %v241
      %v286 = vunpack.c.l.bf16 %v242
      %v287 = vunpack.c.l.bf16 %v243
      %v288 = vunpack.c.l.bf16 %v244
      %v289 = vld [vmem:[%s1] sm:$0x1]
      %v291 = vperm.slane %v289, 0
      %v293 = vmul.f32 %v245, %v291
      %v294 = vmul.f32 %v246, %v291
      %v295 = vmul.f32 %v247, %v291
      %v296 = vmul.f32 %v248, %v291
      %v297 = vmul.f32 %v249, %v291
      %v298 = vmul.f32 %v250, %v291
      %v299 = vmul.f32 %v251, %v291
      %v300 = vmul.f32 %v252, %v291
      %v301 = vmul.f32 %v253, %v291
      %v302 = vmul.f32 %v254, %v291
      %v303 = vmul.f32 %v255, %v291
      %v304 = vmul.f32 %v256, %v291
      %v305 = vmul.f32 %v257, %v291
      %v306 = vmul.f32 %v258, %v291
      %v307 = vmul.f32 %v259, %v291
      %v308 = vmul.f32 %v260, %v291
      %v309 = vmul.f32 %v261, %v291
      %v310 = vmul.f32 %v262, %v291
      %v311 = vmul.f32 %v263, %v291
      %v312 = vmul.f32 %v264, %v291
      %v313 = vmul.f32 %v265, %v291
      %v314 = vmul.f32 %v266, %v291
      %v315 = vmul.f32 %v267, %v291
      %v316 = vmul.f32 %v268, %v291
      %v317 = vmul.f32 %v269, %v291
      %v318 = vmul.f32 %v270, %v291
      %v319 = vmul.f32 %v271, %v291
      %v320 = vmul.f32 %v272, %v291
      %v321 = vmul.f32 %v273, %v291
      %v322 = vmul.f32 %v274, %v291
      %v323 = vmul.f32 %v275, %v291
      %v324 = vmul.f32 %v276, %v291
      %v325 = vmul.f32 %v277, %v291
      %v326 = vmul.f32 %v278, %v291
      %v327 = vmul.f32 %v279, %v291
      %v328 = vmul.f32 %v280, %v291
      %v329 = vmul.f32 %v281, %v291
      %v330 = vmul.f32 %v282, %v291
      %v331 = vmul.f32 %v283, %v291
      %v332 = vmul.f32 %v284, %v291
      %v333 = vmul.f32 %v285, %v291
      %v334 = vmul.f32 %v286, %v291
      %v335 = vmul.f32 %v287, %v291
      %v336 = vmul.f32 %v288, %v291
      %v337 = vld [vmem:[%s2] sm:$0x1]
      %v339 = vperm.slane %v337, 0
      %v341 = vadd.f32 %v293, %v339
      %v342 = vadd.f32 %v294, %v339
      %v343 = vadd.f32 %v295, %v339
      %v344 = vadd.f32 %v296, %v339
      %v345 = vadd.f32 %v297, %v339
      %v346 = vadd.f32 %v298, %v339
      %v347 = vadd.f32 %v299, %v339
      %v348 = vadd.f32 %v300, %v339
      %v349 = vadd.f32 %v301, %v339
      %v350 = vadd.f32 %v302, %v339
      %v351 = vadd.f32 %v303, %v339
      %v352 = vadd.f32 %v304, %v339
      %v353 = vadd.f32 %v305, %v339
      %v354 = vadd.f32 %v306, %v339
      %v355 = vadd.f32 %v307, %v339
      %v356 = vadd.f32 %v308, %v339
      %v357 = vadd.f32 %v309, %v339
      %v358 = vadd.f32 %v310, %v339
      %v359 = vadd.f32 %v311, %v339
      %v360 = vadd.f32 %v312, %v339
      %v361 = vadd.f32 %v313, %v339
      %v362 = vadd.f32 %v314, %v339
      %v363 = vadd.f32 %v315, %v339
      %v364 = vadd.f32 %v316, %v339
      %v365 = vadd.f32 %v317, %v339
      %v366 = vadd.f32 %v318, %v339
      %v367 = vadd.f32 %v319, %v339
      %v368 = vadd.f32 %v320, %v339
      %v369 = vadd.f32 %v321, %v339
      %v370 = vadd.f32 %v322, %v339
      %v371 = vadd.f32 %v323, %v339
      %v372 = vadd.f32 %v324, %v339
      %v373 = vadd.f32 %v325, %v339
      %v374 = vadd.f32 %v326, %v339
      %v375 = vadd.f32 %v327, %v339
      %v376 = vadd.f32 %v328, %v339
      %v377 = vadd.f32 %v329, %v339
      %v378 = vadd.f32 %v330, %v339
      %v379 = vadd.f32 %v331, %v339
      %v380 = vadd.f32 %v332, %v339
      %v381 = vadd.f32 %v333, %v339
      %v382 = vadd.f32 %v334, %v339
      %v383 = vadd.f32 %v335, %v339
      %v384 = vadd.f32 %v336, %v339
      %vm385 = vcmp.ge.f32.partialorder %v341, 0.0
      %vm386 = vcmp.ge.f32.partialorder %v342, 0.0
      %vm387 = vcmp.ge.f32.partialorder %v343, 0.0
      %vm388 = vcmp.ge.f32.partialorder %v344, 0.0
      %vm389 = vcmp.ge.f32.partialorder %v345, 0.0
      %vm390 = vcmp.ge.f32.partialorder %v346, 0.0
      %vm391 = vcmp.ge.f32.partialorder %v347, 0.0
      %vm392 = vcmp.ge.f32.partialorder %v348, 0.0
      %vm393 = vcmp.ge.f32.partialorder %v349, 0.0
      %vm394 = vcmp.ge.f32.partialorder %v350, 0.0
      %vm395 = vcmp.ge.f32.partialorder %v351, 0.0
      %vm396 = vcmp.ge.f32.partialorder %v352, 0.0
      %vm397 = vcmp.ge.f32.partialorder %v353, 0.0
      %vm398 = vcmp.ge.f32.partialorder %v354, 0.0
      %vm399 = vcmp.ge.f32.partialorder %v355, 0.0
      %vm400 = vcmp.ge.f32.partialorder %v356, 0.0
      %vm401 = vcmp.ge.f32.partialorder %v357, 0.0
      %vm402 = vcmp.ge.f32.partialorder %v358, 0.0
      %vm403 = vcmp.ge.f32.partialorder %v359, 0.0
      %vm404 = vcmp.ge.f32.partialorder %v360, 0.0
      %vm405 = vcmp.ge.f32.partialorder %v361, 0.0
      %vm406 = vcmp.ge.f32.partialorder %v362, 0.0
      %vm407 = vcmp.ge.f32.partialorder %v363, 0.0
      %vm408 = vcmp.ge.f32.partialorder %v364, 0.0
      %vm409 = vcmp.ge.f32.partialorder %v365, 0.0
      %vm410 = vcmp.ge.f32.partialorder %v366, 0.0
      %vm411 = vcmp.ge.f32.partialorder %v367, 0.0
      %vm412 = vcmp.ge.f32.partialorder %v368, 0.0
      %vm413 = vcmp.ge.f32.partialorder %v369, 0.0
      %vm414 = vcmp.ge.f32.partialorder %v370, 0.0
      %vm415 = vcmp.ge.f32.partialorder %v371, 0.0
      %vm416 = vcmp.ge.f32.partialorder %v372, 0.0
      %vm417 = vcmp.ge.f32.partialorder %v373, 0.0
      %vm418 = vcmp.ge.f32.partialorder %v374, 0.0
      %vm419 = vcmp.ge.f32.partialorder %v375, 0.0
      %vm420 = vcmp.ge.f32.partialorder %v376, 0.0
      %vm421 = vcmp.ge.f32.partialorder %v377, 0.0
      %vm422 = vcmp.ge.f32.partialorder %v378, 0.0
      %vm423 = vcmp.ge.f32.partialorder %v379, 0.0
      %vm424 = vcmp.ge.f32.partialorder %v380, 0.0
      %vm425 = vcmp.ge.f32.partialorder %v381, 0.0
      %vm426 = vcmp.ge.f32.partialorder %v382, 0.0
      %vm427 = vcmp.ge.f32.partialorder %v383, 0.0
      %vm428 = vcmp.ge.f32.partialorder %v384, 0.0
      %v429 = vld [vmem:[%s3] sm:$0x1]
      %v431 = vperm.slane %v429, 0
      %v433 = vmul.f32 %v431, %v341
      %v434 = vmul.f32 %v431, %v342
      %v435 = vmul.f32 %v431, %v343
      %v436 = vmul.f32 %v431, %v344
      %v437 = vmul.f32 %v431, %v345
      %v438 = vmul.f32 %v431, %v346
      %v439 = vmul.f32 %v431, %v347
      %v440 = vmul.f32 %v431, %v348
      %v441 = vmul.f32 %v431, %v349
      %v442 = vmul.f32 %v431, %v350
      %v443 = vmul.f32 %v431, %v351
      %v444 = vmul.f32 %v431, %v352
      %v445 = vmul.f32 %v431, %v353
      %v446 = vmul.f32 %v431, %v354
      %v447 = vmul.f32 %v431, %v355
      %v448 = vmul.f32 %v431, %v356
      %v449 = vmul.f32 %v431, %v357
      %v450 = vmul.f32 %v431, %v358
      %v451 = vmul.f32 %v431, %v359
      %v452 = vmul.f32 %v431, %v360
      %v453 = vmul.f32 %v431, %v361
      %v454 = vmul.f32 %v431, %v362
      %v455 = vmul.f32 %v431, %v363
      %v456 = vmul.f32 %v431, %v364
      %v457 = vmul.f32 %v431, %v365
      %v458 = vmul.f32 %v431, %v366
      %v459 = vmul.f32 %v431, %v367
      %v460 = vmul.f32 %v431, %v368
      %v461 = vmul.f32 %v431, %v369
      %v462 = vmul.f32 %v431, %v370
      %v463 = vmul.f32 %v431, %v371
      %v464 = vmul.f32 %v431, %v372
      %v465 = vmul.f32 %v431, %v373
      %v466 = vmul.f32 %v431, %v374
      %v467 = vmul.f32 %v431, %v375
      %v468 = vmul.f32 %v431, %v376
      %v469 = vmul.f32 %v431, %v377
      %v470 = vmul.f32 %v431, %v378
      %v471 = vmul.f32 %v431, %v379
      %v472 = vmul.f32 %v431, %v380
      %v473 = vmul.f32 %v431, %v381
      %v474 = vmul.f32 %v431, %v382
      %v475 = vmul.f32 %v431, %v383
      %v476 = vmul.f32 %v431, %v384
      %v477 = vsel %vm385, %v341, %v433
      %v478 = vsel %vm386, %v342, %v434
      %v479 = vsel %vm387, %v343, %v435
      %v480 = vsel %vm388, %v344, %v436
      %v481 = vsel %vm389, %v345, %v437
      %v482 = vsel %vm390, %v346, %v438
      %v483 = vsel %vm391, %v347, %v439
      %v484 = vsel %vm392, %v348, %v440
      %v485 = vsel %vm393, %v349, %v441
      %v486 = vsel %vm394, %v350, %v442
      %v487 = vsel %vm395, %v351, %v443
      %v488 = vsel %vm396, %v352, %v444
      %v489 = vsel %vm397, %v353, %v445
      %v490 = vsel %vm398, %v354, %v446
      %v491 = vsel %vm399, %v355, %v447
      %v492 = vsel %vm400, %v356, %v448
      %v493 = vsel %vm401, %v357, %v449
      %v494 = vsel %vm402, %v358, %v450
      %v495 = vsel %vm403, %v359, %v451
      %v496 = vsel %vm404, %v360, %v452
      %v497 = vsel %vm405, %v361, %v453
      %v498 = vsel %vm406, %v362, %v454
      %v499 = vsel %vm407, %v363, %v455
      %v500 = vsel %vm408, %v364, %v456
      %v501 = vsel %vm409, %v365, %v457
      %v502 = vsel %vm410, %v366, %v458
      %v503 = vsel %vm411, %v367, %v459
      %v504 = vsel %vm412, %v368, %v460
      %v505 = vsel %vm413, %v369, %v461
      %v506 = vsel %vm414, %v370, %v462
      %v507 = vsel %vm415, %v371, %v463
      %v508 = vsel %vm416, %v372, %v464
      %v509 = vsel %vm417, %v373, %v465
      %v510 = vsel %vm418, %v374, %v466
      %v511 = vsel %vm419, %v375, %v467
      %v512 = vsel %vm420, %v376, %v468
      %v513 = vsel %vm421, %v377, %v469
      %v514 = vsel %vm422, %v378, %v470
      %v515 = vsel %vm423, %v379, %v471
      %v516 = vsel %vm424, %v380, %v472
      %v517 = vsel %vm425, %v381, %v473
      %v518 = vsel %vm426, %v382, %v474
      %v519 = vsel %vm427, %v383, %v475
      %v520 = vsel %vm428, %v384, %v476
      %v521 = vpack.c.bf16 %v477, %v477
      %v522 = vpack.c.bf16 %v478, %v478
      %v523 = vpack.c.bf16 %v479, %v479
      %v524 = vpack.c.bf16 %v480, %v480
      %v525 = vpack.c.bf16 %v481, %v481
      %v526 = vpack.c.bf16 %v482, %v482
      %v527 = vpack.c.bf16 %v483, %v483
      %v528 = vpack.c.bf16 %v484, %v484
      %v529 = vpack.c.bf16 %v485, %v485
      %v530 = vpack.c.bf16 %v486, %v486
      %v531 = vpack.c.bf16 %v487, %v487
      %v532 = vpack.c.bf16 %v488, %v488
      %v533 = vpack.c.bf16 %v489, %v489
      %v534 = vpack.c.bf16 %v490, %v490
      %v535 = vpack.c.bf16 %v491, %v491
      %v536 = vpack.c.bf16 %v492, %v492
      %v537 = vpack.c.bf16 %v493, %v493
      %v538 = vpack.c.bf16 %v494, %v494
      %v539 = vpack.c.bf16 %v495, %v495
      %v540 = vpack.c.bf16 %v496, %v496
      %v541 = vpack.c.bf16 %v497, %v497
      %v542 = vpack.c.bf16 %v498, %v498
      %v543 = vpack.c.bf16 %v499, %v499
      %v544 = vpack.c.bf16 %v500, %v500
      %v545 = vpack.c.bf16 %v501, %v501
      %v546 = vpack.c.bf16 %v502, %v502
      %v547 = vpack.c.bf16 %v503, %v503
      %v548 = vpack.c.bf16 %v504, %v504
      %v549 = vpack.c.bf16 %v505, %v505
      %v550 = vpack.c.bf16 %v506, %v506
      %v551 = vpack.c.bf16 %v507, %v507
      %v552 = vpack.c.bf16 %v508, %v508
      %v553 = vpack.c.bf16 %v509, %v509
      %v554 = vpack.c.bf16 %v510, %v510
      %v555 = vpack.c.bf16 %v511, %v511
      %v556 = vpack.c.bf16 %v512, %v512
      %v557 = vpack.c.bf16 %v513, %v513
      %v558 = vpack.c.bf16 %v514, %v514
      %v559 = vpack.c.bf16 %v515, %v515
      %v560 = vpack.c.bf16 %v516, %v516
      %v561 = vpack.c.bf16 %v517, %v517
      %v562 = vpack.c.bf16 %v518, %v518
      %v563 = vpack.c.bf16 %v519, %v519
      %v564 = vpack.c.bf16 %v520, %v520
      %565 = vst [vmem:[%s199] sm:$0xf] %v521
      %566 = vst [vmem:[%s199 + $0x4] sm:$0xf] %v522
      %567 = vst [vmem:[%s199 + $0x8] sm:$0xf] %v523
      %568 = vst [vmem:[%s199 + $0xc] sm:$0xf] %v524
      %569 = vst [vmem:[%s199 + $0x10] sm:$0xf] %v525
      %570 = vst [vmem:[%s199 + $0x14] sm:$0xf] %v526
      %571 = vst [vmem:[%s199 + $0x18] sm:$0xf] %v527
      %572 = vst [vmem:[%s199 + $0x1c] sm:$0xf] %v528
      %573 = vst [vmem:[%s199 + $0x20] sm:$0xf] %v529
      %574 = vst [vmem:[%s199 + $0x24] sm:$0xf] %v530
      %575 = vst [vmem:[%s199 + $0x28] sm:$0xf] %v531
      %576 = vst [vmem:[%s199 + $0x2c] sm:$0xf] %v532
      %577 = vst [vmem:[%s199 + $0x30] sm:$0xf] %v533
      %578 = vst [vmem:[%s199 + $0x34] sm:$0xf] %v534
      %579 = vst [vmem:[%s199 + $0x38] sm:$0xf] %v535
      %580 = vst [vmem:[%s199 + $0x3c] sm:$0xf] %v536
      %581 = vst [vmem:[%s199 + $0x40] sm:$0xf] %v537
      %582 = vst [vmem:[%s199 + $0x44] sm:$0xf] %v538
      %583 = vst [vmem:[%s199 + $0x48] sm:$0xf] %v539
      %584 = vst [vmem:[%s199 + $0x4c] sm:$0xf] %v540
      %585 = vst [vmem:[%s199 + $0x50] sm:$0xf] %v541
      %586 = vst [vmem:[%s199 + $0x54] sm:$0xf] %v542
      %587 = vst [vmem:[%s199 + $0x58] sm:$0xf] %v543
      %588 = vst [vmem:[%s199 + $0x5c] sm:$0xf] %v544
      %589 = vst [vmem:[%s199 + $0x60] sm:$0xf] %v545
      %590 = vst [vmem:[%s199 + $0x64] sm:$0xf] %v546
      %591 = vst [vmem:[%s199 + $0x68] sm:$0xf] %v547
      %592 = vst [vmem:[%s199 + $0x6c] sm:$0xf] %v548
      %593 = vst [vmem:[%s199 + $0x70] sm:$0xf] %v549
      %594 = vst [vmem:[%s199 + $0x74] sm:$0xf] %v550
      %595 = vst [vmem:[%s199 + $0x78] sm:$0xf] %v551
      %596 = vst [vmem:[%s199 + $0x7c] sm:$0xf] %v552
      %597 = vst [vmem:[%s199 + $0x80] sm:$0xf] %v553
      %598 = vst [vmem:[%s199 + $0x84] sm:$0xf] %v554
      %599 = vst [vmem:[%s199 + $0x88] sm:$0xf] %v555
      %600 = vst [vmem:[%s199 + $0x8c] sm:$0xf] %v556
      %601 = vst [vmem:[%s199 + $0x90] sm:$0xf] %v557
      %602 = vst [vmem:[%s199 + $0x94] sm:$0xf] %v558
      %603 = vst [vmem:[%s199 + $0x98] sm:$0xf] %v559
      %604 = vst [vmem:[%s199 + $0x9c] sm:$0xf] %v560
      %605 = vst [vmem:[%s199 + $0xa0] sm:$0xf] %v561
      %606 = vst [vmem:[%s199 + $0xa4] sm:$0xf] %v562
      %607 = vst [vmem:[%s199 + $0xa8] sm:$0xf] %v563
      %608 = vst [vmem:[%s199 + $0xac] sm:$0xf] %v564
      %s609 = smul.u32 44, %s15
      %p610 = scmp.lt.s32.totalorder %s609, 87
      %s611 = scalar_select %p610, %s609, 87
      %s612 = smul.addr %s611, 4
      %s613 = scalar_lea.vmem %s4, %s612
      // Predicated region
      $region37: #{conv_block_nd_forward.5} parent=35 // pred_check
        %p614 = pneg %p122
      $region38: #{conv_block_nd_forward.5} parent=35 // pred_check_branch
        %616 = sbr.rel (%p614) target = $region40
      $region39: #{conv_block_nd_forward.5} parent=35 // pred_region
        %s617 = smul.u32 44, %s15
      $region40: #{conv_block_nd_forward.5} parent=35 // pred_fallthru
        _
    $region36: #{conv_block_nd_forward.5} parent=5 // pred_fallthru
      _
    %p618 = scmp.le.s32.totalorder 2, %s10
    // Predicated region
    $region41: #{conv_block_nd_forward.5} parent=5 // pred_check
      %p619 = pneg %p618
    $region42: #{conv_block_nd_forward.5} parent=5 // pred_check_branch
      %621 = sbr.rel (%p619) target = $region44
    $region43: #{conv_block_nd_forward.5} parent=5 // pred_region
      %s622 = ssub.s32 %s10, 2
      // Predicated region
      $region45: #{conv_block_nd_forward.5} parent=43 // pred_check
        %p623 = pneg %p128
      $region46: #{conv_block_nd_forward.5} parent=43 // pred_check_branch
        %625 = sbr.rel (%p623) target = $region48
      $region47: #{conv_block_nd_forward.5} parent=43 // pred_region
        %s626 = smul.u32 44, %s16
        %p627 = scmp.lt.s32.totalorder %s626, 87
        %s628 = scalar_select %p627, %s626, 87
        %s629 = smul.addr %s628, 4
        %s630 = scalar_lea.vmem %s4, %s629
      $region48: #{conv_block_nd_forward.5} parent=43 // pred_fallthru
        _
    $region44: #{conv_block_nd_forward.5} parent=5 // pred_fallthru
      _
  $region6: #{conv_block_nd_forward.5} parent=0 // loop_footer
    %s14 = sadd.s32 1, %s10
  $region7: #{conv_block_nd_forward.5} parent=0 // loop_footer_branch
    %9 = sbr.rel target = $region3
  $region8: #{conv_block_nd_forward.5} parent=0 // loop_exit
    _

// kernel: conv_block_nd_forward.3
$region0: #{conv_block_nd_forward.3}
  #allocation0 [shape = 'u32[]', space=smem, size = 0x4, offset = 0x4, fixed_abs, tag = 'smem constant byte address 0x4 - core index']
  #allocation1 [shape = 'u32[72,128]{1,0:T(1,128)}', space=vmem, size = 0x9000, scoped, tag = 'internal scratch']
  #allocation2 [shape = 'bf16[416,128]{1,0:T(8,128)(2,1)}', space=vmem, size = 0x1a000, scoped, tag = 'scratch operand']
  #allocation3 [shape = 'bf16[352,1152]{1,0:T(8,128)(2,1)}', space=vmem, size = 0xc6000, scoped, tag = 'scratch operand']
  %s0 = inlined_call_operand.vmem [shape: bf16[704,128], index: 0, kind: input, shape index: {}, may-alias: {0,1,2}]
  %s1 = inlined_call_operand.vmem [shape: bf16[704,128], index: 1, kind: input, shape index: {}, may-alias: {0,1,2}]
  %s2 = inlined_call_operand.vmem [shape: bf16[704,128], index: 2, kind: input, shape index: {}, may-alias: {0,1,2}]
  %s3 = inlined_call_operand.vmem [shape: bf16[1152,128], index: 3, kind: input, shape index: {}]
  %s4 = inlined_call_operand.vmem [shape: f32[1,128], index: 4, kind: input, shape index: {}, may-alias: {4,6}]
  %s5 = inlined_call_operand.vmem [shape: f32[1,128], index: 5, kind: input, shape index: {}]
  %s6 = inlined_call_operand.vmem [shape: f32[1,128], index: 6, kind: input, shape index: {}, may-alias: {4,6}]
  %s7 = inlined_call_operand.vmem [shape: bf16[704,128], index: 7, kind: output, shape index: {0}]
  %s8 = inlined_call_operand.vmem [shape: f32[16,128], index: 8, kind: output, shape index: {1}]
  %9 = xla_tuple %s7, %s8
  %s10 = sld [smem:[#allocation0]]
  $region69: #{conv_block_nd_forward.3} parent=0
    _
  %s12 = ssub.s32 1, %s10
  %s13 = scalar_select 0, %s12, %s10
  loop: start=0, step=1, limit=4
  $region2: #{conv_block_nd_forward.3} parent=0 // loop_pre_header
    _
  $region3: #{conv_block_nd_forward.3} parent=0 // loop_header
    %s15 = sphi 0, %s19
    %p16 = scmp.ge.s32.totalorder %s15, 4
    %s33 = sphi 0, %s35
    %s36 = sphi 0, %s33
    %s37 = sphi 0, %s36
    %s53 = sphi 0, %s37
    %s59 = sphi 0, %s61
    %s62 = sphi 0, %s59
    %s63 = sphi 0, %s62
    %s79 = sphi 0, %s63
    %s93 = sphi 0, %s95
    %s96 = sphi 0, %s93
    %s97 = sphi 0, %s96
    %s113 = sphi 0, %s97
    %s117 = sphi 0, %s117
    %s119 = sphi 0, %s117
    %s120 = sphi 0, %s119
    %s134 = sphi 0, %s120
    %s138 = sphi 0, %s138
    %s140 = sphi 0, %s138
    %s141 = sphi 0, %s140
    %s155 = sphi 0, %s141
    %s159 = sphi 0, %s159
    %s161 = sphi 0, %s159
    %s162 = sphi 0, %s161
    %s176 = sphi 0, %s162
    %s180 = sphi 0, %s180
    %s182 = sphi 0, %s180
    %s183 = sphi 0, %s182
    %s197 = sphi 0, %s183
    %s203 = sphi 0, %s205
    %s206 = sphi 0, %s203
    %s207 = sphi 0, %s206
    %s223 = sphi 0, %s207
    %s229 = sphi 0, %s231
    %s232 = sphi 0, %s229
    %s233 = sphi 0, %s232
    %s249 = sphi 0, %s233
  $region4: #{conv_block_nd_forward.3} parent=0 // loop_header_branch
    %18 = sbr.rel (%p16) target = $region8
  $region5: #{conv_block_nd_forward.3} parent=0 // loop_body
    %s20 = ssub.s32 %s15, 1
    %s21 = ssub.s32 %s15, 2
    %s22 = sadd.s32 %s15, 1
    %s23 = smul.u32 %s15, 11
    %s24 = ssub.s32 %s23, 1
    %p25 = scmp.gt.s32.totalorder %s24, 0
    %s26 = scalar_select %p25, %s24, 0
    %s27 = smul.u32 %s22, 11
    %s28 = ssub.s32 %s27, 1
    %p29 = scmp.gt.s32.totalorder %s28, 0
    %s30 = scalar_select %p29, %s28, 0
    %s31 = ssub.s32 %s26, %s30
    %p32 = scmp.eq.s32.totalorder %s31, 0
    %s34 = sadd.s32 %s33, 1
    %s35 = scalar_select %p32, %s33, %s34
    %p38 = pneg %p32
    %p39 = scmp.eq.s32.totalorder %s15, 1
    %p40 = por %p38, %p39
    %p41 = scmp.ne.s32.totalorder %s33, %s36
    %p42 = scmp.eq.s32.totalorder %s15, 0
    %p43 = por %p41, %p42
    %p44 = scmp.ne.s32.totalorder %s33, %s36
    %p45 = scmp.eq.s32.totalorder %s20, 1
    %p46 = por %p44, %p45
    %p47 = scmp.ne.s32.totalorder %s36, %s37
    %p48 = scmp.eq.s32.totalorder %s20, 0
    %p49 = por %p47, %p48
    %p50 = scmp.ne.s32.totalorder %s36, %s37
    %p51 = scmp.eq.s32.totalorder %s21, 1
    %p52 = por %p50, %p51
    %p54 = scmp.ne.s32.totalorder %s37, %s53
    %p55 = scmp.eq.s32.totalorder %s21, 0
    %p56 = por %p54, %p55
    %s57 = ssub.s32 %s15, %s22
    %p58 = scmp.eq.s32.totalorder %s57, 0
    %s60 = sadd.s32 %s59, 1
    %s61 = scalar_select %p58, %s59, %s60
    %p64 = pneg %p58
    %p65 = scmp.eq.s32.totalorder %s15, 1
    %p66 = por %p64, %p65
    %p67 = scmp.ne.s32.totalorder %s59, %s62
    %p68 = scmp.eq.s32.totalorder %s15, 0
    %p69 = por %p67, %p68
    %p70 = scmp.ne.s32.totalorder %s59, %s62
    %p71 = scmp.eq.s32.totalorder %s20, 1
    %p72 = por %p70, %p71
    %p73 = scmp.ne.s32.totalorder %s62, %s63
    %p74 = scmp.eq.s32.totalorder %s20, 0
    %p75 = por %p73, %p74
    %p76 = scmp.ne.s32.totalorder %s62, %s63
    %p77 = scmp.eq.s32.totalorder %s21, 1
    %p78 = por %p76, %p77
    %p80 = scmp.ne.s32.totalorder %s63, %s79
    %p81 = scmp.eq.s32.totalorder %s21, 0
    %p82 = por %p80, %p81
    %s83 = sadd.s32 %s15, 1
    %s84 = smul.u32 %s83, 11
    %p85 = scmp.lt.s32.totalorder %s84, 21
    %s86 = scalar_select %p85, %s84, 21
    %s87 = sadd.s32 %s22, 1
    %s88 = smul.u32 %s87, 11
    %p89 = scmp.lt.s32.totalorder %s88, 21
    %s90 = scalar_select %p89, %s88, 21
    %s91 = ssub.s32 %s86, %s90
    %p92 = scmp.eq.s32.totalorder %s91, 0
    %s94 = sadd.s32 %s93, 1
    %s95 = scalar_select %p92, %s93, %s94
    %p98 = pneg %p92
    %p99 = scmp.eq.s32.totalorder %s15, 1
    %p100 = por %p98, %p99
    %p101 = scmp.ne.s32.totalorder %s93, %s96
    %p102 = scmp.eq.s32.totalorder %s15, 0
    %p103 = por %p101, %p102
    %p104 = scmp.ne.s32.totalorder %s93, %s96
    %p105 = scmp.eq.s32.totalorder %s20, 1
    %p106 = por %p104, %p105
    %p107 = scmp.ne.s32.totalorder %s96, %s97
    %p108 = scmp.eq.s32.totalorder %s20, 0
    %p109 = por %p107, %p108
    %p110 = scmp.ne.s32.totalorder %s96, %s97
    %p111 = scmp.eq.s32.totalorder %s21, 1
    %p112 = por %p110, %p111
    %p114 = scmp.ne.s32.totalorder %s97, %s113
    %p115 = scmp.eq.s32.totalorder %s21, 0
    %p116 = por %p114, %p115
    %s118 = sadd.s32 %s117, 1
    %p121 = scmp.eq.s32.totalorder %s15, 1
    %p122 = scmp.ne.s32.totalorder %s117, %s119
    %p123 = scmp.eq.s32.totalorder %s15, 0
    %p124 = por %p122, %p123
    %p125 = scmp.ne.s32.totalorder %s117, %s119
    %p126 = scmp.eq.s32.totalorder %s20, 1
    %p127 = por %p125, %p126
    %p128 = scmp.ne.s32.totalorder %s119, %s120
    %p129 = scmp.eq.s32.totalorder %s20, 0
    %p130 = por %p128, %p129
    %p131 = scmp.ne.s32.totalorder %s119, %s120
    %p132 = scmp.eq.s32.totalorder %s21, 1
    %p133 = por %p131, %p132
    %p135 = scmp.ne.s32.totalorder %s120, %s134
    %p136 = scmp.eq.s32.totalorder %s21, 0
    %p137 = por %p135, %p136
    %s139 = sadd.s32 %s138, 1
    %p142 = scmp.eq.s32.totalorder %s15, 1
    %p143 = scmp.ne.s32.totalorder %s138, %s140
    %p144 = scmp.eq.s32.totalorder %s15, 0
    %p145 = por %p143, %p144
    %p146 = scmp.ne.s32.totalorder %s138, %s140
    %p147 = scmp.eq.s32.totalorder %s20, 1
    %p148 = por %p146, %p147
    %p149 = scmp.ne.s32.totalorder %s140, %s141
    %p150 = scmp.eq.s32.totalorder %s20, 0
    %p151 = por %p149, %p150
    %p152 = scmp.ne.s32.totalorder %s140, %s141
    %p153 = scmp.eq.s32.totalorder %s21, 1
    %p154 = por %p152, %p153
    %p156 = scmp.ne.s32.totalorder %s141, %s155
    %p157 = scmp.eq.s32.totalorder %s21, 0
    %p158 = por %p156, %p157
    %s160 = sadd.s32 %s159, 1
    %p163 = scmp.eq.s32.totalorder %s15, 1
    %p164 = scmp.ne.s32.totalorder %s159, %s161
    %p165 = scmp.eq.s32.totalorder %s15, 0
    %p166 = por %p164, %p165
    %p167 = scmp.ne.s32.totalorder %s159, %s161
    %p168 = scmp.eq.s32.totalorder %s20, 1
    %p169 = por %p167, %p168
    %p170 = scmp.ne.s32.totalorder %s161, %s162
    %p171 = scmp.eq.s32.totalorder %s20, 0
    %p172 = por %p170, %p171
    %p173 = scmp.ne.s32.totalorder %s161, %s162
    %p174 = scmp.eq.s32.totalorder %s21, 1
    %p175 = por %p173, %p174
    %p177 = scmp.ne.s32.totalorder %s162, %s176
    %p178 = scmp.eq.s32.totalorder %s21, 0
    %p179 = por %p177, %p178
    %s181 = sadd.s32 %s180, 1
    %p184 = scmp.eq.s32.totalorder %s15, 1
    %p185 = scmp.ne.s32.totalorder %s180, %s182
    %p186 = scmp.eq.s32.totalorder %s15, 0
    %p187 = por %p185, %p186
    %p188 = scmp.ne.s32.totalorder %s180, %s182
    %p189 = scmp.eq.s32.totalorder %s20, 1
    %p190 = por %p188, %p189
    %p191 = scmp.ne.s32.totalorder %s182, %s183
    %p192 = scmp.eq.s32.totalorder %s20, 0
    %p193 = por %p191, %p192
    %p194 = scmp.ne.s32.totalorder %s182, %s183
    %p195 = scmp.eq.s32.totalorder %s21, 1
    %p196 = por %p194, %p195
    %p198 = scmp.ne.s32.totalorder %s183, %s197
    %p199 = scmp.eq.s32.totalorder %s21, 0
    %p200 = por %p198, %p199
    %s201 = ssub.s32 %s15, %s22
    %p202 = scmp.eq.s32.totalorder %s201, 0
    %s204 = sadd.s32 %s203, 1
    %s205 = scalar_select %p202, %s203, %s204
    %p208 = pneg %p202
    %p209 = scmp.eq.s32.totalorder %s15, 1
    %p210 = por %p208, %p209
    %p211 = scmp.ne.s32.totalorder %s203, %s206
    %p212 = scmp.eq.s32.totalorder %s15, 0
    %p213 = por %p211, %p212
    %p214 = scmp.ne.s32.totalorder %s203, %s206
    %p215 = scmp.eq.s32.totalorder %s20, 1
    %p216 = por %p214, %p215
    %p217 = scmp.ne.s32.totalorder %s206, %s207
    %p218 = scmp.eq.s32.totalorder %s20, 0
    %p219 = por %p217, %p218
    %p220 = scmp.ne.s32.totalorder %s206, %s207
    %p221 = scmp.eq.s32.totalorder %s21, 1
    %p222 = por %p220, %p221
    %p224 = scmp.ne.s32.totalorder %s207, %s223
    %p225 = scmp.eq.s32.totalorder %s21, 0
    %p226 = por %p224, %p225
    %s227 = ssub.s32 %s15, %s22
    %p228 = scmp.eq.s32.totalorder %s227, 0
    %s230 = sadd.s32 %s229, 1
    %s231 = scalar_select %p228, %s229, %s230
    %p234 = pneg %p228
    %p235 = scmp.eq.s32.totalorder %s15, 1
    %p236 = por %p234, %p235
    %p237 = scmp.ne.s32.totalorder %s229, %s232
    %p238 = scmp.eq.s32.totalorder %s15, 0
    %p239 = por %p237, %p238
    %p240 = scmp.ne.s32.totalorder %s229, %s232
    %p241 = scmp.eq.s32.totalorder %s20, 1
    %p242 = por %p240, %p241
    %p243 = scmp.ne.s32.totalorder %s232, %s233
    %p244 = scmp.eq.s32.totalorder %s20, 0
    %p245 = por %p243, %p244
    %p246 = scmp.ne.s32.totalorder %s232, %s233
    %p247 = scmp.eq.s32.totalorder %s21, 1
    %p248 = por %p246, %p247
    %p250 = scmp.ne.s32.totalorder %s233, %s249
    %p251 = scmp.eq.s32.totalorder %s21, 0
    %p252 = por %p250, %p251
    %p253 = scmp.le.s32.totalorder 1, %s15
    %p254 = scmp.lt.s32.totalorder %s15, 3
    %p255 = pnand %p253, %p254
    %p256 = pneg %p255
    // Predicated region
    $region9: #{conv_block_nd_forward.3} parent=5 // pred_check
      _
    $region10: #{conv_block_nd_forward.3} parent=5 // pred_check_branch
      %258 = sbr.rel (%p255) target = $region12
    $region11: #{conv_block_nd_forward.3} parent=5 // pred_region
      %s259 = ssub.s32 %s15, 1
      // Predicated region
      $region13: #{conv_block_nd_forward.3} parent=11 // pred_check
        %p260 = pneg %p130
      $region14: #{conv_block_nd_forward.3} parent=11 // pred_check_branch
        %262 = sbr.rel (%p260) target = $region16
      $region15: #{conv_block_nd_forward.3} parent=11 // pred_region
        _
      $region16: #{conv_block_nd_forward.3} parent=11 // pred_fallthru
        _
      // Predicated region
      $region17: #{conv_block_nd_forward.3} parent=11 // pred_check
        %p263 = pneg %p151
      $region18: #{conv_block_nd_forward.3} parent=11 // pred_check_branch
        %265 = sbr.rel (%p263) target = $region20
      $region19: #{conv_block_nd_forward.3} parent=11 // pred_region
        _
      $region20: #{conv_block_nd_forward.3} parent=11 // pred_fallthru
        _
      // Predicated region
      $region21: #{conv_block_nd_forward.3} parent=11 // pred_check
        %p266 = pneg %p172
      $region22: #{conv_block_nd_forward.3} parent=11 // pred_check_branch
        %268 = sbr.rel (%p266) target = $region24
      $region23: #{conv_block_nd_forward.3} parent=11 // pred_region
        _
      $region24: #{conv_block_nd_forward.3} parent=11 // pred_fallthru
        _
      // Predicated region
      $region25: #{conv_block_nd_forward.3} parent=11 // pred_check
        %p269 = pneg %p193
      $region26: #{conv_block_nd_forward.3} parent=11 // pred_check_branch
        %271 = sbr.rel (%p269) target = $region28
      $region27: #{conv_block_nd_forward.3} parent=11 // pred_region
        _
      $region28: #{conv_block_nd_forward.3} parent=11 // pred_fallthru
        _
    $region12: #{conv_block_nd_forward.3} parent=5 // pred_fallthru
      _
    %p272 = scmp.lt.s32.totalorder %s15, 2
    // Predicated region
    $region29: #{conv_block_nd_forward.3} parent=5 // pred_check
      %p273 = pneg %p272
    $region30: #{conv_block_nd_forward.3} parent=5 // pred_check_branch
      %275 = sbr.rel (%p273) target = $region32
    $region31: #{conv_block_nd_forward.3} parent=5 // pred_region
      // Predicated region
      $region33: #{conv_block_nd_forward.3} parent=31 // pred_check
        %p276 = pneg %p43
      $region34: #{conv_block_nd_forward.3} parent=31 // pred_check_branch
        %278 = sbr.rel (%p276) target = $region36
      $region35: #{conv_block_nd_forward.3} parent=31 // pred_region
        %s279 = smul.u32 %s15, 11
        %s280 = ssub.s32 %s279, 1
        %p281 = scmp.gt.s32.totalorder %s280, 0
        %s282 = scalar_select %p281, %s280, 0
        %s283 = smul.u32 4, %s282
        %p284 = scmp.lt.s32.totalorder %s283, 87
        %s285 = scalar_select %p284, %s283, 87
        %s286 = smul.addr %s285, 4
        %s287 = scalar_lea.vmem %s0, %s286
        %s288 = smul.u32 %s15, 11
        %s289 = ssub.s32 %s288, 1
        %p290 = scmp.gt.s32.totalorder %s289, 0
        %s291 = scalar_select %p290, %s289, 0
        %s292 = smul.u32 4, %s291
      $region36: #{conv_block_nd_forward.3} parent=31 // pred_fallthru
        _
      // Predicated region
      $region37: #{conv_block_nd_forward.3} parent=31 // pred_check
        %p293 = pneg %p69
      $region38: #{conv_block_nd_forward.3} parent=31 // pred_check_branch
        %295 = sbr.rel (%p293) target = $region40
      $region39: #{conv_block_nd_forward.3} parent=31 // pred_region
        %s296 = smul.u32 44, %s15
        %p297 = scmp.lt.s32.totalorder %s296, 87
        %s298 = scalar_select %p297, %s296, 87
        %s299 = smul.addr %s298, 4
        %s300 = scalar_lea.vmem %s1, %s299
        %s301 = smul.u32 44, %s15
      $region40: #{conv_block_nd_forward.3} parent=31 // pred_fallthru
        _
      // Predicated region
      $region41: #{conv_block_nd_forward.3} parent=31 // pred_check
        %p302 = pneg %p103
      $region42: #{conv_block_nd_forward.3} parent=31 // pred_check_branch
        %304 = sbr.rel (%p302) target = $region44
      $region43: #{conv_block_nd_forward.3} parent=31 // pred_region
        %s305 = sadd.s32 %s15, 1
        %s306 = smul.u32 %s305, 11
        %p307 = scmp.lt.s32.totalorder %s306, 21
        %s308 = scalar_select %p307, %s306, 21
        %s309 = smul.u32 4, %s308
        %p310 = scmp.lt.s32.totalorder %s309, 87
        %s311 = scalar_select %p310, %s309, 87
        %s312 = smul.addr %s311, 4
        %s313 = scalar_lea.vmem %s2, %s312
        %s314 = sadd.s32 %s15, 1
        %s315 = smul.u32 %s314, 11
        %p316 = scmp.lt.s32.totalorder %s315, 21
        %s317 = scalar_select %p316, %s315, 21
        %s318 = smul.u32 4, %s317
      $region44: #{conv_block_nd_forward.3} parent=31 // pred_fallthru
        _
    $region32: #{conv_block_nd_forward.3} parent=5 // pred_fallthru
      _
    %p319 = scmp.le.s32.totalorder 1, %s15
    %p320 = scmp.lt.s32.totalorder %s15, 3
    %p321 = pnand %p319, %p320
    %p322 = pneg %p321
    // Predicated region
    $region45: #{conv_block_nd_forward.3} parent=5 // pred_check
      _
    $region46: #{conv_block_nd_forward.3} parent=5 // pred_check_branch
      %324 = sbr.rel (%p321) target = $region48
    $region47: #{conv_block_nd_forward.3} parent=5 // pred_region
      %s325 = ssub.s32 %s15, 1
      %s326 = smul.u32 %s20, 11
      %s327 = ssub.s32 %s326, 1
      %p328 = scmp.gt.s32.totalorder %s327, 0
      %s329 = scalar_select %p328, %s327, 0
      %s330 = smul.u32 4, %s329
      %p331 = scmp.lt.s32.totalorder %s330, 87
      %s332 = scalar_select %p331, %s330, 87
      %s333 = smul.addr %s332, 4
      %s334 = scalar_lea.vmem %s0, %s333
      %p335 = pneg %p49
      %p336 = pneg %p46
      %s337 = smul.u32 44, %s20
      %p338 = scmp.lt.s32.totalorder %s337, 87
      %s339 = scalar_select %p338, %s337, 87
      %s340 = smul.addr %s339, 4
      %s341 = scalar_lea.vmem %s1, %s340
      %p342 = pneg %p75
      %p343 = pneg %p72
      %s344 = sadd.s32 %s20, 1
      %s345 = smul.u32 %s344, 11
      %p346 = scmp.lt.s32.totalorder %s345, 21
      %s347 = scalar_select %p346, %s345, 21
      %s348 = smul.u32 4, %s347
      %p349 = scmp.lt.s32.totalorder %s348, 87
      %s350 = scalar_select %p349, %s348, 87
      %s351 = smul.addr %s350, 4
      %s352 = scalar_lea.vmem %s2, %s351
      %p353 = pneg %p109
      %p354 = pneg %p106
      %p355 = pneg %p130
      %p356 = pneg %p127
      %p357 = pneg %p151
      %p358 = pneg %p148
      %p359 = pneg %p172
      %p360 = pneg %p169
      %p361 = pneg %p193
      %p362 = pneg %p190
      %p363 = pneg %p219
      %p364 = pneg %p216
      %s365 = smul.u32 44, %s20
      %p366 = scmp.lt.s32.totalorder %s365, 87
      %s367 = scalar_select %p366, %s365, 87
      %s368 = smul.addr %s367, 4
      %s369 = scalar_lea.vmem %s7, %s368
      %p370 = pneg %p245
      %p371 = pneg %p242
      %p372 = scmp.lt.s32.totalorder %s20, 1
      %s373 = scalar_select %p372, %s20, 1
      %s374 = smul.addr %s373, 8
      %s375 = scalar_lea.vmem %s8, %s374
      %s376 = smul.u32 %s20, 11
      %s377 = ssub.s32 %s376, 1
      %p378 = scmp.gt.s32.totalorder %s377, 0
      %s379 = scalar_select %p378, %s377, 0
      %s380 = smul.u32 4, %s379
      %p381 = scmp.lt.s32.totalorder %s380, 87
      %s382 = scalar_select %p381, %s380, 87
      %s383 = smul.addr %s382, 4
      %s384 = scalar_lea.vmem %s0, %s383
      %s385 = smul.u32 %s20, 11
      %s386 = ssub.s32 %s385, 1
      %p387 = scmp.gt.s32.totalorder %s386, 0
      %s388 = scalar_select %p387, %s386, 0
      %s389 = smul.u32 4, %s388
      %s390 = smul.u32 44, %s20
      %p391 = scmp.lt.s32.totalorder %s390, 87
      %s392 = scalar_select %p391, %s390, 87
      %s393 = smul.addr %s392, 4
      %s394 = scalar_lea.vmem %s1, %s393
      %s395 = smul.u32 44, %s20
      %s396 = sadd.s32 %s20, 1
      %s397 = smul.u32 %s396, 11
      %p398 = scmp.lt.s32.totalorder %s397, 21
      %s399 = scalar_select %p398, %s397, 21
      %s400 = smul.u32 4, %s399
      %p401 = scmp.lt.s32.totalorder %s400, 87
      %s402 = scalar_select %p401, %s400, 87
      %s403 = smul.addr %s402, 4
      %s404 = scalar_lea.vmem %s2, %s403
      %s405 = sadd.s32 %s20, 1
      %s406 = smul.u32 %s405, 11
      %p407 = scmp.lt.s32.totalorder %s406, 21
      %s408 = scalar_select %p407, %s406, 21
      %s409 = smul.u32 4, %s408
      %s410 = smul.u32 44, %s20
      %p411 = scmp.lt.s32.totalorder %s410, 87
      %s412 = scalar_select %p411, %s410, 87
      %s413 = smul.addr %s412, 4
      %s414 = scalar_lea.vmem %s7, %s413
      %s415 = smul.u32 44, %s20
      %p416 = scmp.lt.s32.totalorder %s20, 1
      %s417 = scalar_select %p416, %s20, 1
      %s418 = smul.addr %s417, 8
      %s419 = scalar_lea.vmem %s8, %s418
      %s420 = smul.u32 %s20, 352
      %s421 = ssub.s32 %s420, 32
      %v422 = vlaneseq
      %v423 = vshrl.u32 %v422, 7
      %v424 = vadd.s32 %v423, 8
      %v425 = vadd.s32 %v423, 16
      %v426 = vadd.s32 %v423, 24
      %v427 = vadd.s32 %v423, 32
      %v428 = vadd.s32 %v423, 40
      %v429 = vadd.s32 %v423, 48
      %v430 = vadd.s32 %v423, 56
      %v431 = vadd.s32 %v423, 64
      %v432 = vadd.s32 %v423, 72
      %v433 = vadd.s32 %v423, 80
      %v434 = vadd.s32 %v423, 88
      %v435 = vadd.s32 %v423, 96
      %v436 = vadd.s32 %v423, 104
      %v437 = vadd.s32 %v423, 112
      %v438 = vadd.s32 %v423, 120
      %v439 = vadd.s32 %v423, 128
      %v440 = vadd.s32 %v423, 136
      %v441 = vadd.s32 %v423, 144
      %v442 = vadd.s32 %v423, 152
      %v443 = vadd.s32 %v423, 160
      %v444 = vadd.s32 %v423, 168
      %v445 = vadd.s32 %v423, 176
      %v446 = vadd.s32 %v423, 184
      %v447 = vadd.s32 %v423, 192
      %v448 = vadd.s32 %v423, 200
      %v449 = vadd.s32 %v423, 208
      %v450 = vadd.s32 %v423, 216
      %v451 = vadd.s32 %v423, 224
      %v452 = vadd.s32 %v423, 232
      %v453 = vadd.s32 %v423, 240
      %v454 = vadd.s32 %v423, 248
      %v455 = vadd.s32 %v423, 256
      %v456 = vadd.s32 %v423, 264
      %v457 = vadd.s32 %v423, 272
      %v458 = vadd.s32 %v423, 280
      %v459 = vadd.s32 %v423, 288
      %v460 = vadd.s32 %v423, 296
      %v461 = vadd.s32 %v423, 304
      %v462 = vadd.s32 %v423, 312
      %v463 = vadd.s32 %v423, 320
      %v464 = vadd.s32 %v423, 328
      %v465 = vadd.s32 %v423, 336
      %v466 = vadd.s32 %v423, 344
      %v467 = vadd.s32 %v423, 352
      %v468 = vadd.s32 %v423, 360
      %v469 = vadd.s32 %v423, 368
      %v470 = vadd.s32 %v423, 376
      %v471 = vadd.s32 %v423, 384
      %v472 = vadd.s32 %v423, 392
      %v473 = vadd.s32 %v423, 400
      %v474 = vadd.s32 %v423, 408
      %v475 = vstv %s421
      %v476 = vadd.s32 %v475, %v423
      %v477 = vadd.s32 %v475, %v424
      %v478 = vadd.s32 %v475, %v425
      %v479 = vadd.s32 %v475, %v426
      %v480 = vadd.s32 %v475, %v427
      %v481 = vadd.s32 %v475, %v428
      %v482 = vadd.s32 %v475, %v429
      %v483 = vadd.s32 %v475, %v430
      %v484 = vadd.s32 %v475, %v431
      %v485 = vadd.s32 %v475, %v432
      %v486 = vadd.s32 %v475, %v433
      %v487 = vadd.s32 %v475, %v434
      %v488 = vadd.s32 %v475, %v435
      %v489 = vadd.s32 %v475, %v436
      %v490 = vadd.s32 %v475, %v437
      %v491 = vadd.s32 %v475, %v438
      %v492 = vadd.s32 %v475, %v439
      %v493 = vadd.s32 %v475, %v440
      %v494 = vadd.s32 %v475, %v441
      %v495 = vadd.s32 %v475, %v442
      %v496 = vadd.s32 %v475, %v443
      %v497 = vadd.s32 %v475, %v444
      %v498 = vadd.s32 %v475, %v445
      %v499 = vadd.s32 %v475, %v446
      %v500 = vadd.s32 %v475, %v447
      %v501 = vadd.s32 %v475, %v448
      %v502 = vadd.s32 %v475, %v449
      %v503 = vadd.s32 %v475, %v450
      %v504 = vadd.s32 %v475, %v451
      %v505 = vadd.s32 %v475, %v452
      %v506 = vadd.s32 %v475, %v453
      %v507 = vadd.s32 %v475, %v454
      %v508 = vadd.s32 %v475, %v455
      %v509 = vadd.s32 %v475, %v456
      %v510 = vadd.s32 %v475, %v457
      %v511 = vadd.s32 %v475, %v458
      %v512 = vadd.s32 %v475, %v459
      %v513 = vadd.s32 %v475, %v460
      %v514 = vadd.s32 %v475, %v461
      %v515 = vadd.s32 %v475, %v462
      %v516 = vadd.s32 %v475, %v463
      %v517 = vadd.s32 %v475, %v464
      %v518 = vadd.s32 %v475, %v465
      %v519 = vadd.s32 %v475, %v466
      %v520 = vadd.s32 %v475, %v467
      %v521 = vadd.s32 %v475, %v468
      %v522 = vadd.s32 %v475, %v469
      %v523 = vadd.s32 %v475, %v470
      %v524 = vadd.s32 %v475, %v471
      %v525 = vadd.s32 %v475, %v472
      %v526 = vadd.s32 %v475, %v473
      %v527 = vadd.s32 %v475, %v474
      %v528 = vcvt.s32.f32 %v476
      %v529 = vcvt.s32.f32 %v477
      %v530 = vcvt.s32.f32 %v478
      %v531 = vcvt.s32.f32 %v479
      %v532 = vcvt.s32.f32 %v480
      %v533 = vcvt.s32.f32 %v481
      %v534 = vcvt.s32.f32 %v482
      %v535 = vcvt.s32.f32 %v483
      %v536 = vcvt.s32.f32 %v484
      %v537 = vcvt.s32.f32 %v485
      %v538 = vcvt.s32.f32 %v486
      %v539 = vcvt.s32.f32 %v487
      %v540 = vcvt.s32.f32 %v488
      %v541 = vcvt.s32.f32 %v489
      %v542 = vcvt.s32.f32 %v490
      %v543 = vcvt.s32.f32 %v491
      %v544 = vcvt.s32.f32 %v492
      %v545 = vcvt.s32.f32 %v493
      %v546 = vcvt.s32.f32 %v494
      %v547 = vcvt.s32.f32 %v495
      %v548 = vcvt.s32.f32 %v496
      %v549 = vcvt.s32.f32 %v497
      %v550 = vcvt.s32.f32 %v498
      %v551 = vcvt.s32.f32 %v499
      %v552 = vcvt.s32.f32 %v500
      %v553 = vcvt.s32.f32 %v501
      %v554 = vcvt.s32.f32 %v502
      %v555 = vcvt.s32.f32 %v503
      %v556 = vcvt.s32.f32 %v504
      %v557 = vcvt.s32.f32 %v505
      %v558 = vcvt.s32.f32 %v506
      %v559 = vcvt.s32.f32 %v507
      %v560 = vcvt.s32.f32 %v508
      %v561 = vcvt.s32.f32 %v509
      %v562 = vcvt.s32.f32 %v510
      %v563 = vcvt.s32.f32 %v511
      %v564 = vcvt.s32.f32 %v512
      %v565 = vcvt.s32.f32 %v513
      %v566 = vcvt.s32.f32 %v514
      %v567 = vcvt.s32.f32 %v515
      %v568 = vcvt.s32.f32 %v516
      %v569 = vcvt.s32.f32 %v517
      %v570 = vcvt.s32.f32 %v518
      %v571 = vcvt.s32.f32 %v519
      %v572 = vcvt.s32.f32 %v520
      %v573 = vcvt.s32.f32 %v521
      %v574 = vcvt.s32.f32 %v522
      %v575 = vcvt.s32.f32 %v523
      %v576 = vcvt.s32.f32 %v524
      %v577 = vcvt.s32.f32 %v525
      %v578 = vcvt.s32.f32 %v526
      %v579 = vcvt.s32.f32 %v527
      %v580 = vadd.f32 %v528, 0.5
      %v581 = vadd.f32 %v529, 0.5
      %v582 = vadd.f32 %v530, 0.5
      %v583 = vadd.f32 %v531, 0.5
      %v584 = vadd.f32 %v532, 0.5
      %v585 = vadd.f32 %v533, 0.5
      %v586 = vadd.f32 %v534, 0.5
      %v587 = vadd.f32 %v535, 0.5
      %v588 = vadd.f32 %v536, 0.5
      %v589 = vadd.f32 %v537, 0.5
      %v590 = vadd.f32 %v538, 0.5
      %v591 = vadd.f32 %v539, 0.5
      %v592 = vadd.f32 %v540, 0.5
      %v593 = vadd.f32 %v541, 0.5
      %v594 = vadd.f32 %v542, 0.5
      %v595 = vadd.f32 %v543, 0.5
      %v596 = vadd.f32 %v544, 0.5
      %v597 = vadd.f32 %v545, 0.5
      %v598 = vadd.f32 %v546, 0.5
      %v599 = vadd.f32 %v547, 0.5
      %v600 = vadd.f32 %v548, 0.5
      %v601 = vadd.f32 %v549, 0.5
      %v602 = vadd.f32 %v550, 0.5
      %v603 = vadd.f32 %v551, 0.5
      %v604 = vadd.f32 %v552, 0.5
      %v605 = vadd.f32 %v553, 0.5
      %v606 = vadd.f32 %v554, 0.5
      %v607 = vadd.f32 %v555, 0.5
      %v608 = vadd.f32 %v556, 0.5
      %v609 = vadd.f32 %v557, 0.5
      %v610 = vadd.f32 %v558, 0.5
      %v611 = vadd.f32 %v559, 0.5
      %v612 = vadd.f32 %v560, 0.5
      %v613 = vadd.f32 %v561, 0.5
      %v614 = vadd.f32 %v562, 0.5
      %v615 = vadd.f32 %v563, 0.5
      %v616 = vadd.f32 %v564, 0.5
      %v617 = vadd.f32 %v565, 0.5
      %v618 = vadd.f32 %v566, 0.5
      %v619 = vadd.f32 %v567, 0.5
      %v620 = vadd.f32 %v568, 0.5
      %v621 = vadd.f32 %v569, 0.5
      %v622 = vadd.f32 %v570, 0.5
      %v623 = vadd.f32 %v571, 0.5
      %v624 = vadd.f32 %v572, 0.5
      %v625 = vadd.f32 %v573, 0.5
      %v626 = vadd.f32 %v574, 0.5
      %v627 = vadd.f32 %v575, 0.5
      %v628 = vadd.f32 %v576, 0.5
      %v629 = vadd.f32 %v577, 0.5
      %v630 = vadd.f32 %v578, 0.5
      %v631 = vadd.f32 %v579, 0.5
      %v632 = vmul.f32 %v580, 0.055555556
      %v633 = vmul.f32 %v581, 0.055555556
      %v634 = vmul.f32 %v582, 0.055555556
      %v635 = vmul.f32 %v583, 0.055555556
      %v636 = vmul.f32 %v584, 0.055555556
      %v637 = vmul.f32 %v585, 0.055555556
      %v638 = vmul.f32 %v586, 0.055555556
      %v639 = vmul.f32 %v587, 0.055555556
      %v640 = vmul.f32 %v588, 0.055555556
      %v641 = vmul.f32 %v589, 0.055555556
      %v642 = vmul.f32 %v590, 0.055555556
      %v643 = vmul.f32 %v591, 0.055555556
      %v644 = vmul.f32 %v592, 0.055555556
      %v645 = vmul.f32 %v593, 0.055555556
      %v646 = vmul.f32 %v594, 0.055555556
      %v647 = vmul.f32 %v595, 0.055555556
      %v648 = vmul.f32 %v596, 0.055555556
      %v649 = vmul.f32 %v597, 0.055555556
      %v650 = vmul.f32 %v598, 0.055555556
      %v651 = vmul.f32 %v599, 0.055555556
      %v652 = vmul.f32 %v600, 0.055555556
      %v653 = vmul.f32 %v601, 0.055555556
      %v654 = vmul.f32 %v602, 0.055555556
      %v655 = vmul.f32 %v603, 0.055555556
      %v656 = vmul.f32 %v604, 0.055555556
      %v657 = vmul.f32 %v605, 0.055555556
      %v658 = vmul.f32 %v606, 0.055555556
      %v659 = vmul.f32 %v607, 0.055555556
      %v660 = vmul.f32 %v608, 0.055555556
      %v661 = vmul.f32 %v609, 0.055555556
      %v662 = vmul.f32 %v610, 0.055555556
      %v663 = vmul.f32 %v611, 0.055555556
      %v664 = vmul.f32 %v612, 0.055555556
      %v665 = vmul.f32 %v613, 0.055555556
      %v666 = vmul.f32 %v614, 0.055555556
      %v667 = vmul.f32 %v615, 0.055555556
      %v668 = vmul.f32 %v616, 0.055555556
      %v669 = vmul.f32 %v617, 0.055555556
      %v670 = vmul.f32 %v618, 0.055555556
      %v671 = vmul.f32 %v619, 0.055555556
      %v672 = vmul.f32 %v620, 0.055555556
      %v673 = vmul.f32 %v621, 0.055555556
      %v674 = vmul.f32 %v622, 0.055555556
      %v675 = vmul.f32 %v623, 0.055555556
      %v676 = vmul.f32 %v624, 0.055555556
      %v677 = vmul.f32 %v625, 0.055555556
      %v678 = vmul.f32 %v626, 0.055555556
      %v679 = vmul.f32 %v627, 0.055555556
      %v680 = vmul.f32 %v628, 0.055555556
      %v681 = vmul.f32 %v629, 0.055555556
      %v682 = vmul.f32 %v630, 0.055555556
      %v683 = vmul.f32 %v631, 0.055555556
      %v684 = vfloor.f32 %v632
      %v685 = vfloor.f32 %v633
      %v686 = vfloor.f32 %v634
      %v687 = vfloor.f32 %v635
      %v688 = vfloor.f32 %v636
      %v689 = vfloor.f32 %v637
      %v690 = vfloor.f32 %v638
      %v691 = vfloor.f32 %v639
      %v692 = vfloor.f32 %v640
      %v693 = vfloor.f32 %v641
      %v694 = vfloor.f32 %v642
      %v695 = vfloor.f32 %v643
      %v696 = vfloor.f32 %v644
      %v697 = vfloor.f32 %v645
      %v698 = vfloor.f32 %v646
      %v699 = vfloor.f32 %v647
      %v700 = vfloor.f32 %v648
      %v701 = vfloor.f32 %v649
      %v702 = vfloor.f32 %v650
      %v703 = vfloor.f32 %v651
      %v704 = vfloor.f32 %v652
      %v705 = vfloor.f32 %v653
      %v706 = vfloor.f32 %v654
      %v707 = vfloor.f32 %v655
      %v708 = vfloor.f32 %v656
      %v709 = vfloor.f32 %v657
      %v710 = vfloor.f32 %v658
      %v711 = vfloor.f32 %v659
      %v712 = vfloor.f32 %v660
      %v713 = vfloor.f32 %v661
      %v714 = vfloor.f32 %v662
      %v715 = vfloor.f32 %v663
      %v716 = vfloor.f32 %v664
      %v717 = vfloor.f32 %v665
      %v718 = vfloor.f32 %v666
      %v719 = vfloor.f32 %v667
      %v720 = vfloor.f32 %v668
      %v721 = vfloor.f32 %v669
      %v722 = vfloor.f32 %v670
      %v723 = vfloor.f32 %v671
      %v724 = vfloor.f32 %v672
      %v725 = vfloor.f32 %v673
      %v726 = vfloor.f32 %v674
      %v727 = vfloor.f32 %v675
      %v728 = vfloor.f32 %v676
      %v729 = vfloor.f32 %v677
      %v730 = vfloor.f32 %v678
      %v731 = vfloor.f32 %v679
      %v732 = vfloor.f32 %v680
      %v733 = vfloor.f32 %v681
      %v734 = vfloor.f32 %v682
      %v735 = vfloor.f32 %v683
      %v736 = vmul.f32 %v684, 18.0
      %v737 = vmul.f32 %v685, 18.0
      %v738 = vmul.f32 %v686, 18.0
      %v739 = vmul.f32 %v687, 18.0
      %v740 = vmul.f32 %v688, 18.0
      %v741 = vmul.f32 %v689, 18.0
      %v742 = vmul.f32 %v690, 18.0
      %v743 = vmul.f32 %v691, 18.0
      %v744 = vmul.f32 %v692, 18.0
      %v745 = vmul.f32 %v693, 18.0
      %v746 = vmul.f32 %v694, 18.0
      %v747 = vmul.f32 %v695, 18.0
      %v748 = vmul.f32 %v696, 18.0
      %v749 = vmul.f32 %v697, 18.0
      %v750 = vmul.f32 %v698, 18.0
      %v751 = vmul.f32 %v699, 18.0
      %v752 = vmul.f32 %v700, 18.0
      %v753 = vmul.f32 %v701, 18.0
      %v754 = vmul.f32 %v702, 18.0
      %v755 = vmul.f32 %v703, 18.0
      %v756 = vmul.f32 %v704, 18.0
      %v757 = vmul.f32 %v705, 18.0
      %v758 = vmul.f32 %v706, 18.0
      %v759 = vmul.f32 %v707, 18.0
      %v760 = vmul.f32 %v708, 18.0
      %v761 = vmul.f32 %v709, 18.0
      %v762 = vmul.f32 %v710, 18.0
      %v763 = vmul.f32 %v711, 18.0
      %v764 = vmul.f32 %v712, 18.0
      %v765 = vmul.f32 %v713, 18.0
      %v766 = vmul.f32 %v714, 18.0
      %v767 = vmul.f32 %v715, 18.0
      %v768 = vmul.f32 %v716, 18.0
      %v769 = vmul.f32 %v717, 18.0
      %v770 = vmul.f32 %v718, 18.0
      %v771 = vmul.f32 %v719, 18.0
      %v772 = vmul.f32 %v720, 18.0
      %v773 = vmul.f32 %v721, 18.0
      %v774 = vmul.f32 %v722, 18.0
      %v775 = vmul.f32 %v723, 18.0
      %v776 = vmul.f32 %v724, 18.0
      %v777 = vmul.f32 %v725, 18.0
      %v778 = vmul.f32 %v726, 18.0
      %v779 = vmul.f32 %v727, 18.0
      %v780 = vmul.f32 %v728, 18.0
      %v781 = vmul.f32 %v729, 18.0
      %v782 = vmul.f32 %v730, 18.0
      %v783 = vmul.f32 %v731, 18.0
      %v784 = vmul.f32 %v732, 18.0
      %v785 = vmul.f32 %v733, 18.0
      %v786 = vmul.f32 %v734, 18.0
      %v787 = vmul.f32 %v735, 18.0
      %v788 = vsub.f32 %v580, %v736
      %v789 = vsub.f32 %v581, %v737
      %v790 = vsub.f32 %v582, %v738
      %v791 = vsub.f32 %v583, %v739
      %v792 = vsub.f32 %v584, %v740
      %v793 = vsub.f32 %v585, %v741
      %v794 = vsub.f32 %v586, %v742
      %v795 = vsub.f32 %v587, %v743
      %v796 = vsub.f32 %v588, %v744
      %v797 = vsub.f32 %v589, %v745
      %v798 = vsub.f32 %v590, %v746
      %v799 = vsub.f32 %v591, %v747
      %v800 = vsub.f32 %v592, %v748
      %v801 = vsub.f32 %v593, %v749
      %v802 = vsub.f32 %v594, %v750
      %v803 = vsub.f32 %v595, %v751
      %v804 = vsub.f32 %v596, %v752
      %v805 = vsub.f32 %v597, %v753
      %v806 = vsub.f32 %v598, %v754
      %v807 = vsub.f32 %v599, %v755
      %v808 = vsub.f32 %v600, %v756
      %v809 = vsub.f32 %v601, %v757
      %v810 = vsub.f32 %v602, %v758
      %v811 = vsub.f32 %v603, %v759
      %v812 = vsub.f32 %v604, %v760
      %v813 = vsub.f32 %v605, %v761
      %v814 = vsub.f32 %v606, %v762
      %v815 = vsub.f32 %v607, %v763
      %v816 = vsub.f32 %v608, %v764
      %v817 = vsub.f32 %v609, %v765
      %v818 = vsub.f32 %v610, %v766
      %v819 = vsub.f32 %v611, %v767
      %v820 = vsub.f32 %v612, %v768
      %v821 = vsub.f32 %v613, %v769
      %v822 = vsub.f32 %v614, %v770
      %v823 = vsub.f32 %v615, %v771
      %v824 = vsub.f32 %v616, %v772
      %v825 = vsub.f32 %v617, %v773
      %v826 = vsub.f32 %v618, %v774
      %v827 = vsub.f32 %v619, %v775
      %v828 = vsub.f32 %v620, %v776
      %v829 = vsub.f32 %v621, %v777
      %v830 = vsub.f32 %v622, %v778
      %v831 = vsub.f32 %v623, %v779
      %v832 = vsub.f32 %v624, %v780
      %v833 = vsub.f32 %v625, %v781
      %v834 = vsub.f32 %v626, %v782
      %v835 = vsub.f32 %v627, %v783
      %v836 = vsub.f32 %v628, %v784
      %v837 = vsub.f32 %v629, %v785
      %v838 = vsub.f32 %v630, %v786
      %v839 = vsub.f32 %v631, %v787
      %v840 = vmul.f32 %v580, 0.0030864198
      %v841 = vmul.f32 %v581, 0.0030864198
      %v842 = vmul.f32 %v582, 0.0030864198
      %v843 = vmul.f32 %v583, 0.0030864198
      %v844 = vmul.f32 %v584, 0.0030864198
      %v845 = vmul.f32 %v585, 0.0030864198
      %v846 = vmul.f32 %v586, 0.0030864198
      %v847 = vmul.f32 %v587, 0.0030864198
      %v848 = vmul.f32 %v588, 0.0030864198
      %v849 = vmul.f32 %v589, 0.0030864198
      %v850 = vmul.f32 %v590, 0.0030864198
      %v851 = vmul.f32 %v591, 0.0030864198
      %v852 = vmul.f32 %v592, 0.0030864198
      %v853 = vmul.f32 %v593, 0.0030864198
      %v854 = vmul.f32 %v594, 0.0030864198
      %v855 = vmul.f32 %v595, 0.0030864198
      %v856 = vmul.f32 %v596, 0.0030864198
      %v857 = vmul.f32 %v597, 0.0030864198
      %v858 = vmul.f32 %v598, 0.0030864198
      %v859 = vmul.f32 %v599, 0.0030864198
      %v860 = vmul.f32 %v600, 0.0030864198
      %v861 = vmul.f32 %v601, 0.0030864198
      %v862 = vmul.f32 %v602, 0.0030864198
      %v863 = vmul.f32 %v603, 0.0030864198
      %v864 = vmul.f32 %v604, 0.0030864198
      %v865 = vmul.f32 %v605, 0.0030864198
      %v866 = vmul.f32 %v606, 0.0030864198
      %v867 = vmul.f32 %v607, 0.0030864198
      %v868 = vmul.f32 %v608, 0.0030864198
      %v869 = vmul.f32 %v609, 0.0030864198
      %v870 = vmul.f32 %v610, 0.0030864198
      %v871 = vmul.f32 %v611, 0.0030864198
      %v872 = vmul.f32 %v612, 0.0030864198
      %v873 = vmul.f32 %v613, 0.0030864198
      %v874 = vmul.f32 %v614, 0.0030864198
      %v875 = vmul.f32 %v615, 0.0030864198
      %v876 = vmul.f32 %v616, 0.0030864198
      %v877 = vmul.f32 %v617, 0.0030864198
      %v878 = vmul.f32 %v618, 0.0030864198
      %v879 = vmul.f32 %v619, 0.0030864198
      %v880 = vmul.f32 %v620, 0.0030864198
      %v881 = vmul.f32 %v621, 0.0030864198
      %v882 = vmul.f32 %v622, 0.0030864198
      %v883 = vmul.f32 %v623, 0.0030864198
      %v884 = vmul.f32 %v624, 0.0030864198
      %v885 = vmul.f32 %v625, 0.0030864198
      %v886 = vmul.f32 %v626, 0.0030864198
      %v887 = vmul.f32 %v627, 0.0030864198
      %v888 = vmul.f32 %v628, 0.0030864198
      %v889 = vmul.f32 %v629, 0.0030864198
      %v890 = vmul.f32 %v630, 0.0030864198
      %v891 = vmul.f32 %v631, 0.0030864198
      %v892 = vfloor.f32 %v840
      %v893 = vfloor.f32 %v841
      %v894 = vfloor.f32 %v842
      %v895 = vfloor.f32 %v843
      %v896 = vfloor.f32 %v844
      %v897 = vfloor.f32 %v845
      %v898 = vfloor.f32 %v846
      %v899 = vfloor.f32 %v847
      %v900 = vfloor.f32 %v848
      %v901 = vfloor.f32 %v849
      %v902 = vfloor.f32 %v850
      %v903 = vfloor.f32 %v851
      %v904 = vfloor.f32 %v852
      %v905 = vfloor.f32 %v853
      %v906 = vfloor.f32 %v854
      %v907 = vfloor.f32 %v855
      %v908 = vfloor.f32 %v856
      %v909 = vfloor.f32 %v857
      %v910 = vfloor.f32 %v858
      %v911 = vfloor.f32 %v859
      %v912 = vfloor.f32 %v860
      %v913 = vfloor.f32 %v861
      %v914 = vfloor.f32 %v862
      %v915 = vfloor.f32 %v863
      %v916 = vfloor.f32 %v864
      %v917 = vfloor.f32 %v865
      %v918 = vfloor.f32 %v866
      %v919 = vfloor.f32 %v867
      %v920 = vfloor.f32 %v868
      %v921 = vfloor.f32 %v869
      %v922 = vfloor.f32 %v870
      %v923 = vfloor.f32 %v871
      %v924 = vfloor.f32 %v872
      %v925 = vfloor.f32 %v873
      %v926 = vfloor.f32 %v874
      %v927 = vfloor.f32 %v875
      %v928 = vfloor.f32 %v876
      %v929 = vfloor.f32 %v877
      %v930 = vfloor.f32 %v878
      %v931 = vfloor.f32 %v879
      %v932 = vfloor.f32 %v880
      %v933 = vfloor.f32 %v881
      %v934 = vfloor.f32 %v882
      %v935 = vfloor.f32 %v883
      %v936 = vfloor.f32 %v884
      %v937 = vfloor.f32 %v885
      %v938 = vfloor.f32 %v886
      %v939 = vfloor.f32 %v887
      %v940 = vfloor.f32 %v888
      %v941 = vfloor.f32 %v889
      %v942 = vfloor.f32 %v890
      %v943 = vfloor.f32 %v891
      %v944 = vmul.f32 %v892, 324.0
      %v945 = vmul.f32 %v893, 324.0
      %v946 = vmul.f32 %v894, 324.0
      %v947 = vmul.f32 %v895, 324.0
      %v948 = vmul.f32 %v896, 324.0
      %v949 = vmul.f32 %v897, 324.0
      %v950 = vmul.f32 %v898, 324.0
      %v951 = vmul.f32 %v899, 324.0
      %v952 = vmul.f32 %v900, 324.0
      %v953 = vmul.f32 %v901, 324.0
      %v954 = vmul.f32 %v902, 324.0
      %v955 = vmul.f32 %v903, 324.0
      %v956 = vmul.f32 %v904, 324.0
      %v957 = vmul.f32 %v905, 324.0
      %v958 = vmul.f32 %v906, 324.0
      %v959 = vmul.f32 %v907, 324.0
      %v960 = vmul.f32 %v908, 324.0
      %v961 = vmul.f32 %v909, 324.0
      %v962 = vmul.f32 %v910, 324.0
      %v963 = vmul.f32 %v911, 324.0
      %v964 = vmul.f32 %v912, 324.0
      %v965 = vmul.f32 %v913, 324.0
      %v966 = vmul.f32 %v914, 324.0
      %v967 = vmul.f32 %v915, 324.0
      %v968 = vmul.f32 %v916, 324.0
      %v969 = vmul.f32 %v917, 324.0
      %v970 = vmul.f32 %v918, 324.0
      %v971 = vmul.f32 %v919, 324.0
      %v972 = vmul.f32 %v920, 324.0
      %v973 = vmul.f32 %v921, 324.0
      %v974 = vmul.f32 %v922, 324.0
      %v975 = vmul.f32 %v923, 324.0
      %v976 = vmul.f32 %v924, 324.0
      %v977 = vmul.f32 %v925, 324.0
      %v978 = vmul.f32 %v926, 324.0
      %v979 = vmul.f32 %v927, 324.0
      %v980 = vmul.f32 %v928, 324.0
      %v981 = vmul.f32 %v929, 324.0
      %v982 = vmul.f32 %v930, 324.0
      %v983 = vmul.f32 %v931, 324.0
      %v984 = vmul.f32 %v932, 324.0
      %v985 = vmul.f32 %v933, 324.0
      %v986 = vmul.f32 %v934, 324.0
      %v987 = vmul.f32 %v935, 324.0
      %v988 = vmul.f32 %v936, 324.0
      %v989 = vmul.f32 %v937, 324.0
      %v990 = vmul.f32 %v938, 324.0
      %v991 = vmul.f32 %v939, 324.0
      %v992 = vmul.f32 %v940, 324.0
      %v993 = vmul.f32 %v941, 324.0
      %v994 = vmul.f32 %v942, 324.0
      %v995 = vmul.f32 %v943, 324.0
      %v996 = vsub.f32 %v580, %v944
      %v997 = vsub.f32 %v581, %v945
      %v998 = vsub.f32 %v582, %v946
      %v999 = vsub.f32 %v583, %v947
      %v1000 = vsub.f32 %v584, %v948
      %v1001 = vsub.f32 %v585, %v949
      %v1002 = vsub.f32 %v586, %v950
      %v1003 = vsub.f32 %v587, %v951
      %v1004 = vsub.f32 %v588, %v952
      %v1005 = vsub.f32 %v589, %v953
      %v1006 = vsub.f32 %v590, %v954
      %v1007 = vsub.f32 %v591, %v955
      %v1008 = vsub.f32 %v592, %v956
      %v1009 = vsub.f32 %v593, %v957
      %v1010 = vsub.f32 %v594, %v958
      %v1011 = vsub.f32 %v595, %v959
      %v1012 = vsub.f32 %v596, %v960
      %v1013 = vsub.f32 %v597, %v961
      %v1014 = vsub.f32 %v598, %v962
      %v1015 = vsub.f32 %v599, %v963
      %v1016 = vsub.f32 %v600, %v964
      %v1017 = vsub.f32 %v601, %v965
      %v1018 = vsub.f32 %v602, %v966
      %v1019 = vsub.f32 %v603, %v967
      %v1020 = vsub.f32 %v604, %v968
      %v1021 = vsub.f32 %v605, %v969
      %v1022 = vsub.f32 %v606, %v970
      %v1023 = vsub.f32 %v607, %v971
      %v1024 = vsub.f32 %v608, %v972
      %v1025 = vsub.f32 %v609, %v973
      %v1026 = vsub.f32 %v610, %v974
      %v1027 = vsub.f32 %v611, %v975
      %v1028 = vsub.f32 %v612, %v976
      %v1029 = vsub.f32 %v613, %v977
      %v1030 = vsub.f32 %v614, %v978
      %v1031 = vsub.f32 %v615, %v979
      %v1032 = vsub.f32 %v616, %v980
      %v1033 = vsub.f32 %v617, %v981
      %v1034 = vsub.f32 %v618, %v982
      %v1035 = vsub.f32 %v619, %v983
      %v1036 = vsub.f32 %v620, %v984
      %v1037 = vsub.f32 %v621, %v985
      %v1038 = vsub.f32 %v622, %v986
      %v1039 = vsub.f32 %v623, %v987
      %v1040 = vsub.f32 %v624, %v988
      %v1041 = vsub.f32 %v625, %v989
      %v1042 = vsub.f32 %v626, %v990
      %v1043 = vsub.f32 %v627, %v991
      %v1044 = vsub.f32 %v628, %v992
      %v1045 = vsub.f32 %v629, %v993
      %v1046 = vsub.f32 %v630, %v994
      %v1047 = vsub.f32 %v631, %v995
      %vm1048 = vcmp.ge.s32.totalorder %v476, 0
      %vm1049 = vcmp.ge.s32.totalorder %v477, 0
      %vm1050 = vcmp.ge.s32.totalorder %v478, 0
      %vm1051 = vcmp.ge.s32.totalorder %v479, 0
      %vm1052 = vcmp.ge.s32.totalorder %v480, 0
      %vm1053 = vcmp.ge.s32.totalorder %v481, 0
      %vm1054 = vcmp.ge.s32.totalorder %v482, 0
      %vm1055 = vcmp.ge.s32.totalorder %v483, 0
      %vm1056 = vcmp.ge.s32.totalorder %v484, 0
      %vm1057 = vcmp.ge.s32.totalorder %v485, 0
      %vm1058 = vcmp.ge.s32.totalorder %v486, 0
      %vm1059 = vcmp.ge.s32.totalorder %v487, 0
      %vm1060 = vcmp.ge.s32.totalorder %v488, 0
      %vm1061 = vcmp.ge.s32.totalorder %v489, 0
      %vm1062 = vcmp.ge.s32.totalorder %v490, 0
      %vm1063 = vcmp.ge.s32.totalorder %v491, 0
      %vm1064 = vcmp.ge.s32.totalorder %v492, 0
      %vm1065 = vcmp.ge.s32.totalorder %v493, 0
      %vm1066 = vcmp.ge.s32.totalorder %v494, 0
      %vm1067 = vcmp.ge.s32.totalorder %v495, 0
      %vm1068 = vcmp.ge.s32.totalorder %v496, 0
      %vm1069 = vcmp.ge.s32.totalorder %v497, 0
      %vm1070 = vcmp.ge.s32.totalorder %v498, 0
      %vm1071 = vcmp.ge.s32.totalorder %v499, 0
      %vm1072 = vcmp.ge.s32.totalorder %v500, 0
      %vm1073 = vcmp.ge.s32.totalorder %v501, 0
      %vm1074 = vcmp.ge.s32.totalorder %v502, 0
      %vm1075 = vcmp.ge.s32.totalorder %v503, 0
      %vm1076 = vcmp.ge.s32.totalorder %v504, 0
      %vm1077 = vcmp.ge.s32.totalorder %v505, 0
      %vm1078 = vcmp.ge.s32.totalorder %v506, 0
      %vm1079 = vcmp.ge.s32.totalorder %v507, 0
      %vm1080 = vcmp.ge.s32.totalorder %v508, 0
      %vm1081 = vcmp.ge.s32.totalorder %v509, 0
      %vm1082 = vcmp.ge.s32.totalorder %v510, 0
      %vm1083 = vcmp.ge.s32.totalorder %v511, 0
      %vm1084 = vcmp.ge.s32.totalorder %v512, 0
      %vm1085 = vcmp.ge.s32.totalorder %v513, 0
      %vm1086 = vcmp.ge.s32.totalorder %v514, 0
      %vm1087 = vcmp.ge.s32.totalorder %v515, 0
      %vm1088 = vcmp.ge.s32.totalorder %v516, 0
      %vm1089 = vcmp.ge.s32.totalorder %v517, 0
      %vm1090 = vcmp.ge.s32.totalorder %v518, 0
      %vm1091 = vcmp.ge.s32.totalorder %v519, 0
      %vm1092 = vcmp.ge.s32.totalorder %v520, 0
      %vm1093 = vcmp.ge.s32.totalorder %v521, 0
      %vm1094 = vcmp.ge.s32.totalorder %v522, 0
      %vm1095 = vcmp.ge.s32.totalorder %v523, 0
      %vm1096 = vcmp.ge.s32.totalorder %v524, 0
      %vm1097 = vcmp.ge.s32.totalorder %v525, 0
      %vm1098 = vcmp.ge.s32.totalorder %v526, 0
      %vm1099 = vcmp.ge.s32.totalorder %v527, 0
      %vm1100 = vcmp.lt.s32.totalorder %v476, 648
      %vm1101 = vcmp.lt.s32.totalorder %v477, 648
      %vm1102 = vcmp.lt.s32.totalorder %v478, 648
      %vm1103 = vcmp.lt.s32.totalorder %v479, 648
      %vm1104 = vcmp.lt.s32.totalorder %v480, 648
      %vm1105 = vcmp.lt.s32.totalorder %v481, 648
      %vm1106 = vcmp.lt.s32.totalorder %v482, 648
      %vm1107 = vcmp.lt.s32.totalorder %v483, 648
      %vm1108 = vcmp.lt.s32.totalorder %v484, 648
      %vm1109 = vcmp.lt.s32.totalorder %v485, 648
      %vm1110 = vcmp.lt.s32.totalorder %v486, 648
      %vm1111 = vcmp.lt.s32.totalorder %v487, 648
      %vm1112 = vcmp.lt.s32.totalorder %v488, 648
      %vm1113 = vcmp.lt.s32.totalorder %v489, 648
      %vm1114 = vcmp.lt.s32.totalorder %v490, 648
      %vm1115 = vcmp.lt.s32.totalorder %v491, 648
      %vm1116 = vcmp.lt.s32.totalorder %v492, 648
      %vm1117 = vcmp.lt.s32.totalorder %v493, 648
      %vm1118 = vcmp.lt.s32.totalorder %v494, 648
      %vm1119 = vcmp.lt.s32.totalorder %v495, 648
      %vm1120 = vcmp.lt.s32.totalorder %v496, 648
      %vm1121 = vcmp.lt.s32.totalorder %v497, 648
      %vm1122 = vcmp.lt.s32.totalorder %v498, 648
      %vm1123 = vcmp.lt.s32.totalorder %v499, 648
      %vm1124 = vcmp.lt.s32.totalorder %v500, 648
      %vm1125 = vcmp.lt.s32.totalorder %v501, 648
      %vm1126 = vcmp.lt.s32.totalorder %v502, 648
      %vm1127 = vcmp.lt.s32.totalorder %v503, 648
      %vm1128 = vcmp.lt.s32.totalorder %v504, 648
      %vm1129 = vcmp.lt.s32.totalorder %v505, 648
      %vm1130 = vcmp.lt.s32.totalorder %v506, 648
      %vm1131 = vcmp.lt.s32.totalorder %v507, 648
      %vm1132 = vcmp.lt.s32.totalorder %v508, 648
      %vm1133 = vcmp.lt.s32.totalorder %v509, 648
      %vm1134 = vcmp.lt.s32.totalorder %v510, 648
      %vm1135 = vcmp.lt.s32.totalorder %v511, 648
      %vm1136 = vcmp.lt.s32.totalorder %v512, 648
      %vm1137 = vcmp.lt.s32.totalorder %v513, 648
      %vm1138 = vcmp.lt.s32.totalorder %v514, 648
      %vm1139 = vcmp.lt.s32.totalorder %v515, 648
      %vm1140 = vcmp.lt.s32.totalorder %v516, 648
      %vm1141 = vcmp.lt.s32.totalorder %v517, 648
      %vm1142 = vcmp.lt.s32.totalorder %v518, 648
      %vm1143 = vcmp.lt.s32.totalorder %v519, 648
      %vm1144 = vcmp.lt.s32.totalorder %v520, 648
      %vm1145 = vcmp.lt.s32.totalorder %v521, 648
      %vm1146 = vcmp.lt.s32.totalorder %v522, 648
      %vm1147 = vcmp.lt.s32.totalorder %v523, 648
      %vm1148 = vcmp.lt.s32.totalorder %v524, 648
      %vm1149 = vcmp.lt.s32.totalorder %v525, 648
      %vm1150 = vcmp.lt.s32.totalorder %v526, 648
      %vm1151 = vcmp.lt.s32.totalorder %v527, 648
      %vm1152 = vmand %vm1048, %vm1100
      %vm1153 = vmand %vm1049, %vm1101
      %vm1154 = vmand %vm1050, %vm1102
      %vm1155 = vmand %vm1051, %vm1103
      %vm1156 = vmand %vm1052, %vm1104
      %vm1157 = vmand %vm1053, %vm1105
      %vm1158 = vmand %vm1054, %vm1106
      %vm1159 = vmand %vm1055, %vm1107
      %vm1160 = vmand %vm1056, %vm1108
      %vm1161 = vmand %vm1057, %vm1109
      %vm1162 = vmand %vm1058, %vm1110
      %vm1163 = vmand %vm1059, %vm1111
      %vm1164 = vmand %vm1060, %vm1112
      %vm1165 = vmand %vm1061, %vm1113
      %vm1166 = vmand %vm1062, %vm1114
      %vm1167 = vmand %vm1063, %vm1115
      %vm1168 = vmand %vm1064, %vm1116
      %vm1169 = vmand %vm1065, %vm1117
      %vm1170 = vmand %vm1066, %vm1118
      %vm1171 = vmand %vm1067, %vm1119
      %vm1172 = vmand %vm1068, %vm1120
      %vm1173 = vmand %vm1069, %vm1121
      %vm1174 = vmand %vm1070, %vm1122
      %vm1175 = vmand %vm1071, %vm1123
      %vm1176 = vmand %vm1072, %vm1124
      %vm1177 = vmand %vm1073, %vm1125
      %vm1178 = vmand %vm1074, %vm1126
      %vm1179 = vmand %vm1075, %vm1127
      %vm1180 = vmand %vm1076, %vm1128
      %vm1181 = vmand %vm1077, %vm1129
      %vm1182 = vmand %vm1078, %vm1130
      %vm1183 = vmand %vm1079, %vm1131
      %vm1184 = vmand %vm1080, %vm1132
      %vm1185 = vmand %vm1081, %vm1133
      %vm1186 = vmand %vm1082, %vm1134
      %vm1187 = vmand %vm1083, %vm1135
      %vm1188 = vmand %vm1084, %vm1136
      %vm1189 = vmand %vm1085, %vm1137
      %vm1190 = vmand %vm1086, %vm1138
      %vm1191 = vmand %vm1087, %vm1139
      %vm1192 = vmand %vm1088, %vm1140
      %vm1193 = vmand %vm1089, %vm1141
      %vm1194 = vmand %vm1090, %vm1142
      %vm1195 = vmand %vm1091, %vm1143
      %vm1196 = vmand %vm1092, %vm1144
      %vm1197 = vmand %vm1093, %vm1145
      %vm1198 = vmand %vm1094, %vm1146
      %vm1199 = vmand %vm1095, %vm1147
      %vm1200 = vmand %vm1096, %vm1148
      %vm1201 = vmand %vm1097, %vm1149
      %vm1202 = vmand %vm1098, %vm1150
      %vm1203 = vmand %vm1099, %vm1151
      %vm1204 = vcmp.gt.f32.partialorder %v788, 1.0
      %vm1205 = vcmp.gt.f32.partialorder %v789, 1.0
      %vm1206 = vcmp.gt.f32.partialorder %v790, 1.0
      %vm1207 = vcmp.gt.f32.partialorder %v791, 1.0
      %vm1208 = vcmp.gt.f32.partialorder %v792, 1.0
      %vm1209 = vcmp.gt.f32.partialorder %v793, 1.0
      %vm1210 = vcmp.gt.f32.partialorder %v794, 1.0
      %vm1211 = vcmp.gt.f32.partialorder %v795, 1.0
      %vm1212 = vcmp.gt.f32.partialorder %v796, 1.0
      %vm1213 = vcmp.gt.f32.partialorder %v797, 1.0
      %vm1214 = vcmp.gt.f32.partialorder %v798, 1.0
      %vm1215 = vcmp.gt.f32.partialorder %v799, 1.0
      %vm1216 = vcmp.gt.f32.partialorder %v800, 1.0
      %vm1217 = vcmp.gt.f32.partialorder %v801, 1.0
      %vm1218 = vcmp.gt.f32.partialorder %v802, 1.0
      %vm1219 = vcmp.gt.f32.partialorder %v803, 1.0
      %vm1220 = vcmp.gt.f32.partialorder %v804, 1.0
      %vm1221 = vcmp.gt.f32.partialorder %v805, 1.0
      %vm1222 = vcmp.gt.f32.partialorder %v806, 1.0
      %vm1223 = vcmp.gt.f32.partialorder %v807, 1.0
      %vm1224 = vcmp.gt.f32.partialorder %v808, 1.0
      %vm1225 = vcmp.gt.f32.partialorder %v809, 1.0
      %vm1226 = vcmp.gt.f32.partialorder %v810, 1.0
      %vm1227 = vcmp.gt.f32.partialorder %v811, 1.0
      %vm1228 = vcmp.gt.f32.partialorder %v812, 1.0
      %vm1229 = vcmp.gt.f32.partialorder %v813, 1.0
      %vm1230 = vcmp.gt.f32.partialorder %v814, 1.0
      %vm1231 = vcmp.gt.f32.partialorder %v815, 1.0
      %vm1232 = vcmp.gt.f32.partialorder %v816, 1.0
      %vm1233 = vcmp.gt.f32.partialorder %v817, 1.0
      %vm1234 = vcmp.gt.f32.partialorder %v818, 1.0
      %vm1235 = vcmp.gt.f32.partialorder %v819, 1.0
      %vm1236 = vcmp.gt.f32.partialorder %v820, 1.0
      %vm1237 = vcmp.gt.f32.partialorder %v821, 1.0
      %vm1238 = vcmp.gt.f32.partialorder %v822, 1.0
      %vm1239 = vcmp.gt.f32.partialorder %v823, 1.0
      %vm1240 = vcmp.gt.f32.partialorder %v824, 1.0
      %vm1241 = vcmp.gt.f32.partialorder %v825, 1.0
      %vm1242 = vcmp.gt.f32.partialorder %v826, 1.0
      %vm1243 = vcmp.gt.f32.partialorder %v827, 1.0
      %vm1244 = vcmp.gt.f32.partialorder %v828, 1.0
      %vm1245 = vcmp.gt.f32.partialorder %v829, 1.0
      %vm1246 = vcmp.gt.f32.partialorder %v830, 1.0
      %vm1247 = vcmp.gt.f32.partialorder %v831, 1.0
      %vm1248 = vcmp.gt.f32.partialorder %v832, 1.0
      %vm1249 = vcmp.gt.f32.partialorder %v833, 1.0
      %vm1250 = vcmp.gt.f32.partialorder %v834, 1.0
      %vm1251 = vcmp.gt.f32.partialorder %v835, 1.0
      %vm1252 = vcmp.gt.f32.partialorder %v836, 1.0
      %vm1253 = vcmp.gt.f32.partialorder %v837, 1.0
      %vm1254 = vcmp.gt.f32.partialorder %v838, 1.0
      %vm1255 = vcmp.gt.f32.partialorder %v839, 1.0
      %vm1256 = vmand %vm1152, %vm1204
      %vm1257 = vmand %vm1153, %vm1205
      %vm1258 = vmand %vm1154, %vm1206
      %vm1259 = vmand %vm1155, %vm1207
      %vm1260 = vmand %vm1156, %vm1208
      %vm1261 = vmand %vm1157, %vm1209
      %vm1262 = vmand %vm1158, %vm1210
      %vm1263 = vmand %vm1159, %vm1211
      %vm1264 = vmand %vm1160, %vm1212
      %vm1265 = vmand %vm1161, %vm1213
      %vm1266 = vmand %vm1162, %vm1214
      %vm1267 = vmand %vm1163, %vm1215
      %vm1268 = vmand %vm1164, %vm1216
      %vm1269 = vmand %vm1165, %vm1217
      %vm1270 = vmand %vm1166, %vm1218
      %vm1271 = vmand %vm1167, %vm1219
      %vm1272 = vmand %vm1168, %vm1220
      %vm1273 = vmand %vm1169, %vm1221
      %vm1274 = vmand %vm1170, %vm1222
      %vm1275 = vmand %vm1171, %vm1223
      %vm1276 = vmand %vm1172, %vm1224
      %vm1277 = vmand %vm1173, %vm1225
      %vm1278 = vmand %vm1174, %vm1226
      %vm1279 = vmand %vm1175, %vm1227
      %vm1280 = vmand %vm1176, %vm1228
      %vm1281 = vmand %vm1177, %vm1229
      %vm1282 = vmand %vm1178, %vm1230
      %vm1283 = vmand %vm1179, %vm1231
      %vm1284 = vmand %vm1180, %vm1232
      %vm1285 = vmand %vm1181, %vm1233
      %vm1286 = vmand %vm1182, %vm1234
      %vm1287 = vmand %vm1183, %vm1235
      %vm1288 = vmand %vm1184, %vm1236
      %vm1289 = vmand %vm1185, %vm1237
      %vm1290 = vmand %vm1186, %vm1238
      %vm1291 = vmand %vm1187, %vm1239
      %vm1292 = vmand %vm1188, %vm1240
      %vm1293 = vmand %vm1189, %vm1241
      %vm1294 = vmand %vm1190, %vm1242
      %vm1295 = vmand %vm1191, %vm1243
      %vm1296 = vmand %vm1192, %vm1244
      %vm1297 = vmand %vm1193, %vm1245
      %vm1298 = vmand %vm1194, %vm1246
      %vm1299 = vmand %vm1195, %vm1247
      %vm1300 = vmand %vm1196, %vm1248
      %vm1301 = vmand %vm1197, %vm1249
      %vm1302 = vmand %vm1198, %vm1250
      %vm1303 = vmand %vm1199, %vm1251
      %vm1304 = vmand %vm1200, %vm1252
      %vm1305 = vmand %vm1201, %vm1253
      %vm1306 = vmand %vm1202, %vm1254
      %vm1307 = vmand %vm1203, %vm1255
      %vm1308 = vcmp.lt.f32.partialorder %v788, 17.0
      %vm1309 = vcmp.lt.f32.partialorder %v789, 17.0
      %vm1310 = vcmp.lt.f32.partialorder %v790, 17.0
      %vm1311 = vcmp.lt.f32.partialorder %v791, 17.0
      %vm1312 = vcmp.lt.f32.partialorder %v792, 17.0
      %vm1313 = vcmp.lt.f32.partialorder %v793, 17.0
      %vm1314 = vcmp.lt.f32.partialorder %v794, 17.0
      %vm1315 = vcmp.lt.f32.partialorder %v795, 17.0
      %vm1316 = vcmp.lt.f32.partialorder %v796, 17.0
      %vm1317 = vcmp.lt.f32.partialorder %v797, 17.0
      %vm1318 = vcmp.lt.f32.partialorder %v798, 17.0
      %vm1319 = vcmp.lt.f32.partialorder %v799, 17.0
      %vm1320 = vcmp.lt.f32.partialorder %v800, 17.0
      %vm1321 = vcmp.lt.f32.partialorder %v801, 17.0
      %vm1322 = vcmp.lt.f32.partialorder %v802, 17.0
      %vm1323 = vcmp.lt.f32.partialorder %v803, 17.0
      %vm1324 = vcmp.lt.f32.partialorder %v804, 17.0
      %vm1325 = vcmp.lt.f32.partialorder %v805, 17.0
      %vm1326 = vcmp.lt.f32.partialorder %v806, 17.0
      %vm1327 = vcmp.lt.f32.partialorder %v807, 17.0
      %vm1328 = vcmp.lt.f32.partialorder %v808, 17.0
      %vm1329 = vcmp.lt.f32.partialorder %v809, 17.0
      %vm1330 = vcmp.lt.f32.partialorder %v810, 17.0
      %vm1331 = vcmp.lt.f32.partialorder %v811, 17.0
      %vm1332 = vcmp.lt.f32.partialorder %v812, 17.0
      %vm1333 = vcmp.lt.f32.partialorder %v813, 17.0
      %vm1334 = vcmp.lt.f32.partialorder %v814, 17.0
      %vm1335 = vcmp.lt.f32.partialorder %v815, 17.0
      %vm1336 = vcmp.lt.f32.partialorder %v816, 17.0
      %vm1337 = vcmp.lt.f32.partialorder %v817, 17.0
      %vm1338 = vcmp.lt.f32.partialorder %v818, 17.0
      %vm1339 = vcmp.lt.f32.partialorder %v819, 17.0
      %vm1340 = vcmp.lt.f32.partialorder %v820, 17.0
      %vm1341 = vcmp.lt.f32.partialorder %v821, 17.0
      %vm1342 = vcmp.lt.f32.partialorder %v822, 17.0
      %vm1343 = vcmp.lt.f32.partialorder %v823, 17.0
      %vm1344 = vcmp.lt.f32.partialorder %v824, 17.0
      %vm1345 = vcmp.lt.f32.partialorder %v825, 17.0
      %vm1346 = vcmp.lt.f32.partialorder %v826, 17.0
      %vm1347 = vcmp.lt.f32.partialorder %v827, 17.0
      %vm1348 = vcmp.lt.f32.partialorder %v828, 17.0
      %vm1349 = vcmp.lt.f32.partialorder %v829, 17.0
      %vm1350 = vcmp.lt.f32.partialorder %v830, 17.0
      %vm1351 = vcmp.lt.f32.partialorder %v831, 17.0
      %vm1352 = vcmp.lt.f32.partialorder %v832, 17.0
      %vm1353 = vcmp.lt.f32.partialorder %v833, 17.0
      %vm1354 = vcmp.lt.f32.partialorder %v834, 17.0
      %vm1355 = vcmp.lt.f32.partialorder %v835, 17.0
      %vm1356 = vcmp.lt.f32.partialorder %v836, 17.0
      %vm1357 = vcmp.lt.f32.partialorder %v837, 17.0
      %vm1358 = vcmp.lt.f32.partialorder %v838, 17.0
      %vm1359 = vcmp.lt.f32.partialorder %v839, 17.0
      %vm1360 = vmand %vm1256, %vm1308
      %vm1361 = vmand %vm1257, %vm1309
      %vm1362 = vmand %vm1258, %vm1310
      %vm1363 = vmand %vm1259, %vm1311
      %vm1364 = vmand %vm1260, %vm1312
      %vm1365 = vmand %vm1261, %vm1313
      %vm1366 = vmand %vm1262, %vm1314
      %vm1367 = vmand %vm1263, %vm1315
      %vm1368 = vmand %vm1264, %vm1316
      %vm1369 = vmand %vm1265, %vm1317
      %vm1370 = vmand %vm1266, %vm1318
      %vm1371 = vmand %vm1267, %vm1319
      %vm1372 = vmand %vm1268, %vm1320
      %vm1373 = vmand %vm1269, %vm1321
      %vm1374 = vmand %vm1270, %vm1322
      %vm1375 = vmand %vm1271, %vm1323
      %vm1376 = vmand %vm1272, %vm1324
      %vm1377 = vmand %vm1273, %vm1325
      %vm1378 = vmand %vm1274, %vm1326
      %vm1379 = vmand %vm1275, %vm1327
      %vm1380 = vmand %vm1276, %vm1328
      %vm1381 = vmand %vm1277, %vm1329
      %vm1382 = vmand %vm1278, %vm1330
      %vm1383 = vmand %vm1279, %vm1331
      %vm1384 = vmand %vm1280, %vm1332
      %vm1385 = vmand %vm1281, %vm1333
      %vm1386 = vmand %vm1282, %vm1334
      %vm1387 = vmand %vm1283, %vm1335
      %vm1388 = vmand %vm1284, %vm1336
      %vm1389 = vmand %vm1285, %vm1337
      %vm1390 = vmand %vm1286, %vm1338
      %vm1391 = vmand %vm1287, %vm1339
      %vm1392 = vmand %vm1288, %vm1340
      %vm1393 = vmand %vm1289, %vm1341
      %vm1394 = vmand %vm1290, %vm1342
      %vm1395 = vmand %vm1291, %vm1343
      %vm1396 = vmand %vm1292, %vm1344
      %vm1397 = vmand %vm1293, %vm1345
      %vm1398 = vmand %vm1294, %vm1346
      %vm1399 = vmand %vm1295, %vm1347
      %vm1400 = vmand %vm1296, %vm1348
      %vm1401 = vmand %vm1297, %vm1349
      %vm1402 = vmand %vm1298, %vm1350
      %vm1403 = vmand %vm1299, %vm1351
      %vm1404 = vmand %vm1300, %vm1352
      %vm1405 = vmand %vm1301, %vm1353
      %vm1406 = vmand %vm1302, %vm1354
      %vm1407 = vmand %vm1303, %vm1355
      %vm1408 = vmand %vm1304, %vm1356
      %vm1409 = vmand %vm1305, %vm1357
      %vm1410 = vmand %vm1306, %vm1358
      %vm1411 = vmand %vm1307, %vm1359
      %vm1412 = vcmp.gt.f32.partialorder %v996, 18.0
      %vm1413 = vcmp.gt.f32.partialorder %v997, 18.0
      %vm1414 = vcmp.gt.f32.partialorder %v998, 18.0
      %vm1415 = vcmp.gt.f32.partialorder %v999, 18.0
      %vm1416 = vcmp.gt.f32.partialorder %v1000, 18.0
      %vm1417 = vcmp.gt.f32.partialorder %v1001, 18.0
      %vm1418 = vcmp.gt.f32.partialorder %v1002, 18.0
      %vm1419 = vcmp.gt.f32.partialorder %v1003, 18.0
      %vm1420 = vcmp.gt.f32.partialorder %v1004, 18.0
      %vm1421 = vcmp.gt.f32.partialorder %v1005, 18.0
      %vm1422 = vcmp.gt.f32.partialorder %v1006, 18.0
      %vm1423 = vcmp.gt.f32.partialorder %v1007, 18.0
      %vm1424 = vcmp.gt.f32.partialorder %v1008, 18.0
      %vm1425 = vcmp.gt.f32.partialorder %v1009, 18.0
      %vm1426 = vcmp.gt.f32.partialorder %v1010, 18.0
      %vm1427 = vcmp.gt.f32.partialorder %v1011, 18.0
      %vm1428 = vcmp.gt.f32.partialorder %v1012, 18.0
      %vm1429 = vcmp.gt.f32.partialorder %v1013, 18.0
      %vm1430 = vcmp.gt.f32.partialorder %v1014, 18.0
      %vm1431 = vcmp.gt.f32.partialorder %v1015, 18.0
      %vm1432 = vcmp.gt.f32.partialorder %v1016, 18.0
      %vm1433 = vcmp.gt.f32.partialorder %v1017, 18.0
      %vm1434 = vcmp.gt.f32.partialorder %v1018, 18.0
      %vm1435 = vcmp.gt.f32.partialorder %v1019, 18.0
      %vm1436 = vcmp.gt.f32.partialorder %v1020, 18.0
      %vm1437 = vcmp.gt.f32.partialorder %v1021, 18.0
      %vm1438 = vcmp.gt.f32.partialorder %v1022, 18.0
      %vm1439 = vcmp.gt.f32.partialorder %v1023, 18.0
      %vm1440 = vcmp.gt.f32.partialorder %v1024, 18.0
      %vm1441 = vcmp.gt.f32.partialorder %v1025, 18.0
      %vm1442 = vcmp.gt.f32.partialorder %v1026, 18.0
      %vm1443 = vcmp.gt.f32.partialorder %v1027, 18.0
      %vm1444 = vcmp.gt.f32.partialorder %v1028, 18.0
      %vm1445 = vcmp.gt.f32.partialorder %v1029, 18.0
      %vm1446 = vcmp.gt.f32.partialorder %v1030, 18.0
      %vm1447 = vcmp.gt.f32.partialorder %v1031, 18.0
      %vm1448 = vcmp.gt.f32.partialorder %v1032, 18.0
      %vm1449 = vcmp.gt.f32.partialorder %v1033, 18.0
      %vm1450 = vcmp.gt.f32.partialorder %v1034, 18.0
      %vm1451 = vcmp.gt.f32.partialorder %v1035, 18.0
      %vm1452 = vcmp.gt.f32.partialorder %v1036, 18.0
      %vm1453 = vcmp.gt.f32.partialorder %v1037, 18.0
      %vm1454 = vcmp.gt.f32.partialorder %v1038, 18.0
      %vm1455 = vcmp.gt.f32.partialorder %v1039, 18.0
      %vm1456 = vcmp.gt.f32.partialorder %v1040, 18.0
      %vm1457 = vcmp.gt.f32.partialorder %v1041, 18.0
      %vm1458 = vcmp.gt.f32.partialorder %v1042, 18.0
      %vm1459 = vcmp.gt.f32.partialorder %v1043, 18.0
      %vm1460 = vcmp.gt.f32.partialorder %v1044, 18.0
      %vm1461 = vcmp.gt.f32.partialorder %v1045, 18.0
      %vm1462 = vcmp.gt.f32.partialorder %v1046, 18.0
      %vm1463 = vcmp.gt.f32.partialorder %v1047, 18.0
      %vm1464 = vmand %vm1360, %vm1412
      %vm1465 = vmand %vm1361, %vm1413
      %vm1466 = vmand %vm1362, %vm1414
      %vm1467 = vmand %vm1363, %vm1415
      %vm1468 = vmand %vm1364, %vm1416
      %vm1469 = vmand %vm1365, %vm1417
      %vm1470 = vmand %vm1366, %vm1418
      %vm1471 = vmand %vm1367, %vm1419
      %vm1472 = vmand %vm1368, %vm1420
      %vm1473 = vmand %vm1369, %vm1421
      %vm1474 = vmand %vm1370, %vm1422
      %vm1475 = vmand %vm1371, %vm1423
      %vm1476 = vmand %vm1372, %vm1424
      %vm1477 = vmand %vm1373, %vm1425
      %vm1478 = vmand %vm1374, %vm1426
      %vm1479 = vmand %vm1375, %vm1427
      %vm1480 = vmand %vm1376, %vm1428
      %vm1481 = vmand %vm1377, %vm1429
      %vm1482 = vmand %vm1378, %vm1430
      %vm1483 = vmand %vm1379, %vm1431
      %vm1484 = vmand %vm1380, %vm1432
      %vm1485 = vmand %vm1381, %vm1433
      %vm1486 = vmand %vm1382, %vm1434
      %vm1487 = vmand %vm1383, %vm1435
      %vm1488 = vmand %vm1384, %vm1436
      %vm1489 = vmand %vm1385, %vm1437
      %vm1490 = vmand %vm1386, %vm1438
      %vm1491 = vmand %vm1387, %vm1439
      %vm1492 = vmand %vm1388, %vm1440
      %vm1493 = vmand %vm1389, %vm1441
      %vm1494 = vmand %vm1390, %vm1442
      %vm1495 = vmand %vm1391, %vm1443
      %vm1496 = vmand %vm1392, %vm1444
      %vm1497 = vmand %vm1393, %vm1445
      %vm1498 = vmand %vm1394, %vm1446
      %vm1499 = vmand %vm1395, %vm1447
      %vm1500 = vmand %vm1396, %vm1448
      %vm1501 = vmand %vm1397, %vm1449
      %vm1502 = vmand %vm1398, %vm1450
      %vm1503 = vmand %vm1399, %vm1451
      %vm1504 = vmand %vm1400, %vm1452
      %vm1505 = vmand %vm1401, %vm1453
      %vm1506 = vmand %vm1402, %vm1454
      %vm1507 = vmand %vm1403, %vm1455
      %vm1508 = vmand %vm1404, %vm1456
      %vm1509 = vmand %vm1405, %vm1457
      %vm1510 = vmand %vm1406, %vm1458
      %vm1511 = vmand %vm1407, %vm1459
      %vm1512 = vmand %vm1408, %vm1460
      %vm1513 = vmand %vm1409, %vm1461
      %vm1514 = vmand %vm1410, %vm1462
      %vm1515 = vmand %vm1411, %vm1463
      %vm1516 = vcmp.lt.f32.partialorder %v996, 306.0
      %vm1517 = vcmp.lt.f32.partialorder %v997, 306.0
      %vm1518 = vcmp.lt.f32.partialorder %v998, 306.0
      %vm1519 = vcmp.lt.f32.partialorder %v999, 306.0
      %vm1520 = vcmp.lt.f32.partialorder %v1000, 306.0
      %vm1521 = vcmp.lt.f32.partialorder %v1001, 306.0
      %vm1522 = vcmp.lt.f32.partialorder %v1002, 306.0
      %vm1523 = vcmp.lt.f32.partialorder %v1003, 306.0
      %vm1524 = vcmp.lt.f32.partialorder %v1004, 306.0
      %vm1525 = vcmp.lt.f32.partialorder %v1005, 306.0
      %vm1526 = vcmp.lt.f32.partialorder %v1006, 306.0
      %vm1527 = vcmp.lt.f32.partialorder %v1007, 306.0
      %vm1528 = vcmp.lt.f32.partialorder %v1008, 306.0
      %vm1529 = vcmp.lt.f32.partialorder %v1009, 306.0
      %vm1530 = vcmp.lt.f32.partialorder %v1010, 306.0
      %vm1531 = vcmp.lt.f32.partialorder %v1011, 306.0
      %vm1532 = vcmp.lt.f32.partialorder %v1012, 306.0
      %vm1533 = vcmp.lt.f32.partialorder %v1013, 306.0
      %vm1534 = vcmp.lt.f32.partialorder %v1014, 306.0
      %vm1535 = vcmp.lt.f32.partialorder %v1015, 306.0
      %vm1536 = vcmp.lt.f32.partialorder %v1016, 306.0
      %vm1537 = vcmp.lt.f32.partialorder %v1017, 306.0
      %vm1538 = vcmp.lt.f32.partialorder %v1018, 306.0
      %vm1539 = vcmp.lt.f32.partialorder %v1019, 306.0
      %vm1540 = vcmp.lt.f32.partialorder %v1020, 306.0
      %vm1541 = vcmp.lt.f32.partialorder %v1021, 306.0
      %vm1542 = vcmp.lt.f32.partialorder %v1022, 306.0
      %vm1543 = vcmp.lt.f32.partialorder %v1023, 306.0
      %vm1544 = vcmp.lt.f32.partialorder %v1024, 306.0
      %vm1545 = vcmp.lt.f32.partialorder %v1025, 306.0
      %vm1546 = vcmp.lt.f32.partialorder %v1026, 306.0
      %vm1547 = vcmp.lt.f32.partialorder %v1027, 306.0
      %vm1548 = vcmp.lt.f32.partialorder %v1028, 306.0
      %vm1549 = vcmp.lt.f32.partialorder %v1029, 306.0
      %vm1550 = vcmp.lt.f32.partialorder %v1030, 306.0
      %vm1551 = vcmp.lt.f32.partialorder %v1031, 306.0
      %vm1552 = vcmp.lt.f32.partialorder %v1032, 306.0
      %vm1553 = vcmp.lt.f32.partialorder %v1033, 306.0
      %vm1554 = vcmp.lt.f32.partialorder %v1034, 306.0
      %vm1555 = vcmp.lt.f32.partialorder %v1035, 306.0
      %vm1556 = vcmp.lt.f32.partialorder %v1036, 306.0
      %vm1557 = vcmp.lt.f32.partialorder %v1037, 306.0
      %vm1558 = vcmp.lt.f32.partialorder %v1038, 306.0
      %vm1559 = vcmp.lt.f32.partialorder %v1039, 306.0
      %vm1560 = vcmp.lt.f32.partialorder %v1040, 306.0
      %vm1561 = vcmp.lt.f32.partialorder %v1041, 306.0
      %vm1562 = vcmp.lt.f32.partialorder %v1042, 306.0
      %vm1563 = vcmp.lt.f32.partialorder %v1043, 306.0
      %vm1564 = vcmp.lt.f32.partialorder %v1044, 306.0
      %vm1565 = vcmp.lt.f32.partialorder %v1045, 306.0
      %vm1566 = vcmp.lt.f32.partialorder %v1046, 306.0
      %vm1567 = vcmp.lt.f32.partialorder %v1047, 306.0
      %vm1568 = vmand %vm1464, %vm1516
      %vm1569 = vmand %vm1465, %vm1517
      %vm1570 = vmand %vm1466, %vm1518
      %vm1571 = vmand %vm1467, %vm1519
      %vm1572 = vmand %vm1468, %vm1520
      %vm1573 = vmand %vm1469, %vm1521
      %vm1574 = vmand %vm1470, %vm1522
      %vm1575 = vmand %vm1471, %vm1523
      %vm1576 = vmand %vm1472, %vm1524
      %vm1577 = vmand %vm1473, %vm1525
      %vm1578 = vmand %vm1474, %vm1526
      %vm1579 = vmand %vm1475, %vm1527
      %vm1580 = vmand %vm1476, %vm1528
      %vm1581 = vmand %vm1477, %vm1529
      %vm1582 = vmand %vm1478, %vm1530
      %vm1583 = vmand %vm1479, %vm1531
      %vm1584 = vmand %vm1480, %vm1532
      %vm1585 = vmand %vm1481, %vm1533
      %vm1586 = vmand %vm1482, %vm1534
      %vm1587 = vmand %vm1483, %vm1535
      %vm1588 = vmand %vm1484, %vm1536
      %vm1589 = vmand %vm1485, %vm1537
      %vm1590 = vmand %vm1486, %vm1538
      %vm1591 = vmand %vm1487, %vm1539
      %vm1592 = vmand %vm1488, %vm1540
      %vm1593 = vmand %vm1489, %vm1541
      %vm1594 = vmand %vm1490, %vm1542
      %vm1595 = vmand %vm1491, %vm1543
      %vm1596 = vmand %vm1492, %vm1544
      %vm1597 = vmand %vm1493, %vm1545
      %vm1598 = vmand %vm1494, %vm1546
      %vm1599 = vmand %vm1495, %vm1547
      %vm1600 = vmand %vm1496, %vm1548
      %vm1601 = vmand %vm1497, %vm1549
      %vm1602 = vmand %vm1498, %vm1550
      %vm1603 = vmand %vm1499, %vm1551
      %vm1604 = vmand %vm1500, %vm1552
      %vm1605 = vmand %vm1501, %vm1553
      %vm1606 = vmand %vm1502, %vm1554
      %vm1607 = vmand %vm1503, %vm1555
      %vm1608 = vmand %vm1504, %vm1556
      %vm1609 = vmand %vm1505, %vm1557
      %vm1610 = vmand %vm1506, %vm1558
      %vm1611 = vmand %vm1507, %vm1559
      %vm1612 = vmand %vm1508, %vm1560
      %vm1613 = vmand %vm1509, %vm1561
      %vm1614 = vmand %vm1510, %vm1562
      %vm1615 = vmand %vm1511, %vm1563
      %vm1616 = vmand %vm1512, %vm1564
      %vm1617 = vmand %vm1513, %vm1565
      %vm1618 = vmand %vm1514, %vm1566
      %vm1619 = vmand %vm1515, %vm1567
      %v1620 = vsel %vm1568, 1, 0
      %v1621 = vsel %vm1569, 1, 0
      %v1622 = vsel %vm1570, 1, 0
      %v1623 = vsel %vm1571, 1, 0
      %v1624 = vsel %vm1572, 1, 0
      %v1625 = vsel %vm1573, 1, 0
      %v1626 = vsel %vm1574, 1, 0
      %v1627 = vsel %vm1575, 1, 0
      %v1628 = vsel %vm1576, 1, 0
      %v1629 = vsel %vm1577, 1, 0
      %v1630 = vsel %vm1578, 1, 0
      %v1631 = vsel %vm1579, 1, 0
      %v1632 = vsel %vm1580, 1, 0
      %v1633 = vsel %vm1581, 1, 0
      %v1634 = vsel %vm1582, 1, 0
      %v1635 = vsel %vm1583, 1, 0
      %v1636 = vsel %vm1584, 1, 0
      %v1637 = vsel %vm1585, 1, 0
      %v1638 = vsel %vm1586, 1, 0
      %v1639 = vsel %vm1587, 1, 0
      %v1640 = vsel %vm1588, 1, 0
      %v1641 = vsel %vm1589, 1, 0
      %v1642 = vsel %vm1590, 1, 0
      %v1643 = vsel %vm1591, 1, 0
      %v1644 = vsel %vm1592, 1, 0
      %v1645 = vsel %vm1593, 1, 0
      %v1646 = vsel %vm1594, 1, 0
      %v1647 = vsel %vm1595, 1, 0
      %v1648 = vsel %vm1596, 1, 0
      %v1649 = vsel %vm1597, 1, 0
      %v1650 = vsel %vm1598, 1, 0
      %v1651 = vsel %vm1599, 1, 0
      %v1652 = vsel %vm1600, 1, 0
      %v1653 = vsel %vm1601, 1, 0
      %v1654 = vsel %vm1602, 1, 0
      %v1655 = vsel %vm1603, 1, 0
      %v1656 = vsel %vm1604, 1, 0
      %v1657 = vsel %vm1605, 1, 0
      %v1658 = vsel %vm1606, 1, 0
      %v1659 = vsel %vm1607, 1, 0
      %v1660 = vsel %vm1608, 1, 0
      %v1661 = vsel %vm1609, 1, 0
      %v1662 = vsel %vm1610, 1, 0
      %v1663 = vsel %vm1611, 1, 0
      %v1664 = vsel %vm1612, 1, 0
      %v1665 = vsel %vm1613, 1, 0
      %v1666 = vsel %vm1614, 1, 0
      %v1667 = vsel %vm1615, 1, 0
      %v1668 = vsel %vm1616, 1, 0
      %v1669 = vsel %vm1617, 1, 0
      %v1670 = vsel %vm1618, 1, 0
      %v1671 = vsel %vm1619, 1, 0
      %v1672 = vcvt.s32.f32 %v1620
      %v1673 = vcvt.s32.f32 %v1621
      %v1674 = vcvt.s32.f32 %v1622
      %v1675 = vcvt.s32.f32 %v1623
      %v1676 = vcvt.s32.f32 %v1624
      %v1677 = vcvt.s32.f32 %v1625
      %v1678 = vcvt.s32.f32 %v1626
      %v1679 = vcvt.s32.f32 %v1627
      %v1680 = vcvt.s32.f32 %v1628
      %v1681 = vcvt.s32.f32 %v1629
      %v1682 = vcvt.s32.f32 %v1630
      %v1683 = vcvt.s32.f32 %v1631
      %v1684 = vcvt.s32.f32 %v1632
      %v1685 = vcvt.s32.f32 %v1633
      %v1686 = vcvt.s32.f32 %v1634
      %v1687 = vcvt.s32.f32 %v1635
      %v1688 = vcvt.s32.f32 %v1636
      %v1689 = vcvt.s32.f32 %v1637
      %v1690 = vcvt.s32.f32 %v1638
      %v1691 = vcvt.s32.f32 %v1639
      %v1692 = vcvt.s32.f32 %v1640
      %v1693 = vcvt.s32.f32 %v1641
      %v1694 = vcvt.s32.f32 %v1642
      %v1695 = vcvt.s32.f32 %v1643
      %v1696 = vcvt.s32.f32 %v1644
      %v1697 = vcvt.s32.f32 %v1645
      %v1698 = vcvt.s32.f32 %v1646
      %v1699 = vcvt.s32.f32 %v1647
      %v1700 = vcvt.s32.f32 %v1648
      %v1701 = vcvt.s32.f32 %v1649
      %v1702 = vcvt.s32.f32 %v1650
      %v1703 = vcvt.s32.f32 %v1651
      %v1704 = vcvt.s32.f32 %v1652
      %v1705 = vcvt.s32.f32 %v1653
      %v1706 = vcvt.s32.f32 %v1654
      %v1707 = vcvt.s32.f32 %v1655
      %v1708 = vcvt.s32.f32 %v1656
      %v1709 = vcvt.s32.f32 %v1657
      %v1710 = vcvt.s32.f32 %v1658
      %v1711 = vcvt.s32.f32 %v1659
      %v1712 = vcvt.s32.f32 %v1660
      %v1713 = vcvt.s32.f32 %v1661
      %v1714 = vcvt.s32.f32 %v1662
      %v1715 = vcvt.s32.f32 %v1663
      %v1716 = vcvt.s32.f32 %v1664
      %v1717 = vcvt.s32.f32 %v1665
      %v1718 = vcvt.s32.f32 %v1666
      %v1719 = vcvt.s32.f32 %v1667
      %v1720 = vcvt.s32.f32 %v1668
      %v1721 = vcvt.s32.f32 %v1669
      %v1722 = vcvt.s32.f32 %v1670
      %v1723 = vcvt.s32.f32 %v1671
      %v1724 = vld [vmem:[%s4] sm:$0x1]
      %v1725 = vld [vmem:[%s5] sm:$0x1]
      %v1726 = vld [vmem:[%s6] sm:$0x1]
      %v1727 = vld [vmem:[%s384] sm:$0xf]
      %v1728 = vld [vmem:[%s384 + $0x4] sm:$0xf]
      %v1729 = vld [vmem:[%s384 + $0x8] sm:$0xf]
      %v1730 = vld [vmem:[%s384 + $0xc] sm:$0xf]
      %v1731 = vunpack.c.l.bf16 %v1727
      %v1732 = vunpack.c.l.bf16 %v1728
      %v1733 = vunpack.c.l.bf16 %v1729
      %v1734 = vunpack.c.l.bf16 %v1730
      %v1736 = vperm.slane %v1724, 0
      %v1738 = vmul.f32 %v1731, %v1736
      %v1739 = vmul.f32 %v1732, %v1736
      %v1740 = vmul.f32 %v1733, %v1736
      %v1741 = vmul.f32 %v1734, %v1736
      %v1743 = vperm.slane %v1725, 0
      %v1745 = vadd.f32 %v1738, %v1743
      %v1746 = vadd.f32 %v1739, %v1743
      %v1747 = vadd.f32 %v1740, %v1743
      %v1748 = vadd.f32 %v1741, %v1743
      %vm1749 = vcmp.ge.f32.partialorder %v1745, 0.0
      %vm1750 = vcmp.ge.f32.partialorder %v1746, 0.0
      %vm1751 = vcmp.ge.f32.partialorder %v1747, 0.0
      %vm1752 = vcmp.ge.f32.partialorder %v1748, 0.0
      %v1754 = vperm.slane %v1726, 0
      %v1756 = vmul.f32 %v1754, %v1745
      %v1757 = vmul.f32 %v1754, %v1746
      %v1758 = vmul.f32 %v1754, %v1747
      %v1759 = vmul.f32 %v1754, %v1748
      %v1760 = vsel %vm1749, %v1745, %v1756
      %v1761 = vsel %vm1750, %v1746, %v1757
      %v1762 = vsel %vm1751, %v1747, %v1758
      %v1763 = vsel %vm1752, %v1748, %v1759
      %v1764 = vmul.f32 %v1760, %v1672
      %v1765 = vmul.f32 %v1761, %v1673
      %v1766 = vmul.f32 %v1762, %v1674
      %v1767 = vmul.f32 %v1763, %v1675
      %v1768 = vpack.c.bf16 %v1764, %v1764
      %v1769 = vpack.c.bf16 %v1765, %v1765
      %v1770 = vpack.c.bf16 %v1766, %v1766
      %v1771 = vpack.c.bf16 %v1767, %v1767
      %1772 = vst [vmem:[#allocation2] sm:$0xf] %v1768
      %1773 = vst [vmem:[#allocation2 + $0x4] sm:$0xf] %v1769
      %1774 = vst [vmem:[#allocation2 + $0x8] sm:$0xf] %v1770
      %1775 = vst [vmem:[#allocation2 + $0xc] sm:$0xf] %v1771
      %v1776 = vld [vmem:[%s394] sm:$0xf]
      %v1777 = vld [vmem:[%s394 + $0x4] sm:$0xf]
      %v1778 = vld [vmem:[%s394 + $0x8] sm:$0xf]
      %v1779 = vld [vmem:[%s394 + $0xc] sm:$0xf]
      %v1780 = vld [vmem:[%s394 + $0x10] sm:$0xf]
      %v1781 = vld [vmem:[%s394 + $0x14] sm:$0xf]
      %v1782 = vld [vmem:[%s394 + $0x18] sm:$0xf]
      %v1783 = vld [vmem:[%s394 + $0x1c] sm:$0xf]
      %v1784 = vld [vmem:[%s394 + $0x20] sm:$0xf]
      %v1785 = vld [vmem:[%s394 + $0x24] sm:$0xf]
      %v1786 = vld [vmem:[%s394 + $0x28] sm:$0xf]
      %v1787 = vld [vmem:[%s394 + $0x2c] sm:$0xf]
      %v1788 = vld [vmem:[%s394 + $0x30] sm:$0xf]
      %v1789 = vld [vmem:[%s394 + $0x34] sm:$0xf]
      %v1790 = vld [vmem:[%s394 + $0x38] sm:$0xf]
      %v1791 = vld [vmem:[%s394 + $0x3c] sm:$0xf]
      %v1792 = vld [vmem:[%s394 + $0x40] sm:$0xf]
      %v1793 = vld [vmem:[%s394 + $0x44] sm:$0xf]
      %v1794 = vld [vmem:[%s394 + $0x48] sm:$0xf]
      %v1795 = vld [vmem:[%s394 + $0x4c] sm:$0xf]
      %v1796 = vld [vmem:[%s394 + $0x50] sm:$0xf]
      %v1797 = vld [vmem:[%s394 + $0x54] sm:$0xf]
      %v1798 = vld [vmem:[%s394 + $0x58] sm:$0xf]
      %v1799 = vld [vmem:[%s394 + $0x5c] sm:$0xf]
      %v1800 = vld [vmem:[%s394 + $0x60] sm:$0xf]
      %v1801 = vld [vmem:[%s394 + $0x64] sm:$0xf]
      %v1802 = vld [vmem:[%s394 + $0x68] sm:$0xf]
      %v1803 = vld [vmem:[%s394 + $0x6c] sm:$0xf]
      %v1804 = vld [vmem:[%s394 + $0x70] sm:$0xf]
      %v1805 = vld [vmem:[%s394 + $0x74] sm:$0xf]
      %v1806 = vld [vmem:[%s394 + $0x78] sm:$0xf]
      %v1807 = vld [vmem:[%s394 + $0x7c] sm:$0xf]
      %v1808 = vld [vmem:[%s394 + $0x80] sm:$0xf]
      %v1809 = vld [vmem:[%s394 + $0x84] sm:$0xf]
      %v1810 = vld [vmem:[%s394 + $0x88] sm:$0xf]
      %v1811 = vld [vmem:[%s394 + $0x8c] sm:$0xf]
      %v1812 = vld [vmem:[%s394 + $0x90] sm:$0xf]
      %v1813 = vld [vmem:[%s394 + $0x94] sm:$0xf]
      %v1814 = vld [vmem:[%s394 + $0x98] sm:$0xf]
      %v1815 = vld [vmem:[%s394 + $0x9c] sm:$0xf]
      %v1816 = vld [vmem:[%s394 + $0xa0] sm:$0xf]
      %v1817 = vld [vmem:[%s394 + $0xa4] sm:$0xf]
      %v1818 = vld [vmem:[%s394 + $0xa8] sm:$0xf]
      %v1819 = vld [vmem:[%s394 + $0xac] sm:$0xf]
      %v1820 = vunpack.c.l.bf16 %v1776
      %v1821 = vunpack.c.l.bf16 %v1777
      %v1822 = vunpack.c.l.bf16 %v1778
      %v1823 = vunpack.c.l.bf16 %v1779
      %v1824 = vunpack.c.l.bf16 %v1780
      %v1825 = vunpack.c.l.bf16 %v1781
      %v1826 = vunpack.c.l.bf16 %v1782
      %v1827 = vunpack.c.l.bf16 %v1783
      %v1828 = vunpack.c.l.bf16 %v1784
      %v1829 = vunpack.c.l.bf16 %v1785
      %v1830 = vunpack.c.l.bf16 %v1786
      %v1831 = vunpack.c.l.bf16 %v1787
      %v1832 = vunpack.c.l.bf16 %v1788
      %v1833 = vunpack.c.l.bf16 %v1789
      %v1834 = vunpack.c.l.bf16 %v1790
      %v1835 = vunpack.c.l.bf16 %v1791
      %v1836 = vunpack.c.l.bf16 %v1792
      %v1837 = vunpack.c.l.bf16 %v1793
      %v1838 = vunpack.c.l.bf16 %v1794
      %v1839 = vunpack.c.l.bf16 %v1795
      %v1840 = vunpack.c.l.bf16 %v1796
      %v1841 = vunpack.c.l.bf16 %v1797
      %v1842 = vunpack.c.l.bf16 %v1798
      %v1843 = vunpack.c.l.bf16 %v1799
      %v1844 = vunpack.c.l.bf16 %v1800
      %v1845 = vunpack.c.l.bf16 %v1801
      %v1846 = vunpack.c.l.bf16 %v1802
      %v1847 = vunpack.c.l.bf16 %v1803
      %v1848 = vunpack.c.l.bf16 %v1804
      %v1849 = vunpack.c.l.bf16 %v1805
      %v1850 = vunpack.c.l.bf16 %v1806
      %v1851 = vunpack.c.l.bf16 %v1807
      %v1852 = vunpack.c.l.bf16 %v1808
      %v1853 = vunpack.c.l.bf16 %v1809
      %v1854 = vunpack.c.l.bf16 %v1810
      %v1855 = vunpack.c.l.bf16 %v1811
      %v1856 = vunpack.c.l.bf16 %v1812
      %v1857 = vunpack.c.l.bf16 %v1813
      %v1858 = vunpack.c.l.bf16 %v1814
      %v1859 = vunpack.c.l.bf16 %v1815
      %v1860 = vunpack.c.l.bf16 %v1816
      %v1861 = vunpack.c.l.bf16 %v1817
      %v1862 = vunpack.c.l.bf16 %v1818
      %v1863 = vunpack.c.l.bf16 %v1819
      %v1864 = vmul.f32 %v1820, %v1736
      %v1865 = vmul.f32 %v1821, %v1736
      %v1866 = vmul.f32 %v1822, %v1736
      %v1867 = vmul.f32 %v1823, %v1736
      %v1868 = vmul.f32 %v1824, %v1736
      %v1869 = vmul.f32 %v1825, %v1736
      %v1870 = vmul.f32 %v1826, %v1736
      %v1871 = vmul.f32 %v1827, %v1736
      %v1872 = vmul.f32 %v1828, %v1736
      %v1873 = vmul.f32 %v1829, %v1736
      %v1874 = vmul.f32 %v1830, %v1736
      %v1875 = vmul.f32 %v1831, %v1736
      %v1876 = vmul.f32 %v1832, %v1736
      %v1877 = vmul.f32 %v1833, %v1736
      %v1878 = vmul.f32 %v1834, %v1736
      %v1879 = vmul.f32 %v1835, %v1736
      %v1880 = vmul.f32 %v1836, %v1736
      %v1881 = vmul.f32 %v1837, %v1736
      %v1882 = vmul.f32 %v1838, %v1736
      %v1883 = vmul.f32 %v1839, %v1736
      %v1884 = vmul.f32 %v1840, %v1736
      %v1885 = vmul.f32 %v1841, %v1736
      %v1886 = vmul.f32 %v1842, %v1736
      %v1887 = vmul.f32 %v1843, %v1736
      %v1888 = vmul.f32 %v1844, %v1736
      %v1889 = vmul.f32 %v1845, %v1736
      %v1890 = vmul.f32 %v1846, %v1736
      %v1891 = vmul.f32 %v1847, %v1736
      %v1892 = vmul.f32 %v1848, %v1736
      %v1893 = vmul.f32 %v1849, %v1736
      %v1894 = vmul.f32 %v1850, %v1736
      %v1895 = vmul.f32 %v1851, %v1736
      %v1896 = vmul.f32 %v1852, %v1736
      %v1897 = vmul.f32 %v1853, %v1736
      %v1898 = vmul.f32 %v1854, %v1736
      %v1899 = vmul.f32 %v1855, %v1736
      %v1900 = vmul.f32 %v1856, %v1736
      %v1901 = vmul.f32 %v1857, %v1736
      %v1902 = vmul.f32 %v1858, %v1736
      %v1903 = vmul.f32 %v1859, %v1736
      %v1904 = vmul.f32 %v1860, %v1736
      %v1905 = vmul.f32 %v1861, %v1736
      %v1906 = vmul.f32 %v1862, %v1736
      %v1907 = vmul.f32 %v1863, %v1736
      %v1908 = vadd.f32 %v1864, %v1743
      %v1909 = vadd.f32 %v1865, %v1743
      %v1910 = vadd.f32 %v1866, %v1743
      %v1911 = vadd.f32 %v1867, %v1743
      %v1912 = vadd.f32 %v1868, %v1743
      %v1913 = vadd.f32 %v1869, %v1743
      %v1914 = vadd.f32 %v1870, %v1743
      %v1915 = vadd.f32 %v1871, %v1743
      %v1916 = vadd.f32 %v1872, %v1743
      %v1917 = vadd.f32 %v1873, %v1743
      %v1918 = vadd.f32 %v1874, %v1743
      %v1919 = vadd.f32 %v1875, %v1743
      %v1920 = vadd.f32 %v1876, %v1743
      %v1921 = vadd.f32 %v1877, %v1743
      %v1922 = vadd.f32 %v1878, %v1743
      %v1923 = vadd.f32 %v1879, %v1743
      %v1924 = vadd.f32 %v1880, %v1743
      %v1925 = vadd.f32 %v1881, %v1743
      %v1926 = vadd.f32 %v1882, %v1743
      %v1927 = vadd.f32 %v1883, %v1743
      %v1928 = vadd.f32 %v1884, %v1743
      %v1929 = vadd.f32 %v1885, %v1743
      %v1930 = vadd.f32 %v1886, %v1743
      %v1931 = vadd.f32 %v1887, %v1743
      %v1932 = vadd.f32 %v1888, %v1743
      %v1933 = vadd.f32 %v1889, %v1743
      %v1934 = vadd.f32 %v1890, %v1743
      %v1935 = vadd.f32 %v1891, %v1743
      %v1936 = vadd.f32 %v1892, %v1743
      %v1937 = vadd.f32 %v1893, %v1743
      %v1938 = vadd.f32 %v1894, %v1743
      %v1939 = vadd.f32 %v1895, %v1743
      %v1940 = vadd.f32 %v1896, %v1743
      %v1941 = vadd.f32 %v1897, %v1743
      %v1942 = vadd.f32 %v1898, %v1743
      %v1943 = vadd.f32 %v1899, %v1743
      %v1944 = vadd.f32 %v1900, %v1743
      %v1945 = vadd.f32 %v1901, %v1743
      %v1946 = vadd.f32 %v1902, %v1743
      %v1947 = vadd.f32 %v1903, %v1743
      %v1948 = vadd.f32 %v1904, %v1743
      %v1949 = vadd.f32 %v1905, %v1743
      %v1950 = vadd.f32 %v1906, %v1743
      %v1951 = vadd.f32 %v1907, %v1743
      %vm1952 = vcmp.ge.f32.partialorder %v1908, 0.0
      %vm1953 = vcmp.ge.f32.partialorder %v1909, 0.0
      %vm1954 = vcmp.ge.f32.partialorder %v1910, 0.0
      %vm1955 = vcmp.ge.f32.partialorder %v1911, 0.0
      %vm1956 = vcmp.ge.f32.partialorder %v1912, 0.0
      %vm1957 = vcmp.ge.f32.partialorder %v1913, 0.0
      %vm1958 = vcmp.ge.f32.partialorder %v1914, 0.0
      %vm1959 = vcmp.ge.f32.partialorder %v1915, 0.0
      %vm1960 = vcmp.ge.f32.partialorder %v1916, 0.0
      %vm1961 = vcmp.ge.f32.partialorder %v1917, 0.0
      %vm1962 = vcmp.ge.f32.partialorder %v1918, 0.0
      %vm1963 = vcmp.ge.f32.partialorder %v1919, 0.0
      %vm1964 = vcmp.ge.f32.partialorder %v1920, 0.0
      %vm1965 = vcmp.ge.f32.partialorder %v1921, 0.0
      %vm1966 = vcmp.ge.f32.partialorder %v1922, 0.0
      %vm1967 = vcmp.ge.f32.partialorder %v1923, 0.0
      %vm1968 = vcmp.ge.f32.partialorder %v1924, 0.0
      %vm1969 = vcmp.ge.f32.partialorder %v1925, 0.0
      %vm1970 = vcmp.ge.f32.partialorder %v1926, 0.0
      %vm1971 = vcmp.ge.f32.partialorder %v1927, 0.0
      %vm1972 = vcmp.ge.f32.partialorder %v1928, 0.0
      %vm1973 = vcmp.ge.f32.partialorder %v1929, 0.0
      %vm1974 = vcmp.ge.f32.partialorder %v1930, 0.0
      %vm1975 = vcmp.ge.f32.partialorder %v1931, 0.0
      %vm1976 = vcmp.ge.f32.partialorder %v1932, 0.0
      %vm1977 = vcmp.ge.f32.partialorder %v1933, 0.0
      %vm1978 = vcmp.ge.f32.partialorder %v1934, 0.0
      %vm1979 = vcmp.ge.f32.partialorder %v1935, 0.0
      %vm1980 = vcmp.ge.f32.partialorder %v1936, 0.0
      %vm1981 = vcmp.ge.f32.partialorder %v1937, 0.0
      %vm1982 = vcmp.ge.f32.partialorder %v1938, 0.0
      %vm1983 = vcmp.ge.f32.partialorder %v1939, 0.0
      %vm1984 = vcmp.ge.f32.partialorder %v1940, 0.0
      %vm1985 = vcmp.ge.f32.partialorder %v1941, 0.0
      %vm1986 = vcmp.ge.f32.partialorder %v1942, 0.0
      %vm1987 = vcmp.ge.f32.partialorder %v1943, 0.0
      %vm1988 = vcmp.ge.f32.partialorder %v1944, 0.0
      %vm1989 = vcmp.ge.f32.partialorder %v1945, 0.0
      %vm1990 = vcmp.ge.f32.partialorder %v1946, 0.0
      %vm1991 = vcmp.ge.f32.partialorder %v1947, 0.0
      %vm1992 = vcmp.ge.f32.partialorder %v1948, 0.0
      %vm1993 = vcmp.ge.f32.partialorder %v1949, 0.0
      %vm1994 = vcmp.ge.f32.partialorder %v1950, 0.0
      %vm1995 = vcmp.ge.f32.partialorder %v1951, 0.0
      %v1996 = vmul.f32 %v1754, %v1908
      %v1997 = vmul.f32 %v1754, %v1909
      %v1998 = vmul.f32 %v1754, %v1910
      %v1999 = vmul.f32 %v1754, %v1911
      %v2000 = vmul.f32 %v1754, %v1912
      %v2001 = vmul.f32 %v1754, %v1913
      %v2002 = vmul.f32 %v1754, %v1914
      %v2003 = vmul.f32 %v1754, %v1915
      %v2004 = vmul.f32 %v1754, %v1916
      %v2005 = vmul.f32 %v1754, %v1917
      %v2006 = vmul.f32 %v1754, %v1918
      %v2007 = vmul.f32 %v1754, %v1919
      %v2008 = vmul.f32 %v1754, %v1920
      %v2009 = vmul.f32 %v1754, %v1921
      %v2010 = vmul.f32 %v1754, %v1922
      %v2011 = vmul.f32 %v1754, %v1923
      %v2012 = vmul.f32 %v1754, %v1924
      %v2013 = vmul.f32 %v1754, %v1925
      %v2014 = vmul.f32 %v1754, %v1926
      %v2015 = vmul.f32 %v1754, %v1927
      %v2016 = vmul.f32 %v1754, %v1928
      %v2017 = vmul.f32 %v1754, %v1929
      %v2018 = vmul.f32 %v1754, %v1930
      %v2019 = vmul.f32 %v1754, %v1931
      %v2020 = vmul.f32 %v1754, %v1932
      %v2021 = vmul.f32 %v1754, %v1933
      %v2022 = vmul.f32 %v1754, %v1934
      %v2023 = vmul.f32 %v1754, %v1935
      %v2024 = vmul.f32 %v1754, %v1936
      %v2025 = vmul.f32 %v1754, %v1937
      %v2026 = vmul.f32 %v1754, %v1938
      %v2027 = vmul.f32 %v1754, %v1939
      %v2028 = vmul.f32 %v1754, %v1940
      %v2029 = vmul.f32 %v1754, %v1941
      %v2030 = vmul.f32 %v1754, %v1942
      %v2031 = vmul.f32 %v1754, %v1943
      %v2032 = vmul.f32 %v1754, %v1944
      %v2033 = vmul.f32 %v1754, %v1945
      %v2034 = vmul.f32 %v1754, %v1946
      %v2035 = vmul.f32 %v1754, %v1947
      %v2036 = vmul.f32 %v1754, %v1948
      %v2037 = vmul.f32 %v1754, %v1949
      %v2038 = vmul.f32 %v1754, %v1950
      %v2039 = vmul.f32 %v1754, %v1951
      %v2040 = vsel %vm1952, %v1908, %v1996
      %v2041 = vsel %vm1953, %v1909, %v1997
      %v2042 = vsel %vm1954, %v1910, %v1998
      %v2043 = vsel %vm1955, %v1911, %v1999
      %v2044 = vsel %vm1956, %v1912, %v2000
      %v2045 = vsel %vm1957, %v1913, %v2001
      %v2046 = vsel %vm1958, %v1914, %v2002
      %v2047 = vsel %vm1959, %v1915, %v2003
      %v2048 = vsel %vm1960, %v1916, %v2004
      %v2049 = vsel %vm1961, %v1917, %v2005
      %v2050 = vsel %vm1962, %v1918, %v2006
      %v2051 = vsel %vm1963, %v1919, %v2007
      %v2052 = vsel %vm1964, %v1920, %v2008
      %v2053 = vsel %vm1965, %v1921, %v2009
      %v2054 = vsel %vm1966, %v1922, %v2010
      %v2055 = vsel %vm1967, %v1923, %v2011
      %v2056 = vsel %vm1968, %v1924, %v2012
      %v2057 = vsel %vm1969, %v1925, %v2013
      %v2058 = vsel %vm1970, %v1926, %v2014
      %v2059 = vsel %vm1971, %v1927, %v2015
      %v2060 = vsel %vm1972, %v1928, %v2016
      %v2061 = vsel %vm1973, %v1929, %v2017
      %v2062 = vsel %vm1974, %v1930, %v2018
      %v2063 = vsel %vm1975, %v1931, %v2019
      %v2064 = vsel %vm1976, %v1932, %v2020
      %v2065 = vsel %vm1977, %v1933, %v2021
      %v2066 = vsel %vm1978, %v1934, %v2022
      %v2067 = vsel %vm1979, %v1935, %v2023
      %v2068 = vsel %vm1980, %v1936, %v2024
      %v2069 = vsel %vm1981, %v1937, %v2025
      %v2070 = vsel %vm1982, %v1938, %v2026
      %v2071 = vsel %vm1983, %v1939, %v2027
      %v2072 = vsel %vm1984, %v1940, %v2028
      %v2073 = vsel %vm1985, %v1941, %v2029
      %v2074 = vsel %vm1986, %v1942, %v2030
      %v2075 = vsel %vm1987, %v1943, %v2031
      %v2076 = vsel %vm1988, %v1944, %v2032
      %v2077 = vsel %vm1989, %v1945, %v2033
      %v2078 = vsel %vm1990, %v1946, %v2034
      %v2079 = vsel %vm1991, %v1947, %v2035
      %v2080 = vsel %vm1992, %v1948, %v2036
      %v2081 = vsel %vm1993, %v1949, %v2037
      %v2082 = vsel %vm1994, %v1950, %v2038
      %v2083 = vsel %vm1995, %v1951, %v2039
      %v2084 = vmul.f32 %v2040, %v1676
      %v2085 = vmul.f32 %v2041, %v1677
      %v2086 = vmul.f32 %v2042, %v1678
      %v2087 = vmul.f32 %v2043, %v1679
      %v2088 = vmul.f32 %v2044, %v1680
      %v2089 = vmul.f32 %v2045, %v1681
      %v2090 = vmul.f32 %v2046, %v1682
      %v2091 = vmul.f32 %v2047, %v1683
      %v2092 = vmul.f32 %v2048, %v1684
      %v2093 = vmul.f32 %v2049, %v1685
      %v2094 = vmul.f32 %v2050, %v1686
      %v2095 = vmul.f32 %v2051, %v1687
      %v2096 = vmul.f32 %v2052, %v1688
      %v2097 = vmul.f32 %v2053, %v1689
      %v2098 = vmul.f32 %v2054, %v1690
      %v2099 = vmul.f32 %v2055, %v1691
      %v2100 = vmul.f32 %v2056, %v1692
      %v2101 = vmul.f32 %v2057, %v1693
      %v2102 = vmul.f32 %v2058, %v1694
      %v2103 = vmul.f32 %v2059, %v1695
      %v2104 = vmul.f32 %v2060, %v1696
      %v2105 = vmul.f32 %v2061, %v1697
      %v2106 = vmul.f32 %v2062, %v1698
      %v2107 = vmul.f32 %v2063, %v1699
      %v2108 = vmul.f32 %v2064, %v1700
      %v2109 = vmul.f32 %v2065, %v1701
      %v2110 = vmul.f32 %v2066, %v1702
      %v2111 = vmul.f32 %v2067, %v1703
      %v2112 = vmul.f32 %v2068, %v1704
      %v2113 = vmul.f32 %v2069, %v1705
      %v2114 = vmul.f32 %v2070, %v1706
      %v2115 = vmul.f32 %v2071, %v1707
      %v2116 = vmul.f32 %v2072, %v1708
      %v2117 = vmul.f32 %v2073, %v1709
      %v2118 = vmul.f32 %v2074, %v1710
      %v2119 = vmul.f32 %v2075, %v1711
      %v2120 = vmul.f32 %v2076, %v1712
      %v2121 = vmul.f32 %v2077, %v1713
      %v2122 = vmul.f32 %v2078, %v1714
      %v2123 = vmul.f32 %v2079, %v1715
      %v2124 = vmul.f32 %v2080, %v1716
      %v2125 = vmul.f32 %v2081, %v1717
      %v2126 = vmul.f32 %v2082, %v1718
      %v2127 = vmul.f32 %v2083, %v1719
      %v2128 = vpack.c.bf16 %v2084, %v2084
      %v2129 = vpack.c.bf16 %v2085, %v2085
      %v2130 = vpack.c.bf16 %v2086, %v2086
      %v2131 = vpack.c.bf16 %v2087, %v2087
      %v2132 = vpack.c.bf16 %v2088, %v2088
      %v2133 = vpack.c.bf16 %v2089, %v2089
      %v2134 = vpack.c.bf16 %v2090, %v2090
      %v2135 = vpack.c.bf16 %v2091, %v2091
      %v2136 = vpack.c.bf16 %v2092, %v2092
      %v2137 = vpack.c.bf16 %v2093, %v2093
      %v2138 = vpack.c.bf16 %v2094, %v2094
      %v2139 = vpack.c.bf16 %v2095, %v2095
      %v2140 = vpack.c.bf16 %v2096, %v2096
      %v2141 = vpack.c.bf16 %v2097, %v2097
      %v2142 = vpack.c.bf16 %v2098, %v2098
      %v2143 = vpack.c.bf16 %v2099, %v2099
      %v2144 = vpack.c.bf16 %v2100, %v2100
      %v2145 = vpack.c.bf16 %v2101, %v2101
      %v2146 = vpack.c.bf16 %v2102, %v2102
      %v2147 = vpack.c.bf16 %v2103, %v2103
      %v2148 = vpack.c.bf16 %v2104, %v2104
      %v2149 = vpack.c.bf16 %v2105, %v2105
      %v2150 = vpack.c.bf16 %v2106, %v2106
      %v2151 = vpack.c.bf16 %v2107, %v2107
      %v2152 = vpack.c.bf16 %v2108, %v2108
      %v2153 = vpack.c.bf16 %v2109, %v2109
      %v2154 = vpack.c.bf16 %v2110, %v2110
      %v2155 = vpack.c.bf16 %v2111, %v2111
      %v2156 = vpack.c.bf16 %v2112, %v2112
      %v2157 = vpack.c.bf16 %v2113, %v2113
      %v2158 = vpack.c.bf16 %v2114, %v2114
      %v2159 = vpack.c.bf16 %v2115, %v2115
      %v2160 = vpack.c.bf16 %v2116, %v2116
      %v2161 = vpack.c.bf16 %v2117, %v2117
      %v2162 = vpack.c.bf16 %v2118, %v2118
      %v2163 = vpack.c.bf16 %v2119, %v2119
      %v2164 = vpack.c.bf16 %v2120, %v2120
      %v2165 = vpack.c.bf16 %v2121, %v2121
      %v2166 = vpack.c.bf16 %v2122, %v2122
      %v2167 = vpack.c.bf16 %v2123, %v2123
      %v2168 = vpack.c.bf16 %v2124, %v2124
      %v2169 = vpack.c.bf16 %v2125, %v2125
      %v2170 = vpack.c.bf16 %v2126, %v2126
      %v2171 = vpack.c.bf16 %v2127, %v2127
      %2172 = vst [vmem:[#allocation2 + $0x10] sm:$0xf] %v2128
      %2173 = vst [vmem:[#allocation2 + $0x14] sm:$0xf] %v2129
      %2174 = vst [vmem:[#allocation2 + $0x18] sm:$0xf] %v2130
      %2175 = vst [vmem:[#allocation2 + $0x1c] sm:$0xf] %v2131
      %2176 = vst [vmem:[#allocation2 + $0x20] sm:$0xf] %v2132
      %2177 = vst [vmem:[#allocation2 + $0x24] sm:$0xf] %v2133
      %2178 = vst [vmem:[#allocation2 + $0x28] sm:$0xf] %v2134
      %2179 = vst [vmem:[#allocation2 + $0x2c] sm:$0xf] %v2135
      %2180 = vst [vmem:[#allocation2 + $0x30] sm:$0xf] %v2136
      %2181 = vst [vmem:[#allocation2 + $0x34] sm:$0xf] %v2137
      %2182 = vst [vmem:[#allocation2 + $0x38] sm:$0xf] %v2138
      %2183 = vst [vmem:[#allocation2 + $0x3c] sm:$0xf] %v2139
      %2184 = vst [vmem:[#allocation2 + $0x40] sm:$0xf] %v2140
      %2185 = vst [vmem:[#allocation2 + $0x44] sm:$0xf] %v2141
      %2186 = vst [vmem:[#allocation2 + $0x48] sm:$0xf] %v2142
      %2187 = vst [vmem:[#allocation2 + $0x4c] sm:$0xf] %v2143
      %2188 = vst [vmem:[#allocation2 + $0x50] sm:$0xf] %v2144
      %2189 = vst [vmem:[#allocation2 + $0x54] sm:$0xf] %v2145
      %2190 = vst [vmem:[#allocation2 + $0x58] sm:$0xf] %v2146
      %2191 = vst [vmem:[#allocation2 + $0x5c] sm:$0xf] %v2147
      %2192 = vst [vmem:[#allocation2 + $0x60] sm:$0xf] %v2148
      %2193 = vst [vmem:[#allocation2 + $0x64] sm:$0xf] %v2149
      %2194 = vst [vmem:[#allocation2 + $0x68] sm:$0xf] %v2150
      %2195 = vst [vmem:[#allocation2 + $0x6c] sm:$0xf] %v2151
      %2196 = vst [vmem:[#allocation2 + $0x70] sm:$0xf] %v2152
      %2197 = vst [vmem:[#allocation2 + $0x74] sm:$0xf] %v2153
      %2198 = vst [vmem:[#allocation2 + $0x78] sm:$0xf] %v2154
      %2199 = vst [vmem:[#allocation2 + $0x7c] sm:$0xf] %v2155
      %2200 = vst [vmem:[#allocation2 + $0x80] sm:$0xf] %v2156
      %2201 = vst [vmem:[#allocation2 + $0x84] sm:$0xf] %v2157
      %2202 = vst [vmem:[#allocation2 + $0x88] sm:$0xf] %v2158
      %2203 = vst [vmem:[#allocation2 + $0x8c] sm:$0xf] %v2159
      %2204 = vst [vmem:[#allocation2 + $0x90] sm:$0xf] %v2160
      %2205 = vst [vmem:[#allocation2 + $0x94] sm:$0xf] %v2161
      %2206 = vst [vmem:[#allocation2 + $0x98] sm:$0xf] %v2162
      %2207 = vst [vmem:[#allocation2 + $0x9c] sm:$0xf] %v2163
      %2208 = vst [vmem:[#allocation2 + $0xa0] sm:$0xf] %v2164
      %2209 = vst [vmem:[#allocation2 + $0xa4] sm:$0xf] %v2165
      %2210 = vst [vmem:[#allocation2 + $0xa8] sm:$0xf] %v2166
      %2211 = vst [vmem:[#allocation2 + $0xac] sm:$0xf] %v2167
      %2212 = vst [vmem:[#allocation2 + $0xb0] sm:$0xf] %v2168
      %2213 = vst [vmem:[#allocation2 + $0xb4] sm:$0xf] %v2169
      %2214 = vst [vmem:[#allocation2 + $0xb8] sm:$0xf] %v2170
      %2215 = vst [vmem:[#allocation2 + $0xbc] sm:$0xf] %v2171
      %v2216 = vld [vmem:[%s404] sm:$0xf]
      %v2217 = vld [vmem:[%s404 + $0x4] sm:$0xf]
      %v2218 = vld [vmem:[%s404 + $0x8] sm:$0xf]
      %v2219 = vld [vmem:[%s404 + $0xc] sm:$0xf]
      %v2220 = vunpack.c.l.bf16 %v2216
      %v2221 = vunpack.c.l.bf16 %v2217
      %v2222 = vunpack.c.l.bf16 %v2218
      %v2223 = vunpack.c.l.bf16 %v2219
      %v2224 = vmul.f32 %v2220, %v1736
      %v2225 = vmul.f32 %v2221, %v1736
      %v2226 = vmul.f32 %v2222, %v1736
      %v2227 = vmul.f32 %v2223, %v1736
      %v2228 = vadd.f32 %v2224, %v1743
      %v2229 = vadd.f32 %v2225, %v1743
      %v2230 = vadd.f32 %v2226, %v1743
      %v2231 = vadd.f32 %v2227, %v1743
      %vm2232 = vcmp.ge.f32.partialorder %v2228, 0.0
      %vm2233 = vcmp.ge.f32.partialorder %v2229, 0.0
      %vm2234 = vcmp.ge.f32.partialorder %v2230, 0.0
      %vm2235 = vcmp.ge.f32.partialorder %v2231, 0.0
      %v2236 = vmul.f32 %v1754, %v2228
      %v2237 = vmul.f32 %v1754, %v2229
      %v2238 = vmul.f32 %v1754, %v2230
      %v2239 = vmul.f32 %v1754, %v2231
      %v2240 = vsel %vm2232, %v2228, %v2236
      %v2241 = vsel %vm2233, %v2229, %v2237
      %v2242 = vsel %vm2234, %v2230, %v2238
      %v2243 = vsel %vm2235, %v2231, %v2239
      %v2244 = vmul.f32 %v2240, %v1720
      %v2245 = vmul.f32 %v2241, %v1721
      %v2246 = vmul.f32 %v2242, %v1722
      %v2247 = vmul.f32 %v2243, %v1723
      %v2248 = vpack.c.bf16 %v2244, %v2244
      %v2249 = vpack.c.bf16 %v2245, %v2245
      %v2250 = vpack.c.bf16 %v2246, %v2246
      %v2251 = vpack.c.bf16 %v2247, %v2247
      %2252 = vst [vmem:[#allocation2 + $0xc0] sm:$0xf] %v2248
      %2253 = vst [vmem:[#allocation2 + $0xc4] sm:$0xf] %v2249
      %2254 = vst [vmem:[#allocation2 + $0xc8] sm:$0xf] %v2250
      %2255 = vst [vmem:[#allocation2 + $0xcc] sm:$0xf] %v2251
      %v2256 = vld [vmem:[#allocation2 + $0x4] sm:$0xc]
      %v2257 = vld [vmem:[#allocation2 + $0x8] sm:$0xf]
      %v2258 = vld [vmem:[#allocation2 + $0xc] sm:$0xf]
      %v2259 = vld [vmem:[#allocation2 + $0x10] sm:$0xf]
      %v2260 = vld [vmem:[#allocation2 + $0x14] sm:$0xf]
      %v2261 = vld [vmem:[#allocation2 + $0x18] sm:$0xf]
      %v2262 = vld [vmem:[#allocation2 + $0x1c] sm:$0xf]
      %v2263 = vld [vmem:[#allocation2 + $0x20] sm:$0xf]
      %v2264 = vld [vmem:[#allocation2 + $0x24] sm:$0xf]
      %v2265 = vld [vmem:[#allocation2 + $0x28] sm:$0xf]
      %v2266 = vld [vmem:[#allocation2 + $0x2c] sm:$0xf]
      %v2267 = vld [vmem:[#allocation2 + $0x30] sm:$0xf]
      %v2268 = vld [vmem:[#allocation2 + $0x34] sm:$0xf]
      %v2269 = vld [vmem:[#allocation2 + $0x38] sm:$0xf]
      %v2270 = vld [vmem:[#allocation2 + $0x3c] sm:$0xf]
      %v2271 = vld [vmem:[#allocation2 + $0x40] sm:$0xf]
      %v2272 = vld [vmem:[#allocation2 + $0x44] sm:$0xf]
      %v2273 = vld [vmem:[#allocation2 + $0x48] sm:$0xf]
      %v2274 = vld [vmem:[#allocation2 + $0x4c] sm:$0xf]
      %v2275 = vld [vmem:[#allocation2 + $0x50] sm:$0xf]
      %v2276 = vld [vmem:[#allocation2 + $0x54] sm:$0xf]
      %v2277 = vld [vmem:[#allocation2 + $0x58] sm:$0xf]
      %v2278 = vld [vmem:[#allocation2 + $0x5c] sm:$0xf]
      %v2279 = vld [vmem:[#allocation2 + $0x60] sm:$0xf]
      %v2280 = vld [vmem:[#allocation2 + $0x64] sm:$0xf]
      %v2281 = vld [vmem:[#allocation2 + $0x68] sm:$0xf]
      %v2282 = vld [vmem:[#allocation2 + $0x6c] sm:$0xf]
      %v2283 = vld [vmem:[#allocation2 + $0x70] sm:$0xf]
      %v2284 = vld [vmem:[#allocation2 + $0x74] sm:$0xf]
      %v2285 = vld [vmem:[#allocation2 + $0x78] sm:$0xf]
      %v2286 = vld [vmem:[#allocation2 + $0x7c] sm:$0xf]
      %v2287 = vld [vmem:[#allocation2 + $0x80] sm:$0xf]
      %v2288 = vld [vmem:[#allocation2 + $0x84] sm:$0xf]
      %v2289 = vld [vmem:[#allocation2 + $0x88] sm:$0xf]
      %v2290 = vld [vmem:[#allocation2 + $0x8c] sm:$0xf]
      %v2291 = vld [vmem:[#allocation2 + $0x90] sm:$0xf]
      %v2292 = vld [vmem:[#allocation2 + $0x94] sm:$0xf]
      %v2293 = vld [vmem:[#allocation2 + $0x98] sm:$0xf]
      %v2294 = vld [vmem:[#allocation2 + $0x9c] sm:$0xf]
      %v2295 = vld [vmem:[#allocation2 + $0xa0] sm:$0xf]
      %v2296 = vld [vmem:[#allocation2 + $0xa4] sm:$0xf]
      %v2297 = vld [vmem:[#allocation2 + $0xa8] sm:$0xf]
      %v2298 = vld [vmem:[#allocation2 + $0xac] sm:$0xf]
      %v2299 = vld [vmem:[#allocation2 + $0xb0] sm:$0xf]
      %v2300 = vld [vmem:[#allocation2 + $0xb4] sm:$0x7]
      %vm2301 = vsmask.f32 1280
      %vm2302 = vsmask.f32 5392
      %vm2303 = vmor %vm2301, %vm2302
      %v2305 = vshrl.u32 %v2256, 16
      %v2307 = vrot.slane %v2305, 6
      %v2308 = vshll.u32 %v2256, 16
      %v2310 = vrot.slane %v2308, 7
      %v2311 = vor.u32 %v2307, %v2310
      %v2312 = vrot.slane %v2311, 4
      %v2314 = vshrl.u32 %v2257, 16
      %v2316 = vrot.slane %v2314, 6
      %v2317 = vshll.u32 %v2257, 16
      %v2319 = vrot.slane %v2317, 7
      %v2320 = vor.u32 %v2316, %v2319
      %v2321 = vsel %vm2303, %v2312, %v2320
      %v2322 = vrot.slane %v2320, 4
      %v2324 = vshrl.u32 %v2258, 16
      %v2326 = vrot.slane %v2324, 6
      %v2327 = vshll.u32 %v2258, 16
      %v2329 = vrot.slane %v2327, 7
      %v2330 = vor.u32 %v2326, %v2329
      %v2331 = vsel %vm2303, %v2322, %v2330
      %v2332 = vrot.slane %v2330, 4
      %v2334 = vshrl.u32 %v2259, 16
      %v2336 = vrot.slane %v2334, 6
      %v2337 = vshll.u32 %v2259, 16
      %v2339 = vrot.slane %v2337, 7
      %v2340 = vor.u32 %v2336, %v2339
      %v2341 = vsel %vm2303, %v2332, %v2340
      %v2342 = vrot.slane %v2340, 4
      %v2344 = vshrl.u32 %v2260, 16
      %v2346 = vrot.slane %v2344, 6
      %v2347 = vshll.u32 %v2260, 16
      %v2349 = vrot.slane %v2347, 7
      %v2350 = vor.u32 %v2346, %v2349
      %v2351 = vsel %vm2303, %v2342, %v2350
      %v2352 = vrot.slane %v2350, 4
      %v2354 = vshrl.u32 %v2261, 16
      %v2356 = vrot.slane %v2354, 6
      %v2357 = vshll.u32 %v2261, 16
      %v2359 = vrot.slane %v2357, 7
      %v2360 = vor.u32 %v2356, %v2359
      %v2361 = vsel %vm2303, %v2352, %v2360
      %v2362 = vrot.slane %v2360, 4
      %v2364 = vshrl.u32 %v2262, 16
      %v2366 = vrot.slane %v2364, 6
      %v2367 = vshll.u32 %v2262, 16
      %v2369 = vrot.slane %v2367, 7
      %v2370 = vor.u32 %v2366, %v2369
      %v2371 = vsel %vm2303, %v2362, %v2370
      %v2372 = vrot.slane %v2370, 4
      %v2374 = vshrl.u32 %v2263, 16
      %v2376 = vrot.slane %v2374, 6
      %v2377 = vshll.u32 %v2263, 16
      %v2379 = vrot.slane %v2377, 7
      %v2380 = vor.u32 %v2376, %v2379
      %v2381 = vsel %vm2303, %v2372, %v2380
      %v2382 = vrot.slane %v2380, 4
      %v2384 = vshrl.u32 %v2264, 16
      %v2386 = vrot.slane %v2384, 6
      %v2387 = vshll.u32 %v2264, 16
      %v2389 = vrot.slane %v2387, 7
      %v2390 = vor.u32 %v2386, %v2389
      %v2391 = vsel %vm2303, %v2382, %v2390
      %v2392 = vrot.slane %v2390, 4
      %v2394 = vshrl.u32 %v2265, 16
      %v2396 = vrot.slane %v2394, 6
      %v2397 = vshll.u32 %v2265, 16
      %v2399 = vrot.slane %v2397, 7
      %v2400 = vor.u32 %v2396, %v2399
      %v2401 = vsel %vm2303, %v2392, %v2400
      %v2402 = vrot.slane %v2400, 4
      %v2404 = vshrl.u32 %v2266, 16
      %v2406 = vrot.slane %v2404, 6
      %v2407 = vshll.u32 %v2266, 16
      %v2409 = vrot.slane %v2407, 7
      %v2410 = vor.u32 %v2406, %v2409
      %v2411 = vsel %vm2303, %v2402, %v2410
      %v2412 = vrot.slane %v2410, 4
      %v2414 = vshrl.u32 %v2267, 16
      %v2416 = vrot.slane %v2414, 6
      %v2417 = vshll.u32 %v2267, 16
      %v2419 = vrot.slane %v2417, 7
      %v2420 = vor.u32 %v2416, %v2419
      %v2421 = vsel %vm2303, %v2412, %v2420
      %v2422 = vrot.slane %v2420, 4
      %v2424 = vshrl.u32 %v2268, 16
      %v2426 = vrot.slane %v2424, 6
      %v2427 = vshll.u32 %v2268, 16
      %v2429 = vrot.slane %v2427, 7
      %v2430 = vor.u32 %v2426, %v2429
      %v2431 = vsel %vm2303, %v2422, %v2430
      %v2432 = vrot.slane %v2430, 4
      %v2434 = vshrl.u32 %v2269, 16
      %v2436 = vrot.slane %v2434, 6
      %v2437 = vshll.u32 %v2269, 16
      %v2439 = vrot.slane %v2437, 7
      %v2440 = vor.u32 %v2436, %v2439
      %v2441 = vsel %vm2303, %v2432, %v2440
      %v2442 = vrot.slane %v2440, 4
      %v2444 = vshrl.u32 %v2270, 16
      %v2446 = vrot.slane %v2444, 6
      %v2447 = vshll.u32 %v2270, 16
      %v2449 = vrot.slane %v2447, 7
      %v2450 = vor.u32 %v2446, %v2449
      %v2451 = vsel %vm2303, %v2442, %v2450
      %v2452 = vrot.slane %v2450, 4
      %v2454 = vshrl.u32 %v2271, 16
      %v2456 = vrot.slane %v2454, 6
      %v2457 = vshll.u32 %v2271, 16
      %v2459 = vrot.slane %v2457, 7
      %v2460 = vor.u32 %v2456, %v2459
      %v2461 = vsel %vm2303, %v2452, %v2460
      %v2462 = vrot.slane %v2460, 4
      %v2464 = vshrl.u32 %v2272, 16
      %v2466 = vrot.slane %v2464, 6
      %v2467 = vshll.u32 %v2272, 16
      %v2469 = vrot.slane %v2467, 7
      %v2470 = vor.u32 %v2466, %v2469
      %v2471 = vsel %vm2303, %v2462, %v2470
      %v2472 = vrot.slane %v2470, 4
      %v2474 = vshrl.u32 %v2273, 16
      %v2476 = vrot.slane %v2474, 6
      %v2477 = vshll.u32 %v2273, 16
      %v2479 = vrot.slane %v2477, 7
      %v2480 = vor.u32 %v2476, %v2479
      %v2481 = vsel %vm2303, %v2472, %v2480
      %v2482 = vrot.slane %v2480, 4
      %v2484 = vshrl.u32 %v2274, 16
      %v2486 = vrot.slane %v2484, 6
      %v2487 = vshll.u32 %v2274, 16
      %v2489 = vrot.slane %v2487, 7
      %v2490 = vor.u32 %v2486, %v2489
      %v2491 = vsel %vm2303, %v2482, %v2490
      %v2492 = vrot.slane %v2490, 4
      %v2494 = vshrl.u32 %v2275, 16
      %v2496 = vrot.slane %v2494, 6
      %v2497 = vshll.u32 %v2275, 16
      %v2499 = vrot.slane %v2497, 7
      %v2500 = vor.u32 %v2496, %v2499
      %v2501 = vsel %vm2303, %v2492, %v2500
      %v2502 = vrot.slane %v2500, 4
      %v2504 = vshrl.u32 %v2276, 16
      %v2506 = vrot.slane %v2504, 6
      %v2507 = vshll.u32 %v2276, 16
      %v2509 = vrot.slane %v2507, 7
      %v2510 = vor.u32 %v2506, %v2509
      %v2511 = vsel %vm2303, %v2502, %v2510
      %v2512 = vrot.slane %v2510, 4
      %v2514 = vshrl.u32 %v2277, 16
      %v2516 = vrot.slane %v2514, 6
      %v2517 = vshll.u32 %v2277, 16
      %v2519 = vrot.slane %v2517, 7
      %v2520 = vor.u32 %v2516, %v2519
      %v2521 = vsel %vm2303, %v2512, %v2520
      %v2522 = vrot.slane %v2520, 4
      %v2524 = vshrl.u32 %v2278, 16
      %v2526 = vrot.slane %v2524, 6
      %v2527 = vshll.u32 %v2278, 16
      %v2529 = vrot.slane %v2527, 7
      %v2530 = vor.u32 %v2526, %v2529
      %v2531 = vsel %vm2303, %v2522, %v2530
      %v2532 = vrot.slane %v2530, 4
      %v2534 = vshrl.u32 %v2279, 16
      %v2536 = vrot.slane %v2534, 6
      %v2537 = vshll.u32 %v2279, 16
      %v2539 = vrot.slane %v2537, 7
      %v2540 = vor.u32 %v2536, %v2539
      %v2541 = vsel %vm2303, %v2532, %v2540
      %v2542 = vrot.slane %v2540, 4
      %v2544 = vshrl.u32 %v2280, 16
      %v2546 = vrot.slane %v2544, 6
      %v2547 = vshll.u32 %v2280, 16
      %v2549 = vrot.slane %v2547, 7
      %v2550 = vor.u32 %v2546, %v2549
      %v2551 = vsel %vm2303, %v2542, %v2550
      %v2552 = vrot.slane %v2550, 4
      %v2554 = vshrl.u32 %v2281, 16
      %v2556 = vrot.slane %v2554, 6
      %v2557 = vshll.u32 %v2281, 16
      %v2559 = vrot.slane %v2557, 7
      %v2560 = vor.u32 %v2556, %v2559
      %v2561 = vsel %vm2303, %v2552, %v2560
      %v2562 = vrot.slane %v2560, 4
      %v2564 = vshrl.u32 %v2282, 16
      %v2566 = vrot.slane %v2564, 6
      %v2567 = vshll.u32 %v2282, 16
      %v2569 = vrot.slane %v2567, 7
      %v2570 = vor.u32 %v2566, %v2569
      %v2571 = vsel %vm2303, %v2562, %v2570
      %v2572 = vrot.slane %v2570, 4
      %v2574 = vshrl.u32 %v2283, 16
      %v2576 = vrot.slane %v2574, 6
      %v2577 = vshll.u32 %v2283, 16
      %v2579 = vrot.slane %v2577, 7
      %v2580 = vor.u32 %v2576, %v2579
      %v2581 = vsel %vm2303, %v2572, %v2580
      %v2582 = vrot.slane %v2580, 4
      %v2584 = vshrl.u32 %v2284, 16
      %v2586 = vrot.slane %v2584, 6
      %v2587 = vshll.u32 %v2284, 16
      %v2589 = vrot.slane %v2587, 7
      %v2590 = vor.u32 %v2586, %v2589
      %v2591 = vsel %vm2303, %v2582, %v2590
      %v2592 = vrot.slane %v2590, 4
      %v2594 = vshrl.u32 %v2285, 16
      %v2596 = vrot.slane %v2594, 6
      %v2597 = vshll.u32 %v2285, 16
      %v2599 = vrot.slane %v2597, 7
      %v2600 = vor.u32 %v2596, %v2599
      %v2601 = vsel %vm2303, %v2592, %v2600
      %v2602 = vrot.slane %v2600, 4
      %v2604 = vshrl.u32 %v2286, 16
      %v2606 = vrot.slane %v2604, 6
      %v2607 = vshll.u32 %v2286, 16
      %v2609 = vrot.slane %v2607, 7
      %v2610 = vor.u32 %v2606, %v2609
      %v2611 = vsel %vm2303, %v2602, %v2610
      %v2612 = vrot.slane %v2610, 4
      %v2614 = vshrl.u32 %v2287, 16
      %v2616 = vrot.slane %v2614, 6
      %v2617 = vshll.u32 %v2287, 16
      %v2619 = vrot.slane %v2617, 7
      %v2620 = vor.u32 %v2616, %v2619
      %v2621 = vsel %vm2303, %v2612, %v2620
      %v2622 = vrot.slane %v2620, 4
      %v2624 = vshrl.u32 %v2288, 16
      %v2626 = vrot.slane %v2624, 6
      %v2627 = vshll.u32 %v2288, 16
      %v2629 = vrot.slane %v2627, 7
      %v2630 = vor.u32 %v2626, %v2629
      %v2631 = vsel %vm2303, %v2622, %v2630
      %v2632 = vrot.slane %v2630, 4
      %v2634 = vshrl.u32 %v2289, 16
      %v2636 = vrot.slane %v2634, 6
      %v2637 = vshll.u32 %v2289, 16
      %v2639 = vrot.slane %v2637, 7
      %v2640 = vor.u32 %v2636, %v2639
      %v2641 = vsel %vm2303, %v2632, %v2640
      %v2642 = vrot.slane %v2640, 4
      %v2644 = vshrl.u32 %v2290, 16
      %v2646 = vrot.slane %v2644, 6
      %v2647 = vshll.u32 %v2290, 16
      %v2649 = vrot.slane %v2647, 7
      %v2650 = vor.u32 %v2646, %v2649
      %v2651 = vsel %vm2303, %v2642, %v2650
      %v2652 = vrot.slane %v2650, 4
      %v2654 = vshrl.u32 %v2291, 16
      %v2656 = vrot.slane %v2654, 6
      %v2657 = vshll.u32 %v2291, 16
      %v2659 = vrot.slane %v2657, 7
      %v2660 = vor.u32 %v2656, %v2659
      %v2661 = vsel %vm2303, %v2652, %v2660
      %v2662 = vrot.slane %v2660, 4
      %v2664 = vshrl.u32 %v2292, 16
      %v2666 = vrot.slane %v2664, 6
      %v2667 = vshll.u32 %v2292, 16
      %v2669 = vrot.slane %v2667, 7
      %v2670 = vor.u32 %v2666, %v2669
      %v2671 = vsel %vm2303, %v2662, %v2670
      %v2672 = vrot.slane %v2670, 4
      %v2674 = vshrl.u32 %v2293, 16
      %v2676 = vrot.slane %v2674, 6
      %v2677 = vshll.u32 %v2293, 16
      %v2679 = vrot.slane %v2677, 7
      %v2680 = vor.u32 %v2676, %v2679
      %v2681 = vsel %vm2303, %v2672, %v2680
      %v2682 = vrot.slane %v2680, 4
      %v2684 = vshrl.u32 %v2294, 16
      %v2686 = vrot.slane %v2684, 6
      %v2687 = vshll.u32 %v2294, 16
      %v2689 = vrot.slane %v2687, 7
      %v2690 = vor.u32 %v2686, %v2689
      %v2691 = vsel %vm2303, %v2682, %v2690
      %v2692 = vrot.slane %v2690, 4
      %v2694 = vshrl.u32 %v2295, 16
      %v2696 = vrot.slane %v2694, 6
      %v2697 = vshll.u32 %v2295, 16
      %v2699 = vrot.slane %v2697, 7
      %v2700 = vor.u32 %v2696, %v2699
      %v2701 = vsel %vm2303, %v2692, %v2700
      %v2702 = vrot.slane %v2700, 4
      %v2704 = vshrl.u32 %v2296, 16
      %v2706 = vrot.slane %v2704, 6
      %v2707 = vshll.u32 %v2296, 16
      %v2709 = vrot.slane %v2707, 7
      %v2710 = vor.u32 %v2706, %v2709
      %v2711 = vsel %vm2303, %v2702, %v2710
      %v2712 = vrot.slane %v2710, 4
      %v2714 = vshrl.u32 %v2297, 16
      %v2716 = vrot.slane %v2714, 6
      %v2717 = vshll.u32 %v2297, 16
      %v2719 = vrot.slane %v2717, 7
      %v2720 = vor.u32 %v2716, %v2719
      %v2721 = vsel %vm2303, %v2712, %v2720
      %v2722 = vrot.slane %v2720, 4
      %v2724 = vshrl.u32 %v2298, 16
      %v2726 = vrot.slane %v2724, 6
      %v2727 = vshll.u32 %v2298, 16
      %v2729 = vrot.slane %v2727, 7
      %v2730 = vor.u32 %v2726, %v2729
      %v2731 = vsel %vm2303, %v2722, %v2730
      %v2732 = vrot.slane %v2730, 4
      %v2734 = vshrl.u32 %v2299, 16
      %v2736 = vrot.slane %v2734, 6
      %v2737 = vshll.u32 %v2299, 16
      %v2739 = vrot.slane %v2737, 7
      %v2740 = vor.u32 %v2736, %v2739
      %v2741 = vsel %vm2303, %v2732, %v2740
      %v2742 = vrot.slane %v2740, 4
      %v2744 = vshrl.u32 %v2300, 16
      %v2746 = vrot.slane %v2744, 6
      %v2747 = vshll.u32 %v2300, 16
      %v2749 = vrot.slane %v2747, 7
      %v2750 = vor.u32 %v2746, %v2749
      %v2751 = vsel %vm2303, %v2742, %v2750
      %2796 = vst [vmem:[#allocation3] sm:$0xf] %v2321
      %2797 = vst [vmem:[#allocation3 + $0x24] sm:$0xf] %v2331
      %2798 = vst [vmem:[#allocation3 + $0x48] sm:$0xf] %v2341
      %2799 = vst [vmem:[#allocation3 + $0x6c] sm:$0xf] %v2351
      %2800 = vst [vmem:[#allocation3 + $0x90] sm:$0xf] %v2361
      %2801 = vst [vmem:[#allocation3 + $0xb4] sm:$0xf] %v2371
      %2802 = vst [vmem:[#allocation3 + $0xd8] sm:$0xf] %v2381
      %2803 = vst [vmem:[#allocation3 + $0xfc] sm:$0xf] %v2391
      %2804 = vst [vmem:[#allocation3 + $0x120] sm:$0xf] %v2401
      %2805 = vst [vmem:[#allocation3 + $0x144] sm:$0xf] %v2411
      %2806 = vst [vmem:[#allocation3 + $0x168] sm:$0xf] %v2421
      %2807 = vst [vmem:[#allocation3 + $0x18c] sm:$0xf] %v2431
      %2808 = vst [vmem:[#allocation3 + $0x1b0] sm:$0xf] %v2441
      %2809 = vst [vmem:[#allocation3 + $0x1d4] sm:$0xf] %v2451
      %2810 = vst [vmem:[#allocation3 + $0x1f8] sm:$0xf] %v2461
      %2811 = vst [vmem:[#allocation3 + $0x21c] sm:$0xf] %v2471
      %2812 = vst [vmem:[#allocation3 + $0x240] sm:$0xf] %v2481
      %2813 = vst [vmem:[#allocation3 + $0x264] sm:$0xf] %v2491
      %2814 = vst [vmem:[#allocation3 + $0x288] sm:$0xf] %v2501
      %2815 = vst [vmem:[#allocation3 + $0x2ac] sm:$0xf] %v2511
      %2816 = vst [vmem:[#allocation3 + $0x2d0] sm:$0xf] %v2521
      %2817 = vst [vmem:[#allocation3 + $0x2f4] sm:$0xf] %v2531
      %2818 = vst [vmem:[#allocation3 + $0x318] sm:$0xf] %v2541
      %2819 = vst [vmem:[#allocation3 + $0x33c] sm:$0xf] %v2551
      %2820 = vst [vmem:[#allocation3 + $0x360] sm:$0xf] %v2561
      %2821 = vst [vmem:[#allocation3 + $0x384] sm:$0xf] %v2571
      %2822 = vst [vmem:[#allocation3 + $0x3a8] sm:$0xf] %v2581
      %2823 = vst [vmem:[#allocation3 + $0x3cc] sm:$0xf] %v2591
      %2824 = vst [vmem:[#allocation3 + $0x3f0] sm:$0xf] %v2601
      %2825 = vst [vmem:[#allocation3 + $0x414] sm:$0xf] %v2611
      %2826 = vst [vmem:[#allocation3 + $0x438] sm:$0xf] %v2621
      %2827 = vst [vmem:[#allocation3 + $0x45c] sm:$0xf] %v2631
      %2828 = vst [vmem:[#allocation3 + $0x480] sm:$0xf] %v2641
      %2829 = vst [vmem:[#allocation3 + $0x4a4] sm:$0xf] %v2651
      %2830 = vst [vmem:[#allocation3 + $0x4c8] sm:$0xf] %v2661
      %2831 = vst [vmem:[#allocation3 + $0x4ec] sm:$0xf] %v2671
      %2832 = vst [vmem:[#allocation3 + $0x510] sm:$0xf] %v2681
      %2833 = vst [vmem:[#allocation3 + $0x534] sm:$0xf] %v2691
      %2834 = vst [vmem:[#allocation3 + $0x558] sm:$0xf] %v2701
      %2835 = vst [vmem:[#allocation3 + $0x57c] sm:$0xf] %v2711
      %2836 = vst [vmem:[#allocation3 + $0x5a0] sm:$0xf] %v2721
      %2837 = vst [vmem:[#allocation3 + $0x5c4] sm:$0xf] %v2731
      %2838 = vst [vmem:[#allocation3 + $0x5e8] sm:$0xf] %v2741
      %2839 = vst [vmem:[#allocation3 + $0x60c] sm:$0xf] %v2751
      %v2840 = vld [vmem:[#allocation2 + $0x4] sm:$0x8]
      %v2841 = vld [vmem:[#allocation2 + $0x8] sm:$0xf]
      %v2842 = vld [vmem:[#allocation2 + $0xc] sm:$0xf]
      %v2843 = vld [vmem:[#allocation2 + $0x10] sm:$0xf]
      %v2844 = vld [vmem:[#allocation2 + $0x14] sm:$0xf]
      %v2845 = vld [vmem:[#allocation2 + $0x18] sm:$0xf]
      %v2846 = vld [vmem:[#allocation2 + $0x1c] sm:$0xf]
      %v2847 = vld [vmem:[#allocation2 + $0x20] sm:$0xf]
      %v2848 = vld [vmem:[#allocation2 + $0x24] sm:$0xf]
      %v2849 = vld [vmem:[#allocation2 + $0x28] sm:$0xf]
      %v2850 = vld [vmem:[#allocation2 + $0x2c] sm:$0xf]
      %v2851 = vld [vmem:[#allocation2 + $0x30] sm:$0xf]
      %v2852 = vld [vmem:[#allocation2 + $0x34] sm:$0xf]
      %v2853 = vld [vmem:[#allocation2 + $0x38] sm:$0xf]
      %v2854 = vld [vmem:[#allocation2 + $0x3c] sm:$0xf]
      %v2855 = vld [vmem:[#allocation2 + $0x40] sm:$0xf]
      %v2856 = vld [vmem:[#allocation2 + $0x44] sm:$0xf]
      %v2857 = vld [vmem:[#allocation2 + $0x48] sm:$0xf]
      %v2858 = vld [vmem:[#allocation2 + $0x4c] sm:$0xf]
      %v2859 = vld [vmem:[#allocation2 + $0x50] sm:$0xf]
      %v2860 = vld [vmem:[#allocation2 + $0x54] sm:$0xf]
      %v2861 = vld [vmem:[#allocation2 + $0x58] sm:$0xf]
      %v2862 = vld [vmem:[#allocation2 + $0x5c] sm:$0xf]
      %v2863 = vld [vmem:[#allocation2 + $0x60] sm:$0xf]
      %v2864 = vld [vmem:[#allocation2 + $0x64] sm:$0xf]
      %v2865 = vld [vmem:[#allocation2 + $0x68] sm:$0xf]
      %v2866 = vld [vmem:[#allocation2 + $0x6c] sm:$0xf]
      %v2867 = vld [vmem:[#allocation2 + $0x70] sm:$0xf]
      %v2868 = vld [vmem:[#allocation2 + $0x74] sm:$0xf]
      %v2869 = vld [vmem:[#allocation2 + $0x78] sm:$0xf]
      %v2870 = vld [vmem:[#allocation2 + $0x7c] sm:$0xf]
      %v2871 = vld [vmem:[#allocation2 + $0x80] sm:$0xf]
      %v2872 = vld [vmem:[#allocation2 + $0x84] sm:$0xf]
      %v2873 = vld [vmem:[#allocation2 + $0x88] sm:$0xf]
      %v2874 = vld [vmem:[#allocation2 + $0x8c] sm:$0xf]
      %v2875 = vld [vmem:[#allocation2 + $0x90] sm:$0xf]
      %v2876 = vld [vmem:[#allocation2 + $0x94] sm:$0xf]
      %v2877 = vld [vmem:[#allocation2 + $0x98] sm:$0xf]
      %v2878 = vld [vmem:[#allocation2 + $0x9c] sm:$0xf]
      %v2879 = vld [vmem:[#allocation2 + $0xa0] sm:$0xf]
      %v2880 = vld [vmem:[#allocation2 + $0xa4] sm:$0xf]
      %v2881 = vld [vmem:[#allocation2 + $0xa8] sm:$0xf]
      %v2882 = vld [vmem:[#allocation2 + $0xac] sm:$0xf]
      %v2883 = vld [vmem:[#allocation2 + $0xb0] sm:$0xf]
      %v2884 = vld [vmem:[#allocation2 + $0xb4] sm:$0x7]
      %vm2930 = vcmask 1040384
      %vm2931 = vcmask 1044484
      %vm2932 = vmor %vm2930, %vm2931
      %v2933 = vrot.slane %v2840, 7
      %v2934 = vrot.slane %v2933, 4
      %v2935 = vrot.slane %v2841, 7
      %v2936 = vsel %vm2932, %v2934, %v2935
      %v2937 = vrot.slane %v2935, 4
      %v2938 = vrot.slane %v2842, 7
      %v2939 = vsel %vm2932, %v2937, %v2938
      %v2940 = vrot.slane %v2938, 4
      %v2941 = vrot.slane %v2843, 7
      %v2942 = vsel %vm2932, %v2940, %v2941
      %v2943 = vrot.slane %v2941, 4
      %v2944 = vrot.slane %v2844, 7
      %v2945 = vsel %vm2932, %v2943, %v2944
      %v2946 = vrot.slane %v2944, 4
      %v2947 = vrot.slane %v2845, 7
      %v2948 = vsel %vm2932, %v2946, %v2947
      %v2949 = vrot.slane %v2947, 4
      %v2950 = vrot.slane %v2846, 7
      %v2951 = vsel %vm2932, %v2949, %v2950
      %v2952 = vrot.slane %v2950, 4
      %v2953 = vrot.slane %v2847, 7
      %v2954 = vsel %vm2932, %v2952, %v2953
      %v2955 = vrot.slane %v2953, 4
      %v2956 = vrot.slane %v2848, 7
      %v2957 = vsel %vm2932, %v2955, %v2956
      %v2958 = vrot.slane %v2956, 4
      %v2959 = vrot.slane %v2849, 7
      %v2960 = vsel %vm2932, %v2958, %v2959
      %v2961 = vrot.slane %v2959, 4
      %v2962 = vrot.slane %v2850, 7
      %v2963 = vsel %vm2932, %v2961, %v2962
      %v2964 = vrot.slane %v2962, 4
      %v2965 = vrot.slane %v2851, 7
      %v2966 = vsel %vm2932, %v2964, %v2965
      %v2967 = vrot.slane %v2965, 4
      %v2968 = vrot.slane %v2852, 7
      %v2969 = vsel %vm2932, %v2967, %v2968
      %v2970 = vrot.slane %v2968, 4
      %v2971 = vrot.slane %v2853, 7
      %v2972 = vsel %vm2932, %v2970, %v2971
      %v2973 = vrot.slane %v2971, 4
      %v2974 = vrot.slane %v2854, 7
      %v2975 = vsel %vm2932, %v2973, %v2974
      %v2976 = vrot.slane %v2974, 4
      %v2977 = vrot.slane %v2855, 7
      %v2978 = vsel %vm2932, %v2976, %v2977
      %v2979 = vrot.slane %v2977, 4
      %v2980 = vrot.slane %v2856, 7
      %v2981 = vsel %vm2932, %v2979, %v2980
      %v2982 = vrot.slane %v2980, 4
      %v2983 = vrot.slane %v2857, 7
      %v2984 = vsel %vm2932, %v2982, %v2983
      %v2985 = vrot.slane %v2983, 4
      %v2986 = vrot.slane %v2858, 7
      %v2987 = vsel %vm2932, %v2985, %v2986
      %v2988 = vrot.slane %v2986, 4
      %v2989 = vrot.slane %v2859, 7
      %v2990 = vsel %vm2932, %v2988, %v2989
      %v2991 = vrot.slane %v2989, 4
      %v2992 = vrot.slane %v2860, 7
      %v2993 = vsel %vm2932, %v2991, %v2992
      %v2994 = vrot.slane %v2992, 4
      %v2995 = vrot.slane %v2861, 7
      %v2996 = vsel %vm2932, %v2994, %v2995
      %v2997 = vrot.slane %v2995, 4
      %v2998 = vrot.slane %v2862, 7
      %v2999 = vsel %vm2932, %v2997, %v2998
      %v3000 = vrot.slane %v2998, 4
      %v3001 = vrot.slane %v2863, 7
      %v3002 = vsel %vm2932, %v3000, %v3001
      %v3003 = vrot.slane %v3001, 4
      %v3004 = vrot.slane %v2864, 7
      %v3005 = vsel %vm2932, %v3003, %v3004
      %v3006 = vrot.slane %v3004, 4
      %v3007 = vrot.slane %v2865, 7
      %v3008 = vsel %vm2932, %v3006, %v3007
      %v3009 = vrot.slane %v3007, 4
      %v3010 = vrot.slane %v2866, 7
      %v3011 = vsel %vm2932, %v3009, %v3010
      %v3012 = vrot.slane %v3010, 4
      %v3013 = vrot.slane %v2867, 7
      %v3014 = vsel %vm2932, %v3012, %v3013
      %v3015 = vrot.slane %v3013, 4
      %v3016 = vrot.slane %v2868, 7
      %v3017 = vsel %vm2932, %v3015, %v3016
      %v3018 = vrot.slane %v3016, 4
      %v3019 = vrot.slane %v2869, 7
      %v3020 = vsel %vm2932, %v3018, %v3019
      %v3021 = vrot.slane %v3019, 4
      %v3022 = vrot.slane %v2870, 7
      %v3023 = vsel %vm2932, %v3021, %v3022
      %v3024 = vrot.slane %v3022, 4
      %v3025 = vrot.slane %v2871, 7
      %v3026 = vsel %vm2932, %v3024, %v3025
      %v3027 = vrot.slane %v3025, 4
      %v3028 = vrot.slane %v2872, 7
      %v3029 = vsel %vm2932, %v3027, %v3028
      %v3030 = vrot.slane %v3028, 4
      %v3031 = vrot.slane %v2873, 7
      %v3032 = vsel %vm2932, %v3030, %v3031
      %v3033 = vrot.slane %v3031, 4
      %v3034 = vrot.slane %v2874, 7
      %v3035 = vsel %vm2932, %v3033, %v3034
      %v3036 = vrot.slane %v3034, 4
      %v3037 = vrot.slane %v2875, 7
      %v3038 = vsel %vm2932, %v3036, %v3037
      %v3039 = vrot.slane %v3037, 4
      %v3040 = vrot.slane %v2876, 7
      %v3041 = vsel %vm2932, %v3039, %v3040
      %v3042 = vrot.slane %v3040, 4
      %v3043 = vrot.slane %v2877, 7
      %v3044 = vsel %vm2932, %v3042, %v3043
      %v3045 = vrot.slane %v3043, 4
      %v3046 = vrot.slane %v2878, 7
      %v3047 = vsel %vm2932, %v3045, %v3046
      %v3048 = vrot.slane %v3046, 4
      %v3049 = vrot.slane %v2879, 7
      %v3050 = vsel %vm2932, %v3048, %v3049
      %v3051 = vrot.slane %v3049, 4
      %v3052 = vrot.slane %v2880, 7
      %v3053 = vsel %vm2932, %v3051, %v3052
      %v3054 = vrot.slane %v3052, 4
      %v3055 = vrot.slane %v2881, 7
      %v3056 = vsel %vm2932, %v3054, %v3055
      %v3057 = vrot.slane %v3055, 4
      %v3058 = vrot.slane %v2882, 7
      %v3059 = vsel %vm2932, %v3057, %v3058
      %v3060 = vrot.slane %v3058, 4
      %v3061 = vrot.slane %v2883, 7
      %v3062 = vsel %vm2932, %v3060, %v3061
      %v3063 = vrot.slane %v3061, 4
      %v3064 = vrot.slane %v2884, 7
      %v3065 = vsel %vm2932, %v3063, %v3064
      %3110 = vst [vmem:[#allocation3 + $0x4] sm:$0xf] %v2936
      %3111 = vst [vmem:[#allocation3 + $0x28] sm:$0xf] %v2939
      %3112 = vst [vmem:[#allocation3 + $0x4c] sm:$0xf] %v2942
      %3113 = vst [vmem:[#allocation3 + $0x70] sm:$0xf] %v2945
      %3114 = vst [vmem:[#allocation3 + $0x94] sm:$0xf] %v2948
      %3115 = vst [vmem:[#allocation3 + $0xb8] sm:$0xf] %v2951
      %3116 = vst [vmem:[#allocation3 + $0xdc] sm:$0xf] %v2954
      %3117 = vst [vmem:[#allocation3 + $0x100] sm:$0xf] %v2957
      %3118 = vst [vmem:[#allocation3 + $0x124] sm:$0xf] %v2960
      %3119 = vst [vmem:[#allocation3 + $0x148] sm:$0xf] %v2963
      %3120 = vst [vmem:[#allocation3 + $0x16c] sm:$0xf] %v2966
      %3121 = vst [vmem:[#allocation3 + $0x190] sm:$0xf] %v2969
      %3122 = vst [vmem:[#allocation3 + $0x1b4] sm:$0xf] %v2972
      %3123 = vst [vmem:[#allocation3 + $0x1d8] sm:$0xf] %v2975
      %3124 = vst [vmem:[#allocation3 + $0x1fc] sm:$0xf] %v2978
      %3125 = vst [vmem:[#allocation3 + $0x220] sm:$0xf] %v2981
      %3126 = vst [vmem:[#allocation3 + $0x244] sm:$0xf] %v2984
      %3127 = vst [vmem:[#allocation3 + $0x268] sm:$0xf] %v2987
      %3128 = vst [vmem:[#allocation3 + $0x28c] sm:$0xf] %v2990
      %3129 = vst [vmem:[#allocation3 + $0x2b0] sm:$0xf] %v2993
      %3130 = vst [vmem:[#allocation3 + $0x2d4] sm:$0xf] %v2996
      %3131 = vst [vmem:[#allocation3 + $0x2f8] sm:$0xf] %v2999
      %3132 = vst [vmem:[#allocation3 + $0x31c] sm:$0xf] %v3002
      %3133 = vst [vmem:[#allocation3 + $0x340] sm:$0xf] %v3005
      %3134 = vst [vmem:[#allocation3 + $0x364] sm:$0xf] %v3008
      %3135 = vst [vmem:[#allocation3 + $0x388] sm:$0xf] %v3011
      %3136 = vst [vmem:[#allocation3 + $0x3ac] sm:$0xf] %v3014
      %3137 = vst [vmem:[#allocation3 + $0x3d0] sm:$0xf] %v3017
      %3138 = vst [vmem:[#allocation3 + $0x3f4] sm:$0xf] %v3020
      %3139 = vst [vmem:[#allocation3 + $0x418] sm:$0xf] %v3023
      %3140 = vst [vmem:[#allocation3 + $0x43c] sm:$0xf] %v3026
      %3141 = vst [vmem:[#allocation3 + $0x460] sm:$0xf] %v3029
      %3142 = vst [vmem:[#allocation3 + $0x484] sm:$0xf] %v3032
      %3143 = vst [vmem:[#allocation3 + $0x4a8] sm:$0xf] %v3035
      %3144 = vst [vmem:[#allocation3 + $0x4cc] sm:$0xf] %v3038
      %3145 = vst [vmem:[#allocation3 + $0x4f0] sm:$0xf] %v3041
      %3146 = vst [vmem:[#allocation3 + $0x514] sm:$0xf] %v3044
      %3147 = vst [vmem:[#allocation3 + $0x538] sm:$0xf] %v3047
      %3148 = vst [vmem:[#allocation3 + $0x55c] sm:$0xf] %v3050
      %3149 = vst [vmem:[#allocation3 + $0x580] sm:$0xf] %v3053
      %3150 = vst [vmem:[#allocation3 + $0x5a4] sm:$0xf] %v3056
      %3151 = vst [vmem:[#allocation3 + $0x5c8] sm:$0xf] %v3059
      %3152 = vst [vmem:[#allocation3 + $0x5ec] sm:$0xf] %v3062
      %3153 = vst [vmem:[#allocation3 + $0x610] sm:$0xf] %v3065
      %v3154 = vld [vmem:[#allocation2 + $0x4] sm:$0x8]
      %v3155 = vld [vmem:[#allocation2 + $0x8] sm:$0xf]
      %v3156 = vld [vmem:[#allocation2 + $0xc] sm:$0xf]
      %v3157 = vld [vmem:[#allocation2 + $0x10] sm:$0xf]
      %v3158 = vld [vmem:[#allocation2 + $0x14] sm:$0xf]
      %v3159 = vld [vmem:[#allocation2 + $0x18] sm:$0xf]
      %v3160 = vld [vmem:[#allocation2 + $0x1c] sm:$0xf]
      %v3161 = vld [vmem:[#allocation2 + $0x20] sm:$0xf]
      %v3162 = vld [vmem:[#allocation2 + $0x24] sm:$0xf]
      %v3163 = vld [vmem:[#allocation2 + $0x28] sm:$0xf]
      %v3164 = vld [vmem:[#allocation2 + $0x2c] sm:$0xf]
      %v3165 = vld [vmem:[#allocation2 + $0x30] sm:$0xf]
      %v3166 = vld [vmem:[#allocation2 + $0x34] sm:$0xf]
      %v3167 = vld [vmem:[#allocation2 + $0x38] sm:$0xf]
      %v3168 = vld [vmem:[#allocation2 + $0x3c] sm:$0xf]
      %v3169 = vld [vmem:[#allocation2 + $0x40] sm:$0xf]
      %v3170 = vld [vmem:[#allocation2 + $0x44] sm:$0xf]
      %v3171 = vld [vmem:[#allocation2 + $0x48] sm:$0xf]
      %v3172 = vld [vmem:[#allocation2 + $0x4c] sm:$0xf]
      %v3173 = vld [vmem:[#allocation2 + $0x50] sm:$0xf]
      %v3174 = vld [vmem:[#allocation2 + $0x54] sm:$0xf]
      %v3175 = vld [vmem:[#allocation2 + $0x58] sm:$0xf]
      %v3176 = vld [vmem:[#allocation2 + $0x5c] sm:$0xf]
      %v3177 = vld [vmem:[#allocation2 + $0x60] sm:$0xf]
      %v3178 = vld [vmem:[#allocation2 + $0x64] sm:$0xf]
      %v3179 = vld [vmem:[#allocation2 + $0x68] sm:$0xf]
      %v3180 = vld [vmem:[#allocation2 + $0x6c] sm:$0xf]
      %v3181 = vld [vmem:[#allocation2 + $0x70] sm:$0xf]
      %v3182 = vld [vmem:[#allocation2 + $0x74] sm:$0xf]
      %v3183 = vld [vmem:[#allocation2 + $0x78] sm:$0xf]
      %v3184 = vld [vmem:[#allocation2 + $0x7c] sm:$0xf]
      %v3185 = vld [vmem:[#allocation2 + $0x80] sm:$0xf]
      %v3186 = vld [vmem:[#allocation2 + $0x84] sm:$0xf]
      %v3187 = vld [vmem:[#allocation2 + $0x88] sm:$0xf]
      %v3188 = vld [vmem:[#allocation2 + $0x8c] sm:$0xf]
      %v3189 = vld [vmem:[#allocation2 + $0x90] sm:$0xf]
      %v3190 = vld [vmem:[#allocation2 + $0x94] sm:$0xf]
      %v3191 = vld [vmem:[#allocation2 + $0x98] sm:$0xf]
      %v3192 = vld [vmem:[#allocation2 + $0x9c] sm:$0xf]
      %v3193 = vld [vmem:[#allocation2 + $0xa0] sm:$0xf]
      %v3194 = vld [vmem:[#allocation2 + $0xa4] sm:$0xf]
      %v3195 = vld [vmem:[#allocation2 + $0xa8] sm:$0xf]
      %v3196 = vld [vmem:[#allocation2 + $0xac] sm:$0xf]
      %v3197 = vld [vmem:[#allocation2 + $0xb0] sm:$0xf]
      %v3198 = vld [vmem:[#allocation2 + $0xb4] sm:$0xf]
      %vm3199 = vsmask.f32 256
      %vm3200 = vsmask.f32 4368
      %vm3201 = vmor %vm3199, %vm3200
      %v3203 = vshrl.u32 %v3154, 16
      %v3205 = vrot.slane %v3203, 7
      %v3206 = vrot.slane %v3205, 4
      %v3208 = vshrl.u32 %v3155, 16
      %v3210 = vrot.slane %v3208, 7
      %v3211 = vshll.u32 %v3155, 16
      %v3213 = vor.u32 %v3210, %v3211
      %v3214 = vsel %vm3201, %v3206, %v3213
      %v3215 = vrot.slane %v3210, 4
      %v3217 = vshrl.u32 %v3156, 16
      %v3219 = vrot.slane %v3217, 7
      %v3220 = vshll.u32 %v3156, 16
      %v3222 = vor.u32 %v3219, %v3220
      %v3223 = vsel %vm3201, %v3215, %v3222
      %v3224 = vrot.slane %v3219, 4
      %v3226 = vshrl.u32 %v3157, 16
      %v3228 = vrot.slane %v3226, 7
      %v3229 = vshll.u32 %v3157, 16
      %v3231 = vor.u32 %v3228, %v3229
      %v3232 = vsel %vm3201, %v3224, %v3231
      %v3233 = vrot.slane %v3228, 4
      %v3235 = vshrl.u32 %v3158, 16
      %v3237 = vrot.slane %v3235, 7
      %v3238 = vshll.u32 %v3158, 16
      %v3240 = vor.u32 %v3237, %v3238
      %v3241 = vsel %vm3201, %v3233, %v3240
      %v3242 = vrot.slane %v3237, 4
      %v3244 = vshrl.u32 %v3159, 16
      %v3246 = vrot.slane %v3244, 7
      %v3247 = vshll.u32 %v3159, 16
      %v3249 = vor.u32 %v3246, %v3247
      %v3250 = vsel %vm3201, %v3242, %v3249
      %v3251 = vrot.slane %v3246, 4
      %v3253 = vshrl.u32 %v3160, 16
      %v3255 = vrot.slane %v3253, 7
      %v3256 = vshll.u32 %v3160, 16
      %v3258 = vor.u32 %v3255, %v3256
      %v3259 = vsel %vm3201, %v3251, %v3258
      %v3260 = vrot.slane %v3255, 4
      %v3262 = vshrl.u32 %v3161, 16
      %v3264 = vrot.slane %v3262, 7
      %v3265 = vshll.u32 %v3161, 16
      %v3267 = vor.u32 %v3264, %v3265
      %v3268 = vsel %vm3201, %v3260, %v3267
      %v3269 = vrot.slane %v3264, 4
      %v3271 = vshrl.u32 %v3162, 16
      %v3273 = vrot.slane %v3271, 7
      %v3274 = vshll.u32 %v3162, 16
      %v3276 = vor.u32 %v3273, %v3274
      %v3277 = vsel %vm3201, %v3269, %v3276
      %v3278 = vrot.slane %v3273, 4
      %v3280 = vshrl.u32 %v3163, 16
      %v3282 = vrot.slane %v3280, 7
      %v3283 = vshll.u32 %v3163, 16
      %v3285 = vor.u32 %v3282, %v3283
      %v3286 = vsel %vm3201, %v3278, %v3285
      %v3287 = vrot.slane %v3282, 4
      %v3289 = vshrl.u32 %v3164, 16
      %v3291 = vrot.slane %v3289, 7
      %v3292 = vshll.u32 %v3164, 16
      %v3294 = vor.u32 %v3291, %v3292
      %v3295 = vsel %vm3201, %v3287, %v3294
      %v3296 = vrot.slane %v3291, 4
      %v3298 = vshrl.u32 %v3165, 16
      %v3300 = vrot.slane %v3298, 7
      %v3301 = vshll.u32 %v3165, 16
      %v3303 = vor.u32 %v3300, %v3301
      %v3304 = vsel %vm3201, %v3296, %v3303
      %v3305 = vrot.slane %v3300, 4
      %v3307 = vshrl.u32 %v3166, 16
      %v3309 = vrot.slane %v3307, 7
      %v3310 = vshll.u32 %v3166, 16
      %v3312 = vor.u32 %v3309, %v3310
      %v3313 = vsel %vm3201, %v3305, %v3312
      %v3314 = vrot.slane %v3309, 4
      %v3316 = vshrl.u32 %v3167, 16
      %v3318 = vrot.slane %v3316, 7
      %v3319 = vshll.u32 %v3167, 16
      %v3321 = vor.u32 %v3318, %v3319
      %v3322 = vsel %vm3201, %v3314, %v3321
      %v3323 = vrot.slane %v3318, 4
      %v3325 = vshrl.u32 %v3168, 16
      %v3327 = vrot.slane %v3325, 7
      %v3328 = vshll.u32 %v3168, 16
      %v3330 = vor.u32 %v3327, %v3328
      %v3331 = vsel %vm3201, %v3323, %v3330
      %v3332 = vrot.slane %v3327, 4
      %v3334 = vshrl.u32 %v3169, 16
      %v3336 = vrot.slane %v3334, 7
      %v3337 = vshll.u32 %v3169, 16
      %v3339 = vor.u32 %v3336, %v3337
      %v3340 = vsel %vm3201, %v3332, %v3339
      %v3341 = vrot.slane %v3336, 4
      %v3343 = vshrl.u32 %v3170, 16
      %v3345 = vrot.slane %v3343, 7
      %v3346 = vshll.u32 %v3170, 16
      %v3348 = vor.u32 %v3345, %v3346
      %v3349 = vsel %vm3201, %v3341, %v3348
      %v3350 = vrot.slane %v3345, 4
      %v3352 = vshrl.u32 %v3171, 16
      %v3354 = vrot.slane %v3352, 7
      %v3355 = vshll.u32 %v3171, 16
      %v3357 = vor.u32 %v3354, %v3355
      %v3358 = vsel %vm3201, %v3350, %v3357
      %v3359 = vrot.slane %v3354, 4
      %v3361 = vshrl.u32 %v3172, 16
      %v3363 = vrot.slane %v3361, 7
      %v3364 = vshll.u32 %v3172, 16
      %v3366 = vor.u32 %v3363, %v3364
      %v3367 = vsel %vm3201, %v3359, %v3366
      %v3368 = vrot.slane %v3363, 4
      %v3370 = vshrl.u32 %v3173, 16
      %v3372 = vrot.slane %v3370, 7
      %v3373 = vshll.u32 %v3173, 16
      %v3375 = vor.u32 %v3372, %v3373
      %v3376 = vsel %vm3201, %v3368, %v3375
      %v3377 = vrot.slane %v3372, 4
      %v3379 = vshrl.u32 %v3174, 16
      %v3381 = vrot.slane %v3379, 7
      %v3382 = vshll.u32 %v3174, 16
      %v3384 = vor.u32 %v3381, %v3382
      %v3385 = vsel %vm3201, %v3377, %v3384
      %v3386 = vrot.slane %v3381, 4
      %v3388 = vshrl.u32 %v3175, 16
      %v3390 = vrot.slane %v3388, 7
      %v3391 = vshll.u32 %v3175, 16
      %v3393 = vor.u32 %v3390, %v3391
      %v3394 = vsel %vm3201, %v3386, %v3393
      %v3395 = vrot.slane %v3390, 4
      %v3397 = vshrl.u32 %v3176, 16
      %v3399 = vrot.slane %v3397, 7
      %v3400 = vshll.u32 %v3176, 16
      %v3402 = vor.u32 %v3399, %v3400
      %v3403 = vsel %vm3201, %v3395, %v3402
      %v3404 = vrot.slane %v3399, 4
      %v3406 = vshrl.u32 %v3177, 16
      %v3408 = vrot.slane %v3406, 7
      %v3409 = vshll.u32 %v3177, 16
      %v3411 = vor.u32 %v3408, %v3409
      %v3412 = vsel %vm3201, %v3404, %v3411
      %v3413 = vrot.slane %v3408, 4
      %v3415 = vshrl.u32 %v3178, 16
      %v3417 = vrot.slane %v3415, 7
      %v3418 = vshll.u32 %v3178, 16
      %v3420 = vor.u32 %v3417, %v3418
      %v3421 = vsel %vm3201, %v3413, %v3420
      %v3422 = vrot.slane %v3417, 4
      %v3424 = vshrl.u32 %v3179, 16
      %v3426 = vrot.slane %v3424, 7
      %v3427 = vshll.u32 %v3179, 16
      %v3429 = vor.u32 %v3426, %v3427
      %v3430 = vsel %vm3201, %v3422, %v3429
      %v3431 = vrot.slane %v3426, 4
      %v3433 = vshrl.u32 %v3180, 16
      %v3435 = vrot.slane %v3433, 7
      %v3436 = vshll.u32 %v3180, 16
      %v3438 = vor.u32 %v3435, %v3436
      %v3439 = vsel %vm3201, %v3431, %v3438
      %v3440 = vrot.slane %v3435, 4
      %v3442 = vshrl.u32 %v3181, 16
      %v3444 = vrot.slane %v3442, 7
      %v3445 = vshll.u32 %v3181, 16
      %v3447 = vor.u32 %v3444, %v3445
      %v3448 = vsel %vm3201, %v3440, %v3447
      %v3449 = vrot.slane %v3444, 4
      %v3451 = vshrl.u32 %v3182, 16
      %v3453 = vrot.slane %v3451, 7
      %v3454 = vshll.u32 %v3182, 16
      %v3456 = vor.u32 %v3453, %v3454
      %v3457 = vsel %vm3201, %v3449, %v3456
      %v3458 = vrot.slane %v3453, 4
      %v3460 = vshrl.u32 %v3183, 16
      %v3462 = vrot.slane %v3460, 7
      %v3463 = vshll.u32 %v3183, 16
      %v3465 = vor.u32 %v3462, %v3463
      %v3466 = vsel %vm3201, %v3458, %v3465
      %v3467 = vrot.slane %v3462, 4
      %v3469 = vshrl.u32 %v3184, 16
      %v3471 = vrot.slane %v3469, 7
      %v3472 = vshll.u32 %v3184, 16
      %v3474 = vor.u32 %v3471, %v3472
      %v3475 = vsel %vm3201, %v3467, %v3474
      %v3476 = vrot.slane %v3471, 4
      %v3478 = vshrl.u32 %v3185, 16
      %v3480 = vrot.slane %v3478, 7
      %v3481 = vshll.u32 %v3185, 16
      %v3483 = vor.u32 %v3480, %v3481
      %v3484 = vsel %vm3201, %v3476, %v3483
      %v3485 = vrot.slane %v3480, 4
      %v3487 = vshrl.u32 %v3186, 16
      %v3489 = vrot.slane %v3487, 7
      %v3490 = vshll.u32 %v3186, 16
      %v3492 = vor.u32 %v3489, %v3490
      %v3493 = vsel %vm3201, %v3485, %v3492
      %v3494 = vrot.slane %v3489, 4
      %v3496 = vshrl.u32 %v3187, 16
      %v3498 = vrot.slane %v3496, 7
      %v3499 = vshll.u32 %v3187, 16
      %v3501 = vor.u32 %v3498, %v3499
      %v3502 = vsel %vm3201, %v3494, %v3501
      %v3503 = vrot.slane %v3498, 4
      %v3505 = vshrl.u32 %v3188, 16
      %v3507 = vrot.slane %v3505, 7
      %v3508 = vshll.u32 %v3188, 16
      %v3510 = vor.u32 %v3507, %v3508
      %v3511 = vsel %vm3201, %v3503, %v3510
      %v3512 = vrot.slane %v3507, 4
      %v3514 = vshrl.u32 %v3189, 16
      %v3516 = vrot.slane %v3514, 7
      %v3517 = vshll.u32 %v3189, 16
      %v3519 = vor.u32 %v3516, %v3517
      %v3520 = vsel %vm3201, %v3512, %v3519
      %v3521 = vrot.slane %v3516, 4
      %v3523 = vshrl.u32 %v3190, 16
      %v3525 = vrot.slane %v3523, 7
      %v3526 = vshll.u32 %v3190, 16
      %v3528 = vor.u32 %v3525, %v3526
      %v3529 = vsel %vm3201, %v3521, %v3528
      %v3530 = vrot.slane %v3525, 4
      %v3532 = vshrl.u32 %v3191, 16
      %v3534 = vrot.slane %v3532, 7
      %v3535 = vshll.u32 %v3191, 16
      %v3537 = vor.u32 %v3534, %v3535
      %v3538 = vsel %vm3201, %v3530, %v3537
      %v3539 = vrot.slane %v3534, 4
      %v3541 = vshrl.u32 %v3192, 16
      %v3543 = vrot.slane %v3541, 7
      %v3544 = vshll.u32 %v3192, 16
      %v3546 = vor.u32 %v3543, %v3544
      %v3547 = vsel %vm3201, %v3539, %v3546
      %v3548 = vrot.slane %v3543, 4
      %v3550 = vshrl.u32 %v3193, 16
      %v3552 = vrot.slane %v3550, 7
      %v3553 = vshll.u32 %v3193, 16
      %v3555 = vor.u32 %v3552, %v3553
      %v3556 = vsel %vm3201, %v3548, %v3555
      %v3557 = vrot.slane %v3552, 4
      %v3559 = vshrl.u32 %v3194, 16
      %v3561 = vrot.slane %v3559, 7
      %v3562 = vshll.u32 %v3194, 16
      %v3564 = vor.u32 %v3561, %v3562
      %v3565 = vsel %vm3201, %v3557, %v3564
      %v3566 = vrot.slane %v3561, 4
      %v3568 = vshrl.u32 %v3195, 16
      %v3570 = vrot.slane %v3568, 7
      %v3571 = vshll.u32 %v3195, 16
      %v3573 = vor.u32 %v3570, %v3571
      %v3574 = vsel %vm3201, %v3566, %v3573
      %v3575 = vrot.slane %v3570, 4
      %v3577 = vshrl.u32 %v3196, 16
      %v3579 = vrot.slane %v3577, 7
      %v3580 = vshll.u32 %v3196, 16
      %v3582 = vor.u32 %v3579, %v3580
      %v3583 = vsel %vm3201, %v3575, %v3582
      %v3584 = vrot.slane %v3579, 4
      %v3586 = vshrl.u32 %v3197, 16
      %v3588 = vrot.slane %v3586, 7
      %v3589 = vshll.u32 %v3197, 16
      %v3591 = vor.u32 %v3588, %v3589
      %v3592 = vsel %vm3201, %v3584, %v3591
      %v3593 = vrot.slane %v3588, 4
      %v3595 = vshrl.u32 %v3198, 16
      %v3597 = vrot.slane %v3595, 7
      %v3598 = vshll.u32 %v3198, 16
      %v3600 = vor.u32 %v3597, %v3598
      %v3601 = vsel %vm3201, %v3593, %v3600
      %3646 = vst [vmem:[#allocation3 + $0x8] sm:$0xf] %v3214
      %3647 = vst [vmem:[#allocation3 + $0x2c] sm:$0xf] %v3223
      %3648 = vst [vmem:[#allocation3 + $0x50] sm:$0xf] %v3232
      %3649 = vst [vmem:[#allocation3 + $0x74] sm:$0xf] %v3241
      %3650 = vst [vmem:[#allocation3 + $0x98] sm:$0xf] %v3250
      %3651 = vst [vmem:[#allocation3 + $0xbc] sm:$0xf] %v3259
      %3652 = vst [vmem:[#allocation3 + $0xe0] sm:$0xf] %v3268
      %3653 = vst [vmem:[#allocation3 + $0x104] sm:$0xf] %v3277
      %3654 = vst [vmem:[#allocation3 + $0x128] sm:$0xf] %v3286
      %3655 = vst [vmem:[#allocation3 + $0x14c] sm:$0xf] %v3295
      %3656 = vst [vmem:[#allocation3 + $0x170] sm:$0xf] %v3304
      %3657 = vst [vmem:[#allocation3 + $0x194] sm:$0xf] %v3313
      %3658 = vst [vmem:[#allocation3 + $0x1b8] sm:$0xf] %v3322
      %3659 = vst [vmem:[#allocation3 + $0x1dc] sm:$0xf] %v3331
      %3660 = vst [vmem:[#allocation3 + $0x200] sm:$0xf] %v3340
      %3661 = vst [vmem:[#allocation3 + $0x224] sm:$0xf] %v3349
      %3662 = vst [vmem:[#allocation3 + $0x248] sm:$0xf] %v3358
      %3663 = vst [vmem:[#allocation3 + $0x26c] sm:$0xf] %v3367
      %3664 = vst [vmem:[#allocation3 + $0x290] sm:$0xf] %v3376
      %3665 = vst [vmem:[#allocation3 + $0x2b4] sm:$0xf] %v3385
      %3666 = vst [vmem:[#allocation3 + $0x2d8] sm:$0xf] %v3394
      %3667 = vst [vmem:[#allocation3 + $0x2fc] sm:$0xf] %v3403
      %3668 = vst [vmem:[#allocation3 + $0x320] sm:$0xf] %v3412
      %3669 = vst [vmem:[#allocation3 + $0x344] sm:$0xf] %v3421
      %3670 = vst [vmem:[#allocation3 + $0x368] sm:$0xf] %v3430
      %3671 = vst [vmem:[#allocation3 + $0x38c] sm:$0xf] %v3439
      %3672 = vst [vmem:[#allocation3 + $0x3b0] sm:$0xf] %v3448
      %3673 = vst [vmem:[#allocation3 + $0x3d4] sm:$0xf] %v3457
      %3674 = vst [vmem:[#allocation3 + $0x3f8] sm:$0xf] %v3466
      %3675 = vst [vmem:[#allocation3 + $0x41c] sm:$0xf] %v3475
      %3676 = vst [vmem:[#allocation3 + $0x440] sm:$0xf] %v3484
      %3677 = vst [vmem:[#allocation3 + $0x464] sm:$0xf] %v3493
      %3678 = vst [vmem:[#allocation3 + $0x488] sm:$0xf] %v3502
      %3679 = vst [vmem:[#allocation3 + $0x4ac] sm:$0xf] %v3511
      %3680 = vst [vmem:[#allocation3 + $0x4d0] sm:$0xf] %v3520
      %3681 = vst [vmem:[#allocation3 + $0x4f4] sm:$0xf] %v3529
      %3682 = vst [vmem:[#allocation3 + $0x518] sm:$0xf] %v3538
      %3683 = vst [vmem:[#allocation3 + $0x53c] sm:$0xf] %v3547
      %3684 = vst [vmem:[#allocation3 + $0x560] sm:$0xf] %v3556
      %3685 = vst [vmem:[#allocation3 + $0x584] sm:$0xf] %v3565
      %3686 = vst [vmem:[#allocation3 + $0x5a8] sm:$0xf] %v3574
      %3687 = vst [vmem:[#allocation3 + $0x5cc] sm:$0xf] %v3583
      %3688 = vst [vmem:[#allocation3 + $0x5f0] sm:$0xf] %v3592
      %3689 = vst [vmem:[#allocation3 + $0x614] sm:$0xf] %v3601
      %v3690 = vld [vmem:[#allocation2 + $0xc] sm:$0x8]
      %v3691 = vld [vmem:[#allocation2 + $0x10] sm:$0xf]
      %v3692 = vld [vmem:[#allocation2 + $0x14] sm:$0xf]
      %v3693 = vld [vmem:[#allocation2 + $0x18] sm:$0xf]
      %v3694 = vld [vmem:[#allocation2 + $0x1c] sm:$0xf]
      %v3695 = vld [vmem:[#allocation2 + $0x20] sm:$0xf]
      %v3696 = vld [vmem:[#allocation2 + $0x24] sm:$0xf]
      %v3697 = vld [vmem:[#allocation2 + $0x28] sm:$0xf]
      %v3698 = vld [vmem:[#allocation2 + $0x2c] sm:$0xf]
      %v3699 = vld [vmem:[#allocation2 + $0x30] sm:$0xf]
      %v3700 = vld [vmem:[#allocation2 + $0x34] sm:$0xf]
      %v3701 = vld [vmem:[#allocation2 + $0x38] sm:$0xf]
      %v3702 = vld [vmem:[#allocation2 + $0x3c] sm:$0xf]
      %v3703 = vld [vmem:[#allocation2 + $0x40] sm:$0xf]
      %v3704 = vld [vmem:[#allocation2 + $0x44] sm:$0xf]
      %v3705 = vld [vmem:[#allocation2 + $0x48] sm:$0xf]
      %v3706 = vld [vmem:[#allocation2 + $0x4c] sm:$0xf]
      %v3707 = vld [vmem:[#allocation2 + $0x50] sm:$0xf]
      %v3708 = vld [vmem:[#allocation2 + $0x54] sm:$0xf]
      %v3709 = vld [vmem:[#allocation2 + $0x58] sm:$0xf]
      %v3710 = vld [vmem:[#allocation2 + $0x5c] sm:$0xf]
      %v3711 = vld [vmem:[#allocation2 + $0x60] sm:$0xf]
      %v3712 = vld [vmem:[#allocation2 + $0x64] sm:$0xf]
      %v3713 = vld [vmem:[#allocation2 + $0x68] sm:$0xf]
      %v3714 = vld [vmem:[#allocation2 + $0x6c] sm:$0xf]
      %v3715 = vld [vmem:[#allocation2 + $0x70] sm:$0xf]
      %v3716 = vld [vmem:[#allocation2 + $0x74] sm:$0xf]
      %v3717 = vld [vmem:[#allocation2 + $0x78] sm:$0xf]
      %v3718 = vld [vmem:[#allocation2 + $0x7c] sm:$0xf]
      %v3719 = vld [vmem:[#allocation2 + $0x80] sm:$0xf]
      %v3720 = vld [vmem:[#allocation2 + $0x84] sm:$0xf]
      %v3721 = vld [vmem:[#allocation2 + $0x88] sm:$0xf]
      %v3722 = vld [vmem:[#allocation2 + $0x8c] sm:$0xf]
      %v3723 = vld [vmem:[#allocation2 + $0x90] sm:$0xf]
      %v3724 = vld [vmem:[#allocation2 + $0x94] sm:$0xf]
      %v3725 = vld [vmem:[#allocation2 + $0x98] sm:$0xf]
      %v3726 = vld [vmem:[#allocation2 + $0x9c] sm:$0xf]
      %v3727 = vld [vmem:[#allocation2 + $0xa0] sm:$0xf]
      %v3728 = vld [vmem:[#allocation2 + $0xa4] sm:$0xf]
      %v3729 = vld [vmem:[#allocation2 + $0xa8] sm:$0xf]
      %v3730 = vld [vmem:[#allocation2 + $0xac] sm:$0xf]
      %v3731 = vld [vmem:[#allocation2 + $0xb0] sm:$0xf]
      %v3732 = vld [vmem:[#allocation2 + $0xb4] sm:$0xf]
      %v3733 = vld [vmem:[#allocation2 + $0xb8] sm:$0xf]
      %v3734 = vld [vmem:[#allocation2 + $0xbc] sm:$0xf]
      %v3736 = vshrl.u32 %v3690, 16
      %v3738 = vrot.slane %v3736, 7
      %v3739 = vrot.slane %v3738, 4
      %v3741 = vshrl.u32 %v3691, 16
      %v3743 = vrot.slane %v3741, 7
      %v3744 = vshll.u32 %v3691, 16
      %v3746 = vor.u32 %v3743, %v3744
      %v3747 = vsel %vm3201, %v3739, %v3746
      %v3748 = vrot.slane %v3743, 4
      %v3750 = vshrl.u32 %v3692, 16
      %v3752 = vrot.slane %v3750, 7
      %v3753 = vshll.u32 %v3692, 16
      %v3755 = vor.u32 %v3752, %v3753
      %v3756 = vsel %vm3201, %v3748, %v3755
      %v3757 = vrot.slane %v3752, 4
      %v3759 = vshrl.u32 %v3693, 16
      %v3761 = vrot.slane %v3759, 7
      %v3762 = vshll.u32 %v3693, 16
      %v3764 = vor.u32 %v3761, %v3762
      %v3765 = vsel %vm3201, %v3757, %v3764
      %v3766 = vrot.slane %v3761, 4
      %v3768 = vshrl.u32 %v3694, 16
      %v3770 = vrot.slane %v3768, 7
      %v3771 = vshll.u32 %v3694, 16
      %v3773 = vor.u32 %v3770, %v3771
      %v3774 = vsel %vm3201, %v3766, %v3773
      %v3775 = vrot.slane %v3770, 4
      %v3777 = vshrl.u32 %v3695, 16
      %v3779 = vrot.slane %v3777, 7
      %v3780 = vshll.u32 %v3695, 16
      %v3782 = vor.u32 %v3779, %v3780
      %v3783 = vsel %vm3201, %v3775, %v3782
      %v3784 = vrot.slane %v3779, 4
      %v3786 = vshrl.u32 %v3696, 16
      %v3788 = vrot.slane %v3786, 7
      %v3789 = vshll.u32 %v3696, 16
      %v3791 = vor.u32 %v3788, %v3789
      %v3792 = vsel %vm3201, %v3784, %v3791
      %v3793 = vrot.slane %v3788, 4
      %v3795 = vshrl.u32 %v3697, 16
      %v3797 = vrot.slane %v3795, 7
      %v3798 = vshll.u32 %v3697, 16
      %v3800 = vor.u32 %v3797, %v3798
      %v3801 = vsel %vm3201, %v3793, %v3800
      %v3802 = vrot.slane %v3797, 4
      %v3804 = vshrl.u32 %v3698, 16
      %v3806 = vrot.slane %v3804, 7
      %v3807 = vshll.u32 %v3698, 16
      %v3809 = vor.u32 %v3806, %v3807
      %v3810 = vsel %vm3201, %v3802, %v3809
      %v3811 = vrot.slane %v3806, 4
      %v3813 = vshrl.u32 %v3699, 16
      %v3815 = vrot.slane %v3813, 7
      %v3816 = vshll.u32 %v3699, 16
      %v3818 = vor.u32 %v3815, %v3816
      %v3819 = vsel %vm3201, %v3811, %v3818
      %v3820 = vrot.slane %v3815, 4
      %v3822 = vshrl.u32 %v3700, 16
      %v3824 = vrot.slane %v3822, 7
      %v3825 = vshll.u32 %v3700, 16
      %v3827 = vor.u32 %v3824, %v3825
      %v3828 = vsel %vm3201, %v3820, %v3827
      %v3829 = vrot.slane %v3824, 4
      %v3831 = vshrl.u32 %v3701, 16
      %v3833 = vrot.slane %v3831, 7
      %v3834 = vshll.u32 %v3701, 16
      %v3836 = vor.u32 %v3833, %v3834
      %v3837 = vsel %vm3201, %v3829, %v3836
      %v3838 = vrot.slane %v3833, 4
      %v3840 = vshrl.u32 %v3702, 16
      %v3842 = vrot.slane %v3840, 7
      %v3843 = vshll.u32 %v3702, 16
      %v3845 = vor.u32 %v3842, %v3843
      %v3846 = vsel %vm3201, %v3838, %v3845
      %v3847 = vrot.slane %v3842, 4
      %v3849 = vshrl.u32 %v3703, 16
      %v3851 = vrot.slane %v3849, 7
      %v3852 = vshll.u32 %v3703, 16
      %v3854 = vor.u32 %v3851, %v3852
      %v3855 = vsel %vm3201, %v3847, %v3854
      %v3856 = vrot.slane %v3851, 4
      %v3858 = vshrl.u32 %v3704, 16
      %v3860 = vrot.slane %v3858, 7
      %v3861 = vshll.u32 %v3704, 16
      %v3863 = vor.u32 %v3860, %v3861
      %v3864 = vsel %vm3201, %v3856, %v3863
      %v3865 = vrot.slane %v3860, 4
      %v3867 = vshrl.u32 %v3705, 16
      %v3869 = vrot.slane %v3867, 7
      %v3870 = vshll.u32 %v3705, 16
      %v3872 = vor.u32 %v3869, %v3870
      %v3873 = vsel %vm3201, %v3865, %v3872
      %v3874 = vrot.slane %v3869, 4
      %v3876 = vshrl.u32 %v3706, 16
      %v3878 = vrot.slane %v3876, 7
      %v3879 = vshll.u32 %v3706, 16
      %v3881 = vor.u32 %v3878, %v3879
      %v3882 = vsel %vm3201, %v3874, %v3881
      %v3883 = vrot.slane %v3878, 4
      %v3885 = vshrl.u32 %v3707, 16
      %v3887 = vrot.slane %v3885, 7
      %v3888 = vshll.u32 %v3707, 16
      %v3890 = vor.u32 %v3887, %v3888
      %v3891 = vsel %vm3201, %v3883, %v3890
      %v3892 = vrot.slane %v3887, 4
      %v3894 = vshrl.u32 %v3708, 16
      %v3896 = vrot.slane %v3894, 7
      %v3897 = vshll.u32 %v3708, 16
      %v3899 = vor.u32 %v3896, %v3897
      %v3900 = vsel %vm3201, %v3892, %v3899
      %v3901 = vrot.slane %v3896, 4
      %v3903 = vshrl.u32 %v3709, 16
      %v3905 = vrot.slane %v3903, 7
      %v3906 = vshll.u32 %v3709, 16
      %v3908 = vor.u32 %v3905, %v3906
      %v3909 = vsel %vm3201, %v3901, %v3908
      %v3910 = vrot.slane %v3905, 4
      %v3912 = vshrl.u32 %v3710, 16
      %v3914 = vrot.slane %v3912, 7
      %v3915 = vshll.u32 %v3710, 16
      %v3917 = vor.u32 %v3914, %v3915
      %v3918 = vsel %vm3201, %v3910, %v3917
      %v3919 = vrot.slane %v3914, 4
      %v3921 = vshrl.u32 %v3711, 16
      %v3923 = vrot.slane %v3921, 7
      %v3924 = vshll.u32 %v3711, 16
      %v3926 = vor.u32 %v3923, %v3924
      %v3927 = vsel %vm3201, %v3919, %v3926
      %v3928 = vrot.slane %v3923, 4
      %v3930 = vshrl.u32 %v3712, 16
      %v3932 = vrot.slane %v3930, 7
      %v3933 = vshll.u32 %v3712, 16
      %v3935 = vor.u32 %v3932, %v3933
      %v3936 = vsel %vm3201, %v3928, %v3935
      %v3937 = vrot.slane %v3932, 4
      %v3939 = vshrl.u32 %v3713, 16
      %v3941 = vrot.slane %v3939, 7
      %v3942 = vshll.u32 %v3713, 16
      %v3944 = vor.u32 %v3941, %v3942
      %v3945 = vsel %vm3201, %v3937, %v3944
      %v3946 = vrot.slane %v3941, 4
      %v3948 = vshrl.u32 %v3714, 16
      %v3950 = vrot.slane %v3948, 7
      %v3951 = vshll.u32 %v3714, 16
      %v3953 = vor.u32 %v3950, %v3951
      %v3954 = vsel %vm3201, %v3946, %v3953
      %v3955 = vrot.slane %v3950, 4
      %v3957 = vshrl.u32 %v3715, 16
      %v3959 = vrot.slane %v3957, 7
      %v3960 = vshll.u32 %v3715, 16
      %v3962 = vor.u32 %v3959, %v3960
      %v3963 = vsel %vm3201, %v3955, %v3962
      %v3964 = vrot.slane %v3959, 4
      %v3966 = vshrl.u32 %v3716, 16
      %v3968 = vrot.slane %v3966, 7
      %v3969 = vshll.u32 %v3716, 16
      %v3971 = vor.u32 %v3968, %v3969
      %v3972 = vsel %vm3201, %v3964, %v3971
      %v3973 = vrot.slane %v3968, 4
      %v3975 = vshrl.u32 %v3717, 16
      %v3977 = vrot.slane %v3975, 7
      %v3978 = vshll.u32 %v3717, 16
      %v3980 = vor.u32 %v3977, %v3978
      %v3981 = vsel %vm3201, %v3973, %v3980
      %v3982 = vrot.slane %v3977, 4
      %v3984 = vshrl.u32 %v3718, 16
      %v3986 = vrot.slane %v3984, 7
      %v3987 = vshll.u32 %v3718, 16
      %v3989 = vor.u32 %v3986, %v3987
      %v3990 = vsel %vm3201, %v3982, %v3989
      %v3991 = vrot.slane %v3986, 4
      %v3993 = vshrl.u32 %v3719, 16
      %v3995 = vrot.slane %v3993, 7
      %v3996 = vshll.u32 %v3719, 16
      %v3998 = vor.u32 %v3995, %v3996
      %v3999 = vsel %vm3201, %v3991, %v3998
      %v4000 = vrot.slane %v3995, 4
      %v4002 = vshrl.u32 %v3720, 16
      %v4004 = vrot.slane %v4002, 7
      %v4005 = vshll.u32 %v3720, 16
      %v4007 = vor.u32 %v4004, %v4005
      %v4008 = vsel %vm3201, %v4000, %v4007
      %v4009 = vrot.slane %v4004, 4
      %v4011 = vshrl.u32 %v3721, 16
      %v4013 = vrot.slane %v4011, 7
      %v4014 = vshll.u32 %v3721, 16
      %v4016 = vor.u32 %v4013, %v4014
      %v4017 = vsel %vm3201, %v4009, %v4016
      %v4018 = vrot.slane %v4013, 4
      %v4020 = vshrl.u32 %v3722, 16
      %v4022 = vrot.slane %v4020, 7
      %v4023 = vshll.u32 %v3722, 16
      %v4025 = vor.u32 %v4022, %v4023
      %v4026 = vsel %vm3201, %v4018, %v4025
      %v4027 = vrot.slane %v4022, 4
      %v4029 = vshrl.u32 %v3723, 16
      %v4031 = vrot.slane %v4029, 7
      %v4032 = vshll.u32 %v3723, 16
      %v4034 = vor.u32 %v4031, %v4032
      %v4035 = vsel %vm3201, %v4027, %v4034
      %v4036 = vrot.slane %v4031, 4
      %v4038 = vshrl.u32 %v3724, 16
      %v4040 = vrot.slane %v4038, 7
      %v4041 = vshll.u32 %v3724, 16
      %v4043 = vor.u32 %v4040, %v4041
      %v4044 = vsel %vm3201, %v4036, %v4043
      %v4045 = vrot.slane %v4040, 4
      %v4047 = vshrl.u32 %v3725, 16
      %v4049 = vrot.slane %v4047, 7
      %v4050 = vshll.u32 %v3725, 16
      %v4052 = vor.u32 %v4049, %v4050
      %v4053 = vsel %vm3201, %v4045, %v4052
      %v4054 = vrot.slane %v4049, 4
      %v4056 = vshrl.u32 %v3726, 16
      %v4058 = vrot.slane %v4056, 7
      %v4059 = vshll.u32 %v3726, 16
      %v4061 = vor.u32 %v4058, %v4059
      %v4062 = vsel %vm3201, %v4054, %v4061
      %v4063 = vrot.slane %v4058, 4
      %v4065 = vshrl.u32 %v3727, 16
      %v4067 = vrot.slane %v4065, 7
      %v4068 = vshll.u32 %v3727, 16
      %v4070 = vor.u32 %v4067, %v4068
      %v4071 = vsel %vm3201, %v4063, %v4070
      %v4072 = vrot.slane %v4067, 4
      %v4074 = vshrl.u32 %v3728, 16
      %v4076 = vrot.slane %v4074, 7
      %v4077 = vshll.u32 %v3728, 16
      %v4079 = vor.u32 %v4076, %v4077
      %v4080 = vsel %vm3201, %v4072, %v4079
      %v4081 = vrot.slane %v4076, 4
      %v4083 = vshrl.u32 %v3729, 16
      %v4085 = vrot.slane %v4083, 7
      %v4086 = vshll.u32 %v3729, 16
      %v4088 = vor.u32 %v4085, %v4086
      %v4089 = vsel %vm3201, %v4081, %v4088
      %v4090 = vrot.slane %v4085, 4
      %v4092 = vshrl.u32 %v3730, 16
      %v4094 = vrot.slane %v4092, 7
      %v4095 = vshll.u32 %v3730, 16
      %v4097 = vor.u32 %v4094, %v4095
      %v4098 = vsel %vm3201, %v4090, %v4097
      %v4099 = vrot.slane %v4094, 4
      %v4101 = vshrl.u32 %v3731, 16
      %v4103 = vrot.slane %v4101, 7
      %v4104 = vshll.u32 %v3731, 16
      %v4106 = vor.u32 %v4103, %v4104
      %v4107 = vsel %vm3201, %v4099, %v4106
      %v4108 = vrot.slane %v4103, 4
      %v4110 = vshrl.u32 %v3732, 16
      %v4112 = vrot.slane %v4110, 7
      %v4113 = vshll.u32 %v3732, 16
      %v4115 = vor.u32 %v4112, %v4113
      %v4116 = vsel %vm3201, %v4108, %v4115
      %v4117 = vrot.slane %v4112, 4
      %v4119 = vshrl.u32 %v3733, 16
      %v4121 = vrot.slane %v4119, 7
      %v4122 = vshll.u32 %v3733, 16
      %v4124 = vor.u32 %v4121, %v4122
      %v4125 = vsel %vm3201, %v4117, %v4124
      %v4126 = vrot.slane %v4121, 4
      %v4128 = vshrl.u32 %v3734, 16
      %v4130 = vrot.slane %v4128, 7
      %v4131 = vshll.u32 %v3734, 16
      %v4133 = vor.u32 %v4130, %v4131
      %v4134 = vsel %vm3201, %v4126, %v4133
      %4179 = vst [vmem:[#allocation3 + $0xc] sm:$0xf] %v3747
      %4180 = vst [vmem:[#allocation3 + $0x30] sm:$0xf] %v3756
      %4181 = vst [vmem:[#allocation3 + $0x54] sm:$0xf] %v3765
      %4182 = vst [vmem:[#allocation3 + $0x78] sm:$0xf] %v3774
      %4183 = vst [vmem:[#allocation3 + $0x9c] sm:$0xf] %v3783
      %4184 = vst [vmem:[#allocation3 + $0xc0] sm:$0xf] %v3792
      %4185 = vst [vmem:[#allocation3 + $0xe4] sm:$0xf] %v3801
      %4186 = vst [vmem:[#allocation3 + $0x108] sm:$0xf] %v3810
      %4187 = vst [vmem:[#allocation3 + $0x12c] sm:$0xf] %v3819
      %4188 = vst [vmem:[#allocation3 + $0x150] sm:$0xf] %v3828
      %4189 = vst [vmem:[#allocation3 + $0x174] sm:$0xf] %v3837
      %4190 = vst [vmem:[#allocation3 + $0x198] sm:$0xf] %v3846
      %4191 = vst [vmem:[#allocation3 + $0x1bc] sm:$0xf] %v3855
      %4192 = vst [vmem:[#allocation3 + $0x1e0] sm:$0xf] %v3864
      %4193 = vst [vmem:[#allocation3 + $0x204] sm:$0xf] %v3873
      %4194 = vst [vmem:[#allocation3 + $0x228] sm:$0xf] %v3882
      %4195 = vst [vmem:[#allocation3 + $0x24c] sm:$0xf] %v3891
      %4196 = vst [vmem:[#allocation3 + $0x270] sm:$0xf] %v3900
      %4197 = vst [vmem:[#allocation3 + $0x294] sm:$0xf] %v3909
      %4198 = vst [vmem:[#allocation3 + $0x2b8] sm:$0xf] %v3918
      %4199 = vst [vmem:[#allocation3 + $0x2dc] sm:$0xf] %v3927
      %4200 = vst [vmem:[#allocation3 + $0x300] sm:$0xf] %v3936
      %4201 = vst [vmem:[#allocation3 + $0x324] sm:$0xf] %v3945
      %4202 = vst [vmem:[#allocation3 + $0x348] sm:$0xf] %v3954
      %4203 = vst [vmem:[#allocation3 + $0x36c] sm:$0xf] %v3963
      %4204 = vst [vmem:[#allocation3 + $0x390] sm:$0xf] %v3972
      %4205 = vst [vmem:[#allocation3 + $0x3b4] sm:$0xf] %v3981
      %4206 = vst [vmem:[#allocation3 + $0x3d8] sm:$0xf] %v3990
      %4207 = vst [vmem:[#allocation3 + $0x3fc] sm:$0xf] %v3999
      %4208 = vst [vmem:[#allocation3 + $0x420] sm:$0xf] %v4008
      %4209 = vst [vmem:[#allocation3 + $0x444] sm:$0xf] %v4017
      %4210 = vst [vmem:[#allocation3 + $0x468] sm:$0xf] %v4026
      %4211 = vst [vmem:[#allocation3 + $0x48c] sm:$0xf] %v4035
      %4212 = vst [vmem:[#allocation3 + $0x4b0] sm:$0xf] %v4044
      %4213 = vst [vmem:[#allocation3 + $0x4d4] sm:$0xf] %v4053
      %4214 = vst [vmem:[#allocation3 + $0x4f8] sm:$0xf] %v4062
      %4215 = vst [vmem:[#allocation3 + $0x51c] sm:$0xf] %v4071
      %4216 = vst [vmem:[#allocation3 + $0x540] sm:$0xf] %v4080
      %4217 = vst [vmem:[#allocation3 + $0x564] sm:$0xf] %v4089
      %4218 = vst [vmem:[#allocation3 + $0x588] sm:$0xf] %v4098
      %4219 = vst [vmem:[#allocation3 + $0x5ac] sm:$0xf] %v4107
      %4220 = vst [vmem:[#allocation3 + $0x5d0] sm:$0xf] %v4116
      %4221 = vst [vmem:[#allocation3 + $0x5f4] sm:$0xf] %v4125
      %4222 = vst [vmem:[#allocation3 + $0x618] sm:$0xf] %v4134
      %v4223 = vld [vmem:[#allocation2 + $0x10] sm:$0xf]
      %v4224 = vld [vmem:[#allocation2 + $0x14] sm:$0xf]
      %v4225 = vld [vmem:[#allocation2 + $0x18] sm:$0xf]
      %v4226 = vld [vmem:[#allocation2 + $0x1c] sm:$0xf]
      %v4227 = vld [vmem:[#allocation2 + $0x20] sm:$0xf]
      %v4228 = vld [vmem:[#allocation2 + $0x24] sm:$0xf]
      %v4229 = vld [vmem:[#allocation2 + $0x28] sm:$0xf]
      %v4230 = vld [vmem:[#allocation2 + $0x2c] sm:$0xf]
      %v4231 = vld [vmem:[#allocation2 + $0x30] sm:$0xf]
      %v4232 = vld [vmem:[#allocation2 + $0x34] sm:$0xf]
      %v4233 = vld [vmem:[#allocation2 + $0x38] sm:$0xf]
      %v4234 = vld [vmem:[#allocation2 + $0x3c] sm:$0xf]
      %v4235 = vld [vmem:[#allocation2 + $0x40] sm:$0xf]
      %v4236 = vld [vmem:[#allocation2 + $0x44] sm:$0xf]
      %v4237 = vld [vmem:[#allocation2 + $0x48] sm:$0xf]
      %v4238 = vld [vmem:[#allocation2 + $0x4c] sm:$0xf]
      %v4239 = vld [vmem:[#allocation2 + $0x50] sm:$0xf]
      %v4240 = vld [vmem:[#allocation2 + $0x54] sm:$0xf]
      %v4241 = vld [vmem:[#allocation2 + $0x58] sm:$0xf]
      %v4242 = vld [vmem:[#allocation2 + $0x5c] sm:$0xf]
      %v4243 = vld [vmem:[#allocation2 + $0x60] sm:$0xf]
      %v4244 = vld [vmem:[#allocation2 + $0x64] sm:$0xf]
      %v4245 = vld [vmem:[#allocation2 + $0x68] sm:$0xf]
      %v4246 = vld [vmem:[#allocation2 + $0x6c] sm:$0xf]
      %v4247 = vld [vmem:[#allocation2 + $0x70] sm:$0xf]
      %v4248 = vld [vmem:[#allocation2 + $0x74] sm:$0xf]
      %v4249 = vld [vmem:[#allocation2 + $0x78] sm:$0xf]
      %v4250 = vld [vmem:[#allocation2 + $0x7c] sm:$0xf]
      %v4251 = vld [vmem:[#allocation2 + $0x80] sm:$0xf]
      %v4252 = vld [vmem:[#allocation2 + $0x84] sm:$0xf]
      %v4253 = vld [vmem:[#allocation2 + $0x88] sm:$0xf]
      %v4254 = vld [vmem:[#allocation2 + $0x8c] sm:$0xf]
      %v4255 = vld [vmem:[#allocation2 + $0x90] sm:$0xf]
      %v4256 = vld [vmem:[#allocation2 + $0x94] sm:$0xf]
      %v4257 = vld [vmem:[#allocation2 + $0x98] sm:$0xf]
      %v4258 = vld [vmem:[#allocation2 + $0x9c] sm:$0xf]
      %v4259 = vld [vmem:[#allocation2 + $0xa0] sm:$0xf]
      %v4260 = vld [vmem:[#allocation2 + $0xa4] sm:$0xf]
      %v4261 = vld [vmem:[#allocation2 + $0xa8] sm:$0xf]
      %v4262 = vld [vmem:[#allocation2 + $0xac] sm:$0xf]
      %v4263 = vld [vmem:[#allocation2 + $0xb0] sm:$0xf]
      %v4264 = vld [vmem:[#allocation2 + $0xb4] sm:$0xf]
      %v4265 = vld [vmem:[#allocation2 + $0xb8] sm:$0xf]
      %v4266 = vld [vmem:[#allocation2 + $0xbc] sm:$0xf]
      %4267 = vst [vmem:[#allocation3 + $0x10] sm:$0xf] %v4223
      %4268 = vst [vmem:[#allocation3 + $0x34] sm:$0xf] %v4224
      %4269 = vst [vmem:[#allocation3 + $0x58] sm:$0xf] %v4225
      %4270 = vst [vmem:[#allocation3 + $0x7c] sm:$0xf] %v4226
      %4271 = vst [vmem:[#allocation3 + $0xa0] sm:$0xf] %v4227
      %4272 = vst [vmem:[#allocation3 + $0xc4] sm:$0xf] %v4228
      %4273 = vst [vmem:[#allocation3 + $0xe8] sm:$0xf] %v4229
      %4274 = vst [vmem:[#allocation3 + $0x10c] sm:$0xf] %v4230
      %4275 = vst [vmem:[#allocation3 + $0x130] sm:$0xf] %v4231
      %4276 = vst [vmem:[#allocation3 + $0x154] sm:$0xf] %v4232
      %4277 = vst [vmem:[#allocation3 + $0x178] sm:$0xf] %v4233
      %4278 = vst [vmem:[#allocation3 + $0x19c] sm:$0xf] %v4234
      %4279 = vst [vmem:[#allocation3 + $0x1c0] sm:$0xf] %v4235
      %4280 = vst [vmem:[#allocation3 + $0x1e4] sm:$0xf] %v4236
      %4281 = vst [vmem:[#allocation3 + $0x208] sm:$0xf] %v4237
      %4282 = vst [vmem:[#allocation3 + $0x22c] sm:$0xf] %v4238
      %4283 = vst [vmem:[#allocation3 + $0x250] sm:$0xf] %v4239
      %4284 = vst [vmem:[#allocation3 + $0x274] sm:$0xf] %v4240
      %4285 = vst [vmem:[#allocation3 + $0x298] sm:$0xf] %v4241
      %4286 = vst [vmem:[#allocation3 + $0x2bc] sm:$0xf] %v4242
      %4287 = vst [vmem:[#allocation3 + $0x2e0] sm:$0xf] %v4243
      %4288 = vst [vmem:[#allocation3 + $0x304] sm:$0xf] %v4244
      %4289 = vst [vmem:[#allocation3 + $0x328] sm:$0xf] %v4245
      %4290 = vst [vmem:[#allocation3 + $0x34c] sm:$0xf] %v4246
      %4291 = vst [vmem:[#allocation3 + $0x370] sm:$0xf] %v4247
      %4292 = vst [vmem:[#allocation3 + $0x394] sm:$0xf] %v4248
      %4293 = vst [vmem:[#allocation3 + $0x3b8] sm:$0xf] %v4249
      %4294 = vst [vmem:[#allocation3 + $0x3dc] sm:$0xf] %v4250
      %4295 = vst [vmem:[#allocation3 + $0x400] sm:$0xf] %v4251
      %4296 = vst [vmem:[#allocation3 + $0x424] sm:$0xf] %v4252
      %4297 = vst [vmem:[#allocation3 + $0x448] sm:$0xf] %v4253
      %4298 = vst [vmem:[#allocation3 + $0x46c] sm:$0xf] %v4254
      %4299 = vst [vmem:[#allocation3 + $0x490] sm:$0xf] %v4255
      %4300 = vst [vmem:[#allocation3 + $0x4b4] sm:$0xf] %v4256
      %4301 = vst [vmem:[#allocation3 + $0x4d8] sm:$0xf] %v4257
      %4302 = vst [vmem:[#allocation3 + $0x4fc] sm:$0xf] %v4258
      %4303 = vst [vmem:[#allocation3 + $0x520] sm:$0xf] %v4259
      %4304 = vst [vmem:[#allocation3 + $0x544] sm:$0xf] %v4260
      %4305 = vst [vmem:[#allocation3 + $0x568] sm:$0xf] %v4261
      %4306 = vst [vmem:[#allocation3 + $0x58c] sm:$0xf] %v4262
      %4307 = vst [vmem:[#allocation3 + $0x5b0] sm:$0xf] %v4263
      %4308 = vst [vmem:[#allocation3 + $0x5d4] sm:$0xf] %v4264
      %4309 = vst [vmem:[#allocation3 + $0x5f8] sm:$0xf] %v4265
      %4310 = vst [vmem:[#allocation3 + $0x61c] sm:$0xf] %v4266
      %v4311 = vld [vmem:[#allocation2 + $0x10] sm:$0xf]
      %v4312 = vld [vmem:[#allocation2 + $0x14] sm:$0xf]
      %v4313 = vld [vmem:[#allocation2 + $0x18] sm:$0xf]
      %v4314 = vld [vmem:[#allocation2 + $0x1c] sm:$0xf]
      %v4315 = vld [vmem:[#allocation2 + $0x20] sm:$0xf]
      %v4316 = vld [vmem:[#allocation2 + $0x24] sm:$0xf]
      %v4317 = vld [vmem:[#allocation2 + $0x28] sm:$0xf]
      %v4318 = vld [vmem:[#allocation2 + $0x2c] sm:$0xf]
      %v4319 = vld [vmem:[#allocation2 + $0x30] sm:$0xf]
      %v4320 = vld [vmem:[#allocation2 + $0x34] sm:$0xf]
      %v4321 = vld [vmem:[#allocation2 + $0x38] sm:$0xf]
      %v4322 = vld [vmem:[#allocation2 + $0x3c] sm:$0xf]
      %v4323 = vld [vmem:[#allocation2 + $0x40] sm:$0xf]
      %v4324 = vld [vmem:[#allocation2 + $0x44] sm:$0xf]
      %v4325 = vld [vmem:[#allocation2 + $0x48] sm:$0xf]
      %v4326 = vld [vmem:[#allocation2 + $0x4c] sm:$0xf]
      %v4327 = vld [vmem:[#allocation2 + $0x50] sm:$0xf]
      %v4328 = vld [vmem:[#allocation2 + $0x54] sm:$0xf]
      %v4329 = vld [vmem:[#allocation2 + $0x58] sm:$0xf]
      %v4330 = vld [vmem:[#allocation2 + $0x5c] sm:$0xf]
      %v4331 = vld [vmem:[#allocation2 + $0x60] sm:$0xf]
      %v4332 = vld [vmem:[#allocation2 + $0x64] sm:$0xf]
      %v4333 = vld [vmem:[#allocation2 + $0x68] sm:$0xf]
      %v4334 = vld [vmem:[#allocation2 + $0x6c] sm:$0xf]
      %v4335 = vld [vmem:[#allocation2 + $0x70] sm:$0xf]
      %v4336 = vld [vmem:[#allocation2 + $0x74] sm:$0xf]
      %v4337 = vld [vmem:[#allocation2 + $0x78] sm:$0xf]
      %v4338 = vld [vmem:[#allocation2 + $0x7c] sm:$0xf]
      %v4339 = vld [vmem:[#allocation2 + $0x80] sm:$0xf]
      %v4340 = vld [vmem:[#allocation2 + $0x84] sm:$0xf]
      %v4341 = vld [vmem:[#allocation2 + $0x88] sm:$0xf]
      %v4342 = vld [vmem:[#allocation2 + $0x8c] sm:$0xf]
      %v4343 = vld [vmem:[#allocation2 + $0x90] sm:$0xf]
      %v4344 = vld [vmem:[#allocation2 + $0x94] sm:$0xf]
      %v4345 = vld [vmem:[#allocation2 + $0x98] sm:$0xf]
      %v4346 = vld [vmem:[#allocation2 + $0x9c] sm:$0xf]
      %v4347 = vld [vmem:[#allocation2 + $0xa0] sm:$0xf]
      %v4348 = vld [vmem:[#allocation2 + $0xa4] sm:$0xf]
      %v4349 = vld [vmem:[#allocation2 + $0xa8] sm:$0xf]
      %v4350 = vld [vmem:[#allocation2 + $0xac] sm:$0xf]
      %v4351 = vld [vmem:[#allocation2 + $0xb0] sm:$0xf]
      %v4352 = vld [vmem:[#allocation2 + $0xb4] sm:$0xf]
      %v4353 = vld [vmem:[#allocation2 + $0xb8] sm:$0xf]
      %v4354 = vld [vmem:[#allocation2 + $0xbc] sm:$0xf]
      %v4355 = vld [vmem:[#allocation2 + $0xc0] sm:$0x1]
      %vm4356 = vsmask.f32 3328
      %vm4357 = vsmask.f32 7440
      %vm4358 = vmor %vm4356, %vm4357
      %v4360 = vshrl.u32 %v4311, 16
      %v4362 = vrot.slane %v4360, 4
      %v4363 = vshll.u32 %v4311, 16
      %v4365 = vrot.slane %v4363, 5
      %v4366 = vor.u32 %v4362, %v4365
      %v4367 = vrot.slane %v4366, 4
      %v4369 = vshll.u32 %v4312, 16
      %v4371 = vrot.slane %v4369, 5
      %v4372 = vsel %vm4358, %v4367, %v4371
      %v4373 = vshrl.u32 %v4312, 16
      %v4375 = vrot.slane %v4373, 4
      %v4376 = vor.u32 %v4375, %v4371
      %v4377 = vrot.slane %v4376, 4
      %v4379 = vshll.u32 %v4313, 16
      %v4381 = vrot.slane %v4379, 5
      %v4382 = vsel %vm4358, %v4377, %v4381
      %v4383 = vshrl.u32 %v4313, 16
      %v4385 = vrot.slane %v4383, 4
      %v4386 = vor.u32 %v4385, %v4381
      %v4387 = vrot.slane %v4386, 4
      %v4389 = vshll.u32 %v4314, 16
      %v4391 = vrot.slane %v4389, 5
      %v4392 = vsel %vm4358, %v4387, %v4391
      %v4393 = vshrl.u32 %v4314, 16
      %v4395 = vrot.slane %v4393, 4
      %v4396 = vor.u32 %v4395, %v4391
      %v4397 = vrot.slane %v4396, 4
      %v4399 = vshll.u32 %v4315, 16
      %v4401 = vrot.slane %v4399, 5
      %v4402 = vsel %vm4358, %v4397, %v4401
      %v4403 = vshrl.u32 %v4315, 16
      %v4405 = vrot.slane %v4403, 4
      %v4406 = vor.u32 %v4405, %v4401
      %v4407 = vrot.slane %v4406, 4
      %v4409 = vshll.u32 %v4316, 16
      %v4411 = vrot.slane %v4409, 5
      %v4412 = vsel %vm4358, %v4407, %v4411
      %v4413 = vshrl.u32 %v4316, 16
      %v4415 = vrot.slane %v4413, 4
      %v4416 = vor.u32 %v4415, %v4411
      %v4417 = vrot.slane %v4416, 4
      %v4419 = vshll.u32 %v4317, 16
      %v4421 = vrot.slane %v4419, 5
      %v4422 = vsel %vm4358, %v4417, %v4421
      %v4423 = vshrl.u32 %v4317, 16
      %v4425 = vrot.slane %v4423, 4
      %v4426 = vor.u32 %v4425, %v4421
      %v4427 = vrot.slane %v4426, 4
      %v4429 = vshll.u32 %v4318, 16
      %v4431 = vrot.slane %v4429, 5
      %v4432 = vsel %vm4358, %v4427, %v4431
      %v4433 = vshrl.u32 %v4318, 16
      %v4435 = vrot.slane %v4433, 4
      %v4436 = vor.u32 %v4435, %v4431
      %v4437 = vrot.slane %v4436, 4
      %v4439 = vshll.u32 %v4319, 16
      %v4441 = vrot.slane %v4439, 5
      %v4442 = vsel %vm4358, %v4437, %v4441
      %v4443 = vshrl.u32 %v4319, 16
      %v4445 = vrot.slane %v4443, 4
      %v4446 = vor.u32 %v4445, %v4441
      %v4447 = vrot.slane %v4446, 4
      %v4449 = vshll.u32 %v4320, 16
      %v4451 = vrot.slane %v4449, 5
      %v4452 = vsel %vm4358, %v4447, %v4451
      %v4453 = vshrl.u32 %v4320, 16
      %v4455 = vrot.slane %v4453, 4
      %v4456 = vor.u32 %v4455, %v4451
      %v4457 = vrot.slane %v4456, 4
      %v4459 = vshll.u32 %v4321, 16
      %v4461 = vrot.slane %v4459, 5
      %v4462 = vsel %vm4358, %v4457, %v4461
      %v4463 = vshrl.u32 %v4321, 16
      %v4465 = vrot.slane %v4463, 4
      %v4466 = vor.u32 %v4465, %v4461
      %v4467 = vrot.slane %v4466, 4
      %v4469 = vshll.u32 %v4322, 16
      %v4471 = vrot.slane %v4469, 5
      %v4472 = vsel %vm4358, %v4467, %v4471
      %v4473 = vshrl.u32 %v4322, 16
      %v4475 = vrot.slane %v4473, 4
      %v4476 = vor.u32 %v4475, %v4471
      %v4477 = vrot.slane %v4476, 4
      %v4479 = vshll.u32 %v4323, 16
      %v4481 = vrot.slane %v4479, 5
      %v4482 = vsel %vm4358, %v4477, %v4481
      %v4483 = vshrl.u32 %v4323, 16
      %v4485 = vrot.slane %v4483, 4
      %v4486 = vor.u32 %v4485, %v4481
      %v4487 = vrot.slane %v4486, 4
      %v4489 = vshll.u32 %v4324, 16
      %v4491 = vrot.slane %v4489, 5
      %v4492 = vsel %vm4358, %v4487, %v4491
      %v4493 = vshrl.u32 %v4324, 16
      %v4495 = vrot.slane %v4493, 4
      %v4496 = vor.u32 %v4495, %v4491
      %v4497 = vrot.slane %v4496, 4
      %v4499 = vshll.u32 %v4325, 16
      %v4501 = vrot.slane %v4499, 5
      %v4502 = vsel %vm4358, %v4497, %v4501
      %v4503 = vshrl.u32 %v4325, 16
      %v4505 = vrot.slane %v4503, 4
      %v4506 = vor.u32 %v4505, %v4501
      %v4507 = vrot.slane %v4506, 4
      %v4509 = vshll.u32 %v4326, 16
      %v4511 = vrot.slane %v4509, 5
      %v4512 = vsel %vm4358, %v4507, %v4511
      %v4513 = vshrl.u32 %v4326, 16
      %v4515 = vrot.slane %v4513, 4
      %v4516 = vor.u32 %v4515, %v4511
      %v4517 = vrot.slane %v4516, 4
      %v4519 = vshll.u32 %v4327, 16
      %v4521 = vrot.slane %v4519, 5
      %v4522 = vsel %vm4358, %v4517, %v4521
      %v4523 = vshrl.u32 %v4327, 16
      %v4525 = vrot.slane %v4523, 4
      %v4526 = vor.u32 %v4525, %v4521
      %v4527 = vrot.slane %v4526, 4
      %v4529 = vshll.u32 %v4328, 16
      %v4531 = vrot.slane %v4529, 5
      %v4532 = vsel %vm4358, %v4527, %v4531
      %v4533 = vshrl.u32 %v4328, 16
      %v4535 = vrot.slane %v4533, 4
      %v4536 = vor.u32 %v4535, %v4531
      %v4537 = vrot.slane %v4536, 4
      %v4539 = vshll.u32 %v4329, 16
      %v4541 = vrot.slane %v4539, 5
      %v4542 = vsel %vm4358, %v4537, %v4541
      %v4543 = vshrl.u32 %v4329, 16
      %v4545 = vrot.slane %v4543, 4
      %v4546 = vor.u32 %v4545, %v4541
      %v4547 = vrot.slane %v4546, 4
      %v4549 = vshll.u32 %v4330, 16
      %v4551 = vrot.slane %v4549, 5
      %v4552 = vsel %vm4358, %v4547, %v4551
      %v4553 = vshrl.u32 %v4330, 16
      %v4555 = vrot.slane %v4553, 4
      %v4556 = vor.u32 %v4555, %v4551
      %v4557 = vrot.slane %v4556, 4
      %v4559 = vshll.u32 %v4331, 16
      %v4561 = vrot.slane %v4559, 5
      %v4562 = vsel %vm4358, %v4557, %v4561
      %v4563 = vshrl.u32 %v4331, 16
      %v4565 = vrot.slane %v4563, 4
      %v4566 = vor.u32 %v4565, %v4561
      %v4567 = vrot.slane %v4566, 4
      %v4569 = vshll.u32 %v4332, 16
      %v4571 = vrot.slane %v4569, 5
      %v4572 = vsel %vm4358, %v4567, %v4571
      %v4573 = vshrl.u32 %v4332, 16
      %v4575 = vrot.slane %v4573, 4
      %v4576 = vor.u32 %v4575, %v4571
      %v4577 = vrot.slane %v4576, 4
      %v4579 = vshll.u32 %v4333, 16
      %v4581 = vrot.slane %v4579, 5
      %v4582 = vsel %vm4358, %v4577, %v4581
      %v4583 = vshrl.u32 %v4333, 16
      %v4585 = vrot.slane %v4583, 4
      %v4586 = vor.u32 %v4585, %v4581
      %v4587 = vrot.slane %v4586, 4
      %v4589 = vshll.u32 %v4334, 16
      %v4591 = vrot.slane %v4589, 5
      %v4592 = vsel %vm4358, %v4587, %v4591
      %v4593 = vshrl.u32 %v4334, 16
      %v4595 = vrot.slane %v4593, 4
      %v4596 = vor.u32 %v4595, %v4591
      %v4597 = vrot.slane %v4596, 4
      %v4599 = vshll.u32 %v4335, 16
      %v4601 = vrot.slane %v4599, 5
      %v4602 = vsel %vm4358, %v4597, %v4601
      %v4603 = vshrl.u32 %v4335, 16
      %v4605 = vrot.slane %v4603, 4
      %v4606 = vor.u32 %v4605, %v4601
      %v4607 = vrot.slane %v4606, 4
      %v4609 = vshll.u32 %v4336, 16
      %v4611 = vrot.slane %v4609, 5
      %v4612 = vsel %vm4358, %v4607, %v4611
      %v4613 = vshrl.u32 %v4336, 16
      %v4615 = vrot.slane %v4613, 4
      %v4616 = vor.u32 %v4615, %v4611
      %v4617 = vrot.slane %v4616, 4
      %v4619 = vshll.u32 %v4337, 16
      %v4621 = vrot.slane %v4619, 5
      %v4622 = vsel %vm4358, %v4617, %v4621
      %v4623 = vshrl.u32 %v4337, 16
      %v4625 = vrot.slane %v4623, 4
      %v4626 = vor.u32 %v4625, %v4621
      %v4627 = vrot.slane %v4626, 4
      %v4629 = vshll.u32 %v4338, 16
      %v4631 = vrot.slane %v4629, 5
      %v4632 = vsel %vm4358, %v4627, %v4631
      %v4633 = vshrl.u32 %v4338, 16
      %v4635 = vrot.slane %v4633, 4
      %v4636 = vor.u32 %v4635, %v4631
      %v4637 = vrot.slane %v4636, 4
      %v4639 = vshll.u32 %v4339, 16
      %v4641 = vrot.slane %v4639, 5
      %v4642 = vsel %vm4358, %v4637, %v4641
      %v4643 = vshrl.u32 %v4339, 16
      %v4645 = vrot.slane %v4643, 4
      %v4646 = vor.u32 %v4645, %v4641
      %v4647 = vrot.slane %v4646, 4
      %v4649 = vshll.u32 %v4340, 16
      %v4651 = vrot.slane %v4649, 5
      %v4652 = vsel %vm4358, %v4647, %v4651
      %v4653 = vshrl.u32 %v4340, 16
      %v4655 = vrot.slane %v4653, 4
      %v4656 = vor.u32 %v4655, %v4651
      %v4657 = vrot.slane %v4656, 4
      %v4659 = vshll.u32 %v4341, 16
      %v4661 = vrot.slane %v4659, 5
      %v4662 = vsel %vm4358, %v4657, %v4661
      %v4663 = vshrl.u32 %v4341, 16
      %v4665 = vrot.slane %v4663, 4
      %v4666 = vor.u32 %v4665, %v4661
      %v4667 = vrot.slane %v4666, 4
      %v4669 = vshll.u32 %v4342, 16
      %v4671 = vrot.slane %v4669, 5
      %v4672 = vsel %vm4358, %v4667, %v4671
      %v4673 = vshrl.u32 %v4342, 16
      %v4675 = vrot.slane %v4673, 4
      %v4676 = vor.u32 %v4675, %v4671
      %v4677 = vrot.slane %v4676, 4
      %v4679 = vshll.u32 %v4343, 16
      %v4681 = vrot.slane %v4679, 5
      %v4682 = vsel %vm4358, %v4677, %v4681
      %v4683 = vshrl.u32 %v4343, 16
      %v4685 = vrot.slane %v4683, 4
      %v4686 = vor.u32 %v4685, %v4681
      %v4687 = vrot.slane %v4686, 4
      %v4689 = vshll.u32 %v4344, 16
      %v4691 = vrot.slane %v4689, 5
      %v4692 = vsel %vm4358, %v4687, %v4691
      %v4693 = vshrl.u32 %v4344, 16
      %v4695 = vrot.slane %v4693, 4
      %v4696 = vor.u32 %v4695, %v4691
      %v4697 = vrot.slane %v4696, 4
      %v4699 = vshll.u32 %v4345, 16
      %v4701 = vrot.slane %v4699, 5
      %v4702 = vsel %vm4358, %v4697, %v4701
      %v4703 = vshrl.u32 %v4345, 16
      %v4705 = vrot.slane %v4703, 4
      %v4706 = vor.u32 %v4705, %v4701
      %v4707 = vrot.slane %v4706, 4
      %v4709 = vshll.u32 %v4346, 16
      %v4711 = vrot.slane %v4709, 5
      %v4712 = vsel %vm4358, %v4707, %v4711
      %v4713 = vshrl.u32 %v4346, 16
      %v4715 = vrot.slane %v4713, 4
      %v4716 = vor.u32 %v4715, %v4711
      %v4717 = vrot.slane %v4716, 4
      %v4719 = vshll.u32 %v4347, 16
      %v4721 = vrot.slane %v4719, 5
      %v4722 = vsel %vm4358, %v4717, %v4721
      %v4723 = vshrl.u32 %v4347, 16
      %v4725 = vrot.slane %v4723, 4
      %v4726 = vor.u32 %v4725, %v4721
      %v4727 = vrot.slane %v4726, 4
      %v4729 = vshll.u32 %v4348, 16
      %v4731 = vrot.slane %v4729, 5
      %v4732 = vsel %vm4358, %v4727, %v4731
      %v4733 = vshrl.u32 %v4348, 16
      %v4735 = vrot.slane %v4733, 4
      %v4736 = vor.u32 %v4735, %v4731
      %v4737 = vrot.slane %v4736, 4
      %v4739 = vshll.u32 %v4349, 16
      %v4741 = vrot.slane %v4739, 5
      %v4742 = vsel %vm4358, %v4737, %v4741
      %v4743 = vshrl.u32 %v4349, 16
      %v4745 = vrot.slane %v4743, 4
      %v4746 = vor.u32 %v4745, %v4741
      %v4747 = vrot.slane %v4746, 4
      %v4749 = vshll.u32 %v4350, 16
      %v4751 = vrot.slane %v4749, 5
      %v4752 = vsel %vm4358, %v4747, %v4751
      %v4753 = vshrl.u32 %v4350, 16
      %v4755 = vrot.slane %v4753, 4
      %v4756 = vor.u32 %v4755, %v4751
      %v4757 = vrot.slane %v4756, 4
      %v4759 = vshll.u32 %v4351, 16
      %v4761 = vrot.slane %v4759, 5
      %v4762 = vsel %vm4358, %v4757, %v4761
      %v4763 = vshrl.u32 %v4351, 16
      %v4765 = vrot.slane %v4763, 4
      %v4766 = vor.u32 %v4765, %v4761
      %v4767 = vrot.slane %v4766, 4
      %v4769 = vshll.u32 %v4352, 16
      %v4771 = vrot.slane %v4769, 5
      %v4772 = vsel %vm4358, %v4767, %v4771
      %v4773 = vshrl.u32 %v4352, 16
      %v4775 = vrot.slane %v4773, 4
      %v4776 = vor.u32 %v4775, %v4771
      %v4777 = vrot.slane %v4776, 4
      %v4779 = vshll.u32 %v4353, 16
      %v4781 = vrot.slane %v4779, 5
      %v4782 = vsel %vm4358, %v4777, %v4781
      %v4783 = vshrl.u32 %v4353, 16
      %v4785 = vrot.slane %v4783, 4
      %v4786 = vor.u32 %v4785, %v4781
      %v4787 = vrot.slane %v4786, 4
      %v4789 = vshll.u32 %v4354, 16
      %v4791 = vrot.slane %v4789, 5
      %v4792 = vsel %vm4358, %v4787, %v4791
      %v4793 = vshrl.u32 %v4354, 16
      %v4795 = vrot.slane %v4793, 4
      %v4796 = vor.u32 %v4795, %v4791
      %v4797 = vrot.slane %v4796, 4
      %v4799 = vshll.u32 %v4355, 16
      %v4801 = vrot.slane %v4799, 5
      %v4802 = vsel %vm4358, %v4797, %v4801
      %4847 = vst [vmem:[#allocation3 + $0x14] sm:$0xf] %v4372
      %4848 = vst [vmem:[#allocation3 + $0x38] sm:$0xf] %v4382
      %4849 = vst [vmem:[#allocation3 + $0x5c] sm:$0xf] %v4392
      %4850 = vst [vmem:[#allocation3 + $0x80] sm:$0xf] %v4402
      %4851 = vst [vmem:[#allocation3 + $0xa4] sm:$0xf] %v4412
      %4852 = vst [vmem:[#allocation3 + $0xc8] sm:$0xf] %v4422
      %4853 = vst [vmem:[#allocation3 + $0xec] sm:$0xf] %v4432
      %4854 = vst [vmem:[#allocation3 + $0x110] sm:$0xf] %v4442
      %4855 = vst [vmem:[#allocation3 + $0x134] sm:$0xf] %v4452
      %4856 = vst [vmem:[#allocation3 + $0x158] sm:$0xf] %v4462
      %4857 = vst [vmem:[#allocation3 + $0x17c] sm:$0xf] %v4472
      %4858 = vst [vmem:[#allocation3 + $0x1a0] sm:$0xf] %v4482
      %4859 = vst [vmem:[#allocation3 + $0x1c4] sm:$0xf] %v4492
      %4860 = vst [vmem:[#allocation3 + $0x1e8] sm:$0xf] %v4502
      %4861 = vst [vmem:[#allocation3 + $0x20c] sm:$0xf] %v4512
      %4862 = vst [vmem:[#allocation3 + $0x230] sm:$0xf] %v4522
      %4863 = vst [vmem:[#allocation3 + $0x254] sm:$0xf] %v4532
      %4864 = vst [vmem:[#allocation3 + $0x278] sm:$0xf] %v4542
      %4865 = vst [vmem:[#allocation3 + $0x29c] sm:$0xf] %v4552
      %4866 = vst [vmem:[#allocation3 + $0x2c0] sm:$0xf] %v4562
      %4867 = vst [vmem:[#allocation3 + $0x2e4] sm:$0xf] %v4572
      %4868 = vst [vmem:[#allocation3 + $0x308] sm:$0xf] %v4582
      %4869 = vst [vmem:[#allocation3 + $0x32c] sm:$0xf] %v4592
      %4870 = vst [vmem:[#allocation3 + $0x350] sm:$0xf] %v4602
      %4871 = vst [vmem:[#allocation3 + $0x374] sm:$0xf] %v4612
      %4872 = vst [vmem:[#allocation3 + $0x398] sm:$0xf] %v4622
      %4873 = vst [vmem:[#allocation3 + $0x3bc] sm:$0xf] %v4632
      %4874 = vst [vmem:[#allocation3 + $0x3e0] sm:$0xf] %v4642
      %4875 = vst [vmem:[#allocation3 + $0x404] sm:$0xf] %v4652
      %4876 = vst [vmem:[#allocation3 + $0x428] sm:$0xf] %v4662
      %4877 = vst [vmem:[#allocation3 + $0x44c] sm:$0xf] %v4672
      %4878 = vst [vmem:[#allocation3 + $0x470] sm:$0xf] %v4682
      %4879 = vst [vmem:[#allocation3 + $0x494] sm:$0xf] %v4692
      %4880 = vst [vmem:[#allocation3 + $0x4b8] sm:$0xf] %v4702
      %4881 = vst [vmem:[#allocation3 + $0x4dc] sm:$0xf] %v4712
      %4882 = vst [vmem:[#allocation3 + $0x500] sm:$0xf] %v4722
      %4883 = vst [vmem:[#allocation3 + $0x524] sm:$0xf] %v4732
      %4884 = vst [vmem:[#allocation3 + $0x548] sm:$0xf] %v4742
      %4885 = vst [vmem:[#allocation3 + $0x56c] sm:$0xf] %v4752
      %4886 = vst [vmem:[#allocation3 + $0x590] sm:$0xf] %v4762
      %4887 = vst [vmem:[#allocation3 + $0x5b4] sm:$0xf] %v4772
      %4888 = vst [vmem:[#allocation3 + $0x5d8] sm:$0xf] %v4782
      %4889 = vst [vmem:[#allocation3 + $0x5fc] sm:$0xf] %v4792
      %4890 = vst [vmem:[#allocation3 + $0x620] sm:$0xf] %v4802
      %v4891 = vld [vmem:[#allocation2 + $0x18] sm:$0xf]
      %v4892 = vld [vmem:[#allocation2 + $0x1c] sm:$0xf]
      %v4893 = vld [vmem:[#allocation2 + $0x20] sm:$0xf]
      %v4894 = vld [vmem:[#allocation2 + $0x24] sm:$0xf]
      %v4895 = vld [vmem:[#allocation2 + $0x28] sm:$0xf]
      %v4896 = vld [vmem:[#allocation2 + $0x2c] sm:$0xf]
      %v4897 = vld [vmem:[#allocation2 + $0x30] sm:$0xf]
      %v4898 = vld [vmem:[#allocation2 + $0x34] sm:$0xf]
      %v4899 = vld [vmem:[#allocation2 + $0x38] sm:$0xf]
      %v4900 = vld [vmem:[#allocation2 + $0x3c] sm:$0xf]
      %v4901 = vld [vmem:[#allocation2 + $0x40] sm:$0xf]
      %v4902 = vld [vmem:[#allocation2 + $0x44] sm:$0xf]
      %v4903 = vld [vmem:[#allocation2 + $0x48] sm:$0xf]
      %v4904 = vld [vmem:[#allocation2 + $0x4c] sm:$0xf]
      %v4905 = vld [vmem:[#allocation2 + $0x50] sm:$0xf]
      %v4906 = vld [vmem:[#allocation2 + $0x54] sm:$0xf]
      %v4907 = vld [vmem:[#allocation2 + $0x58] sm:$0xf]
      %v4908 = vld [vmem:[#allocation2 + $0x5c] sm:$0xf]
      %v4909 = vld [vmem:[#allocation2 + $0x60] sm:$0xf]
      %v4910 = vld [vmem:[#allocation2 + $0x64] sm:$0xf]
      %v4911 = vld [vmem:[#allocation2 + $0x68] sm:$0xf]
      %v4912 = vld [vmem:[#allocation2 + $0x6c] sm:$0xf]
      %v4913 = vld [vmem:[#allocation2 + $0x70] sm:$0xf]
      %v4914 = vld [vmem:[#allocation2 + $0x74] sm:$0xf]
      %v4915 = vld [vmem:[#allocation2 + $0x78] sm:$0xf]
      %v4916 = vld [vmem:[#allocation2 + $0x7c] sm:$0xf]
      %v4917 = vld [vmem:[#allocation2 + $0x80] sm:$0xf]
      %v4918 = vld [vmem:[#allocation2 + $0x84] sm:$0xf]
      %v4919 = vld [vmem:[#allocation2 + $0x88] sm:$0xf]
      %v4920 = vld [vmem:[#allocation2 + $0x8c] sm:$0xf]
      %v4921 = vld [vmem:[#allocation2 + $0x90] sm:$0xf]
      %v4922 = vld [vmem:[#allocation2 + $0x94] sm:$0xf]
      %v4923 = vld [vmem:[#allocation2 + $0x98] sm:$0xf]
      %v4924 = vld [vmem:[#allocation2 + $0x9c] sm:$0xf]
      %v4925 = vld [vmem:[#allocation2 + $0xa0] sm:$0xf]
      %v4926 = vld [vmem:[#allocation2 + $0xa4] sm:$0xf]
      %v4927 = vld [vmem:[#allocation2 + $0xa8] sm:$0xf]
      %v4928 = vld [vmem:[#allocation2 + $0xac] sm:$0xf]
      %v4929 = vld [vmem:[#allocation2 + $0xb0] sm:$0xf]
      %v4930 = vld [vmem:[#allocation2 + $0xb4] sm:$0xf]
      %v4931 = vld [vmem:[#allocation2 + $0xb8] sm:$0xf]
      %v4932 = vld [vmem:[#allocation2 + $0xbc] sm:$0xf]
      %v4933 = vld [vmem:[#allocation2 + $0xc0] sm:$0xf]
      %v4934 = vld [vmem:[#allocation2 + $0xc4] sm:$0xf]
      %v4935 = vld [vmem:[#allocation2 + $0xc8] sm:$0x1]
      %v4937 = vshrl.u32 %v4891, 16
      %v4939 = vrot.slane %v4937, 4
      %v4940 = vshll.u32 %v4891, 16
      %v4942 = vrot.slane %v4940, 5
      %v4943 = vor.u32 %v4939, %v4942
      %v4944 = vrot.slane %v4943, 4
      %v4946 = vshll.u32 %v4892, 16
      %v4948 = vrot.slane %v4946, 5
      %v4949 = vsel %vm4358, %v4944, %v4948
      %v4950 = vshrl.u32 %v4892, 16
      %v4952 = vrot.slane %v4950, 4
      %v4953 = vor.u32 %v4952, %v4948
      %v4954 = vrot.slane %v4953, 4
      %v4956 = vshll.u32 %v4893, 16
      %v4958 = vrot.slane %v4956, 5
      %v4959 = vsel %vm4358, %v4954, %v4958
      %v4960 = vshrl.u32 %v4893, 16
      %v4962 = vrot.slane %v4960, 4
      %v4963 = vor.u32 %v4962, %v4958
      %v4964 = vrot.slane %v4963, 4
      %v4966 = vshll.u32 %v4894, 16
      %v4968 = vrot.slane %v4966, 5
      %v4969 = vsel %vm4358, %v4964, %v4968
      %v4970 = vshrl.u32 %v4894, 16
      %v4972 = vrot.slane %v4970, 4
      %v4973 = vor.u32 %v4972, %v4968
      %v4974 = vrot.slane %v4973, 4
      %v4976 = vshll.u32 %v4895, 16
      %v4978 = vrot.slane %v4976, 5
      %v4979 = vsel %vm4358, %v4974, %v4978
      %v4980 = vshrl.u32 %v4895, 16
      %v4982 = vrot.slane %v4980, 4
      %v4983 = vor.u32 %v4982, %v4978
      %v4984 = vrot.slane %v4983, 4
      %v4986 = vshll.u32 %v4896, 16
      %v4988 = vrot.slane %v4986, 5
      %v4989 = vsel %vm4358, %v4984, %v4988
      %v4990 = vshrl.u32 %v4896, 16
      %v4992 = vrot.slane %v4990, 4
      %v4993 = vor.u32 %v4992, %v4988
      %v4994 = vrot.slane %v4993, 4
      %v4996 = vshll.u32 %v4897, 16
      %v4998 = vrot.slane %v4996, 5
      %v4999 = vsel %vm4358, %v4994, %v4998
      %v5000 = vshrl.u32 %v4897, 16
      %v5002 = vrot.slane %v5000, 4
      %v5003 = vor.u32 %v5002, %v4998
      %v5004 = vrot.slane %v5003, 4
      %v5006 = vshll.u32 %v4898, 16
      %v5008 = vrot.slane %v5006, 5
      %v5009 = vsel %vm4358, %v5004, %v5008
      %v5010 = vshrl.u32 %v4898, 16
      %v5012 = vrot.slane %v5010, 4
      %v5013 = vor.u32 %v5012, %v5008
      %v5014 = vrot.slane %v5013, 4
      %v5016 = vshll.u32 %v4899, 16
      %v5018 = vrot.slane %v5016, 5
      %v5019 = vsel %vm4358, %v5014, %v5018
      %v5020 = vshrl.u32 %v4899, 16
      %v5022 = vrot.slane %v5020, 4
      %v5023 = vor.u32 %v5022, %v5018
      %v5024 = vrot.slane %v5023, 4
      %v5026 = vshll.u32 %v4900, 16
      %v5028 = vrot.slane %v5026, 5
      %v5029 = vsel %vm4358, %v5024, %v5028
      %v5030 = vshrl.u32 %v4900, 16
      %v5032 = vrot.slane %v5030, 4
      %v5033 = vor.u32 %v5032, %v5028
      %v5034 = vrot.slane %v5033, 4
      %v5036 = vshll.u32 %v4901, 16
      %v5038 = vrot.slane %v5036, 5
      %v5039 = vsel %vm4358, %v5034, %v5038
      %v5040 = vshrl.u32 %v4901, 16
      %v5042 = vrot.slane %v5040, 4
      %v5043 = vor.u32 %v5042, %v5038
      %v5044 = vrot.slane %v5043, 4
      %v5046 = vshll.u32 %v4902, 16
      %v5048 = vrot.slane %v5046, 5
      %v5049 = vsel %vm4358, %v5044, %v5048
      %v5050 = vshrl.u32 %v4902, 16
      %v5052 = vrot.slane %v5050, 4
      %v5053 = vor.u32 %v5052, %v5048
      %v5054 = vrot.slane %v5053, 4
      %v5056 = vshll.u32 %v4903, 16
      %v5058 = vrot.slane %v5056, 5
      %v5059 = vsel %vm4358, %v5054, %v5058
      %v5060 = vshrl.u32 %v4903, 16
      %v5062 = vrot.slane %v5060, 4
      %v5063 = vor.u32 %v5062, %v5058
      %v5064 = vrot.slane %v5063, 4
      %v5066 = vshll.u32 %v4904, 16
      %v5068 = vrot.slane %v5066, 5
      %v5069 = vsel %vm4358, %v5064, %v5068
      %v5070 = vshrl.u32 %v4904, 16
      %v5072 = vrot.slane %v5070, 4
      %v5073 = vor.u32 %v5072, %v5068
      %v5074 = vrot.slane %v5073, 4
      %v5076 = vshll.u32 %v4905, 16
      %v5078 = vrot.slane %v5076, 5
      %v5079 = vsel %vm4358, %v5074, %v5078
      %v5080 = vshrl.u32 %v4905, 16
      %v5082 = vrot.slane %v5080, 4
      %v5083 = vor.u32 %v5082, %v5078
      %v5084 = vrot.slane %v5083, 4
      %v5086 = vshll.u32 %v4906, 16
      %v5088 = vrot.slane %v5086, 5
      %v5089 = vsel %vm4358, %v5084, %v5088
      %v5090 = vshrl.u32 %v4906, 16
      %v5092 = vrot.slane %v5090, 4
      %v5093 = vor.u32 %v5092, %v5088
      %v5094 = vrot.slane %v5093, 4
      %v5096 = vshll.u32 %v4907, 16
      %v5098 = vrot.slane %v5096, 5
      %v5099 = vsel %vm4358, %v5094, %v5098
      %v5100 = vshrl.u32 %v4907, 16
      %v5102 = vrot.slane %v5100, 4
      %v5103 = vor.u32 %v5102, %v5098
      %v5104 = vrot.slane %v5103, 4
      %v5106 = vshll.u32 %v4908, 16
      %v5108 = vrot.slane %v5106, 5
      %v5109 = vsel %vm4358, %v5104, %v5108
      %v5110 = vshrl.u32 %v4908, 16
      %v5112 = vrot.slane %v5110, 4
      %v5113 = vor.u32 %v5112, %v5108
      %v5114 = vrot.slane %v5113, 4
      %v5116 = vshll.u32 %v4909, 16
      %v5118 = vrot.slane %v5116, 5
      %v5119 = vsel %vm4358, %v5114, %v5118
      %v5120 = vshrl.u32 %v4909, 16
      %v5122 = vrot.slane %v5120, 4
      %v5123 = vor.u32 %v5122, %v5118
      %v5124 = vrot.slane %v5123, 4
      %v5126 = vshll.u32 %v4910, 16
      %v5128 = vrot.slane %v5126, 5
      %v5129 = vsel %vm4358, %v5124, %v5128
      %v5130 = vshrl.u32 %v4910, 16
      %v5132 = vrot.slane %v5130, 4
      %v5133 = vor.u32 %v5132, %v5128
      %v5134 = vrot.slane %v5133, 4
      %v5136 = vshll.u32 %v4911, 16
      %v5138 = vrot.slane %v5136, 5
      %v5139 = vsel %vm4358, %v5134, %v5138
      %v5140 = vshrl.u32 %v4911, 16
      %v5142 = vrot.slane %v5140, 4
      %v5143 = vor.u32 %v5142, %v5138
      %v5144 = vrot.slane %v5143, 4
      %v5146 = vshll.u32 %v4912, 16
      %v5148 = vrot.slane %v5146, 5
      %v5149 = vsel %vm4358, %v5144, %v5148
      %v5150 = vshrl.u32 %v4912, 16
      %v5152 = vrot.slane %v5150, 4
      %v5153 = vor.u32 %v5152, %v5148
      %v5154 = vrot.slane %v5153, 4
      %v5156 = vshll.u32 %v4913, 16
      %v5158 = vrot.slane %v5156, 5
      %v5159 = vsel %vm4358, %v5154, %v5158
      %v5160 = vshrl.u32 %v4913, 16
      %v5162 = vrot.slane %v5160, 4
      %v5163 = vor.u32 %v5162, %v5158
      %v5164 = vrot.slane %v5163, 4
      %v5166 = vshll.u32 %v4914, 16
      %v5168 = vrot.slane %v5166, 5
      %v5169 = vsel %vm4358, %v5164, %v5168
      %v5170 = vshrl.u32 %v4914, 16
      %v5172 = vrot.slane %v5170, 4
      %v5173 = vor.u32 %v5172, %v5168
      %v5174 = vrot.slane %v5173, 4
      %v5176 = vshll.u32 %v4915, 16
      %v5178 = vrot.slane %v5176, 5
      %v5179 = vsel %vm4358, %v5174, %v5178
      %v5180 = vshrl.u32 %v4915, 16
      %v5182 = vrot.slane %v5180, 4
      %v5183 = vor.u32 %v5182, %v5178
      %v5184 = vrot.slane %v5183, 4
      %v5186 = vshll.u32 %v4916, 16
      %v5188 = vrot.slane %v5186, 5
      %v5189 = vsel %vm4358, %v5184, %v5188
      %v5190 = vshrl.u32 %v4916, 16
      %v5192 = vrot.slane %v5190, 4
      %v5193 = vor.u32 %v5192, %v5188
      %v5194 = vrot.slane %v5193, 4
      %v5196 = vshll.u32 %v4917, 16
      %v5198 = vrot.slane %v5196, 5
      %v5199 = vsel %vm4358, %v5194, %v5198
      %v5200 = vshrl.u32 %v4917, 16
      %v5202 = vrot.slane %v5200, 4
      %v5203 = vor.u32 %v5202, %v5198
      %v5204 = vrot.slane %v5203, 4
      %v5206 = vshll.u32 %v4918, 16
      %v5208 = vrot.slane %v5206, 5
      %v5209 = vsel %vm4358, %v5204, %v5208
      %v5210 = vshrl.u32 %v4918, 16
      %v5212 = vrot.slane %v5210, 4
      %v5213 = vor.u32 %v5212, %v5208
      %v5214 = vrot.slane %v5213, 4
      %v5216 = vshll.u32 %v4919, 16
      %v5218 = vrot.slane %v5216, 5
      %v5219 = vsel %vm4358, %v5214, %v5218
      %v5220 = vshrl.u32 %v4919, 16
      %v5222 = vrot.slane %v5220, 4
      %v5223 = vor.u32 %v5222, %v5218
      %v5224 = vrot.slane %v5223, 4
      %v5226 = vshll.u32 %v4920, 16
      %v5228 = vrot.slane %v5226, 5
      %v5229 = vsel %vm4358, %v5224, %v5228
      %v5230 = vshrl.u32 %v4920, 16
      %v5232 = vrot.slane %v5230, 4
      %v5233 = vor.u32 %v5232, %v5228
      %v5234 = vrot.slane %v5233, 4
      %v5236 = vshll.u32 %v4921, 16
      %v5238 = vrot.slane %v5236, 5
      %v5239 = vsel %vm4358, %v5234, %v5238
      %v5240 = vshrl.u32 %v4921, 16
      %v5242 = vrot.slane %v5240, 4
      %v5243 = vor.u32 %v5242, %v5238
      %v5244 = vrot.slane %v5243, 4
      %v5246 = vshll.u32 %v4922, 16
      %v5248 = vrot.slane %v5246, 5
      %v5249 = vsel %vm4358, %v5244, %v5248
      %v5250 = vshrl.u32 %v4922, 16
      %v5252 = vrot.slane %v5250, 4
      %v5253 = vor.u32 %v5252, %v5248
      %v5254 = vrot.slane %v5253, 4
      %v5256 = vshll.u32 %v4923, 16
      %v5258 = vrot.slane %v5256, 5
      %v5259 = vsel %vm4358, %v5254, %v5258
      %v5260 = vshrl.u32 %v4923, 16
      %v5262 = vrot.slane %v5260, 4
      %v5263 = vor.u32 %v5262, %v5258
      %v5264 = vrot.slane %v5263, 4
      %v5266 = vshll.u32 %v4924, 16
      %v5268 = vrot.slane %v5266, 5
      %v5269 = vsel %vm4358, %v5264, %v5268
      %v5270 = vshrl.u32 %v4924, 16
      %v5272 = vrot.slane %v5270, 4
      %v5273 = vor.u32 %v5272, %v5268
      %v5274 = vrot.slane %v5273, 4
      %v5276 = vshll.u32 %v4925, 16
      %v5278 = vrot.slane %v5276, 5
      %v5279 = vsel %vm4358, %v5274, %v5278
      %v5280 = vshrl.u32 %v4925, 16
      %v5282 = vrot.slane %v5280, 4
      %v5283 = vor.u32 %v5282, %v5278
      %v5284 = vrot.slane %v5283, 4
      %v5286 = vshll.u32 %v4926, 16
      %v5288 = vrot.slane %v5286, 5
      %v5289 = vsel %vm4358, %v5284, %v5288
      %v5290 = vshrl.u32 %v4926, 16
      %v5292 = vrot.slane %v5290, 4
      %v5293 = vor.u32 %v5292, %v5288
      %v5294 = vrot.slane %v5293, 4
      %v5296 = vshll.u32 %v4927, 16
      %v5298 = vrot.slane %v5296, 5
      %v5299 = vsel %vm4358, %v5294, %v5298
      %v5300 = vshrl.u32 %v4927, 16
      %v5302 = vrot.slane %v5300, 4
      %v5303 = vor.u32 %v5302, %v5298
      %v5304 = vrot.slane %v5303, 4
      %v5306 = vshll.u32 %v4928, 16
      %v5308 = vrot.slane %v5306, 5
      %v5309 = vsel %vm4358, %v5304, %v5308
      %v5310 = vshrl.u32 %v4928, 16
      %v5312 = vrot.slane %v5310, 4
      %v5313 = vor.u32 %v5312, %v5308
      %v5314 = vrot.slane %v5313, 4
      %v5316 = vshll.u32 %v4929, 16
      %v5318 = vrot.slane %v5316, 5
      %v5319 = vsel %vm4358, %v5314, %v5318
      %v5320 = vshrl.u32 %v4929, 16
      %v5322 = vrot.slane %v5320, 4
      %v5323 = vor.u32 %v5322, %v5318
      %v5324 = vrot.slane %v5323, 4
      %v5326 = vshll.u32 %v4930, 16
      %v5328 = vrot.slane %v5326, 5
      %v5329 = vsel %vm4358, %v5324, %v5328
      %v5330 = vshrl.u32 %v4930, 16
      %v5332 = vrot.slane %v5330, 4
      %v5333 = vor.u32 %v5332, %v5328
      %v5334 = vrot.slane %v5333, 4
      %v5336 = vshll.u32 %v4931, 16
      %v5338 = vrot.slane %v5336, 5
      %v5339 = vsel %vm4358, %v5334, %v5338
      %v5340 = vshrl.u32 %v4931, 16
      %v5342 = vrot.slane %v5340, 4
      %v5343 = vor.u32 %v5342, %v5338
      %v5344 = vrot.slane %v5343, 4
      %v5346 = vshll.u32 %v4932, 16
      %v5348 = vrot.slane %v5346, 5
      %v5349 = vsel %vm4358, %v5344, %v5348
      %v5350 = vshrl.u32 %v4932, 16
      %v5352 = vrot.slane %v5350, 4
      %v5353 = vor.u32 %v5352, %v5348
      %v5354 = vrot.slane %v5353, 4
      %v5356 = vshll.u32 %v4933, 16
      %v5358 = vrot.slane %v5356, 5
      %v5359 = vsel %vm4358, %v5354, %v5358
      %v5360 = vshrl.u32 %v4933, 16
      %v5362 = vrot.slane %v5360, 4
      %v5363 = vor.u32 %v5362, %v5358
      %v5364 = vrot.slane %v5363, 4
      %v5366 = vshll.u32 %v4934, 16
      %v5368 = vrot.slane %v5366, 5
      %v5369 = vsel %vm4358, %v5364, %v5368
      %v5370 = vshrl.u32 %v4934, 16
      %v5372 = vrot.slane %v5370, 4
      %v5373 = vor.u32 %v5372, %v5368
      %v5374 = vrot.slane %v5373, 4
      %v5376 = vshll.u32 %v4935, 16
      %v5378 = vrot.slane %v5376, 5
      %v5379 = vsel %vm4358, %v5374, %v5378
      %5424 = vst [vmem:[#allocation3 + $0x18] sm:$0xf] %v4949
      %5425 = vst [vmem:[#allocation3 + $0x3c] sm:$0xf] %v4959
      %5426 = vst [vmem:[#allocation3 + $0x60] sm:$0xf] %v4969
      %5427 = vst [vmem:[#allocation3 + $0x84] sm:$0xf] %v4979
      %5428 = vst [vmem:[#allocation3 + $0xa8] sm:$0xf] %v4989
      %5429 = vst [vmem:[#allocation3 + $0xcc] sm:$0xf] %v4999
      %5430 = vst [vmem:[#allocation3 + $0xf0] sm:$0xf] %v5009
      %5431 = vst [vmem:[#allocation3 + $0x114] sm:$0xf] %v5019
      %5432 = vst [vmem:[#allocation3 + $0x138] sm:$0xf] %v5029
      %5433 = vst [vmem:[#allocation3 + $0x15c] sm:$0xf] %v5039
      %5434 = vst [vmem:[#allocation3 + $0x180] sm:$0xf] %v5049
      %5435 = vst [vmem:[#allocation3 + $0x1a4] sm:$0xf] %v5059
      %5436 = vst [vmem:[#allocation3 + $0x1c8] sm:$0xf] %v5069
      %5437 = vst [vmem:[#allocation3 + $0x1ec] sm:$0xf] %v5079
      %5438 = vst [vmem:[#allocation3 + $0x210] sm:$0xf] %v5089
      %5439 = vst [vmem:[#allocation3 + $0x234] sm:$0xf] %v5099
      %5440 = vst [vmem:[#allocation3 + $0x258] sm:$0xf] %v5109
      %5441 = vst [vmem:[#allocation3 + $0x27c] sm:$0xf] %v5119
      %5442 = vst [vmem:[#allocation3 + $0x2a0] sm:$0xf] %v5129
      %5443 = vst [vmem:[#allocation3 + $0x2c4] sm:$0xf] %v5139
      %5444 = vst [vmem:[#allocation3 + $0x2e8] sm:$0xf] %v5149
      %5445 = vst [vmem:[#allocation3 + $0x30c] sm:$0xf] %v5159
      %5446 = vst [vmem:[#allocation3 + $0x330] sm:$0xf] %v5169
      %5447 = vst [vmem:[#allocation3 + $0x354] sm:$0xf] %v5179
      %5448 = vst [vmem:[#allocation3 + $0x378] sm:$0xf] %v5189
      %5449 = vst [vmem:[#allocation3 + $0x39c] sm:$0xf] %v5199
      %5450 = vst [vmem:[#allocation3 + $0x3c0] sm:$0xf] %v5209
      %5451 = vst [vmem:[#allocation3 + $0x3e4] sm:$0xf] %v5219
      %5452 = vst [vmem:[#allocation3 + $0x408] sm:$0xf] %v5229
      %5453 = vst [vmem:[#allocation3 + $0x42c] sm:$0xf] %v5239
      %5454 = vst [vmem:[#allocation3 + $0x450] sm:$0xf] %v5249
      %5455 = vst [vmem:[#allocation3 + $0x474] sm:$0xf] %v5259
      %5456 = vst [vmem:[#allocation3 + $0x498] sm:$0xf] %v5269
      %5457 = vst [vmem:[#allocation3 + $0x4bc] sm:$0xf] %v5279
      %5458 = vst [vmem:[#allocation3 + $0x4e0] sm:$0xf] %v5289
      %5459 = vst [vmem:[#allocation3 + $0x504] sm:$0xf] %v5299
      %5460 = vst [vmem:[#allocation3 + $0x528] sm:$0xf] %v5309
      %5461 = vst [vmem:[#allocation3 + $0x54c] sm:$0xf] %v5319
      %5462 = vst [vmem:[#allocation3 + $0x570] sm:$0xf] %v5329
      %5463 = vst [vmem:[#allocation3 + $0x594] sm:$0xf] %v5339
      %5464 = vst [vmem:[#allocation3 + $0x5b8] sm:$0xf] %v5349
      %5465 = vst [vmem:[#allocation3 + $0x5dc] sm:$0xf] %v5359
      %5466 = vst [vmem:[#allocation3 + $0x600] sm:$0xf] %v5369
      %5467 = vst [vmem:[#allocation3 + $0x624] sm:$0xf] %v5379
      %v5468 = vld [vmem:[#allocation2 + $0x18] sm:$0xe]
      %v5469 = vld [vmem:[#allocation2 + $0x1c] sm:$0xf]
      %v5470 = vld [vmem:[#allocation2 + $0x20] sm:$0xf]
      %v5471 = vld [vmem:[#allocation2 + $0x24] sm:$0xf]
      %v5472 = vld [vmem:[#allocation2 + $0x28] sm:$0xf]
      %v5473 = vld [vmem:[#allocation2 + $0x2c] sm:$0xf]
      %v5474 = vld [vmem:[#allocation2 + $0x30] sm:$0xf]
      %v5475 = vld [vmem:[#allocation2 + $0x34] sm:$0xf]
      %v5476 = vld [vmem:[#allocation2 + $0x38] sm:$0xf]
      %v5477 = vld [vmem:[#allocation2 + $0x3c] sm:$0xf]
      %v5478 = vld [vmem:[#allocation2 + $0x40] sm:$0xf]
      %v5479 = vld [vmem:[#allocation2 + $0x44] sm:$0xf]
      %v5480 = vld [vmem:[#allocation2 + $0x48] sm:$0xf]
      %v5481 = vld [vmem:[#allocation2 + $0x4c] sm:$0xf]
      %v5482 = vld [vmem:[#allocation2 + $0x50] sm:$0xf]
      %v5483 = vld [vmem:[#allocation2 + $0x54] sm:$0xf]
      %v5484 = vld [vmem:[#allocation2 + $0x58] sm:$0xf]
      %v5485 = vld [vmem:[#allocation2 + $0x5c] sm:$0xf]
      %v5486 = vld [vmem:[#allocation2 + $0x60] sm:$0xf]
      %v5487 = vld [vmem:[#allocation2 + $0x64] sm:$0xf]
      %v5488 = vld [vmem:[#allocation2 + $0x68] sm:$0xf]
      %v5489 = vld [vmem:[#allocation2 + $0x6c] sm:$0xf]
      %v5490 = vld [vmem:[#allocation2 + $0x70] sm:$0xf]
      %v5491 = vld [vmem:[#allocation2 + $0x74] sm:$0xf]
      %v5492 = vld [vmem:[#allocation2 + $0x78] sm:$0xf]
      %v5493 = vld [vmem:[#allocation2 + $0x7c] sm:$0xf]
      %v5494 = vld [vmem:[#allocation2 + $0x80] sm:$0xf]
      %v5495 = vld [vmem:[#allocation2 + $0x84] sm:$0xf]
      %v5496 = vld [vmem:[#allocation2 + $0x88] sm:$0xf]
      %v5497 = vld [vmem:[#allocation2 + $0x8c] sm:$0xf]
      %v5498 = vld [vmem:[#allocation2 + $0x90] sm:$0xf]
      %v5499 = vld [vmem:[#allocation2 + $0x94] sm:$0xf]
      %v5500 = vld [vmem:[#allocation2 + $0x98] sm:$0xf]
      %v5501 = vld [vmem:[#allocation2 + $0x9c] sm:$0xf]
      %v5502 = vld [vmem:[#allocation2 + $0xa0] sm:$0xf]
      %v5503 = vld [vmem:[#allocation2 + $0xa4] sm:$0xf]
      %v5504 = vld [vmem:[#allocation2 + $0xa8] sm:$0xf]
      %v5505 = vld [vmem:[#allocation2 + $0xac] sm:$0xf]
      %v5506 = vld [vmem:[#allocation2 + $0xb0] sm:$0xf]
      %v5507 = vld [vmem:[#allocation2 + $0xb4] sm:$0xf]
      %v5508 = vld [vmem:[#allocation2 + $0xb8] sm:$0xf]
      %v5509 = vld [vmem:[#allocation2 + $0xbc] sm:$0xf]
      %v5510 = vld [vmem:[#allocation2 + $0xc0] sm:$0xf]
      %v5511 = vld [vmem:[#allocation2 + $0xc4] sm:$0xf]
      %v5512 = vld [vmem:[#allocation2 + $0xc8] sm:$0x1]
      %vm5558 = vcmask 1042432
      %vm5559 = vcmask 1046532
      %vm5560 = vmor %vm5558, %vm5559
      %v5561 = vrot.slane %v5468, 5
      %v5562 = vrot.slane %v5561, 4
      %v5563 = vrot.slane %v5469, 5
      %v5564 = vsel %vm5560, %v5562, %v5563
      %v5565 = vrot.slane %v5563, 4
      %v5566 = vrot.slane %v5470, 5
      %v5567 = vsel %vm5560, %v5565, %v5566
      %v5568 = vrot.slane %v5566, 4
      %v5569 = vrot.slane %v5471, 5
      %v5570 = vsel %vm5560, %v5568, %v5569
      %v5571 = vrot.slane %v5569, 4
      %v5572 = vrot.slane %v5472, 5
      %v5573 = vsel %vm5560, %v5571, %v5572
      %v5574 = vrot.slane %v5572, 4
      %v5575 = vrot.slane %v5473, 5
      %v5576 = vsel %vm5560, %v5574, %v5575
      %v5577 = vrot.slane %v5575, 4
      %v5578 = vrot.slane %v5474, 5
      %v5579 = vsel %vm5560, %v5577, %v5578
      %v5580 = vrot.slane %v5578, 4
      %v5581 = vrot.slane %v5475, 5
      %v5582 = vsel %vm5560, %v5580, %v5581
      %v5583 = vrot.slane %v5581, 4
      %v5584 = vrot.slane %v5476, 5
      %v5585 = vsel %vm5560, %v5583, %v5584
      %v5586 = vrot.slane %v5584, 4
      %v5587 = vrot.slane %v5477, 5
      %v5588 = vsel %vm5560, %v5586, %v5587
      %v5589 = vrot.slane %v5587, 4
      %v5590 = vrot.slane %v5478, 5
      %v5591 = vsel %vm5560, %v5589, %v5590
      %v5592 = vrot.slane %v5590, 4
      %v5593 = vrot.slane %v5479, 5
      %v5594 = vsel %vm5560, %v5592, %v5593
      %v5595 = vrot.slane %v5593, 4
      %v5596 = vrot.slane %v5480, 5
      %v5597 = vsel %vm5560, %v5595, %v5596
      %v5598 = vrot.slane %v5596, 4
      %v5599 = vrot.slane %v5481, 5
      %v5600 = vsel %vm5560, %v5598, %v5599
      %v5601 = vrot.slane %v5599, 4
      %v5602 = vrot.slane %v5482, 5
      %v5603 = vsel %vm5560, %v5601, %v5602
      %v5604 = vrot.slane %v5602, 4
      %v5605 = vrot.slane %v5483, 5
      %v5606 = vsel %vm5560, %v5604, %v5605
      %v5607 = vrot.slane %v5605, 4
      %v5608 = vrot.slane %v5484, 5
      %v5609 = vsel %vm5560, %v5607, %v5608
      %v5610 = vrot.slane %v5608, 4
      %v5611 = vrot.slane %v5485, 5
      %v5612 = vsel %vm5560, %v5610, %v5611
      %v5613 = vrot.slane %v5611, 4
      %v5614 = vrot.slane %v5486, 5
      %v5615 = vsel %vm5560, %v5613, %v5614
      %v5616 = vrot.slane %v5614, 4
      %v5617 = vrot.slane %v5487, 5
      %v5618 = vsel %vm5560, %v5616, %v5617
      %v5619 = vrot.slane %v5617, 4
      %v5620 = vrot.slane %v5488, 5
      %v5621 = vsel %vm5560, %v5619, %v5620
      %v5622 = vrot.slane %v5620, 4
      %v5623 = vrot.slane %v5489, 5
      %v5624 = vsel %vm5560, %v5622, %v5623
      %v5625 = vrot.slane %v5623, 4
      %v5626 = vrot.slane %v5490, 5
      %v5627 = vsel %vm5560, %v5625, %v5626
      %v5628 = vrot.slane %v5626, 4
      %v5629 = vrot.slane %v5491, 5
      %v5630 = vsel %vm5560, %v5628, %v5629
      %v5631 = vrot.slane %v5629, 4
      %v5632 = vrot.slane %v5492, 5
      %v5633 = vsel %vm5560, %v5631, %v5632
      %v5634 = vrot.slane %v5632, 4
      %v5635 = vrot.slane %v5493, 5
      %v5636 = vsel %vm5560, %v5634, %v5635
      %v5637 = vrot.slane %v5635, 4
      %v5638 = vrot.slane %v5494, 5
      %v5639 = vsel %vm5560, %v5637, %v5638
      %v5640 = vrot.slane %v5638, 4
      %v5641 = vrot.slane %v5495, 5
      %v5642 = vsel %vm5560, %v5640, %v5641
      %v5643 = vrot.slane %v5641, 4
      %v5644 = vrot.slane %v5496, 5
      %v5645 = vsel %vm5560, %v5643, %v5644
      %v5646 = vrot.slane %v5644, 4
      %v5647 = vrot.slane %v5497, 5
      %v5648 = vsel %vm5560, %v5646, %v5647
      %v5649 = vrot.slane %v5647, 4
      %v5650 = vrot.slane %v5498, 5
      %v5651 = vsel %vm5560, %v5649, %v5650
      %v5652 = vrot.slane %v5650, 4
      %v5653 = vrot.slane %v5499, 5
      %v5654 = vsel %vm5560, %v5652, %v5653
      %v5655 = vrot.slane %v5653, 4
      %v5656 = vrot.slane %v5500, 5
      %v5657 = vsel %vm5560, %v5655, %v5656
      %v5658 = vrot.slane %v5656, 4
      %v5659 = vrot.slane %v5501, 5
      %v5660 = vsel %vm5560, %v5658, %v5659
      %v5661 = vrot.slane %v5659, 4
      %v5662 = vrot.slane %v5502, 5
      %v5663 = vsel %vm5560, %v5661, %v5662
      %v5664 = vrot.slane %v5662, 4
      %v5665 = vrot.slane %v5503, 5
      %v5666 = vsel %vm5560, %v5664, %v5665
      %v5667 = vrot.slane %v5665, 4
      %v5668 = vrot.slane %v5504, 5
      %v5669 = vsel %vm5560, %v5667, %v5668
      %v5670 = vrot.slane %v5668, 4
      %v5671 = vrot.slane %v5505, 5
      %v5672 = vsel %vm5560, %v5670, %v5671
      %v5673 = vrot.slane %v5671, 4
      %v5674 = vrot.slane %v5506, 5
      %v5675 = vsel %vm5560, %v5673, %v5674
      %v5676 = vrot.slane %v5674, 4
      %v5677 = vrot.slane %v5507, 5
      %v5678 = vsel %vm5560, %v5676, %v5677
      %v5679 = vrot.slane %v5677, 4
      %v5680 = vrot.slane %v5508, 5
      %v5681 = vsel %vm5560, %v5679, %v5680
      %v5682 = vrot.slane %v5680, 4
      %v5683 = vrot.slane %v5509, 5
      %v5684 = vsel %vm5560, %v5682, %v5683
      %v5685 = vrot.slane %v5683, 4
      %v5686 = vrot.slane %v5510, 5
      %v5687 = vsel %vm5560, %v5685, %v5686
      %v5688 = vrot.slane %v5686, 4
      %v5689 = vrot.slane %v5511, 5
      %v5690 = vsel %vm5560, %v5688, %v5689
      %v5691 = vrot.slane %v5689, 4
      %v5692 = vrot.slane %v5512, 5
      %v5693 = vsel %vm5560, %v5691, %v5692
      %5738 = vst [vmem:[#allocation3 + $0x1c] sm:$0xf] %v5564
      %5739 = vst [vmem:[#allocation3 + $0x40] sm:$0xf] %v5567
      %5740 = vst [vmem:[#allocation3 + $0x64] sm:$0xf] %v5570
      %5741 = vst [vmem:[#allocation3 + $0x88] sm:$0xf] %v5573
      %5742 = vst [vmem:[#allocation3 + $0xac] sm:$0xf] %v5576
      %5743 = vst [vmem:[#allocation3 + $0xd0] sm:$0xf] %v5579
      %5744 = vst [vmem:[#allocation3 + $0xf4] sm:$0xf] %v5582
      %5745 = vst [vmem:[#allocation3 + $0x118] sm:$0xf] %v5585
      %5746 = vst [vmem:[#allocation3 + $0x13c] sm:$0xf] %v5588
      %5747 = vst [vmem:[#allocation3 + $0x160] sm:$0xf] %v5591
      %5748 = vst [vmem:[#allocation3 + $0x184] sm:$0xf] %v5594
      %5749 = vst [vmem:[#allocation3 + $0x1a8] sm:$0xf] %v5597
      %5750 = vst [vmem:[#allocation3 + $0x1cc] sm:$0xf] %v5600
      %5751 = vst [vmem:[#allocation3 + $0x1f0] sm:$0xf] %v5603
      %5752 = vst [vmem:[#allocation3 + $0x214] sm:$0xf] %v5606
      %5753 = vst [vmem:[#allocation3 + $0x238] sm:$0xf] %v5609
      %5754 = vst [vmem:[#allocation3 + $0x25c] sm:$0xf] %v5612
      %5755 = vst [vmem:[#allocation3 + $0x280] sm:$0xf] %v5615
      %5756 = vst [vmem:[#allocation3 + $0x2a4] sm:$0xf] %v5618
      %5757 = vst [vmem:[#allocation3 + $0x2c8] sm:$0xf] %v5621
      %5758 = vst [vmem:[#allocation3 + $0x2ec] sm:$0xf] %v5624
      %5759 = vst [vmem:[#allocation3 + $0x310] sm:$0xf] %v5627
      %5760 = vst [vmem:[#allocation3 + $0x334] sm:$0xf] %v5630
      %5761 = vst [vmem:[#allocation3 + $0x358] sm:$0xf] %v5633
      %5762 = vst [vmem:[#allocation3 + $0x37c] sm:$0xf] %v5636
      %5763 = vst [vmem:[#allocation3 + $0x3a0] sm:$0xf] %v5639
      %5764 = vst [vmem:[#allocation3 + $0x3c4] sm:$0xf] %v5642
      %5765 = vst [vmem:[#allocation3 + $0x3e8] sm:$0xf] %v5645
      %5766 = vst [vmem:[#allocation3 + $0x40c] sm:$0xf] %v5648
      %5767 = vst [vmem:[#allocation3 + $0x430] sm:$0xf] %v5651
      %5768 = vst [vmem:[#allocation3 + $0x454] sm:$0xf] %v5654
      %5769 = vst [vmem:[#allocation3 + $0x478] sm:$0xf] %v5657
      %5770 = vst [vmem:[#allocation3 + $0x49c] sm:$0xf] %v5660
      %5771 = vst [vmem:[#allocation3 + $0x4c0] sm:$0xf] %v5663
      %5772 = vst [vmem:[#allocation3 + $0x4e4] sm:$0xf] %v5666
      %5773 = vst [vmem:[#allocation3 + $0x508] sm:$0xf] %v5669
      %5774 = vst [vmem:[#allocation3 + $0x52c] sm:$0xf] %v5672
      %5775 = vst [vmem:[#allocation3 + $0x550] sm:$0xf] %v5675
      %5776 = vst [vmem:[#allocation3 + $0x574] sm:$0xf] %v5678
      %5777 = vst [vmem:[#allocation3 + $0x598] sm:$0xf] %v5681
      %5778 = vst [vmem:[#allocation3 + $0x5bc] sm:$0xf] %v5684
      %5779 = vst [vmem:[#allocation3 + $0x5e0] sm:$0xf] %v5687
      %5780 = vst [vmem:[#allocation3 + $0x604] sm:$0xf] %v5690
      %5781 = vst [vmem:[#allocation3 + $0x628] sm:$0xf] %v5693
      %v5782 = vld [vmem:[#allocation2 + $0x18] sm:$0xe]
      %v5783 = vld [vmem:[#allocation2 + $0x1c] sm:$0xf]
      %v5784 = vld [vmem:[#allocation2 + $0x20] sm:$0xf]
      %v5785 = vld [vmem:[#allocation2 + $0x24] sm:$0xf]
      %v5786 = vld [vmem:[#allocation2 + $0x28] sm:$0xf]
      %v5787 = vld [vmem:[#allocation2 + $0x2c] sm:$0xf]
      %v5788 = vld [vmem:[#allocation2 + $0x30] sm:$0xf]
      %v5789 = vld [vmem:[#allocation2 + $0x34] sm:$0xf]
      %v5790 = vld [vmem:[#allocation2 + $0x38] sm:$0xf]
      %v5791 = vld [vmem:[#allocation2 + $0x3c] sm:$0xf]
      %v5792 = vld [vmem:[#allocation2 + $0x40] sm:$0xf]
      %v5793 = vld [vmem:[#allocation2 + $0x44] sm:$0xf]
      %v5794 = vld [vmem:[#allocation2 + $0x48] sm:$0xf]
      %v5795 = vld [vmem:[#allocation2 + $0x4c] sm:$0xf]
      %v5796 = vld [vmem:[#allocation2 + $0x50] sm:$0xf]
      %v5797 = vld [vmem:[#allocation2 + $0x54] sm:$0xf]
      %v5798 = vld [vmem:[#allocation2 + $0x58] sm:$0xf]
      %v5799 = vld [vmem:[#allocation2 + $0x5c] sm:$0xf]
      %v5800 = vld [vmem:[#allocation2 + $0x60] sm:$0xf]
      %v5801 = vld [vmem:[#allocation2 + $0x64] sm:$0xf]
      %v5802 = vld [vmem:[#allocation2 + $0x68] sm:$0xf]
      %v5803 = vld [vmem:[#allocation2 + $0x6c] sm:$0xf]
      %v5804 = vld [vmem:[#allocation2 + $0x70] sm:$0xf]
      %v5805 = vld [vmem:[#allocation2 + $0x74] sm:$0xf]
      %v5806 = vld [vmem:[#allocation2 + $0x78] sm:$0xf]
      %v5807 = vld [vmem:[#allocation2 + $0x7c] sm:$0xf]
      %v5808 = vld [vmem:[#allocation2 + $0x80] sm:$0xf]
      %v5809 = vld [vmem:[#allocation2 + $0x84] sm:$0xf]
      %v5810 = vld [vmem:[#allocation2 + $0x88] sm:$0xf]
      %v5811 = vld [vmem:[#allocation2 + $0x8c] sm:$0xf]
      %v5812 = vld [vmem:[#allocation2 + $0x90] sm:$0xf]
      %v5813 = vld [vmem:[#allocation2 + $0x94] sm:$0xf]
      %v5814 = vld [vmem:[#allocation2 + $0x98] sm:$0xf]
      %v5815 = vld [vmem:[#allocation2 + $0x9c] sm:$0xf]
      %v5816 = vld [vmem:[#allocation2 + $0xa0] sm:$0xf]
      %v5817 = vld [vmem:[#allocation2 + $0xa4] sm:$0xf]
      %v5818 = vld [vmem:[#allocation2 + $0xa8] sm:$0xf]
      %v5819 = vld [vmem:[#allocation2 + $0xac] sm:$0xf]
      %v5820 = vld [vmem:[#allocation2 + $0xb0] sm:$0xf]
      %v5821 = vld [vmem:[#allocation2 + $0xb4] sm:$0xf]
      %v5822 = vld [vmem:[#allocation2 + $0xb8] sm:$0xf]
      %v5823 = vld [vmem:[#allocation2 + $0xbc] sm:$0xf]
      %v5824 = vld [vmem:[#allocation2 + $0xc0] sm:$0xf]
      %v5825 = vld [vmem:[#allocation2 + $0xc4] sm:$0xf]
      %v5826 = vld [vmem:[#allocation2 + $0xc8] sm:$0x3]
      %vm5827 = vsmask.f32 2304
      %vm5828 = vsmask.f32 6416
      %vm5829 = vmor %vm5827, %vm5828
      %v5831 = vshrl.u32 %v5782, 16
      %v5833 = vrot.slane %v5831, 5
      %v5834 = vshll.u32 %v5782, 16
      %v5836 = vrot.slane %v5834, 6
      %v5837 = vor.u32 %v5833, %v5836
      %v5838 = vrot.slane %v5837, 4
      %v5840 = vshrl.u32 %v5783, 16
      %v5842 = vrot.slane %v5840, 5
      %v5843 = vshll.u32 %v5783, 16
      %v5845 = vrot.slane %v5843, 6
      %v5846 = vor.u32 %v5842, %v5845
      %v5847 = vsel %vm5829, %v5838, %v5846
      %v5848 = vrot.slane %v5846, 4
      %v5850 = vshrl.u32 %v5784, 16
      %v5852 = vrot.slane %v5850, 5
      %v5853 = vshll.u32 %v5784, 16
      %v5855 = vrot.slane %v5853, 6
      %v5856 = vor.u32 %v5852, %v5855
      %v5857 = vsel %vm5829, %v5848, %v5856
      %v5858 = vrot.slane %v5856, 4
      %v5860 = vshrl.u32 %v5785, 16
      %v5862 = vrot.slane %v5860, 5
      %v5863 = vshll.u32 %v5785, 16
      %v5865 = vrot.slane %v5863, 6
      %v5866 = vor.u32 %v5862, %v5865
      %v5867 = vsel %vm5829, %v5858, %v5866
      %v5868 = vrot.slane %v5866, 4
      %v5870 = vshrl.u32 %v5786, 16
      %v5872 = vrot.slane %v5870, 5
      %v5873 = vshll.u32 %v5786, 16
      %v5875 = vrot.slane %v5873, 6
      %v5876 = vor.u32 %v5872, %v5875
      %v5877 = vsel %vm5829, %v5868, %v5876
      %v5878 = vrot.slane %v5876, 4
      %v5880 = vshrl.u32 %v5787, 16
      %v5882 = vrot.slane %v5880, 5
      %v5883 = vshll.u32 %v5787, 16
      %v5885 = vrot.slane %v5883, 6
      %v5886 = vor.u32 %v5882, %v5885
      %v5887 = vsel %vm5829, %v5878, %v5886
      %v5888 = vrot.slane %v5886, 4
      %v5890 = vshrl.u32 %v5788, 16
      %v5892 = vrot.slane %v5890, 5
      %v5893 = vshll.u32 %v5788, 16
      %v5895 = vrot.slane %v5893, 6
      %v5896 = vor.u32 %v5892, %v5895
      %v5897 = vsel %vm5829, %v5888, %v5896
      %v5898 = vrot.slane %v5896, 4
      %v5900 = vshrl.u32 %v5789, 16
      %v5902 = vrot.slane %v5900, 5
      %v5903 = vshll.u32 %v5789, 16
      %v5905 = vrot.slane %v5903, 6
      %v5906 = vor.u32 %v5902, %v5905
      %v5907 = vsel %vm5829, %v5898, %v5906
      %v5908 = vrot.slane %v5906, 4
      %v5910 = vshrl.u32 %v5790, 16
      %v5912 = vrot.slane %v5910, 5
      %v5913 = vshll.u32 %v5790, 16
      %v5915 = vrot.slane %v5913, 6
      %v5916 = vor.u32 %v5912, %v5915
      %v5917 = vsel %vm5829, %v5908, %v5916
      %v5918 = vrot.slane %v5916, 4
      %v5920 = vshrl.u32 %v5791, 16
      %v5922 = vrot.slane %v5920, 5
      %v5923 = vshll.u32 %v5791, 16
      %v5925 = vrot.slane %v5923, 6
      %v5926 = vor.u32 %v5922, %v5925
      %v5927 = vsel %vm5829, %v5918, %v5926
      %v5928 = vrot.slane %v5926, 4
      %v5930 = vshrl.u32 %v5792, 16
      %v5932 = vrot.slane %v5930, 5
      %v5933 = vshll.u32 %v5792, 16
      %v5935 = vrot.slane %v5933, 6
      %v5936 = vor.u32 %v5932, %v5935
      %v5937 = vsel %vm5829, %v5928, %v5936
      %v5938 = vrot.slane %v5936, 4
      %v5940 = vshrl.u32 %v5793, 16
      %v5942 = vrot.slane %v5940, 5
      %v5943 = vshll.u32 %v5793, 16
      %v5945 = vrot.slane %v5943, 6
      %v5946 = vor.u32 %v5942, %v5945
      %v5947 = vsel %vm5829, %v5938, %v5946
      %v5948 = vrot.slane %v5946, 4
      %v5950 = vshrl.u32 %v5794, 16
      %v5952 = vrot.slane %v5950, 5
      %v5953 = vshll.u32 %v5794, 16
      %v5955 = vrot.slane %v5953, 6
      %v5956 = vor.u32 %v5952, %v5955
      %v5957 = vsel %vm5829, %v5948, %v5956
      %v5958 = vrot.slane %v5956, 4
      %v5960 = vshrl.u32 %v5795, 16
      %v5962 = vrot.slane %v5960, 5
      %v5963 = vshll.u32 %v5795, 16
      %v5965 = vrot.slane %v5963, 6
      %v5966 = vor.u32 %v5962, %v5965
      %v5967 = vsel %vm5829, %v5958, %v5966
      %v5968 = vrot.slane %v5966, 4
      %v5970 = vshrl.u32 %v5796, 16
      %v5972 = vrot.slane %v5970, 5
      %v5973 = vshll.u32 %v5796, 16
      %v5975 = vrot.slane %v5973, 6
      %v5976 = vor.u32 %v5972, %v5975
      %v5977 = vsel %vm5829, %v5968, %v5976
      %v5978 = vrot.slane %v5976, 4
      %v5980 = vshrl.u32 %v5797, 16
      %v5982 = vrot.slane %v5980, 5
      %v5983 = vshll.u32 %v5797, 16
      %v5985 = vrot.slane %v5983, 6
      %v5986 = vor.u32 %v5982, %v5985
      %v5987 = vsel %vm5829, %v5978, %v5986
      %v5988 = vrot.slane %v5986, 4
      %v5990 = vshrl.u32 %v5798, 16
      %v5992 = vrot.slane %v5990, 5
      %v5993 = vshll.u32 %v5798, 16
      %v5995 = vrot.slane %v5993, 6
      %v5996 = vor.u32 %v5992, %v5995
      %v5997 = vsel %vm5829, %v5988, %v5996
      %v5998 = vrot.slane %v5996, 4
      %v6000 = vshrl.u32 %v5799, 16
      %v6002 = vrot.slane %v6000, 5
      %v6003 = vshll.u32 %v5799, 16
      %v6005 = vrot.slane %v6003, 6
      %v6006 = vor.u32 %v6002, %v6005
      %v6007 = vsel %vm5829, %v5998, %v6006
      %v6008 = vrot.slane %v6006, 4
      %v6010 = vshrl.u32 %v5800, 16
      %v6012 = vrot.slane %v6010, 5
      %v6013 = vshll.u32 %v5800, 16
      %v6015 = vrot.slane %v6013, 6
      %v6016 = vor.u32 %v6012, %v6015
      %v6017 = vsel %vm5829, %v6008, %v6016
      %v6018 = vrot.slane %v6016, 4
      %v6020 = vshrl.u32 %v5801, 16
      %v6022 = vrot.slane %v6020, 5
      %v6023 = vshll.u32 %v5801, 16
      %v6025 = vrot.slane %v6023, 6
      %v6026 = vor.u32 %v6022, %v6025
      %v6027 = vsel %vm5829, %v6018, %v6026
      %v6028 = vrot.slane %v6026, 4
      %v6030 = vshrl.u32 %v5802, 16
      %v6032 = vrot.slane %v6030, 5
      %v6033 = vshll.u32 %v5802, 16
      %v6035 = vrot.slane %v6033, 6
      %v6036 = vor.u32 %v6032, %v6035
      %v6037 = vsel %vm5829, %v6028, %v6036
      %v6038 = vrot.slane %v6036, 4
      %v6040 = vshrl.u32 %v5803, 16
      %v6042 = vrot.slane %v6040, 5
      %v6043 = vshll.u32 %v5803, 16
      %v6045 = vrot.slane %v6043, 6
      %v6046 = vor.u32 %v6042, %v6045
      %v6047 = vsel %vm5829, %v6038, %v6046
      %v6048 = vrot.slane %v6046, 4
      %v6050 = vshrl.u32 %v5804, 16
      %v6052 = vrot.slane %v6050, 5
      %v6053 = vshll.u32 %v5804, 16
      %v6055 = vrot.slane %v6053, 6
      %v6056 = vor.u32 %v6052, %v6055
      %v6057 = vsel %vm5829, %v6048, %v6056
      %v6058 = vrot.slane %v6056, 4
      %v6060 = vshrl.u32 %v5805, 16
      %v6062 = vrot.slane %v6060, 5
      %v6063 = vshll.u32 %v5805, 16
      %v6065 = vrot.slane %v6063, 6
      %v6066 = vor.u32 %v6062, %v6065
      %v6067 = vsel %vm5829, %v6058, %v6066
      %v6068 = vrot.slane %v6066, 4
      %v6070 = vshrl.u32 %v5806, 16
      %v6072 = vrot.slane %v6070, 5
      %v6073 = vshll.u32 %v5806, 16
      %v6075 = vrot.slane %v6073, 6
      %v6076 = vor.u32 %v6072, %v6075
      %v6077 = vsel %vm5829, %v6068, %v6076
      %v6078 = vrot.slane %v6076, 4
      %v6080 = vshrl.u32 %v5807, 16
      %v6082 = vrot.slane %v6080, 5
      %v6083 = vshll.u32 %v5807, 16
      %v6085 = vrot.slane %v6083, 6
      %v6086 = vor.u32 %v6082, %v6085
      %v6087 = vsel %vm5829, %v6078, %v6086
      %v6088 = vrot.slane %v6086, 4
      %v6090 = vshrl.u32 %v5808, 16
      %v6092 = vrot.slane %v6090, 5
      %v6093 = vshll.u32 %v5808, 16
      %v6095 = vrot.slane %v6093, 6
      %v6096 = vor.u32 %v6092, %v6095
      %v6097 = vsel %vm5829, %v6088, %v6096
      %v6098 = vrot.slane %v6096, 4
      %v6100 = vshrl.u32 %v5809, 16
      %v6102 = vrot.slane %v6100, 5
      %v6103 = vshll.u32 %v5809, 16
      %v6105 = vrot.slane %v6103, 6
      %v6106 = vor.u32 %v6102, %v6105
      %v6107 = vsel %vm5829, %v6098, %v6106
      %v6108 = vrot.slane %v6106, 4
      %v6110 = vshrl.u32 %v5810, 16
      %v6112 = vrot.slane %v6110, 5
      %v6113 = vshll.u32 %v5810, 16
      %v6115 = vrot.slane %v6113, 6
      %v6116 = vor.u32 %v6112, %v6115
      %v6117 = vsel %vm5829, %v6108, %v6116
      %v6118 = vrot.slane %v6116, 4
      %v6120 = vshrl.u32 %v5811, 16
      %v6122 = vrot.slane %v6120, 5
      %v6123 = vshll.u32 %v5811, 16
      %v6125 = vrot.slane %v6123, 6
      %v6126 = vor.u32 %v6122, %v6125
      %v6127 = vsel %vm5829, %v6118, %v6126
      %v6128 = vrot.slane %v6126, 4
      %v6130 = vshrl.u32 %v5812, 16
      %v6132 = vrot.slane %v6130, 5
      %v6133 = vshll.u32 %v5812, 16
      %v6135 = vrot.slane %v6133, 6
      %v6136 = vor.u32 %v6132, %v6135
      %v6137 = vsel %vm5829, %v6128, %v6136
      %v6138 = vrot.slane %v6136, 4
      %v6140 = vshrl.u32 %v5813, 16
      %v6142 = vrot.slane %v6140, 5
      %v6143 = vshll.u32 %v5813, 16
      %v6145 = vrot.slane %v6143, 6
      %v6146 = vor.u32 %v6142, %v6145
      %v6147 = vsel %vm5829, %v6138, %v6146
      %v6148 = vrot.slane %v6146, 4
      %v6150 = vshrl.u32 %v5814, 16
      %v6152 = vrot.slane %v6150, 5
      %v6153 = vshll.u32 %v5814, 16
      %v6155 = vrot.slane %v6153, 6
      %v6156 = vor.u32 %v6152, %v6155
      %v6157 = vsel %vm5829, %v6148, %v6156
      %v6158 = vrot.slane %v6156, 4
      %v6160 = vshrl.u32 %v5815, 16
      %v6162 = vrot.slane %v6160, 5
      %v6163 = vshll.u32 %v5815, 16
      %v6165 = vrot.slane %v6163, 6
      %v6166 = vor.u32 %v6162, %v6165
      %v6167 = vsel %vm5829, %v6158, %v6166
      %v6168 = vrot.slane %v6166, 4
      %v6170 = vshrl.u32 %v5816, 16
      %v6172 = vrot.slane %v6170, 5
      %v6173 = vshll.u32 %v5816, 16
      %v6175 = vrot.slane %v6173, 6
      %v6176 = vor.u32 %v6172, %v6175
      %v6177 = vsel %vm5829, %v6168, %v6176
      %v6178 = vrot.slane %v6176, 4
      %v6180 = vshrl.u32 %v5817, 16
      %v6182 = vrot.slane %v6180, 5
      %v6183 = vshll.u32 %v5817, 16
      %v6185 = vrot.slane %v6183, 6
      %v6186 = vor.u32 %v6182, %v6185
      %v6187 = vsel %vm5829, %v6178, %v6186
      %v6188 = vrot.slane %v6186, 4
      %v6190 = vshrl.u32 %v5818, 16
      %v6192 = vrot.slane %v6190, 5
      %v6193 = vshll.u32 %v5818, 16
      %v6195 = vrot.slane %v6193, 6
      %v6196 = vor.u32 %v6192, %v6195
      %v6197 = vsel %vm5829, %v6188, %v6196
      %v6198 = vrot.slane %v6196, 4
      %v6200 = vshrl.u32 %v5819, 16
      %v6202 = vrot.slane %v6200, 5
      %v6203 = vshll.u32 %v5819, 16
      %v6205 = vrot.slane %v6203, 6
      %v6206 = vor.u32 %v6202, %v6205
      %v6207 = vsel %vm5829, %v6198, %v6206
      %v6208 = vrot.slane %v6206, 4
      %v6210 = vshrl.u32 %v5820, 16
      %v6212 = vrot.slane %v6210, 5
      %v6213 = vshll.u32 %v5820, 16
      %v6215 = vrot.slane %v6213, 6
      %v6216 = vor.u32 %v6212, %v6215
      %v6217 = vsel %vm5829, %v6208, %v6216
      %v6218 = vrot.slane %v6216, 4
      %v6220 = vshrl.u32 %v5821, 16
      %v6222 = vrot.slane %v6220, 5
      %v6223 = vshll.u32 %v5821, 16
      %v6225 = vrot.slane %v6223, 6
      %v6226 = vor.u32 %v6222, %v6225
      %v6227 = vsel %vm5829, %v6218, %v6226
      %v6228 = vrot.slane %v6226, 4
      %v6230 = vshrl.u32 %v5822, 16
      %v6232 = vrot.slane %v6230, 5
      %v6233 = vshll.u32 %v5822, 16
      %v6235 = vrot.slane %v6233, 6
      %v6236 = vor.u32 %v6232, %v6235
      %v6237 = vsel %vm5829, %v6228, %v6236
      %v6238 = vrot.slane %v6236, 4
      %v6240 = vshrl.u32 %v5823, 16
      %v6242 = vrot.slane %v6240, 5
      %v6243 = vshll.u32 %v5823, 16
      %v6245 = vrot.slane %v6243, 6
      %v6246 = vor.u32 %v6242, %v6245
      %v6247 = vsel %vm5829, %v6238, %v6246
      %v6248 = vrot.slane %v6246, 4
      %v6250 = vshrl.u32 %v5824, 16
      %v6252 = vrot.slane %v6250, 5
      %v6253 = vshll.u32 %v5824, 16
      %v6255 = vrot.slane %v6253, 6
      %v6256 = vor.u32 %v6252, %v6255
      %v6257 = vsel %vm5829, %v6248, %v6256
      %v6258 = vrot.slane %v6256, 4
      %v6260 = vshrl.u32 %v5825, 16
      %v6262 = vrot.slane %v6260, 5
      %v6263 = vshll.u32 %v5825, 16
      %v6265 = vrot.slane %v6263, 6
      %v6266 = vor.u32 %v6262, %v6265
      %v6267 = vsel %vm5829, %v6258, %v6266
      %v6268 = vrot.slane %v6266, 4
      %v6270 = vshrl.u32 %v5826, 16
      %v6272 = vrot.slane %v6270, 5
      %v6273 = vshll.u32 %v5826, 16
      %v6275 = vrot.slane %v6273, 6
      %v6276 = vor.u32 %v6272, %v6275
      %v6277 = vsel %vm5829, %v6268, %v6276
      %6322 = vst [vmem:[#allocation3 + $0x20] sm:$0xf] %v5847
      %6323 = vst [vmem:[#allocation3 + $0x44] sm:$0xf] %v5857
      %6324 = vst [vmem:[#allocation3 + $0x68] sm:$0xf] %v5867
      %6325 = vst [vmem:[#allocation3 + $0x8c] sm:$0xf] %v5877
      %6326 = vst [vmem:[#allocation3 + $0xb0] sm:$0xf] %v5887
      %6327 = vst [vmem:[#allocation3 + $0xd4] sm:$0xf] %v5897
      %6328 = vst [vmem:[#allocation3 + $0xf8] sm:$0xf] %v5907
      %6329 = vst [vmem:[#allocation3 + $0x11c] sm:$0xf] %v5917
      %6330 = vst [vmem:[#allocation3 + $0x140] sm:$0xf] %v5927
      %6331 = vst [vmem:[#allocation3 + $0x164] sm:$0xf] %v5937
      %6332 = vst [vmem:[#allocation3 + $0x188] sm:$0xf] %v5947
      %6333 = vst [vmem:[#allocation3 + $0x1ac] sm:$0xf] %v5957
      %6334 = vst [vmem:[#allocation3 + $0x1d0] sm:$0xf] %v5967
      %6335 = vst [vmem:[#allocation3 + $0x1f4] sm:$0xf] %v5977
      %6336 = vst [vmem:[#allocation3 + $0x218] sm:$0xf] %v5987
      %6337 = vst [vmem:[#allocation3 + $0x23c] sm:$0xf] %v5997
      %6338 = vst [vmem:[#allocation3 + $0x260] sm:$0xf] %v6007
      %6339 = vst [vmem:[#allocation3 + $0x284] sm:$0xf] %v6017
      %6340 = vst [vmem:[#allocation3 + $0x2a8] sm:$0xf] %v6027
      %6341 = vst [vmem:[#allocation3 + $0x2cc] sm:$0xf] %v6037
      %6342 = vst [vmem:[#allocation3 + $0x2f0] sm:$0xf] %v6047
      %6343 = vst [vmem:[#allocation3 + $0x314] sm:$0xf] %v6057
      %6344 = vst [vmem:[#allocation3 + $0x338] sm:$0xf] %v6067
      %6345 = vst [vmem:[#allocation3 + $0x35c] sm:$0xf] %v6077
      %6346 = vst [vmem:[#allocation3 + $0x380] sm:$0xf] %v6087
      %6347 = vst [vmem:[#allocation3 + $0x3a4] sm:$0xf] %v6097
      %6348 = vst [vmem:[#allocation3 + $0x3c8] sm:$0xf] %v6107
      %6349 = vst [vmem:[#allocation3 + $0x3ec] sm:$0xf] %v6117
      %6350 = vst [vmem:[#allocation3 + $0x410] sm:$0xf] %v6127
      %6351 = vst [vmem:[#allocation3 + $0x434] sm:$0xf] %v6137
      %6352 = vst [vmem:[#allocation3 + $0x458] sm:$0xf] %v6147
      %6353 = vst [vmem:[#allocation3 + $0x47c] sm:$0xf] %v6157
      %6354 = vst [vmem:[#allocation3 + $0x4a0] sm:$0xf] %v6167
      %6355 = vst [vmem:[#allocation3 + $0x4c4] sm:$0xf] %v6177
      %6356 = vst [vmem:[#allocation3 + $0x4e8] sm:$0xf] %v6187
      %6357 = vst [vmem:[#allocation3 + $0x50c] sm:$0xf] %v6197
      %6358 = vst [vmem:[#allocation3 + $0x530] sm:$0xf] %v6207
      %6359 = vst [vmem:[#allocation3 + $0x554] sm:$0xf] %v6217
      %6360 = vst [vmem:[#allocation3 + $0x578] sm:$0xf] %v6227
      %6361 = vst [vmem:[#allocation3 + $0x59c] sm:$0xf] %v6237
      %6362 = vst [vmem:[#allocation3 + $0x5c0] sm:$0xf] %v6247
      %6363 = vst [vmem:[#allocation3 + $0x5e4] sm:$0xf] %v6257
      %6364 = vst [vmem:[#allocation3 + $0x608] sm:$0xf] %v6267
      %6365 = vst [vmem:[#allocation3 + $0x62c] sm:$0xf] %v6277
      %v6366 = vld [vmem:[#allocation3] sm:$0xff]
      %v6367 = vld [vmem:[#allocation3 + $0x8] sm:$0xff]
      %v6368 = vld [vmem:[#allocation3 + $0x10] sm:$0xff]
      %v6369 = vld [vmem:[#allocation3 + $0x18] sm:$0xff]
      %v6370 = vld [vmem:[#allocation3 + $0x20] sm:$0xf]
      %v6371 = vld [vmem:[#allocation3 + $0x24] sm:$0xff]
      %v6372 = vld [vmem:[#allocation3 + $0x2c] sm:$0xff]
      %v6373 = vld [vmem:[#allocation3 + $0x34] sm:$0xff]
      %v6374 = vld [vmem:[#allocation3 + $0x3c] sm:$0xff]
      %v6375 = vld [vmem:[#allocation3 + $0x44] sm:$0xf]
      %v6376 = vld [vmem:[#allocation3 + $0x48] sm:$0xff]
      %v6377 = vld [vmem:[#allocation3 + $0x50] sm:$0xff]
      %v6378 = vld [vmem:[#allocation3 + $0x58] sm:$0xff]
      %v6379 = vld [vmem:[#allocation3 + $0x60] sm:$0xff]
      %v6380 = vld [vmem:[#allocation3 + $0x68] sm:$0xf]
      %v6381 = vld [vmem:[#allocation3 + $0x6c] sm:$0xff]
      %v6382 = vld [vmem:[#allocation3 + $0x74] sm:$0xff]
      %v6383 = vld [vmem:[#allocation3 + $0x7c] sm:$0xff]
      %v6384 = vld [vmem:[#allocation3 + $0x84] sm:$0xff]
      %v6385 = vld [vmem:[#allocation3 + $0x8c] sm:$0xf]
      %v6386 = vld [vmem:[#allocation3 + $0x90] sm:$0xff]
      %v6387 = vld [vmem:[#allocation3 + $0x98] sm:$0xff]
      %v6388 = vld [vmem:[#allocation3 + $0xa0] sm:$0xff]
      %v6389 = vld [vmem:[#allocation3 + $0xa8] sm:$0xff]
      %v6390 = vld [vmem:[#allocation3 + $0xb0] sm:$0xf]
      %v6391 = vld [vmem:[#allocation3 + $0xb4] sm:$0xff]
      %v6392 = vld [vmem:[#allocation3 + $0xbc] sm:$0xff]
      %v6393 = vld [vmem:[#allocation3 + $0xc4] sm:$0xff]
      %v6394 = vld [vmem:[#allocation3 + $0xcc] sm:$0xff]
      %v6395 = vld [vmem:[#allocation3 + $0xd4] sm:$0xf]
      %v6396 = vld [vmem:[#allocation3 + $0xd8] sm:$0xff]
      %v6397 = vld [vmem:[#allocation3 + $0xe0] sm:$0xff]
      %v6398 = vld [vmem:[#allocation3 + $0xe8] sm:$0xff]
      %v6399 = vld [vmem:[#allocation3 + $0xf0] sm:$0xff]
      %v6400 = vld [vmem:[#allocation3 + $0xf8] sm:$0xf]
      %v6401 = vld [vmem:[#allocation3 + $0xfc] sm:$0xff]
      %v6402 = vld [vmem:[#allocation3 + $0x104] sm:$0xff]
      %v6403 = vld [vmem:[#allocation3 + $0x10c] sm:$0xff]
      %v6404 = vld [vmem:[#allocation3 + $0x114] sm:$0xff]
      %v6405 = vld [vmem:[#allocation3 + $0x11c] sm:$0xf]
      %v6406 = vld [vmem:[#allocation3 + $0x120] sm:$0xff]
      %v6407 = vld [vmem:[#allocation3 + $0x128] sm:$0xff]
      %v6408 = vld [vmem:[#allocation3 + $0x130] sm:$0xff]
      %v6409 = vld [vmem:[#allocation3 + $0x138] sm:$0xff]
      %v6410 = vld [vmem:[#allocation3 + $0x140] sm:$0xf]
      %v6411 = vld [vmem:[#allocation3 + $0x144] sm:$0xff]
      %v6412 = vld [vmem:[#allocation3 + $0x14c] sm:$0xff]
      %v6413 = vld [vmem:[#allocation3 + $0x154] sm:$0xff]
      %v6414 = vld [vmem:[#allocation3 + $0x15c] sm:$0xff]
      %v6415 = vld [vmem:[#allocation3 + $0x164] sm:$0xf]
      %v6416 = vld [vmem:[#allocation3 + $0x168] sm:$0xff]
      %v6417 = vld [vmem:[#allocation3 + $0x170] sm:$0xff]
      %v6418 = vld [vmem:[#allocation3 + $0x178] sm:$0xff]
      %v6419 = vld [vmem:[#allocation3 + $0x180] sm:$0xff]
      %v6420 = vld [vmem:[#allocation3 + $0x188] sm:$0xf]
      %v6421 = vld [vmem:[#allocation3 + $0x18c] sm:$0xff]
      %v6422 = vld [vmem:[#allocation3 + $0x194] sm:$0xff]
      %v6423 = vld [vmem:[#allocation3 + $0x19c] sm:$0xff]
      %v6424 = vld [vmem:[#allocation3 + $0x1a4] sm:$0xff]
      %v6425 = vld [vmem:[#allocation3 + $0x1ac] sm:$0xf]
      %v6426 = vld [vmem:[#allocation3 + $0x1b0] sm:$0xff]
      %v6427 = vld [vmem:[#allocation3 + $0x1b8] sm:$0xff]
      %v6428 = vld [vmem:[#allocation3 + $0x1c0] sm:$0xff]
      %v6429 = vld [vmem:[#allocation3 + $0x1c8] sm:$0xff]
      %v6430 = vld [vmem:[#allocation3 + $0x1d0] sm:$0xf]
      %v6431 = vld [vmem:[#allocation3 + $0x1d4] sm:$0xff]
      %v6432 = vld [vmem:[#allocation3 + $0x1dc] sm:$0xff]
      %v6433 = vld [vmem:[#allocation3 + $0x1e4] sm:$0xff]
      %v6434 = vld [vmem:[#allocation3 + $0x1ec] sm:$0xff]
      %v6435 = vld [vmem:[#allocation3 + $0x1f4] sm:$0xf]
      %v6436 = vld [vmem:[#allocation3 + $0x1f8] sm:$0xff]
      %v6437 = vld [vmem:[#allocation3 + $0x200] sm:$0xff]
      %v6438 = vld [vmem:[#allocation3 + $0x208] sm:$0xff]
      %v6439 = vld [vmem:[#allocation3 + $0x210] sm:$0xff]
      %v6440 = vld [vmem:[#allocation3 + $0x218] sm:$0xf]
      %v6441 = vld [vmem:[#allocation3 + $0x21c] sm:$0xff]
      %v6442 = vld [vmem:[#allocation3 + $0x224] sm:$0xff]
      %v6443 = vld [vmem:[#allocation3 + $0x22c] sm:$0xff]
      %v6444 = vld [vmem:[#allocation3 + $0x234] sm:$0xff]
      %v6445 = vld [vmem:[#allocation3 + $0x23c] sm:$0xf]
      %v6446 = vld [vmem:[#allocation3 + $0x240] sm:$0xff]
      %v6447 = vld [vmem:[#allocation3 + $0x248] sm:$0xff]
      %v6448 = vld [vmem:[#allocation3 + $0x250] sm:$0xff]
      %v6449 = vld [vmem:[#allocation3 + $0x258] sm:$0xff]
      %v6450 = vld [vmem:[#allocation3 + $0x260] sm:$0xf]
      %v6451 = vld [vmem:[#allocation3 + $0x264] sm:$0xff]
      %v6452 = vld [vmem:[#allocation3 + $0x26c] sm:$0xff]
      %v6453 = vld [vmem:[#allocation3 + $0x274] sm:$0xff]
      %v6454 = vld [vmem:[#allocation3 + $0x27c] sm:$0xff]
      %v6455 = vld [vmem:[#allocation3 + $0x284] sm:$0xf]
      %v6456 = vld [vmem:[#allocation3 + $0x288] sm:$0xff]
      %v6457 = vld [vmem:[#allocation3 + $0x290] sm:$0xff]
      %v6458 = vld [vmem:[#allocation3 + $0x298] sm:$0xff]
      %v6459 = vld [vmem:[#allocation3 + $0x2a0] sm:$0xff]
      %v6460 = vld [vmem:[#allocation3 + $0x2a8] sm:$0xf]
      %v6461 = vld [vmem:[#allocation3 + $0x2ac] sm:$0xff]
      %v6462 = vld [vmem:[#allocation3 + $0x2b4] sm:$0xff]
      %v6463 = vld [vmem:[#allocation3 + $0x2bc] sm:$0xff]
      %v6464 = vld [vmem:[#allocation3 + $0x2c4] sm:$0xff]
      %v6465 = vld [vmem:[#allocation3 + $0x2cc] sm:$0xf]
      %v6466 = vld [vmem:[#allocation3 + $0x2d0] sm:$0xff]
      %v6467 = vld [vmem:[#allocation3 + $0x2d8] sm:$0xff]
      %v6468 = vld [vmem:[#allocation3 + $0x2e0] sm:$0xff]
      %v6469 = vld [vmem:[#allocation3 + $0x2e8] sm:$0xff]
      %v6470 = vld [vmem:[#allocation3 + $0x2f0] sm:$0xf]
      %v6471 = vld [vmem:[#allocation3 + $0x2f4] sm:$0xff]
      %v6472 = vld [vmem:[#allocation3 + $0x2fc] sm:$0xff]
      %v6473 = vld [vmem:[#allocation3 + $0x304] sm:$0xff]
      %v6474 = vld [vmem:[#allocation3 + $0x30c] sm:$0xff]
      %v6475 = vld [vmem:[#allocation3 + $0x314] sm:$0xf]
      %v6476 = vld [vmem:[#allocation3 + $0x318] sm:$0xff]
      %v6477 = vld [vmem:[#allocation3 + $0x320] sm:$0xff]
      %v6478 = vld [vmem:[#allocation3 + $0x328] sm:$0xff]
      %v6479 = vld [vmem:[#allocation3 + $0x330] sm:$0xff]
      %v6480 = vld [vmem:[#allocation3 + $0x338] sm:$0xf]
      %v6481 = vld [vmem:[#allocation3 + $0x33c] sm:$0xff]
      %v6482 = vld [vmem:[#allocation3 + $0x344] sm:$0xff]
      %v6483 = vld [vmem:[#allocation3 + $0x34c] sm:$0xff]
      %v6484 = vld [vmem:[#allocation3 + $0x354] sm:$0xff]
      %v6485 = vld [vmem:[#allocation3 + $0x35c] sm:$0xf]
      %v6486 = vld [vmem:[#allocation3 + $0x360] sm:$0xff]
      %v6487 = vld [vmem:[#allocation3 + $0x368] sm:$0xff]
      %v6488 = vld [vmem:[#allocation3 + $0x370] sm:$0xff]
      %v6489 = vld [vmem:[#allocation3 + $0x378] sm:$0xff]
      %v6490 = vld [vmem:[#allocation3 + $0x380] sm:$0xf]
      %v6491 = vld [vmem:[#allocation3 + $0x384] sm:$0xff]
      %v6492 = vld [vmem:[#allocation3 + $0x38c] sm:$0xff]
      %v6493 = vld [vmem:[#allocation3 + $0x394] sm:$0xff]
      %v6494 = vld [vmem:[#allocation3 + $0x39c] sm:$0xff]
      %v6495 = vld [vmem:[#allocation3 + $0x3a4] sm:$0xf]
      %v6496 = vld [vmem:[#allocation3 + $0x3a8] sm:$0xff]
      %v6497 = vld [vmem:[#allocation3 + $0x3b0] sm:$0xff]
      %v6498 = vld [vmem:[#allocation3 + $0x3b8] sm:$0xff]
      %v6499 = vld [vmem:[#allocation3 + $0x3c0] sm:$0xff]
      %v6500 = vld [vmem:[#allocation3 + $0x3c8] sm:$0xf]
      %v6501 = vld [vmem:[#allocation3 + $0x3cc] sm:$0xff]
      %v6502 = vld [vmem:[#allocation3 + $0x3d4] sm:$0xff]
      %v6503 = vld [vmem:[#allocation3 + $0x3dc] sm:$0xff]
      %v6504 = vld [vmem:[#allocation3 + $0x3e4] sm:$0xff]
      %v6505 = vld [vmem:[#allocation3 + $0x3ec] sm:$0xf]
      %v6506 = vld [vmem:[#allocation3 + $0x3f0] sm:$0xff]
      %v6507 = vld [vmem:[#allocation3 + $0x3f8] sm:$0xff]
      %v6508 = vld [vmem:[#allocation3 + $0x400] sm:$0xff]
      %v6509 = vld [vmem:[#allocation3 + $0x408] sm:$0xff]
      %v6510 = vld [vmem:[#allocation3 + $0x410] sm:$0xf]
      %v6511 = vld [vmem:[#allocation3 + $0x414] sm:$0xff]
      %v6512 = vld [vmem:[#allocation3 + $0x41c] sm:$0xff]
      %v6513 = vld [vmem:[#allocation3 + $0x424] sm:$0xff]
      %v6514 = vld [vmem:[#allocation3 + $0x42c] sm:$0xff]
      %v6515 = vld [vmem:[#allocation3 + $0x434] sm:$0xf]
      %v6516 = vld [vmem:[#allocation3 + $0x438] sm:$0xff]
      %v6517 = vld [vmem:[#allocation3 + $0x440] sm:$0xff]
      %v6518 = vld [vmem:[#allocation3 + $0x448] sm:$0xff]
      %v6519 = vld [vmem:[#allocation3 + $0x450] sm:$0xff]
      %v6520 = vld [vmem:[#allocation3 + $0x458] sm:$0xf]
      %v6521 = vld [vmem:[#allocation3 + $0x45c] sm:$0xff]
      %v6522 = vld [vmem:[#allocation3 + $0x464] sm:$0xff]
      %v6523 = vld [vmem:[#allocation3 + $0x46c] sm:$0xff]
      %v6524 = vld [vmem:[#allocation3 + $0x474] sm:$0xff]
      %v6525 = vld [vmem:[#allocation3 + $0x47c] sm:$0xf]
      %v6526 = vld [vmem:[#allocation3 + $0x480] sm:$0xff]
      %v6527 = vld [vmem:[#allocation3 + $0x488] sm:$0xff]
      %v6528 = vld [vmem:[#allocation3 + $0x490] sm:$0xff]
      %v6529 = vld [vmem:[#allocation3 + $0x498] sm:$0xff]
      %v6530 = vld [vmem:[#allocation3 + $0x4a0] sm:$0xf]
      %v6531 = vld [vmem:[#allocation3 + $0x4a4] sm:$0xff]
      %v6532 = vld [vmem:[#allocation3 + $0x4ac] sm:$0xff]
      %v6533 = vld [vmem:[#allocation3 + $0x4b4] sm:$0xff]
      %v6534 = vld [vmem:[#allocation3 + $0x4bc] sm:$0xff]
      %v6535 = vld [vmem:[#allocation3 + $0x4c4] sm:$0xf]
      %v6536 = vld [vmem:[#allocation3 + $0x4c8] sm:$0xff]
      %v6537 = vld [vmem:[#allocation3 + $0x4d0] sm:$0xff]
      %v6538 = vld [vmem:[#allocation3 + $0x4d8] sm:$0xff]
      %v6539 = vld [vmem:[#allocation3 + $0x4e0] sm:$0xff]
      %v6540 = vld [vmem:[#allocation3 + $0x4e8] sm:$0xf]
      %v6541 = vld [vmem:[#allocation3 + $0x4ec] sm:$0xff]
      %v6542 = vld [vmem:[#allocation3 + $0x4f4] sm:$0xff]
      %v6543 = vld [vmem:[#allocation3 + $0x4fc] sm:$0xff]
      %v6544 = vld [vmem:[#allocation3 + $0x504] sm:$0xff]
      %v6545 = vld [vmem:[#allocation3 + $0x50c] sm:$0xf]
      %v6546 = vld [vmem:[#allocation3 + $0x510] sm:$0xff]
      %v6547 = vld [vmem:[#allocation3 + $0x518] sm:$0xff]
      %v6548 = vld [vmem:[#allocation3 + $0x520] sm:$0xff]
      %v6549 = vld [vmem:[#allocation3 + $0x528] sm:$0xff]
      %v6550 = vld [vmem:[#allocation3 + $0x530] sm:$0xf]
      %v6551 = vld [vmem:[#allocation3 + $0x534] sm:$0xff]
      %v6552 = vld [vmem:[#allocation3 + $0x53c] sm:$0xff]
      %v6553 = vld [vmem:[#allocation3 + $0x544] sm:$0xff]
      %v6554 = vld [vmem:[#allocation3 + $0x54c] sm:$0xff]
      %v6555 = vld [vmem:[#allocation3 + $0x554] sm:$0xf]
      %v6556 = vld [vmem:[#allocation3 + $0x558] sm:$0xff]
      %v6557 = vld [vmem:[#allocation3 + $0x560] sm:$0xff]
      %v6558 = vld [vmem:[#allocation3 + $0x568] sm:$0xff]
      %v6559 = vld [vmem:[#allocation3 + $0x570] sm:$0xff]
      %v6560 = vld [vmem:[#allocation3 + $0x578] sm:$0xf]
      %v6561 = vld [vmem:[#allocation3 + $0x57c] sm:$0xff]
      %v6562 = vld [vmem:[#allocation3 + $0x584] sm:$0xff]
      %v6563 = vld [vmem:[#allocation3 + $0x58c] sm:$0xff]
      %v6564 = vld [vmem:[#allocation3 + $0x594] sm:$0xff]
      %v6565 = vld [vmem:[#allocation3 + $0x59c] sm:$0xf]
      %v6566 = vld [vmem:[#allocation3 + $0x5a0] sm:$0xff]
      %v6567 = vld [vmem:[#allocation3 + $0x5a8] sm:$0xff]
      %v6568 = vld [vmem:[#allocation3 + $0x5b0] sm:$0xff]
      %v6569 = vld [vmem:[#allocation3 + $0x5b8] sm:$0xff]
      %v6570 = vld [vmem:[#allocation3 + $0x5c0] sm:$0xf]
      %v6571 = vld [vmem:[#allocation3 + $0x5c4] sm:$0xff]
      %v6572 = vld [vmem:[#allocation3 + $0x5cc] sm:$0xff]
      %v6573 = vld [vmem:[#allocation3 + $0x5d4] sm:$0xff]
      %v6574 = vld [vmem:[#allocation3 + $0x5dc] sm:$0xff]
      %v6575 = vld [vmem:[#allocation3 + $0x5e4] sm:$0xf]
      %v6576 = vld [vmem:[#allocation3 + $0x5e8] sm:$0xff]
      %v6577 = vld [vmem:[#allocation3 + $0x5f0] sm:$0xff]
      %v6578 = vld [vmem:[#allocation3 + $0x5f8] sm:$0xff]
      %v6579 = vld [vmem:[#allocation3 + $0x600] sm:$0xff]
      %v6580 = vld [vmem:[#allocation3 + $0x608] sm:$0xf]
      %v6581 = vld [vmem:[#allocation3 + $0x60c] sm:$0xff]
      %v6582 = vld [vmem:[#allocation3 + $0x614] sm:$0xff]
      %v6583 = vld [vmem:[#allocation3 + $0x61c] sm:$0xff]
      %v6584 = vld [vmem:[#allocation3 + $0x624] sm:$0xff]
      %v6585 = vld [vmem:[#allocation3 + $0x62c] sm:$0xf]
      %v6586 = vld [vmem:[%s3] sm:$0xf]
      %v6587 = vld [vmem:[%s3 + $0x4] sm:$0xf]
      %v6588 = vld [vmem:[%s3 + $0x8] sm:$0xf]
      %v6589 = vld [vmem:[%s3 + $0xc] sm:$0xf]
      %v6590 = vld [vmem:[%s3 + $0x10] sm:$0xf]
      %v6591 = vld [vmem:[%s3 + $0x14] sm:$0xf]
      %v6592 = vld [vmem:[%s3 + $0x18] sm:$0xf]
      %v6593 = vld [vmem:[%s3 + $0x1c] sm:$0xf]
      %v6594 = vld [vmem:[%s3 + $0x20] sm:$0xf]
      %v6595 = vld [vmem:[%s3 + $0x24] sm:$0xf]
      %v6596 = vld [vmem:[%s3 + $0x28] sm:$0xf]
      %v6597 = vld [vmem:[%s3 + $0x2c] sm:$0xf]
      %v6598 = vld [vmem:[%s3 + $0x30] sm:$0xf]
      %v6599 = vld [vmem:[%s3 + $0x34] sm:$0xf]
      %v6600 = vld [vmem:[%s3 + $0x38] sm:$0xf]
      %v6601 = vld [vmem:[%s3 + $0x3c] sm:$0xf]
      %v6602 = vld [vmem:[%s3 + $0x40] sm:$0xf]
      %v6603 = vld [vmem:[%s3 + $0x44] sm:$0xf]
      %v6604 = vld [vmem:[%s3 + $0x48] sm:$0xf]
      %v6605 = vld [vmem:[%s3 + $0x4c] sm:$0xf]
      %v6606 = vld [vmem:[%s3 + $0x50] sm:$0xf]
      %v6607 = vld [vmem:[%s3 + $0x54] sm:$0xf]
      %v6608 = vld [vmem:[%s3 + $0x58] sm:$0xf]
      %v6609 = vld [vmem:[%s3 + $0x5c] sm:$0xf]
      %v6610 = vld [vmem:[%s3 + $0x60] sm:$0xf]
      %v6611 = vld [vmem:[%s3 + $0x64] sm:$0xf]
      %v6612 = vld [vmem:[%s3 + $0x68] sm:$0xf]
      %v6613 = vld [vmem:[%s3 + $0x6c] sm:$0xf]
      %v6614 = vld [vmem:[%s3 + $0x70] sm:$0xf]
      %v6615 = vld [vmem:[%s3 + $0x74] sm:$0xf]
      %v6616 = vld [vmem:[%s3 + $0x78] sm:$0xf]
      %v6617 = vld [vmem:[%s3 + $0x7c] sm:$0xf]
      %v6618 = vld [vmem:[%s3 + $0x80] sm:$0xf]
      %v6619 = vld [vmem:[%s3 + $0x84] sm:$0xf]
      %v6620 = vld [vmem:[%s3 + $0x88] sm:$0xf]
      %v6621 = vld [vmem:[%s3 + $0x8c] sm:$0xf]
      %v6622 = vld [vmem:[%s3 + $0x90] sm:$0xf]
      %v6623 = vld [vmem:[%s3 + $0x94] sm:$0xf]
      %v6624 = vld [vmem:[%s3 + $0x98] sm:$0xf]
      %v6625 = vld [vmem:[%s3 + $0x9c] sm:$0xf]
      %v6626 = vld [vmem:[%s3 + $0xa0] sm:$0xf]
      %v6627 = vld [vmem:[%s3 + $0xa4] sm:$0xf]
      %v6628 = vld [vmem:[%s3 + $0xa8] sm:$0xf]
      %v6629 = vld [vmem:[%s3 + $0xac] sm:$0xf]
      %v6630 = vld [vmem:[%s3 + $0xb0] sm:$0xf]
      %v6631 = vld [vmem:[%s3 + $0xb4] sm:$0xf]
      %v6632 = vld [vmem:[%s3 + $0xb8] sm:$0xf]
      %v6633 = vld [vmem:[%s3 + $0xbc] sm:$0xf]
      %v6634 = vld [vmem:[%s3 + $0xc0] sm:$0xf]
      %v6635 = vld [vmem:[%s3 + $0xc4] sm:$0xf]
      %v6636 = vld [vmem:[%s3 + $0xc8] sm:$0xf]
      %v6637 = vld [vmem:[%s3 + $0xcc] sm:$0xf]
      %v6638 = vld [vmem:[%s3 + $0xd0] sm:$0xf]
      %v6639 = vld [vmem:[%s3 + $0xd4] sm:$0xf]
      %v6640 = vld [vmem:[%s3 + $0xd8] sm:$0xf]
      %v6641 = vld [vmem:[%s3 + $0xdc] sm:$0xf]
      %v6642 = vld [vmem:[%s3 + $0xe0] sm:$0xf]
      %v6643 = vld [vmem:[%s3 + $0xe4] sm:$0xf]
      %v6644 = vld [vmem:[%s3 + $0xe8] sm:$0xf]
      %v6645 = vld [vmem:[%s3 + $0xec] sm:$0xf]
      %v6646 = vld [vmem:[%s3 + $0xf0] sm:$0xf]
      %v6647 = vld [vmem:[%s3 + $0xf4] sm:$0xf]
      %v6648 = vld [vmem:[%s3 + $0xf8] sm:$0xf]
      %v6649 = vld [vmem:[%s3 + $0xfc] sm:$0xf]
      %v6650 = vld [vmem:[%s3 + $0x100] sm:$0xf]
      %v6651 = vld [vmem:[%s3 + $0x104] sm:$0xf]
      %v6652 = vld [vmem:[%s3 + $0x108] sm:$0xf]
      %v6653 = vld [vmem:[%s3 + $0x10c] sm:$0xf]
      %v6654 = vld [vmem:[%s3 + $0x110] sm:$0xf]
      %v6655 = vld [vmem:[%s3 + $0x114] sm:$0xf]
      %v6656 = vld [vmem:[%s3 + $0x118] sm:$0xf]
      %v6657 = vld [vmem:[%s3 + $0x11c] sm:$0xf]
      %v6658 = vld [vmem:[%s3 + $0x120] sm:$0xf]
      %v6659 = vld [vmem:[%s3 + $0x124] sm:$0xf]
      %v6660 = vld [vmem:[%s3 + $0x128] sm:$0xf]
      %v6661 = vld [vmem:[%s3 + $0x12c] sm:$0xf]
      %v6662 = vld [vmem:[%s3 + $0x130] sm:$0xf]
      %v6663 = vld [vmem:[%s3 + $0x134] sm:$0xf]
      %v6664 = vld [vmem:[%s3 + $0x138] sm:$0xf]
      %v6665 = vld [vmem:[%s3 + $0x13c] sm:$0xf]
      %v6666 = vld [vmem:[%s3 + $0x140] sm:$0xf]
      %v6667 = vld [vmem:[%s3 + $0x144] sm:$0xf]
      %v6668 = vld [vmem:[%s3 + $0x148] sm:$0xf]
      %v6669 = vld [vmem:[%s3 + $0x14c] sm:$0xf]
      %v6670 = vld [vmem:[%s3 + $0x150] sm:$0xf]
      %v6671 = vld [vmem:[%s3 + $0x154] sm:$0xf]
      %v6672 = vld [vmem:[%s3 + $0x158] sm:$0xf]
      %v6673 = vld [vmem:[%s3 + $0x15c] sm:$0xf]
      %v6674 = vld [vmem:[%s3 + $0x160] sm:$0xf]
      %v6675 = vld [vmem:[%s3 + $0x164] sm:$0xf]
      %v6676 = vld [vmem:[%s3 + $0x168] sm:$0xf]
      %v6677 = vld [vmem:[%s3 + $0x16c] sm:$0xf]
      %v6678 = vld [vmem:[%s3 + $0x170] sm:$0xf]
      %v6679 = vld [vmem:[%s3 + $0x174] sm:$0xf]
      %v6680 = vld [vmem:[%s3 + $0x178] sm:$0xf]
      %v6681 = vld [vmem:[%s3 + $0x17c] sm:$0xf]
      %v6682 = vld [vmem:[%s3 + $0x180] sm:$0xf]
      %v6683 = vld [vmem:[%s3 + $0x184] sm:$0xf]
      %v6684 = vld [vmem:[%s3 + $0x188] sm:$0xf]
      %v6685 = vld [vmem:[%s3 + $0x18c] sm:$0xf]
      %v6686 = vld [vmem:[%s3 + $0x190] sm:$0xf]
      %v6687 = vld [vmem:[%s3 + $0x194] sm:$0xf]
      %v6688 = vld [vmem:[%s3 + $0x198] sm:$0xf]
      %v6689 = vld [vmem:[%s3 + $0x19c] sm:$0xf]
      %v6690 = vld [vmem:[%s3 + $0x1a0] sm:$0xf]
      %v6691 = vld [vmem:[%s3 + $0x1a4] sm:$0xf]
      %v6692 = vld [vmem:[%s3 + $0x1a8] sm:$0xf]
      %v6693 = vld [vmem:[%s3 + $0x1ac] sm:$0xf]
      %v6694 = vld [vmem:[%s3 + $0x1b0] sm:$0xf]
      %v6695 = vld [vmem:[%s3 + $0x1b4] sm:$0xf]
      %v6696 = vld [vmem:[%s3 + $0x1b8] sm:$0xf]
      %v6697 = vld [vmem:[%s3 + $0x1bc] sm:$0xf]
      %v6698 = vld [vmem:[%s3 + $0x1c0] sm:$0xf]
      %v6699 = vld [vmem:[%s3 + $0x1c4] sm:$0xf]
      %v6700 = vld [vmem:[%s3 + $0x1c8] sm:$0xf]
      %v6701 = vld [vmem:[%s3 + $0x1cc] sm:$0xf]
      %v6702 = vld [vmem:[%s3 + $0x1d0] sm:$0xf]
      %v6703 = vld [vmem:[%s3 + $0x1d4] sm:$0xf]
      %v6704 = vld [vmem:[%s3 + $0x1d8] sm:$0xf]
      %v6705 = vld [vmem:[%s3 + $0x1dc] sm:$0xf]
      %v6706 = vld [vmem:[%s3 + $0x1e0] sm:$0xf]
      %v6707 = vld [vmem:[%s3 + $0x1e4] sm:$0xf]
      %v6708 = vld [vmem:[%s3 + $0x1e8] sm:$0xf]
      %v6709 = vld [vmem:[%s3 + $0x1ec] sm:$0xf]
      %v6710 = vld [vmem:[%s3 + $0x1f0] sm:$0xf]
      %v6711 = vld [vmem:[%s3 + $0x1f4] sm:$0xf]
      %v6712 = vld [vmem:[%s3 + $0x1f8] sm:$0xf]
      %v6713 = vld [vmem:[%s3 + $0x1fc] sm:$0xf]
      %v6714 = vld [vmem:[%s3 + $0x200] sm:$0xf]
      %v6715 = vld [vmem:[%s3 + $0x204] sm:$0xf]
      %v6716 = vld [vmem:[%s3 + $0x208] sm:$0xf]
      %v6717 = vld [vmem:[%s3 + $0x20c] sm:$0xf]
      %v6718 = vld [vmem:[%s3 + $0x210] sm:$0xf]
      %v6719 = vld [vmem:[%s3 + $0x214] sm:$0xf]
      %v6720 = vld [vmem:[%s3 + $0x218] sm:$0xf]
      %v6721 = vld [vmem:[%s3 + $0x21c] sm:$0xf]
      %v6722 = vld [vmem:[%s3 + $0x220] sm:$0xf]
      %v6723 = vld [vmem:[%s3 + $0x224] sm:$0xf]
      %v6724 = vld [vmem:[%s3 + $0x228] sm:$0xf]
      %v6725 = vld [vmem:[%s3 + $0x22c] sm:$0xf]
      %v6726 = vld [vmem:[%s3 + $0x230] sm:$0xf]
      %v6727 = vld [vmem:[%s3 + $0x234] sm:$0xf]
      %v6728 = vld [vmem:[%s3 + $0x238] sm:$0xf]
      %v6729 = vld [vmem:[%s3 + $0x23c] sm:$0xf]
      %v6950 = vunpack.c.l.b16 %v6366
      %v6951 = vunpack.c.h.b16 %v6366
      %v6952 = vunpack.c.l.b16 %v6367
      %v6953 = vunpack.c.h.b16 %v6367
      %v6954 = vunpack.c.l.b16 %v6368
      %v6955 = vunpack.c.h.b16 %v6368
      %v6956 = vunpack.c.l.b16 %v6369
      %v6957 = vunpack.c.h.b16 %v6369
      %v6958 = vunpack.c.l.b16 %v6370
      %v6959 = vunpack.c.l.b16 %v6371
      %v6960 = vunpack.c.h.b16 %v6371
      %v6961 = vunpack.c.l.b16 %v6372
      %v6962 = vunpack.c.h.b16 %v6372
      %v6963 = vunpack.c.l.b16 %v6373
      %v6964 = vunpack.c.h.b16 %v6373
      %v6965 = vunpack.c.l.b16 %v6374
      %v6966 = vunpack.c.h.b16 %v6374
      %v6967 = vunpack.c.l.b16 %v6375
      %v6968 = vunpack.c.l.b16 %v6376
      %v6969 = vunpack.c.h.b16 %v6376
      %v6970 = vunpack.c.l.b16 %v6377
      %v6971 = vunpack.c.h.b16 %v6377
      %v6972 = vunpack.c.l.b16 %v6378
      %v6973 = vunpack.c.h.b16 %v6378
      %v6974 = vunpack.c.l.b16 %v6379
      %v6975 = vunpack.c.h.b16 %v6379
      %v6976 = vunpack.c.l.b16 %v6380
      %v6977 = vunpack.c.l.b16 %v6381
      %v6978 = vunpack.c.h.b16 %v6381
      %v6979 = vunpack.c.l.b16 %v6382
      %v6980 = vunpack.c.h.b16 %v6382
      %v6981 = vunpack.c.l.b16 %v6383
      %v6982 = vunpack.c.h.b16 %v6383
      %v6983 = vunpack.c.l.b16 %v6384
      %v6984 = vunpack.c.h.b16 %v6384
      %v6985 = vunpack.c.l.b16 %v6385
      %v6986 = vunpack.c.l.b16 %v6386
      %v6987 = vunpack.c.h.b16 %v6386
      %v6988 = vunpack.c.l.b16 %v6387
      %v6989 = vunpack.c.h.b16 %v6387
      %v6990 = vunpack.c.l.b16 %v6388
      %v6991 = vunpack.c.h.b16 %v6388
      %v6992 = vunpack.c.l.b16 %v6389
      %v6993 = vunpack.c.h.b16 %v6389
      %v6994 = vunpack.c.l.b16 %v6390
      %v6995 = vunpack.c.l.b16 %v6391
      %v6996 = vunpack.c.h.b16 %v6391
      %v6997 = vunpack.c.l.b16 %v6392
      %v6998 = vunpack.c.h.b16 %v6392
      %v6999 = vunpack.c.l.b16 %v6393
      %v7000 = vunpack.c.h.b16 %v6393
      %v7001 = vunpack.c.l.b16 %v6394
      %v7002 = vunpack.c.h.b16 %v6394
      %v7003 = vunpack.c.l.b16 %v6395
      %v7004 = vunpack.c.l.b16 %v6396
      %v7005 = vunpack.c.h.b16 %v6396
      %v7006 = vunpack.c.l.b16 %v6397
      %v7007 = vunpack.c.h.b16 %v6397
      %v7008 = vunpack.c.l.b16 %v6398
      %v7009 = vunpack.c.h.b16 %v6398
      %v7010 = vunpack.c.l.b16 %v6399
      %v7011 = vunpack.c.h.b16 %v6399
      %v7012 = vunpack.c.l.b16 %v6400
      %v7013 = vunpack.c.l.b16 %v6401
      %v7014 = vunpack.c.h.b16 %v6401
      %v7015 = vunpack.c.l.b16 %v6402
      %v7016 = vunpack.c.h.b16 %v6402
      %v7017 = vunpack.c.l.b16 %v6403
      %v7018 = vunpack.c.h.b16 %v6403
      %v7019 = vunpack.c.l.b16 %v6404
      %v7020 = vunpack.c.h.b16 %v6404
      %v7021 = vunpack.c.l.b16 %v6405
      %v7022 = vunpack.c.l.b16 %v6406
      %v7023 = vunpack.c.h.b16 %v6406
      %v7024 = vunpack.c.l.b16 %v6407
      %v7025 = vunpack.c.h.b16 %v6407
      %v7026 = vunpack.c.l.b16 %v6408
      %v7027 = vunpack.c.h.b16 %v6408
      %v7028 = vunpack.c.l.b16 %v6409
      %v7029 = vunpack.c.h.b16 %v6409
      %v7030 = vunpack.c.l.b16 %v6410
      %v7031 = vunpack.c.l.b16 %v6411
      %v7032 = vunpack.c.h.b16 %v6411
      %v7033 = vunpack.c.l.b16 %v6412
      %v7034 = vunpack.c.h.b16 %v6412
      %v7035 = vunpack.c.l.b16 %v6413
      %v7036 = vunpack.c.h.b16 %v6413
      %v7037 = vunpack.c.l.b16 %v6414
      %v7038 = vunpack.c.h.b16 %v6414
      %v7039 = vunpack.c.l.b16 %v6415
      %v7040 = vunpack.c.l.b16 %v6416
      %v7041 = vunpack.c.h.b16 %v6416
      %v7042 = vunpack.c.l.b16 %v6417
      %v7043 = vunpack.c.h.b16 %v6417
      %v7044 = vunpack.c.l.b16 %v6418
      %v7045 = vunpack.c.h.b16 %v6418
      %v7046 = vunpack.c.l.b16 %v6419
      %v7047 = vunpack.c.h.b16 %v6419
      %v7048 = vunpack.c.l.b16 %v6420
      %v7049 = vunpack.c.l.b16 %v6421
      %v7050 = vunpack.c.h.b16 %v6421
      %v7051 = vunpack.c.l.b16 %v6422
      %v7052 = vunpack.c.h.b16 %v6422
      %v7053 = vunpack.c.l.b16 %v6423
      %v7054 = vunpack.c.h.b16 %v6423
      %v7055 = vunpack.c.l.b16 %v6424
      %v7056 = vunpack.c.h.b16 %v6424
      %v7057 = vunpack.c.l.b16 %v6425
      %v7058 = vunpack.c.l.b16 %v6426
      %v7059 = vunpack.c.h.b16 %v6426
      %v7060 = vunpack.c.l.b16 %v6427
      %v7061 = vunpack.c.h.b16 %v6427
      %v7062 = vunpack.c.l.b16 %v6428
      %v7063 = vunpack.c.h.b16 %v6428
      %v7064 = vunpack.c.l.b16 %v6429
      %v7065 = vunpack.c.h.b16 %v6429
      %v7066 = vunpack.c.l.b16 %v6430
      %v7067 = vunpack.c.l.b16 %v6431
      %v7068 = vunpack.c.h.b16 %v6431
      %v7069 = vunpack.c.l.b16 %v6432
      %v7070 = vunpack.c.h.b16 %v6432
      %v7071 = vunpack.c.l.b16 %v6433
      %v7072 = vunpack.c.h.b16 %v6433
      %v7073 = vunpack.c.l.b16 %v6434
      %v7074 = vunpack.c.h.b16 %v6434
      %v7075 = vunpack.c.l.b16 %v6435
      %v7076 = vunpack.c.l.b16 %v6436
      %v7077 = vunpack.c.h.b16 %v6436
      %v7078 = vunpack.c.l.b16 %v6437
      %v7079 = vunpack.c.h.b16 %v6437
      %v7080 = vunpack.c.l.b16 %v6438
      %v7081 = vunpack.c.h.b16 %v6438
      %v7082 = vunpack.c.l.b16 %v6439
      %v7083 = vunpack.c.h.b16 %v6439
      %v7084 = vunpack.c.l.b16 %v6440
      %v7085 = vunpack.c.l.b16 %v6441
      %v7086 = vunpack.c.h.b16 %v6441
      %v7087 = vunpack.c.l.b16 %v6442
      %v7088 = vunpack.c.h.b16 %v6442
      %v7089 = vunpack.c.l.b16 %v6443
      %v7090 = vunpack.c.h.b16 %v6443
      %v7091 = vunpack.c.l.b16 %v6444
      %v7092 = vunpack.c.h.b16 %v6444
      %v7093 = vunpack.c.l.b16 %v6445
      %v7094 = vunpack.c.l.b16 %v6446
      %v7095 = vunpack.c.h.b16 %v6446
      %v7096 = vunpack.c.l.b16 %v6447
      %v7097 = vunpack.c.h.b16 %v6447
      %v7098 = vunpack.c.l.b16 %v6448
      %v7099 = vunpack.c.h.b16 %v6448
      %v7100 = vunpack.c.l.b16 %v6449
      %v7101 = vunpack.c.h.b16 %v6449
      %v7102 = vunpack.c.l.b16 %v6450
      %v7103 = vunpack.c.l.b16 %v6451
      %v7104 = vunpack.c.h.b16 %v6451
      %v7105 = vunpack.c.l.b16 %v6452
      %v7106 = vunpack.c.h.b16 %v6452
      %v7107 = vunpack.c.l.b16 %v6453
      %v7108 = vunpack.c.h.b16 %v6453
      %v7109 = vunpack.c.l.b16 %v6454
      %v7110 = vunpack.c.h.b16 %v6454
      %v7111 = vunpack.c.l.b16 %v6455
      %v7112 = vunpack.c.l.b16 %v6456
      %v7113 = vunpack.c.h.b16 %v6456
      %v7114 = vunpack.c.l.b16 %v6457
      %v7115 = vunpack.c.h.b16 %v6457
      %v7116 = vunpack.c.l.b16 %v6458
      %v7117 = vunpack.c.h.b16 %v6458
      %v7118 = vunpack.c.l.b16 %v6459
      %v7119 = vunpack.c.h.b16 %v6459
      %v7120 = vunpack.c.l.b16 %v6460
      %v7121 = vunpack.c.l.b16 %v6461
      %v7122 = vunpack.c.h.b16 %v6461
      %v7123 = vunpack.c.l.b16 %v6462
      %v7124 = vunpack.c.h.b16 %v6462
      %v7125 = vunpack.c.l.b16 %v6463
      %v7126 = vunpack.c.h.b16 %v6463
      %v7127 = vunpack.c.l.b16 %v6464
      %v7128 = vunpack.c.h.b16 %v6464
      %v7129 = vunpack.c.l.b16 %v6465
      %v7130 = vunpack.c.l.b16 %v6466
      %v7131 = vunpack.c.h.b16 %v6466
      %v7132 = vunpack.c.l.b16 %v6467
      %v7133 = vunpack.c.h.b16 %v6467
      %v7134 = vunpack.c.l.b16 %v6468
      %v7135 = vunpack.c.h.b16 %v6468
      %v7136 = vunpack.c.l.b16 %v6469
      %v7137 = vunpack.c.h.b16 %v6469
      %v7138 = vunpack.c.l.b16 %v6470
      %v7139 = vunpack.c.l.b16 %v6471
      %v7140 = vunpack.c.h.b16 %v6471
      %v7141 = vunpack.c.l.b16 %v6472
      %v7142 = vunpack.c.h.b16 %v6472
      %v7143 = vunpack.c.l.b16 %v6473
      %v7144 = vunpack.c.h.b16 %v6473
      %v7145 = vunpack.c.l.b16 %v6474
      %v7146 = vunpack.c.h.b16 %v6474
      %v7147 = vunpack.c.l.b16 %v6475
      %v7148 = vunpack.c.l.b16 %v6476
      %v7149 = vunpack.c.h.b16 %v6476
      %v7150 = vunpack.c.l.b16 %v6477
      %v7151 = vunpack.c.h.b16 %v6477
      %v7152 = vunpack.c.l.b16 %v6478
      %v7153 = vunpack.c.h.b16 %v6478
      %v7154 = vunpack.c.l.b16 %v6479
      %v7155 = vunpack.c.h.b16 %v6479
      %v7156 = vunpack.c.l.b16 %v6480
      %v7157 = vunpack.c.l.b16 %v6481
      %v7158 = vunpack.c.h.b16 %v6481
      %v7159 = vunpack.c.l.b16 %v6482
      %v7160 = vunpack.c.h.b16 %v6482
      %v7161 = vunpack.c.l.b16 %v6483
      %v7162 = vunpack.c.h.b16 %v6483
      %v7163 = vunpack.c.l.b16 %v6484
      %v7164 = vunpack.c.h.b16 %v6484
      %v7165 = vunpack.c.l.b16 %v6485
      %v7166 = vunpack.c.l.b16 %v6486
      %v7167 = vunpack.c.h.b16 %v6486
      %v7168 = vunpack.c.l.b16 %v6487
      %v7169 = vunpack.c.h.b16 %v6487
      %v7170 = vunpack.c.l.b16 %v6488
      %v7171 = vunpack.c.h.b16 %v6488
      %v7172 = vunpack.c.l.b16 %v6489
      %v7173 = vunpack.c.h.b16 %v6489
      %v7174 = vunpack.c.l.b16 %v6490
      %v7175 = vunpack.c.l.b16 %v6491
      %v7176 = vunpack.c.h.b16 %v6491
      %v7177 = vunpack.c.l.b16 %v6492
      %v7178 = vunpack.c.h.b16 %v6492
      %v7179 = vunpack.c.l.b16 %v6493
      %v7180 = vunpack.c.h.b16 %v6493
      %v7181 = vunpack.c.l.b16 %v6494
      %v7182 = vunpack.c.h.b16 %v6494
      %v7183 = vunpack.c.l.b16 %v6495
      %v7184 = vunpack.c.l.b16 %v6496
      %v7185 = vunpack.c.h.b16 %v6496
      %v7186 = vunpack.c.l.b16 %v6497
      %v7187 = vunpack.c.h.b16 %v6497
      %v7188 = vunpack.c.l.b16 %v6498
      %v7189 = vunpack.c.h.b16 %v6498
      %v7190 = vunpack.c.l.b16 %v6499
      %v7191 = vunpack.c.h.b16 %v6499
      %v7192 = vunpack.c.l.b16 %v6500
      %v7193 = vunpack.c.l.b16 %v6501
      %v7194 = vunpack.c.h.b16 %v6501
      %v7195 = vunpack.c.l.b16 %v6502
      %v7196 = vunpack.c.h.b16 %v6502
      %v7197 = vunpack.c.l.b16 %v6503
      %v7198 = vunpack.c.h.b16 %v6503
      %v7199 = vunpack.c.l.b16 %v6504
      %v7200 = vunpack.c.h.b16 %v6504
      %v7201 = vunpack.c.l.b16 %v6505
      %v7202 = vunpack.c.l.b16 %v6506
      %v7203 = vunpack.c.h.b16 %v6506
      %v7204 = vunpack.c.l.b16 %v6507
      %v7205 = vunpack.c.h.b16 %v6507
      %v7206 = vunpack.c.l.b16 %v6508
      %v7207 = vunpack.c.h.b16 %v6508
      %v7208 = vunpack.c.l.b16 %v6509
      %v7209 = vunpack.c.h.b16 %v6509
      %v7210 = vunpack.c.l.b16 %v6510
      %v7211 = vunpack.c.l.b16 %v6511
      %v7212 = vunpack.c.h.b16 %v6511
      %v7213 = vunpack.c.l.b16 %v6512
      %v7214 = vunpack.c.h.b16 %v6512
      %v7215 = vunpack.c.l.b16 %v6513
      %v7216 = vunpack.c.h.b16 %v6513
      %v7217 = vunpack.c.l.b16 %v6514
      %v7218 = vunpack.c.h.b16 %v6514
      %v7219 = vunpack.c.l.b16 %v6515
      %v7220 = vunpack.c.l.b16 %v6516
      %v7221 = vunpack.c.h.b16 %v6516
      %v7222 = vunpack.c.l.b16 %v6517
      %v7223 = vunpack.c.h.b16 %v6517
      %v7224 = vunpack.c.l.b16 %v6518
      %v7225 = vunpack.c.h.b16 %v6518
      %v7226 = vunpack.c.l.b16 %v6519
      %v7227 = vunpack.c.h.b16 %v6519
      %v7228 = vunpack.c.l.b16 %v6520
      %v7229 = vunpack.c.l.b16 %v6521
      %v7230 = vunpack.c.h.b16 %v6521
      %v7231 = vunpack.c.l.b16 %v6522
      %v7232 = vunpack.c.h.b16 %v6522
      %v7233 = vunpack.c.l.b16 %v6523
      %v7234 = vunpack.c.h.b16 %v6523
      %v7235 = vunpack.c.l.b16 %v6524
      %v7236 = vunpack.c.h.b16 %v6524
      %v7237 = vunpack.c.l.b16 %v6525
      %v7238 = vunpack.c.l.b16 %v6526
      %v7239 = vunpack.c.h.b16 %v6526
      %v7240 = vunpack.c.l.b16 %v6527
      %v7241 = vunpack.c.h.b16 %v6527
      %v7242 = vunpack.c.l.b16 %v6528
      %v7243 = vunpack.c.h.b16 %v6528
      %v7244 = vunpack.c.l.b16 %v6529
      %v7245 = vunpack.c.h.b16 %v6529
      %v7246 = vunpack.c.l.b16 %v6530
      %v7247 = vunpack.c.l.b16 %v6531
      %v7248 = vunpack.c.h.b16 %v6531
      %v7249 = vunpack.c.l.b16 %v6532
      %v7250 = vunpack.c.h.b16 %v6532
      %v7251 = vunpack.c.l.b16 %v6533
      %v7252 = vunpack.c.h.b16 %v6533
      %v7253 = vunpack.c.l.b16 %v6534
      %v7254 = vunpack.c.h.b16 %v6534
      %v7255 = vunpack.c.l.b16 %v6535
      %v7256 = vunpack.c.l.b16 %v6536
      %v7257 = vunpack.c.h.b16 %v6536
      %v7258 = vunpack.c.l.b16 %v6537
      %v7259 = vunpack.c.h.b16 %v6537
      %v7260 = vunpack.c.l.b16 %v6538
      %v7261 = vunpack.c.h.b16 %v6538
      %v7262 = vunpack.c.l.b16 %v6539
      %v7263 = vunpack.c.h.b16 %v6539
      %v7264 = vunpack.c.l.b16 %v6540
      %v7265 = vunpack.c.l.b16 %v6541
      %v7266 = vunpack.c.h.b16 %v6541
      %v7267 = vunpack.c.l.b16 %v6542
      %v7268 = vunpack.c.h.b16 %v6542
      %v7269 = vunpack.c.l.b16 %v6543
      %v7270 = vunpack.c.h.b16 %v6543
      %v7271 = vunpack.c.l.b16 %v6544
      %v7272 = vunpack.c.h.b16 %v6544
      %v7273 = vunpack.c.l.b16 %v6545
      %v7274 = vunpack.c.l.b16 %v6546
      %v7275 = vunpack.c.h.b16 %v6546
      %v7276 = vunpack.c.l.b16 %v6547
      %v7277 = vunpack.c.h.b16 %v6547
      %v7278 = vunpack.c.l.b16 %v6548
      %v7279 = vunpack.c.h.b16 %v6548
      %v7280 = vunpack.c.l.b16 %v6549
      %v7281 = vunpack.c.h.b16 %v6549
      %v7282 = vunpack.c.l.b16 %v6550
      %v7283 = vunpack.c.l.b16 %v6551
      %v7284 = vunpack.c.h.b16 %v6551
      %v7285 = vunpack.c.l.b16 %v6552
      %v7286 = vunpack.c.h.b16 %v6552
      %v7287 = vunpack.c.l.b16 %v6553
      %v7288 = vunpack.c.h.b16 %v6553
      %v7289 = vunpack.c.l.b16 %v6554
      %v7290 = vunpack.c.h.b16 %v6554
      %v7291 = vunpack.c.l.b16 %v6555
      %v7292 = vunpack.c.l.b16 %v6556
      %v7293 = vunpack.c.h.b16 %v6556
      %v7294 = vunpack.c.l.b16 %v6557
      %v7295 = vunpack.c.h.b16 %v6557
      %v7296 = vunpack.c.l.b16 %v6558
      %v7297 = vunpack.c.h.b16 %v6558
      %v7298 = vunpack.c.l.b16 %v6559
      %v7299 = vunpack.c.h.b16 %v6559
      %v7300 = vunpack.c.l.b16 %v6560
      %v7301 = vunpack.c.l.b16 %v6561
      %v7302 = vunpack.c.h.b16 %v6561
      %v7303 = vunpack.c.l.b16 %v6562
      %v7304 = vunpack.c.h.b16 %v6562
      %v7305 = vunpack.c.l.b16 %v6563
      %v7306 = vunpack.c.h.b16 %v6563
      %v7307 = vunpack.c.l.b16 %v6564
      %v7308 = vunpack.c.h.b16 %v6564
      %v7309 = vunpack.c.l.b16 %v6565
      %v7310 = vunpack.c.l.b16 %v6566
      %v7311 = vunpack.c.h.b16 %v6566
      %v7312 = vunpack.c.l.b16 %v6567
      %v7313 = vunpack.c.h.b16 %v6567
      %v7314 = vunpack.c.l.b16 %v6568
      %v7315 = vunpack.c.h.b16 %v6568
      %v7316 = vunpack.c.l.b16 %v6569
      %v7317 = vunpack.c.h.b16 %v6569
      %v7318 = vunpack.c.l.b16 %v6570
      %v7319 = vunpack.c.l.b16 %v6571
      %v7320 = vunpack.c.h.b16 %v6571
      %v7321 = vunpack.c.l.b16 %v6572
      %v7322 = vunpack.c.h.b16 %v6572
      %v7323 = vunpack.c.l.b16 %v6573
      %v7324 = vunpack.c.h.b16 %v6573
      %v7325 = vunpack.c.l.b16 %v6574
      %v7326 = vunpack.c.h.b16 %v6574
      %v7327 = vunpack.c.l.b16 %v6575
      %v7328 = vunpack.c.l.b16 %v6576
      %v7329 = vunpack.c.h.b16 %v6576
      %v7330 = vunpack.c.l.b16 %v6577
      %v7331 = vunpack.c.h.b16 %v6577
      %v7332 = vunpack.c.l.b16 %v6578
      %v7333 = vunpack.c.h.b16 %v6578
      %v7334 = vunpack.c.l.b16 %v6579
      %v7335 = vunpack.c.h.b16 %v6579
      %v7336 = vunpack.c.l.b16 %v6580
      %v7337 = vunpack.c.l.b16 %v6581
      %v7338 = vunpack.c.h.b16 %v6581
      %v7339 = vunpack.c.l.b16 %v6582
      %v7340 = vunpack.c.h.b16 %v6582
      %v7341 = vunpack.c.l.b16 %v6583
      %v7342 = vunpack.c.h.b16 %v6583
      %v7343 = vunpack.c.l.b16 %v6584
      %v7344 = vunpack.c.h.b16 %v6584
      %v7345 = vunpack.c.l.b16 %v6585
      %v7346 = vpack.c.b16 %v6959, %v6950
      %v7347 = vpack.c.b16 %v6960, %v6951
      %v7348 = vpack.c.b16 %v6961, %v6952
      %v7349 = vpack.c.b16 %v6962, %v6953
      %v7350 = vpack.c.b16 %v6963, %v6954
      %v7351 = vpack.c.b16 %v6964, %v6955
      %v7352 = vpack.c.b16 %v6965, %v6956
      %v7353 = vpack.c.b16 %v6966, %v6957
      %v7354 = vpack.c.b16 %v6967, %v6958
      %v7355 = vpack.c.b16 %v6977, %v6968
      %v7356 = vpack.c.b16 %v6978, %v6969
      %v7357 = vpack.c.b16 %v6979, %v6970
      %v7358 = vpack.c.b16 %v6980, %v6971
      %v7359 = vpack.c.b16 %v6981, %v6972
      %v7360 = vpack.c.b16 %v6982, %v6973
      %v7361 = vpack.c.b16 %v6983, %v6974
      %v7362 = vpack.c.b16 %v6984, %v6975
      %v7363 = vpack.c.b16 %v6985, %v6976
      %v7364 = vpack.c.b16 %v6995, %v6986
      %v7365 = vpack.c.b16 %v6996, %v6987
      %v7366 = vpack.c.b16 %v6997, %v6988
      %v7367 = vpack.c.b16 %v6998, %v6989
      %v7368 = vpack.c.b16 %v6999, %v6990
      %v7369 = vpack.c.b16 %v7000, %v6991
      %v7370 = vpack.c.b16 %v7001, %v6992
      %v7371 = vpack.c.b16 %v7002, %v6993
      %v7372 = vpack.c.b16 %v7003, %v6994
      %v7373 = vpack.c.b16 %v7013, %v7004
      %v7374 = vpack.c.b16 %v7014, %v7005
      %v7375 = vpack.c.b16 %v7015, %v7006
      %v7376 = vpack.c.b16 %v7016, %v7007
      %v7377 = vpack.c.b16 %v7017, %v7008
      %v7378 = vpack.c.b16 %v7018, %v7009
      %v7379 = vpack.c.b16 %v7019, %v7010
      %v7380 = vpack.c.b16 %v7020, %v7011
      %v7381 = vpack.c.b16 %v7021, %v7012
      %v7382 = vpack.c.b16 %v7031, %v7022
      %v7383 = vpack.c.b16 %v7032, %v7023
      %v7384 = vpack.c.b16 %v7033, %v7024
      %v7385 = vpack.c.b16 %v7034, %v7025
      %v7386 = vpack.c.b16 %v7035, %v7026
      %v7387 = vpack.c.b16 %v7036, %v7027
      %v7388 = vpack.c.b16 %v7037, %v7028
      %v7389 = vpack.c.b16 %v7038, %v7029
      %v7390 = vpack.c.b16 %v7039, %v7030
      %v7391 = vpack.c.b16 %v7049, %v7040
      %v7392 = vpack.c.b16 %v7050, %v7041
      %v7393 = vpack.c.b16 %v7051, %v7042
      %v7394 = vpack.c.b16 %v7052, %v7043
      %v7395 = vpack.c.b16 %v7053, %v7044
      %v7396 = vpack.c.b16 %v7054, %v7045
      %v7397 = vpack.c.b16 %v7055, %v7046
      %v7398 = vpack.c.b16 %v7056, %v7047
      %v7399 = vpack.c.b16 %v7057, %v7048
      %v7400 = vpack.c.b16 %v7067, %v7058
      %v7401 = vpack.c.b16 %v7068, %v7059
      %v7402 = vpack.c.b16 %v7069, %v7060
      %v7403 = vpack.c.b16 %v7070, %v7061
      %v7404 = vpack.c.b16 %v7071, %v7062
      %v7405 = vpack.c.b16 %v7072, %v7063
      %v7406 = vpack.c.b16 %v7073, %v7064
      %v7407 = vpack.c.b16 %v7074, %v7065
      %v7408 = vpack.c.b16 %v7075, %v7066
      %v7409 = vpack.c.b16 %v7085, %v7076
      %v7410 = vpack.c.b16 %v7086, %v7077
      %v7411 = vpack.c.b16 %v7087, %v7078
      %v7412 = vpack.c.b16 %v7088, %v7079
      %v7413 = vpack.c.b16 %v7089, %v7080
      %v7414 = vpack.c.b16 %v7090, %v7081
      %v7415 = vpack.c.b16 %v7091, %v7082
      %v7416 = vpack.c.b16 %v7092, %v7083
      %v7417 = vpack.c.b16 %v7093, %v7084
      %v7418 = vpack.c.b16 %v7103, %v7094
      %v7419 = vpack.c.b16 %v7104, %v7095
      %v7420 = vpack.c.b16 %v7105, %v7096
      %v7421 = vpack.c.b16 %v7106, %v7097
      %v7422 = vpack.c.b16 %v7107, %v7098
      %v7423 = vpack.c.b16 %v7108, %v7099
      %v7424 = vpack.c.b16 %v7109, %v7100
      %v7425 = vpack.c.b16 %v7110, %v7101
      %v7426 = vpack.c.b16 %v7111, %v7102
      %v7427 = vpack.c.b16 %v7121, %v7112
      %v7428 = vpack.c.b16 %v7122, %v7113
      %v7429 = vpack.c.b16 %v7123, %v7114
      %v7430 = vpack.c.b16 %v7124, %v7115
      %v7431 = vpack.c.b16 %v7125, %v7116
      %v7432 = vpack.c.b16 %v7126, %v7117
      %v7433 = vpack.c.b16 %v7127, %v7118
      %v7434 = vpack.c.b16 %v7128, %v7119
      %v7435 = vpack.c.b16 %v7129, %v7120
      %v7436 = vpack.c.b16 %v7139, %v7130
      %v7437 = vpack.c.b16 %v7140, %v7131
      %v7438 = vpack.c.b16 %v7141, %v7132
      %v7439 = vpack.c.b16 %v7142, %v7133
      %v7440 = vpack.c.b16 %v7143, %v7134
      %v7441 = vpack.c.b16 %v7144, %v7135
      %v7442 = vpack.c.b16 %v7145, %v7136
      %v7443 = vpack.c.b16 %v7146, %v7137
      %v7444 = vpack.c.b16 %v7147, %v7138
      %v7445 = vpack.c.b16 %v7157, %v7148
      %v7446 = vpack.c.b16 %v7158, %v7149
      %v7447 = vpack.c.b16 %v7159, %v7150
      %v7448 = vpack.c.b16 %v7160, %v7151
      %v7449 = vpack.c.b16 %v7161, %v7152
      %v7450 = vpack.c.b16 %v7162, %v7153
      %v7451 = vpack.c.b16 %v7163, %v7154
      %v7452 = vpack.c.b16 %v7164, %v7155
      %v7453 = vpack.c.b16 %v7165, %v7156
      %v7454 = vpack.c.b16 %v7175, %v7166
      %v7455 = vpack.c.b16 %v7176, %v7167
      %v7456 = vpack.c.b16 %v7177, %v7168
      %v7457 = vpack.c.b16 %v7178, %v7169
      %v7458 = vpack.c.b16 %v7179, %v7170
      %v7459 = vpack.c.b16 %v7180, %v7171
      %v7460 = vpack.c.b16 %v7181, %v7172
      %v7461 = vpack.c.b16 %v7182, %v7173
      %v7462 = vpack.c.b16 %v7183, %v7174
      %v7463 = vpack.c.b16 %v7193, %v7184
      %v7464 = vpack.c.b16 %v7194, %v7185
      %v7465 = vpack.c.b16 %v7195, %v7186
      %v7466 = vpack.c.b16 %v7196, %v7187
      %v7467 = vpack.c.b16 %v7197, %v7188
      %v7468 = vpack.c.b16 %v7198, %v7189
      %v7469 = vpack.c.b16 %v7199, %v7190
      %v7470 = vpack.c.b16 %v7200, %v7191
      %v7471 = vpack.c.b16 %v7201, %v7192
      %v7472 = vpack.c.b16 %v7211, %v7202
      %v7473 = vpack.c.b16 %v7212, %v7203
      %v7474 = vpack.c.b16 %v7213, %v7204
      %v7475 = vpack.c.b16 %v7214, %v7205
      %v7476 = vpack.c.b16 %v7215, %v7206
      %v7477 = vpack.c.b16 %v7216, %v7207
      %v7478 = vpack.c.b16 %v7217, %v7208
      %v7479 = vpack.c.b16 %v7218, %v7209
      %v7480 = vpack.c.b16 %v7219, %v7210
      %v7481 = vpack.c.b16 %v7229, %v7220
      %v7482 = vpack.c.b16 %v7230, %v7221
      %v7483 = vpack.c.b16 %v7231, %v7222
      %v7484 = vpack.c.b16 %v7232, %v7223
      %v7485 = vpack.c.b16 %v7233, %v7224
      %v7486 = vpack.c.b16 %v7234, %v7225
      %v7487 = vpack.c.b16 %v7235, %v7226
      %v7488 = vpack.c.b16 %v7236, %v7227
      %v7489 = vpack.c.b16 %v7237, %v7228
      %v7490 = vpack.c.b16 %v7247, %v7238
      %v7491 = vpack.c.b16 %v7248, %v7239
      %v7492 = vpack.c.b16 %v7249, %v7240
      %v7493 = vpack.c.b16 %v7250, %v7241
      %v7494 = vpack.c.b16 %v7251, %v7242
      %v7495 = vpack.c.b16 %v7252, %v7243
      %v7496 = vpack.c.b16 %v7253, %v7244
      %v7497 = vpack.c.b16 %v7254, %v7245
      %v7498 = vpack.c.b16 %v7255, %v7246
      %v7499 = vpack.c.b16 %v7265, %v7256
      %v7500 = vpack.c.b16 %v7266, %v7257
      %v7501 = vpack.c.b16 %v7267, %v7258
      %v7502 = vpack.c.b16 %v7268, %v7259
      %v7503 = vpack.c.b16 %v7269, %v7260
      %v7504 = vpack.c.b16 %v7270, %v7261
      %v7505 = vpack.c.b16 %v7271, %v7262
      %v7506 = vpack.c.b16 %v7272, %v7263
      %v7507 = vpack.c.b16 %v7273, %v7264
      %v7508 = vpack.c.b16 %v7283, %v7274
      %v7509 = vpack.c.b16 %v7284, %v7275
      %v7510 = vpack.c.b16 %v7285, %v7276
      %v7511 = vpack.c.b16 %v7286, %v7277
      %v7512 = vpack.c.b16 %v7287, %v7278
      %v7513 = vpack.c.b16 %v7288, %v7279
      %v7514 = vpack.c.b16 %v7289, %v7280
      %v7515 = vpack.c.b16 %v7290, %v7281
      %v7516 = vpack.c.b16 %v7291, %v7282
      %v7517 = vpack.c.b16 %v7301, %v7292
      %v7518 = vpack.c.b16 %v7302, %v7293
      %v7519 = vpack.c.b16 %v7303, %v7294
      %v7520 = vpack.c.b16 %v7304, %v7295
      %v7521 = vpack.c.b16 %v7305, %v7296
      %v7522 = vpack.c.b16 %v7306, %v7297
      %v7523 = vpack.c.b16 %v7307, %v7298
      %v7524 = vpack.c.b16 %v7308, %v7299
      %v7525 = vpack.c.b16 %v7309, %v7300
      %v7526 = vpack.c.b16 %v7319, %v7310
      %v7527 = vpack.c.b16 %v7320, %v7311
      %v7528 = vpack.c.b16 %v7321, %v7312
      %v7529 = vpack.c.b16 %v7322, %v7313
      %v7530 = vpack.c.b16 %v7323, %v7314
      %v7531 = vpack.c.b16 %v7324, %v7315
      %v7532 = vpack.c.b16 %v7325, %v7316
      %v7533 = vpack.c.b16 %v7326, %v7317
      %v7534 = vpack.c.b16 %v7327, %v7318
      %v7535 = vpack.c.b16 %v7337, %v7328
      %v7536 = vpack.c.b16 %v7338, %v7329
      %v7537 = vpack.c.b16 %v7339, %v7330
      %v7538 = vpack.c.b16 %v7340, %v7331
      %v7539 = vpack.c.b16 %v7341, %v7332
      %v7540 = vpack.c.b16 %v7342, %v7333
      %v7541 = vpack.c.b16 %v7343, %v7334
      %v7542 = vpack.c.b16 %v7344, %v7335
      %v7543 = vpack.c.b16 %v7345, %v7336
      %v7886 = vunpack.c.l.b16 %v6586
      %v7887 = vunpack.c.l.b16 %v6587
      %v7888 = vunpack.c.l.b16 %v6588
      %v7889 = vunpack.c.l.b16 %v6589
      %v7890 = vunpack.c.l.b16 %v6590
      %v7891 = vunpack.c.l.b16 %v6591
      %v7892 = vunpack.c.l.b16 %v6592
      %v7893 = vunpack.c.l.b16 %v6593
      %v7894 = vunpack.c.l.b16 %v6594
      %v7895 = vunpack.c.l.b16 %v6595
      %v7896 = vunpack.c.l.b16 %v6596
      %v7897 = vunpack.c.l.b16 %v6597
      %v7898 = vunpack.c.l.b16 %v6598
      %v7899 = vunpack.c.l.b16 %v6599
      %v7900 = vunpack.c.l.b16 %v6600
      %v7901 = vunpack.c.l.b16 %v6601
      %v7902 = vunpack.c.l.b16 %v6602
      %v7903 = vunpack.c.l.b16 %v6603
      %v7904 = vunpack.c.l.b16 %v6604
      %v7905 = vunpack.c.l.b16 %v6605
      %v7906 = vunpack.c.l.b16 %v6606
      %v7907 = vunpack.c.l.b16 %v6607
      %v7908 = vunpack.c.l.b16 %v6608
      %v7909 = vunpack.c.l.b16 %v6609
      %v7910 = vunpack.c.l.b16 %v6610
      %v7911 = vunpack.c.l.b16 %v6611
      %v7912 = vunpack.c.l.b16 %v6612
      %v7913 = vunpack.c.l.b16 %v6613
      %v7914 = vunpack.c.l.b16 %v6614
      %v7915 = vunpack.c.l.b16 %v6615
      %v7916 = vunpack.c.l.b16 %v6616
      %v7917 = vunpack.c.l.b16 %v6617
      %v7918 = vunpack.c.l.b16 %v6618
      %v7919 = vunpack.c.l.b16 %v6619
      %v7920 = vunpack.c.l.b16 %v6620
      %v7921 = vunpack.c.l.b16 %v6621
      %v7922 = vunpack.c.l.b16 %v6622
      %v7923 = vunpack.c.l.b16 %v6623
      %v7924 = vunpack.c.l.b16 %v6624
      %v7925 = vunpack.c.l.b16 %v6625
      %v7926 = vunpack.c.l.b16 %v6626
      %v7927 = vunpack.c.l.b16 %v6627
      %v7928 = vunpack.c.l.b16 %v6628
      %v7929 = vunpack.c.l.b16 %v6629
      %v7930 = vunpack.c.l.b16 %v6630
      %v7931 = vunpack.c.l.b16 %v6631
      %v7932 = vunpack.c.l.b16 %v6632
      %v7933 = vunpack.c.l.b16 %v6633
      %v7934 = vunpack.c.l.b16 %v6634
      %v7935 = vunpack.c.l.b16 %v6635
      %v7936 = vunpack.c.l.b16 %v6636
      %v7937 = vunpack.c.l.b16 %v6637
      %v7938 = vunpack.c.l.b16 %v6638
      %v7939 = vunpack.c.l.b16 %v6639
      %v7940 = vunpack.c.l.b16 %v6640
      %v7941 = vunpack.c.l.b16 %v6641
      %v7942 = vunpack.c.l.b16 %v6642
      %v7943 = vunpack.c.l.b16 %v6643
      %v7944 = vunpack.c.l.b16 %v6644
      %v7945 = vunpack.c.l.b16 %v6645
      %v7946 = vunpack.c.l.b16 %v6646
      %v7947 = vunpack.c.l.b16 %v6647
      %v7948 = vunpack.c.l.b16 %v6648
      %v7949 = vunpack.c.l.b16 %v6649
      %v7950 = vunpack.c.l.b16 %v6650
      %v7951 = vunpack.c.l.b16 %v6651
      %v7952 = vunpack.c.l.b16 %v6652
      %v7953 = vunpack.c.l.b16 %v6653
      %v7954 = vunpack.c.l.b16 %v6654
      %v7955 = vunpack.c.l.b16 %v6655
      %v7956 = vunpack.c.l.b16 %v6656
      %v7957 = vunpack.c.l.b16 %v6657
      %v7958 = vunpack.c.l.b16 %v6658
      %v7959 = vunpack.c.l.b16 %v6659
      %v7960 = vunpack.c.l.b16 %v6660
      %v7961 = vunpack.c.l.b16 %v6661
      %v7962 = vunpack.c.l.b16 %v6662
      %v7963 = vunpack.c.l.b16 %v6663
      %v7964 = vunpack.c.l.b16 %v6664
      %v7965 = vunpack.c.l.b16 %v6665
      %v7966 = vunpack.c.l.b16 %v6666
      %v7967 = vunpack.c.l.b16 %v6667
      %v7968 = vunpack.c.l.b16 %v6668
      %v7969 = vunpack.c.l.b16 %v6669
      %v7970 = vunpack.c.l.b16 %v6670
      %v7971 = vunpack.c.l.b16 %v6671
      %v7972 = vunpack.c.l.b16 %v6672
      %v7973 = vunpack.c.l.b16 %v6673
      %v7974 = vunpack.c.l.b16 %v6674
      %v7975 = vunpack.c.l.b16 %v6675
      %v7976 = vunpack.c.l.b16 %v6676
      %v7977 = vunpack.c.l.b16 %v6677
      %v7978 = vunpack.c.l.b16 %v6678
      %v7979 = vunpack.c.l.b16 %v6679
      %v7980 = vunpack.c.l.b16 %v6680
      %v7981 = vunpack.c.l.b16 %v6681
      %v7982 = vunpack.c.l.b16 %v6682
      %v7983 = vunpack.c.l.b16 %v6683
      %v7984 = vunpack.c.l.b16 %v6684
      %v7985 = vunpack.c.l.b16 %v6685
      %v7986 = vunpack.c.l.b16 %v6686
      %v7987 = vunpack.c.l.b16 %v6687
      %v7988 = vunpack.c.l.b16 %v6688
      %v7989 = vunpack.c.l.b16 %v6689
      %v7990 = vunpack.c.l.b16 %v6690
      %v7991 = vunpack.c.l.b16 %v6691
      %v7992 = vunpack.c.l.b16 %v6692
      %v7993 = vunpack.c.l.b16 %v6693
      %v7994 = vunpack.c.l.b16 %v6694
      %v7995 = vunpack.c.l.b16 %v6695
      %v7996 = vunpack.c.l.b16 %v6696
      %v7997 = vunpack.c.l.b16 %v6697
      %v7998 = vunpack.c.l.b16 %v6698
      %v7999 = vunpack.c.l.b16 %v6699
      %v8000 = vunpack.c.l.b16 %v6700
      %v8001 = vunpack.c.l.b16 %v6701
      %v8002 = vunpack.c.l.b16 %v6702
      %v8003 = vunpack.c.l.b16 %v6703
      %v8004 = vunpack.c.l.b16 %v6704
      %v8005 = vunpack.c.l.b16 %v6705
      %v8006 = vunpack.c.l.b16 %v6706
      %v8007 = vunpack.c.l.b16 %v6707
      %v8008 = vunpack.c.l.b16 %v6708
      %v8009 = vunpack.c.l.b16 %v6709
      %v8010 = vunpack.c.l.b16 %v6710
      %v8011 = vunpack.c.l.b16 %v6711
      %v8012 = vunpack.c.l.b16 %v6712
      %v8013 = vunpack.c.l.b16 %v6713
      %v8014 = vunpack.c.l.b16 %v6714
      %v8015 = vunpack.c.l.b16 %v6715
      %v8016 = vunpack.c.l.b16 %v6716
      %v8017 = vunpack.c.l.b16 %v6717
      %v8018 = vunpack.c.l.b16 %v6718
      %v8019 = vunpack.c.l.b16 %v6719
      %v8020 = vunpack.c.l.b16 %v6720
      %v8021 = vunpack.c.l.b16 %v6721
      %v8022 = vunpack.c.l.b16 %v6722
      %v8023 = vunpack.c.l.b16 %v6723
      %v8024 = vunpack.c.l.b16 %v6724
      %v8025 = vunpack.c.l.b16 %v6725
      %v8026 = vunpack.c.l.b16 %v6726
      %v8027 = vunpack.c.l.b16 %v6727
      %v8028 = vunpack.c.l.b16 %v6728
      %v8029 = vunpack.c.l.b16 %v6729
      %v8030 = vpack.c.b16 %v7887, %v7886
      %v8031 = vpack.c.b16 %v7889, %v7888
      %v8032 = vpack.c.b16 %v7891, %v7890
      %v8033 = vpack.c.b16 %v7893, %v7892
      %v8034 = vpack.c.b16 %v7895, %v7894
      %v8035 = vpack.c.b16 %v7897, %v7896
      %v8036 = vpack.c.b16 %v7899, %v7898
      %v8037 = vpack.c.b16 %v7901, %v7900
      %v8038 = vpack.c.b16 %v7903, %v7902
      %v8039 = vpack.c.b16 %v7905, %v7904
      %v8040 = vpack.c.b16 %v7907, %v7906
      %v8041 = vpack.c.b16 %v7909, %v7908
      %v8042 = vpack.c.b16 %v7911, %v7910
      %v8043 = vpack.c.b16 %v7913, %v7912
      %v8044 = vpack.c.b16 %v7915, %v7914
      %v8045 = vpack.c.b16 %v7917, %v7916
      %v8046 = vpack.c.b16 %v7919, %v7918
      %v8047 = vpack.c.b16 %v7921, %v7920
      %v8048 = vpack.c.b16 %v7923, %v7922
      %v8049 = vpack.c.b16 %v7925, %v7924
      %v8050 = vpack.c.b16 %v7927, %v7926
      %v8051 = vpack.c.b16 %v7929, %v7928
      %v8052 = vpack.c.b16 %v7931, %v7930
      %v8053 = vpack.c.b16 %v7933, %v7932
      %v8054 = vpack.c.b16 %v7935, %v7934
      %v8055 = vpack.c.b16 %v7937, %v7936
      %v8056 = vpack.c.b16 %v7939, %v7938
      %v8057 = vpack.c.b16 %v7941, %v7940
      %v8058 = vpack.c.b16 %v7943, %v7942
      %v8059 = vpack.c.b16 %v7945, %v7944
      %v8060 = vpack.c.b16 %v7947, %v7946
      %v8061 = vpack.c.b16 %v7949, %v7948
      %v8062 = vpack.c.b16 %v7951, %v7950
      %v8063 = vpack.c.b16 %v7953, %v7952
      %v8064 = vpack.c.b16 %v7955, %v7954
      %v8065 = vpack.c.b16 %v7957, %v7956
      %v8066 = vpack.c.b16 %v7959, %v7958
      %v8067 = vpack.c.b16 %v7961, %v7960
      %v8068 = vpack.c.b16 %v7963, %v7962
      %v8069 = vpack.c.b16 %v7965, %v7964
      %v8070 = vpack.c.b16 %v7967, %v7966
      %v8071 = vpack.c.b16 %v7969, %v7968
      %v8072 = vpack.c.b16 %v7971, %v7970
      %v8073 = vpack.c.b16 %v7973, %v7972
      %v8074 = vpack.c.b16 %v7975, %v7974
      %v8075 = vpack.c.b16 %v7977, %v7976
      %v8076 = vpack.c.b16 %v7979, %v7978
      %v8077 = vpack.c.b16 %v7981, %v7980
      %v8078 = vpack.c.b16 %v7983, %v7982
      %v8079 = vpack.c.b16 %v7985, %v7984
      %v8080 = vpack.c.b16 %v7987, %v7986
      %v8081 = vpack.c.b16 %v7989, %v7988
      %v8082 = vpack.c.b16 %v7991, %v7990
      %v8083 = vpack.c.b16 %v7993, %v7992
      %v8084 = vpack.c.b16 %v7995, %v7994
      %v8085 = vpack.c.b16 %v7997, %v7996
      %v8086 = vpack.c.b16 %v7999, %v7998
      %v8087 = vpack.c.b16 %v8001, %v8000
      %v8088 = vpack.c.b16 %v8003, %v8002
      %v8089 = vpack.c.b16 %v8005, %v8004
      %v8090 = vpack.c.b16 %v8007, %v8006
      %v8091 = vpack.c.b16 %v8009, %v8008
      %v8092 = vpack.c.b16 %v8011, %v8010
      %v8093 = vpack.c.b16 %v8013, %v8012
      %v8094 = vpack.c.b16 %v8015, %v8014
      %v8095 = vpack.c.b16 %v8017, %v8016
      %v8096 = vpack.c.b16 %v8019, %v8018
      %v8097 = vpack.c.b16 %v8021, %v8020
      %v8098 = vpack.c.b16 %v8023, %v8022
      %v8099 = vpack.c.b16 %v8025, %v8024
      %v8100 = vpack.c.b16 %v8027, %v8026
      %v8101 = vpack.c.b16 %v8029, %v8028
      %8174 = vmatpush.bf16.msra.mxu0 %v8037
      %8175 = vmatpush.bf16.msra.mxu0 %v8036
      %8176 = vmatpush.bf16.msra.mxu0 %v8035
      %8177 = vmatpush.bf16.msra.mxu0 %v8034
      %8178 = vmatpush.bf16.msra.mxu0 %v8033
      %8179 = vmatpush.bf16.msra.mxu0 %v8032
      %8180 = vmatpush.bf16.msra.mxu0 %v8031
      %8181 = vmatpush.bf16.msra.mxu0 %v8030
      %8182 = vmatmul.bf16.gmra.mxu0 %v7346
      %v8183 = vpop.f32.mrf.mxu0
      %v8184 = vadd.f32 0.0, %v8183
      %v8185 = vpop.f32.mrf.mxu0
      %v8186 = vadd.f32 0.0, %v8185
      %8187 = vmatmul.bf16.gmra.mxu0 %v7355
      %v8188 = vpop.f32.mrf.mxu0
      %v8189 = vadd.f32 0.0, %v8188
      %v8190 = vpop.f32.mrf.mxu0
      %v8191 = vadd.f32 0.0, %v8190
      %8192 = vmatmul.bf16.gmra.mxu0 %v7364
      %v8193 = vpop.f32.mrf.mxu0
      %v8194 = vadd.f32 0.0, %v8193
      %v8195 = vpop.f32.mrf.mxu0
      %v8196 = vadd.f32 0.0, %v8195
      %8197 = vmatmul.bf16.gmra.mxu0 %v7373
      %v8198 = vpop.f32.mrf.mxu0
      %v8199 = vadd.f32 0.0, %v8198
      %v8200 = vpop.f32.mrf.mxu0
      %v8201 = vadd.f32 0.0, %v8200
      %8202 = vmatmul.bf16.gmra.mxu0 %v7382
      %v8203 = vpop.f32.mrf.mxu0
      %v8204 = vadd.f32 0.0, %v8203
      %v8205 = vpop.f32.mrf.mxu0
      %v8206 = vadd.f32 0.0, %v8205
      %8207 = vmatmul.bf16.gmra.mxu0 %v7391
      %v8208 = vpop.f32.mrf.mxu0
      %v8209 = vadd.f32 0.0, %v8208
      %v8210 = vpop.f32.mrf.mxu0
      %v8211 = vadd.f32 0.0, %v8210
      %8212 = vmatmul.bf16.gmra.mxu0 %v7400
      %v8213 = vpop.f32.mrf.mxu0
      %v8214 = vadd.f32 0.0, %v8213
      %v8215 = vpop.f32.mrf.mxu0
      %v8216 = vadd.f32 0.0, %v8215
      %8217 = vmatmul.bf16.gmra.mxu0 %v7409
      %v8218 = vpop.f32.mrf.mxu0
      %v8219 = vadd.f32 0.0, %v8218
      %v8220 = vpop.f32.mrf.mxu0
      %v8221 = vadd.f32 0.0, %v8220
      %8222 = vmatmul.bf16.gmra.mxu0 %v7418
      %v8223 = vpop.f32.mrf.mxu0
      %v8224 = vadd.f32 0.0, %v8223
      %v8225 = vpop.f32.mrf.mxu0
      %v8226 = vadd.f32 0.0, %v8225
      %8227 = vmatmul.bf16.gmra.mxu0 %v7427
      %v8228 = vpop.f32.mrf.mxu0
      %v8229 = vadd.f32 0.0, %v8228
      %v8230 = vpop.f32.mrf.mxu0
      %v8231 = vadd.f32 0.0, %v8230
      %8232 = vmatmul.bf16.gmra.mxu0 %v7436
      %v8233 = vpop.f32.mrf.mxu0
      %v8234 = vadd.f32 0.0, %v8233
      %v8235 = vpop.f32.mrf.mxu0
      %v8236 = vadd.f32 0.0, %v8235
      %8237 = vmatmul.bf16.gmra.mxu0 %v7445
      %v8238 = vpop.f32.mrf.mxu0
      %v8239 = vadd.f32 0.0, %v8238
      %v8240 = vpop.f32.mrf.mxu0
      %v8241 = vadd.f32 0.0, %v8240
      %8242 = vmatmul.bf16.gmra.mxu0 %v7454
      %v8243 = vpop.f32.mrf.mxu0
      %v8244 = vadd.f32 0.0, %v8243
      %v8245 = vpop.f32.mrf.mxu0
      %v8246 = vadd.f32 0.0, %v8245
      %8247 = vmatmul.bf16.gmra.mxu0 %v7463
      %v8248 = vpop.f32.mrf.mxu0
      %v8249 = vadd.f32 0.0, %v8248
      %v8250 = vpop.f32.mrf.mxu0
      %v8251 = vadd.f32 0.0, %v8250
      %8252 = vmatmul.bf16.gmra.mxu0 %v7472
      %v8253 = vpop.f32.mrf.mxu0
      %v8254 = vadd.f32 0.0, %v8253
      %v8255 = vpop.f32.mrf.mxu0
      %v8256 = vadd.f32 0.0, %v8255
      %8257 = vmatmul.bf16.gmra.mxu0 %v7481
      %v8258 = vpop.f32.mrf.mxu0
      %v8259 = vadd.f32 0.0, %v8258
      %v8260 = vpop.f32.mrf.mxu0
      %v8261 = vadd.f32 0.0, %v8260
      %8262 = vmatmul.bf16.gmra.mxu0 %v7490
      %v8263 = vpop.f32.mrf.mxu0
      %v8264 = vadd.f32 0.0, %v8263
      %v8265 = vpop.f32.mrf.mxu0
      %v8266 = vadd.f32 0.0, %v8265
      %8267 = vmatmul.bf16.gmra.mxu0 %v7499
      %v8268 = vpop.f32.mrf.mxu0
      %v8269 = vadd.f32 0.0, %v8268
      %v8270 = vpop.f32.mrf.mxu0
      %v8271 = vadd.f32 0.0, %v8270
      %8272 = vmatmul.bf16.gmra.mxu0 %v7508
      %v8273 = vpop.f32.mrf.mxu0
      %v8274 = vadd.f32 0.0, %v8273
      %v8275 = vpop.f32.mrf.mxu0
      %v8276 = vadd.f32 0.0, %v8275
      %8277 = vmatmul.bf16.gmra.mxu0 %v7517
      %v8278 = vpop.f32.mrf.mxu0
      %v8279 = vadd.f32 0.0, %v8278
      %v8280 = vpop.f32.mrf.mxu0
      %v8281 = vadd.f32 0.0, %v8280
      %8282 = vmatmul.bf16.gmra.mxu0 %v7526
      %v8283 = vpop.f32.mrf.mxu0
      %v8284 = vadd.f32 0.0, %v8283
      %v8285 = vpop.f32.mrf.mxu0
      %v8286 = vadd.f32 0.0, %v8285
      %8287 = vmatmul.bf16.gmra.mxu0 %v7535
      %v8288 = vpop.f32.mrf.mxu0
      %v8289 = vadd.f32 0.0, %v8288
      %v8290 = vpop.f32.mrf.mxu0
      %v8291 = vadd.f32 0.0, %v8290
      %8292 = vdwg.mxu0
      %8293 = vmatpush.bf16.msra.mxu0 %v8045
      %8294 = vmatpush.bf16.msra.mxu0 %v8044
      %8295 = vmatpush.bf16.msra.mxu0 %v8043
      %8296 = vmatpush.bf16.msra.mxu0 %v8042
      %8297 = vmatpush.bf16.msra.mxu0 %v8041
      %8298 = vmatpush.bf16.msra.mxu0 %v8040
      %8299 = vmatpush.bf16.msra.mxu0 %v8039
      %8300 = vmatpush.bf16.msra.mxu0 %v8038
      %8301 = vmatmul.bf16.gmra.mxu0 %v7347
      %v8302 = vpop.f32.mrf.mxu0
      %v8303 = vadd.f32 %v8184, %v8302
      %v8304 = vpop.f32.mrf.mxu0
      %v8305 = vadd.f32 %v8186, %v8304
      %8306 = vmatmul.bf16.gmra.mxu0 %v7356
      %v8307 = vpop.f32.mrf.mxu0
      %v8308 = vadd.f32 %v8189, %v8307
      %v8309 = vpop.f32.mrf.mxu0
      %v8310 = vadd.f32 %v8191, %v8309
      %8311 = vmatmul.bf16.gmra.mxu0 %v7365
      %v8312 = vpop.f32.mrf.mxu0
      %v8313 = vadd.f32 %v8194, %v8312
      %v8314 = vpop.f32.mrf.mxu0
      %v8315 = vadd.f32 %v8196, %v8314
      %8316 = vmatmul.bf16.gmra.mxu0 %v7374
      %v8317 = vpop.f32.mrf.mxu0
      %v8318 = vadd.f32 %v8199, %v8317
      %v8319 = vpop.f32.mrf.mxu0
      %v8320 = vadd.f32 %v8201, %v8319
      %8321 = vmatmul.bf16.gmra.mxu0 %v7383
      %v8322 = vpop.f32.mrf.mxu0
      %v8323 = vadd.f32 %v8204, %v8322
      %v8324 = vpop.f32.mrf.mxu0
      %v8325 = vadd.f32 %v8206, %v8324
      %8326 = vmatmul.bf16.gmra.mxu0 %v7392
      %v8327 = vpop.f32.mrf.mxu0
      %v8328 = vadd.f32 %v8209, %v8327
      %v8329 = vpop.f32.mrf.mxu0
      %v8330 = vadd.f32 %v8211, %v8329
      %8331 = vmatmul.bf16.gmra.mxu0 %v7401
      %v8332 = vpop.f32.mrf.mxu0
      %v8333 = vadd.f32 %v8214, %v8332
      %v8334 = vpop.f32.mrf.mxu0
      %v8335 = vadd.f32 %v8216, %v8334
      %8336 = vmatmul.bf16.gmra.mxu0 %v7410
      %v8337 = vpop.f32.mrf.mxu0
      %v8338 = vadd.f32 %v8219, %v8337
      %v8339 = vpop.f32.mrf.mxu0
      %v8340 = vadd.f32 %v8221, %v8339
      %8341 = vmatmul.bf16.gmra.mxu0 %v7419
      %v8342 = vpop.f32.mrf.mxu0
      %v8343 = vadd.f32 %v8224, %v8342
      %v8344 = vpop.f32.mrf.mxu0
      %v8345 = vadd.f32 %v8226, %v8344
      %8346 = vmatmul.bf16.gmra.mxu0 %v7428
      %v8347 = vpop.f32.mrf.mxu0
      %v8348 = vadd.f32 %v8229, %v8347
      %v8349 = vpop.f32.mrf.mxu0
      %v8350 = vadd.f32 %v8231, %v8349
      %8351 = vmatmul.bf16.gmra.mxu0 %v7437
      %v8352 = vpop.f32.mrf.mxu0
      %v8353 = vadd.f32 %v8234, %v8352
      %v8354 = vpop.f32.mrf.mxu0
      %v8355 = vadd.f32 %v8236, %v8354
      %8356 = vmatmul.bf16.gmra.mxu0 %v7446
      %v8357 = vpop.f32.mrf.mxu0
      %v8358 = vadd.f32 %v8239, %v8357
      %v8359 = vpop.f32.mrf.mxu0
      %v8360 = vadd.f32 %v8241, %v8359
      %8361 = vmatmul.bf16.gmra.mxu0 %v7455
      %v8362 = vpop.f32.mrf.mxu0
      %v8363 = vadd.f32 %v8244, %v8362
      %v8364 = vpop.f32.mrf.mxu0
      %v8365 = vadd.f32 %v8246, %v8364
      %8366 = vmatmul.bf16.gmra.mxu0 %v7464
      %v8367 = vpop.f32.mrf.mxu0
      %v8368 = vadd.f32 %v8249, %v8367
      %v8369 = vpop.f32.mrf.mxu0
      %v8370 = vadd.f32 %v8251, %v8369
      %8371 = vmatmul.bf16.gmra.mxu0 %v7473
      %v8372 = vpop.f32.mrf.mxu0
      %v8373 = vadd.f32 %v8254, %v8372
      %v8374 = vpop.f32.mrf.mxu0
      %v8375 = vadd.f32 %v8256, %v8374
      %8376 = vmatmul.bf16.gmra.mxu0 %v7482
      %v8377 = vpop.f32.mrf.mxu0
      %v8378 = vadd.f32 %v8259, %v8377
      %v8379 = vpop.f32.mrf.mxu0
      %v8380 = vadd.f32 %v8261, %v8379
      %8381 = vmatmul.bf16.gmra.mxu0 %v7491
      %v8382 = vpop.f32.mrf.mxu0
      %v8383 = vadd.f32 %v8264, %v8382
      %v8384 = vpop.f32.mrf.mxu0
      %v8385 = vadd.f32 %v8266, %v8384
      %8386 = vmatmul.bf16.gmra.mxu0 %v7500
      %v8387 = vpop.f32.mrf.mxu0
      %v8388 = vadd.f32 %v8269, %v8387
      %v8389 = vpop.f32.mrf.mxu0
      %v8390 = vadd.f32 %v8271, %v8389
      %8391 = vmatmul.bf16.gmra.mxu0 %v7509
      %v8392 = vpop.f32.mrf.mxu0
      %v8393 = vadd.f32 %v8274, %v8392
      %v8394 = vpop.f32.mrf.mxu0
      %v8395 = vadd.f32 %v8276, %v8394
      %8396 = vmatmul.bf16.gmra.mxu0 %v7518
      %v8397 = vpop.f32.mrf.mxu0
      %v8398 = vadd.f32 %v8279, %v8397
      %v8399 = vpop.f32.mrf.mxu0
      %v8400 = vadd.f32 %v8281, %v8399
      %8401 = vmatmul.bf16.gmra.mxu0 %v7527
      %v8402 = vpop.f32.mrf.mxu0
      %v8403 = vadd.f32 %v8284, %v8402
      %v8404 = vpop.f32.mrf.mxu0
      %v8405 = vadd.f32 %v8286, %v8404
      %8406 = vmatmul.bf16.gmra.mxu0 %v7536
      %v8407 = vpop.f32.mrf.mxu0
      %v8408 = vadd.f32 %v8289, %v8407
      %v8409 = vpop.f32.mrf.mxu0
      %v8410 = vadd.f32 %v8291, %v8409
      %8411 = vdwg.mxu0
      %8412 = vmatpush.bf16.msra.mxu0 %v8053
      %8413 = vmatpush.bf16.msra.mxu0 %v8052
      %8414 = vmatpush.bf16.msra.mxu0 %v8051
      %8415 = vmatpush.bf16.msra.mxu0 %v8050
      %8416 = vmatpush.bf16.msra.mxu0 %v8049
      %8417 = vmatpush.bf16.msra.mxu0 %v8048
      %8418 = vmatpush.bf16.msra.mxu0 %v8047
      %8419 = vmatpush.bf16.msra.mxu0 %v8046
      %8420 = vmatmul.bf16.gmra.mxu0 %v7348
      %v8421 = vpop.f32.mrf.mxu0
      %v8422 = vadd.f32 %v8303, %v8421
      %v8423 = vpop.f32.mrf.mxu0
      %v8424 = vadd.f32 %v8305, %v8423
      %8425 = vmatmul.bf16.gmra.mxu0 %v7357
      %v8426 = vpop.f32.mrf.mxu0
      %v8427 = vadd.f32 %v8308, %v8426
      %v8428 = vpop.f32.mrf.mxu0
      %v8429 = vadd.f32 %v8310, %v8428
      %8430 = vmatmul.bf16.gmra.mxu0 %v7366
      %v8431 = vpop.f32.mrf.mxu0
      %v8432 = vadd.f32 %v8313, %v8431
      %v8433 = vpop.f32.mrf.mxu0
      %v8434 = vadd.f32 %v8315, %v8433
      %8435 = vmatmul.bf16.gmra.mxu0 %v7375
      %v8436 = vpop.f32.mrf.mxu0
      %v8437 = vadd.f32 %v8318, %v8436
      %v8438 = vpop.f32.mrf.mxu0
      %v8439 = vadd.f32 %v8320, %v8438
      %8440 = vmatmul.bf16.gmra.mxu0 %v7384
      %v8441 = vpop.f32.mrf.mxu0
      %v8442 = vadd.f32 %v8323, %v8441
      %v8443 = vpop.f32.mrf.mxu0
      %v8444 = vadd.f32 %v8325, %v8443
      %8445 = vmatmul.bf16.gmra.mxu0 %v7393
      %v8446 = vpop.f32.mrf.mxu0
      %v8447 = vadd.f32 %v8328, %v8446
      %v8448 = vpop.f32.mrf.mxu0
      %v8449 = vadd.f32 %v8330, %v8448
      %8450 = vmatmul.bf16.gmra.mxu0 %v7402
      %v8451 = vpop.f32.mrf.mxu0
      %v8452 = vadd.f32 %v8333, %v8451
      %v8453 = vpop.f32.mrf.mxu0
      %v8454 = vadd.f32 %v8335, %v8453
      %8455 = vmatmul.bf16.gmra.mxu0 %v7411
      %v8456 = vpop.f32.mrf.mxu0
      %v8457 = vadd.f32 %v8338, %v8456
      %v8458 = vpop.f32.mrf.mxu0
      %v8459 = vadd.f32 %v8340, %v8458
      %8460 = vmatmul.bf16.gmra.mxu0 %v7420
      %v8461 = vpop.f32.mrf.mxu0
      %v8462 = vadd.f32 %v8343, %v8461
      %v8463 = vpop.f32.mrf.mxu0
      %v8464 = vadd.f32 %v8345, %v8463
      %8465 = vmatmul.bf16.gmra.mxu0 %v7429
      %v8466 = vpop.f32.mrf.mxu0
      %v8467 = vadd.f32 %v8348, %v8466
      %v8468 = vpop.f32.mrf.mxu0
      %v8469 = vadd.f32 %v8350, %v8468
      %8470 = vmatmul.bf16.gmra.mxu0 %v7438
      %v8471 = vpop.f32.mrf.mxu0
      %v8472 = vadd.f32 %v8353, %v8471
      %v8473 = vpop.f32.mrf.mxu0
      %v8474 = vadd.f32 %v8355, %v8473
      %8475 = vmatmul.bf16.gmra.mxu0 %v7447
      %v8476 = vpop.f32.mrf.mxu0
      %v8477 = vadd.f32 %v8358, %v8476
      %v8478 = vpop.f32.mrf.mxu0
      %v8479 = vadd.f32 %v8360, %v8478
      %8480 = vmatmul.bf16.gmra.mxu0 %v7456
      %v8481 = vpop.f32.mrf.mxu0
      %v8482 = vadd.f32 %v8363, %v8481
      %v8483 = vpop.f32.mrf.mxu0
      %v8484 = vadd.f32 %v8365, %v8483
      %8485 = vmatmul.bf16.gmra.mxu0 %v7465
      %v8486 = vpop.f32.mrf.mxu0
      %v8487 = vadd.f32 %v8368, %v8486
      %v8488 = vpop.f32.mrf.mxu0
      %v8489 = vadd.f32 %v8370, %v8488
      %8490 = vmatmul.bf16.gmra.mxu0 %v7474
      %v8491 = vpop.f32.mrf.mxu0
      %v8492 = vadd.f32 %v8373, %v8491
      %v8493 = vpop.f32.mrf.mxu0
      %v8494 = vadd.f32 %v8375, %v8493
      %8495 = vmatmul.bf16.gmra.mxu0 %v7483
      %v8496 = vpop.f32.mrf.mxu0
      %v8497 = vadd.f32 %v8378, %v8496
      %v8498 = vpop.f32.mrf.mxu0
      %v8499 = vadd.f32 %v8380, %v8498
      %8500 = vmatmul.bf16.gmra.mxu0 %v7492
      %v8501 = vpop.f32.mrf.mxu0
      %v8502 = vadd.f32 %v8383, %v8501
      %v8503 = vpop.f32.mrf.mxu0
      %v8504 = vadd.f32 %v8385, %v8503
      %8505 = vmatmul.bf16.gmra.mxu0 %v7501
      %v8506 = vpop.f32.mrf.mxu0
      %v8507 = vadd.f32 %v8388, %v8506
      %v8508 = vpop.f32.mrf.mxu0
      %v8509 = vadd.f32 %v8390, %v8508
      %8510 = vmatmul.bf16.gmra.mxu0 %v7510
      %v8511 = vpop.f32.mrf.mxu0
      %v8512 = vadd.f32 %v8393, %v8511
      %v8513 = vpop.f32.mrf.mxu0
      %v8514 = vadd.f32 %v8395, %v8513
      %8515 = vmatmul.bf16.gmra.mxu0 %v7519
      %v8516 = vpop.f32.mrf.mxu0
      %v8517 = vadd.f32 %v8398, %v8516
      %v8518 = vpop.f32.mrf.mxu0
      %v8519 = vadd.f32 %v8400, %v8518
      %8520 = vmatmul.bf16.gmra.mxu0 %v7528
      %v8521 = vpop.f32.mrf.mxu0
      %v8522 = vadd.f32 %v8403, %v8521
      %v8523 = vpop.f32.mrf.mxu0
      %v8524 = vadd.f32 %v8405, %v8523
      %8525 = vmatmul.bf16.gmra.mxu0 %v7537
      %v8526 = vpop.f32.mrf.mxu0
      %v8527 = vadd.f32 %v8408, %v8526
      %v8528 = vpop.f32.mrf.mxu0
      %v8529 = vadd.f32 %v8410, %v8528
      %8530 = vdwg.mxu0
      %8531 = vmatpush.bf16.msra.mxu0 %v8061
      %8532 = vmatpush.bf16.msra.mxu0 %v8060
      %8533 = vmatpush.bf16.msra.mxu0 %v8059
      %8534 = vmatpush.bf16.msra.mxu0 %v8058
      %8535 = vmatpush.bf16.msra.mxu0 %v8057
      %8536 = vmatpush.bf16.msra.mxu0 %v8056
      %8537 = vmatpush.bf16.msra.mxu0 %v8055
      %8538 = vmatpush.bf16.msra.mxu0 %v8054
      %8539 = vmatmul.bf16.gmra.mxu0 %v7349
      %v8540 = vpop.f32.mrf.mxu0
      %v8541 = vadd.f32 %v8422, %v8540
      %v8542 = vpop.f32.mrf.mxu0
      %v8543 = vadd.f32 %v8424, %v8542
      %8544 = vmatmul.bf16.gmra.mxu0 %v7358
      %v8545 = vpop.f32.mrf.mxu0
      %v8546 = vadd.f32 %v8427, %v8545
      %v8547 = vpop.f32.mrf.mxu0
      %v8548 = vadd.f32 %v8429, %v8547
      %8549 = vmatmul.bf16.gmra.mxu0 %v7367
      %v8550 = vpop.f32.mrf.mxu0
      %v8551 = vadd.f32 %v8432, %v8550
      %v8552 = vpop.f32.mrf.mxu0
      %v8553 = vadd.f32 %v8434, %v8552
      %8554 = vmatmul.bf16.gmra.mxu0 %v7376
      %v8555 = vpop.f32.mrf.mxu0
      %v8556 = vadd.f32 %v8437, %v8555
      %v8557 = vpop.f32.mrf.mxu0
      %v8558 = vadd.f32 %v8439, %v8557
      %8559 = vmatmul.bf16.gmra.mxu0 %v7385
      %v8560 = vpop.f32.mrf.mxu0
      %v8561 = vadd.f32 %v8442, %v8560
      %v8562 = vpop.f32.mrf.mxu0
      %v8563 = vadd.f32 %v8444, %v8562
      %8564 = vmatmul.bf16.gmra.mxu0 %v7394
      %v8565 = vpop.f32.mrf.mxu0
      %v8566 = vadd.f32 %v8447, %v8565
      %v8567 = vpop.f32.mrf.mxu0
      %v8568 = vadd.f32 %v8449, %v8567
      %8569 = vmatmul.bf16.gmra.mxu0 %v7403
      %v8570 = vpop.f32.mrf.mxu0
      %v8571 = vadd.f32 %v8452, %v8570
      %v8572 = vpop.f32.mrf.mxu0
      %v8573 = vadd.f32 %v8454, %v8572
      %8574 = vmatmul.bf16.gmra.mxu0 %v7412
      %v8575 = vpop.f32.mrf.mxu0
      %v8576 = vadd.f32 %v8457, %v8575
      %v8577 = vpop.f32.mrf.mxu0
      %v8578 = vadd.f32 %v8459, %v8577
      %8579 = vmatmul.bf16.gmra.mxu0 %v7421
      %v8580 = vpop.f32.mrf.mxu0
      %v8581 = vadd.f32 %v8462, %v8580
      %v8582 = vpop.f32.mrf.mxu0
      %v8583 = vadd.f32 %v8464, %v8582
      %8584 = vmatmul.bf16.gmra.mxu0 %v7430
      %v8585 = vpop.f32.mrf.mxu0
      %v8586 = vadd.f32 %v8467, %v8585
      %v8587 = vpop.f32.mrf.mxu0
      %v8588 = vadd.f32 %v8469, %v8587
      %8589 = vmatmul.bf16.gmra.mxu0 %v7439
      %v8590 = vpop.f32.mrf.mxu0
      %v8591 = vadd.f32 %v8472, %v8590
      %v8592 = vpop.f32.mrf.mxu0
      %v8593 = vadd.f32 %v8474, %v8592
      %8594 = vmatmul.bf16.gmra.mxu0 %v7448
      %v8595 = vpop.f32.mrf.mxu0
      %v8596 = vadd.f32 %v8477, %v8595
      %v8597 = vpop.f32.mrf.mxu0
      %v8598 = vadd.f32 %v8479, %v8597
      %8599 = vmatmul.bf16.gmra.mxu0 %v7457
      %v8600 = vpop.f32.mrf.mxu0
      %v8601 = vadd.f32 %v8482, %v8600
      %v8602 = vpop.f32.mrf.mxu0
      %v8603 = vadd.f32 %v8484, %v8602
      %8604 = vmatmul.bf16.gmra.mxu0 %v7466
      %v8605 = vpop.f32.mrf.mxu0
      %v8606 = vadd.f32 %v8487, %v8605
      %v8607 = vpop.f32.mrf.mxu0
      %v8608 = vadd.f32 %v8489, %v8607
      %8609 = vmatmul.bf16.gmra.mxu0 %v7475
      %v8610 = vpop.f32.mrf.mxu0
      %v8611 = vadd.f32 %v8492, %v8610
      %v8612 = vpop.f32.mrf.mxu0
      %v8613 = vadd.f32 %v8494, %v8612
      %8614 = vmatmul.bf16.gmra.mxu0 %v7484
      %v8615 = vpop.f32.mrf.mxu0
      %v8616 = vadd.f32 %v8497, %v8615
      %v8617 = vpop.f32.mrf.mxu0
      %v8618 = vadd.f32 %v8499, %v8617
      %8619 = vmatmul.bf16.gmra.mxu0 %v7493
      %v8620 = vpop.f32.mrf.mxu0
      %v8621 = vadd.f32 %v8502, %v8620
      %v8622 = vpop.f32.mrf.mxu0
      %v8623 = vadd.f32 %v8504, %v8622
      %8624 = vmatmul.bf16.gmra.mxu0 %v7502
      %v8625 = vpop.f32.mrf.mxu0
      %v8626 = vadd.f32 %v8507, %v8625
      %v8627 = vpop.f32.mrf.mxu0
      %v8628 = vadd.f32 %v8509, %v8627
      %8629 = vmatmul.bf16.gmra.mxu0 %v7511
      %v8630 = vpop.f32.mrf.mxu0
      %v8631 = vadd.f32 %v8512, %v8630
      %v8632 = vpop.f32.mrf.mxu0
      %v8633 = vadd.f32 %v8514, %v8632
      %8634 = vmatmul.bf16.gmra.mxu0 %v7520
      %v8635 = vpop.f32.mrf.mxu0
      %v8636 = vadd.f32 %v8517, %v8635
      %v8637 = vpop.f32.mrf.mxu0
      %v8638 = vadd.f32 %v8519, %v8637
      %8639 = vmatmul.bf16.gmra.mxu0 %v7529
      %v8640 = vpop.f32.mrf.mxu0
      %v8641 = vadd.f32 %v8522, %v8640
      %v8642 = vpop.f32.mrf.mxu0
      %v8643 = vadd.f32 %v8524, %v8642
      %8644 = vmatmul.bf16.gmra.mxu0 %v7538
      %v8645 = vpop.f32.mrf.mxu0
      %v8646 = vadd.f32 %v8527, %v8645
      %v8647 = vpop.f32.mrf.mxu0
      %v8648 = vadd.f32 %v8529, %v8647
      %8649 = vdwg.mxu0
      %8650 = vmatpush.bf16.msra.mxu0 %v8069
      %8651 = vmatpush.bf16.msra.mxu0 %v8068
      %8652 = vmatpush.bf16.msra.mxu0 %v8067
      %8653 = vmatpush.bf16.msra.mxu0 %v8066
      %8654 = vmatpush.bf16.msra.mxu0 %v8065
      %8655 = vmatpush.bf16.msra.mxu0 %v8064
      %8656 = vmatpush.bf16.msra.mxu0 %v8063
      %8657 = vmatpush.bf16.msra.mxu0 %v8062
      %8658 = vmatmul.bf16.gmra.mxu0 %v7350
      %v8659 = vpop.f32.mrf.mxu0
      %v8660 = vadd.f32 %v8541, %v8659
      %v8661 = vpop.f32.mrf.mxu0
      %v8662 = vadd.f32 %v8543, %v8661
      %8663 = vmatmul.bf16.gmra.mxu0 %v7359
      %v8664 = vpop.f32.mrf.mxu0
      %v8665 = vadd.f32 %v8546, %v8664
      %v8666 = vpop.f32.mrf.mxu0
      %v8667 = vadd.f32 %v8548, %v8666
      %8668 = vmatmul.bf16.gmra.mxu0 %v7368
      %v8669 = vpop.f32.mrf.mxu0
      %v8670 = vadd.f32 %v8551, %v8669
      %v8671 = vpop.f32.mrf.mxu0
      %v8672 = vadd.f32 %v8553, %v8671
      %8673 = vmatmul.bf16.gmra.mxu0 %v7377
      %v8674 = vpop.f32.mrf.mxu0
      %v8675 = vadd.f32 %v8556, %v8674
      %v8676 = vpop.f32.mrf.mxu0
      %v8677 = vadd.f32 %v8558, %v8676
      %8678 = vmatmul.bf16.gmra.mxu0 %v7386
      %v8679 = vpop.f32.mrf.mxu0
      %v8680 = vadd.f32 %v8561, %v8679
      %v8681 = vpop.f32.mrf.mxu0
      %v8682 = vadd.f32 %v8563, %v8681
      %8683 = vmatmul.bf16.gmra.mxu0 %v7395
      %v8684 = vpop.f32.mrf.mxu0
      %v8685 = vadd.f32 %v8566, %v8684
      %v8686 = vpop.f32.mrf.mxu0
      %v8687 = vadd.f32 %v8568, %v8686
      %8688 = vmatmul.bf16.gmra.mxu0 %v7404
      %v8689 = vpop.f32.mrf.mxu0
      %v8690 = vadd.f32 %v8571, %v8689
      %v8691 = vpop.f32.mrf.mxu0
      %v8692 = vadd.f32 %v8573, %v8691
      %8693 = vmatmul.bf16.gmra.mxu0 %v7413
      %v8694 = vpop.f32.mrf.mxu0
      %v8695 = vadd.f32 %v8576, %v8694
      %v8696 = vpop.f32.mrf.mxu0
      %v8697 = vadd.f32 %v8578, %v8696
      %8698 = vmatmul.bf16.gmra.mxu0 %v7422
      %v8699 = vpop.f32.mrf.mxu0
      %v8700 = vadd.f32 %v8581, %v8699
      %v8701 = vpop.f32.mrf.mxu0
      %v8702 = vadd.f32 %v8583, %v8701
      %8703 = vmatmul.bf16.gmra.mxu0 %v7431
      %v8704 = vpop.f32.mrf.mxu0
      %v8705 = vadd.f32 %v8586, %v8704
      %v8706 = vpop.f32.mrf.mxu0
      %v8707 = vadd.f32 %v8588, %v8706
      %8708 = vmatmul.bf16.gmra.mxu0 %v7440
      %v8709 = vpop.f32.mrf.mxu0
      %v8710 = vadd.f32 %v8591, %v8709
      %v8711 = vpop.f32.mrf.mxu0
      %v8712 = vadd.f32 %v8593, %v8711
      %8713 = vmatmul.bf16.gmra.mxu0 %v7449
      %v8714 = vpop.f32.mrf.mxu0
      %v8715 = vadd.f32 %v8596, %v8714
      %v8716 = vpop.f32.mrf.mxu0
      %v8717 = vadd.f32 %v8598, %v8716
      %8718 = vmatmul.bf16.gmra.mxu0 %v7458
      %v8719 = vpop.f32.mrf.mxu0
      %v8720 = vadd.f32 %v8601, %v8719
      %v8721 = vpop.f32.mrf.mxu0
      %v8722 = vadd.f32 %v8603, %v8721
      %8723 = vmatmul.bf16.gmra.mxu0 %v7467
      %v8724 = vpop.f32.mrf.mxu0
      %v8725 = vadd.f32 %v8606, %v8724
      %v8726 = vpop.f32.mrf.mxu0
      %v8727 = vadd.f32 %v8608, %v8726
      %8728 = vmatmul.bf16.gmra.mxu0 %v7476
      %v8729 = vpop.f32.mrf.mxu0
      %v8730 = vadd.f32 %v8611, %v8729
      %v8731 = vpop.f32.mrf.mxu0
      %v8732 = vadd.f32 %v8613, %v8731
      %8733 = vmatmul.bf16.gmra.mxu0 %v7485
      %v8734 = vpop.f32.mrf.mxu0
      %v8735 = vadd.f32 %v8616, %v8734
      %v8736 = vpop.f32.mrf.mxu0
      %v8737 = vadd.f32 %v8618, %v8736
      %8738 = vmatmul.bf16.gmra.mxu0 %v7494
      %v8739 = vpop.f32.mrf.mxu0
      %v8740 = vadd.f32 %v8621, %v8739
      %v8741 = vpop.f32.mrf.mxu0
      %v8742 = vadd.f32 %v8623, %v8741
      %8743 = vmatmul.bf16.gmra.mxu0 %v7503
      %v8744 = vpop.f32.mrf.mxu0
      %v8745 = vadd.f32 %v8626, %v8744
      %v8746 = vpop.f32.mrf.mxu0
      %v8747 = vadd.f32 %v8628, %v8746
      %8748 = vmatmul.bf16.gmra.mxu0 %v7512
      %v8749 = vpop.f32.mrf.mxu0
      %v8750 = vadd.f32 %v8631, %v8749
      %v8751 = vpop.f32.mrf.mxu0
      %v8752 = vadd.f32 %v8633, %v8751
      %8753 = vmatmul.bf16.gmra.mxu0 %v7521
      %v8754 = vpop.f32.mrf.mxu0
      %v8755 = vadd.f32 %v8636, %v8754
      %v8756 = vpop.f32.mrf.mxu0
      %v8757 = vadd.f32 %v8638, %v8756
      %8758 = vmatmul.bf16.gmra.mxu0 %v7530
      %v8759 = vpop.f32.mrf.mxu0
      %v8760 = vadd.f32 %v8641, %v8759
      %v8761 = vpop.f32.mrf.mxu0
      %v8762 = vadd.f32 %v8643, %v8761
      %8763 = vmatmul.bf16.gmra.mxu0 %v7539
      %v8764 = vpop.f32.mrf.mxu0
      %v8765 = vadd.f32 %v8646, %v8764
      %v8766 = vpop.f32.mrf.mxu0
      %v8767 = vadd.f32 %v8648, %v8766
      %8768 = vdwg.mxu0
      %8769 = vmatpush.bf16.msra.mxu0 %v8077
      %8770 = vmatpush.bf16.msra.mxu0 %v8076
      %8771 = vmatpush.bf16.msra.mxu0 %v8075
      %8772 = vmatpush.bf16.msra.mxu0 %v8074
      %8773 = vmatpush.bf16.msra.mxu0 %v8073
      %8774 = vmatpush.bf16.msra.mxu0 %v8072
      %8775 = vmatpush.bf16.msra.mxu0 %v8071
      %8776 = vmatpush.bf16.msra.mxu0 %v8070
      %8777 = vmatmul.bf16.gmra.mxu0 %v7351
      %v8778 = vpop.f32.mrf.mxu0
      %v8779 = vadd.f32 %v8660, %v8778
      %v8780 = vpop.f32.mrf.mxu0
      %v8781 = vadd.f32 %v8662, %v8780
      %8782 = vmatmul.bf16.gmra.mxu0 %v7360
      %v8783 = vpop.f32.mrf.mxu0
      %v8784 = vadd.f32 %v8665, %v8783
      %v8785 = vpop.f32.mrf.mxu0
      %v8786 = vadd.f32 %v8667, %v8785
      %8787 = vmatmul.bf16.gmra.mxu0 %v7369
      %v8788 = vpop.f32.mrf.mxu0
      %v8789 = vadd.f32 %v8670, %v8788
      %v8790 = vpop.f32.mrf.mxu0
      %v8791 = vadd.f32 %v8672, %v8790
      %8792 = vmatmul.bf16.gmra.mxu0 %v7378
      %v8793 = vpop.f32.mrf.mxu0
      %v8794 = vadd.f32 %v8675, %v8793
      %v8795 = vpop.f32.mrf.mxu0
      %v8796 = vadd.f32 %v8677, %v8795
      %8797 = vmatmul.bf16.gmra.mxu0 %v7387
      %v8798 = vpop.f32.mrf.mxu0
      %v8799 = vadd.f32 %v8680, %v8798
      %v8800 = vpop.f32.mrf.mxu0
      %v8801 = vadd.f32 %v8682, %v8800
      %8802 = vmatmul.bf16.gmra.mxu0 %v7396
      %v8803 = vpop.f32.mrf.mxu0
      %v8804 = vadd.f32 %v8685, %v8803
      %v8805 = vpop.f32.mrf.mxu0
      %v8806 = vadd.f32 %v8687, %v8805
      %8807 = vmatmul.bf16.gmra.mxu0 %v7405
      %v8808 = vpop.f32.mrf.mxu0
      %v8809 = vadd.f32 %v8690, %v8808
      %v8810 = vpop.f32.mrf.mxu0
      %v8811 = vadd.f32 %v8692, %v8810
      %8812 = vmatmul.bf16.gmra.mxu0 %v7414
      %v8813 = vpop.f32.mrf.mxu0
      %v8814 = vadd.f32 %v8695, %v8813
      %v8815 = vpop.f32.mrf.mxu0
      %v8816 = vadd.f32 %v8697, %v8815
      %8817 = vmatmul.bf16.gmra.mxu0 %v7423
      %v8818 = vpop.f32.mrf.mxu0
      %v8819 = vadd.f32 %v8700, %v8818
      %v8820 = vpop.f32.mrf.mxu0
      %v8821 = vadd.f32 %v8702, %v8820
      %8822 = vmatmul.bf16.gmra.mxu0 %v7432
      %v8823 = vpop.f32.mrf.mxu0
      %v8824 = vadd.f32 %v8705, %v8823
      %v8825 = vpop.f32.mrf.mxu0
      %v8826 = vadd.f32 %v8707, %v8825
      %8827 = vmatmul.bf16.gmra.mxu0 %v7441
      %v8828 = vpop.f32.mrf.mxu0
      %v8829 = vadd.f32 %v8710, %v8828
      %v8830 = vpop.f32.mrf.mxu0
      %v8831 = vadd.f32 %v8712, %v8830
      %8832 = vmatmul.bf16.gmra.mxu0 %v7450
      %v8833 = vpop.f32.mrf.mxu0
      %v8834 = vadd.f32 %v8715, %v8833
      %v8835 = vpop.f32.mrf.mxu0
      %v8836 = vadd.f32 %v8717, %v8835
      %8837 = vmatmul.bf16.gmra.mxu0 %v7459
      %v8838 = vpop.f32.mrf.mxu0
      %v8839 = vadd.f32 %v8720, %v8838
      %v8840 = vpop.f32.mrf.mxu0
      %v8841 = vadd.f32 %v8722, %v8840
      %8842 = vmatmul.bf16.gmra.mxu0 %v7468
      %v8843 = vpop.f32.mrf.mxu0
      %v8844 = vadd.f32 %v8725, %v8843
      %v8845 = vpop.f32.mrf.mxu0
      %v8846 = vadd.f32 %v8727, %v8845
      %8847 = vmatmul.bf16.gmra.mxu0 %v7477
      %v8848 = vpop.f32.mrf.mxu0
      %v8849 = vadd.f32 %v8730, %v8848
      %v8850 = vpop.f32.mrf.mxu0
      %v8851 = vadd.f32 %v8732, %v8850
      %8852 = vmatmul.bf16.gmra.mxu0 %v7486
      %v8853 = vpop.f32.mrf.mxu0
      %v8854 = vadd.f32 %v8735, %v8853
      %v8855 = vpop.f32.mrf.mxu0
      %v8856 = vadd.f32 %v8737, %v8855
      %8857 = vmatmul.bf16.gmra.mxu0 %v7495
      %v8858 = vpop.f32.mrf.mxu0
      %v8859 = vadd.f32 %v8740, %v8858
      %v8860 = vpop.f32.mrf.mxu0
      %v8861 = vadd.f32 %v8742, %v8860
      %8862 = vmatmul.bf16.gmra.mxu0 %v7504
      %v8863 = vpop.f32.mrf.mxu0
      %v8864 = vadd.f32 %v8745, %v8863
      %v8865 = vpop.f32.mrf.mxu0
      %v8866 = vadd.f32 %v8747, %v8865
      %8867 = vmatmul.bf16.gmra.mxu0 %v7513
      %v8868 = vpop.f32.mrf.mxu0
      %v8869 = vadd.f32 %v8750, %v8868
      %v8870 = vpop.f32.mrf.mxu0
      %v8871 = vadd.f32 %v8752, %v8870
      %8872 = vmatmul.bf16.gmra.mxu0 %v7522
      %v8873 = vpop.f32.mrf.mxu0
      %v8874 = vadd.f32 %v8755, %v8873
      %v8875 = vpop.f32.mrf.mxu0
      %v8876 = vadd.f32 %v8757, %v8875
      %8877 = vmatmul.bf16.gmra.mxu0 %v7531
      %v8878 = vpop.f32.mrf.mxu0
      %v8879 = vadd.f32 %v8760, %v8878
      %v8880 = vpop.f32.mrf.mxu0
      %v8881 = vadd.f32 %v8762, %v8880
      %8882 = vmatmul.bf16.gmra.mxu0 %v7540
      %v8883 = vpop.f32.mrf.mxu0
      %v8884 = vadd.f32 %v8765, %v8883
      %v8885 = vpop.f32.mrf.mxu0
      %v8886 = vadd.f32 %v8767, %v8885
      %8887 = vdwg.mxu0
      %8888 = vmatpush.bf16.msra.mxu0 %v8085
      %8889 = vmatpush.bf16.msra.mxu0 %v8084
      %8890 = vmatpush.bf16.msra.mxu0 %v8083
      %8891 = vmatpush.bf16.msra.mxu0 %v8082
      %8892 = vmatpush.bf16.msra.mxu0 %v8081
      %8893 = vmatpush.bf16.msra.mxu0 %v8080
      %8894 = vmatpush.bf16.msra.mxu0 %v8079
      %8895 = vmatpush.bf16.msra.mxu0 %v8078
      %8896 = vmatmul.bf16.gmra.mxu0 %v7352
      %v8897 = vpop.f32.mrf.mxu0
      %v8898 = vadd.f32 %v8779, %v8897
      %v8899 = vpop.f32.mrf.mxu0
      %v8900 = vadd.f32 %v8781, %v8899
      %8901 = vmatmul.bf16.gmra.mxu0 %v7361
      %v8902 = vpop.f32.mrf.mxu0
      %v8903 = vadd.f32 %v8784, %v8902
      %v8904 = vpop.f32.mrf.mxu0
      %v8905 = vadd.f32 %v8786, %v8904
      %8906 = vmatmul.bf16.gmra.mxu0 %v7370
      %v8907 = vpop.f32.mrf.mxu0
      %v8908 = vadd.f32 %v8789, %v8907
      %v8909 = vpop.f32.mrf.mxu0
      %v8910 = vadd.f32 %v8791, %v8909
      %8911 = vmatmul.bf16.gmra.mxu0 %v7379
      %v8912 = vpop.f32.mrf.mxu0
      %v8913 = vadd.f32 %v8794, %v8912
      %v8914 = vpop.f32.mrf.mxu0
      %v8915 = vadd.f32 %v8796, %v8914
      %8916 = vmatmul.bf16.gmra.mxu0 %v7388
      %v8917 = vpop.f32.mrf.mxu0
      %v8918 = vadd.f32 %v8799, %v8917
      %v8919 = vpop.f32.mrf.mxu0
      %v8920 = vadd.f32 %v8801, %v8919
      %8921 = vmatmul.bf16.gmra.mxu0 %v7397
      %v8922 = vpop.f32.mrf.mxu0
      %v8923 = vadd.f32 %v8804, %v8922
      %v8924 = vpop.f32.mrf.mxu0
      %v8925 = vadd.f32 %v8806, %v8924
      %8926 = vmatmul.bf16.gmra.mxu0 %v7406
      %v8927 = vpop.f32.mrf.mxu0
      %v8928 = vadd.f32 %v8809, %v8927
      %v8929 = vpop.f32.mrf.mxu0
      %v8930 = vadd.f32 %v8811, %v8929
      %8931 = vmatmul.bf16.gmra.mxu0 %v7415
      %v8932 = vpop.f32.mrf.mxu0
      %v8933 = vadd.f32 %v8814, %v8932
      %v8934 = vpop.f32.mrf.mxu0
      %v8935 = vadd.f32 %v8816, %v8934
      %8936 = vmatmul.bf16.gmra.mxu0 %v7424
      %v8937 = vpop.f32.mrf.mxu0
      %v8938 = vadd.f32 %v8819, %v8937
      %v8939 = vpop.f32.mrf.mxu0
      %v8940 = vadd.f32 %v8821, %v8939
      %8941 = vmatmul.bf16.gmra.mxu0 %v7433
      %v8942 = vpop.f32.mrf.mxu0
      %v8943 = vadd.f32 %v8824, %v8942
      %v8944 = vpop.f32.mrf.mxu0
      %v8945 = vadd.f32 %v8826, %v8944
      %8946 = vmatmul.bf16.gmra.mxu0 %v7442
      %v8947 = vpop.f32.mrf.mxu0
      %v8948 = vadd.f32 %v8829, %v8947
      %v8949 = vpop.f32.mrf.mxu0
      %v8950 = vadd.f32 %v8831, %v8949
      %8951 = vmatmul.bf16.gmra.mxu0 %v7451
      %v8952 = vpop.f32.mrf.mxu0
      %v8953 = vadd.f32 %v8834, %v8952
      %v8954 = vpop.f32.mrf.mxu0
      %v8955 = vadd.f32 %v8836, %v8954
      %8956 = vmatmul.bf16.gmra.mxu0 %v7460
      %v8957 = vpop.f32.mrf.mxu0
      %v8958 = vadd.f32 %v8839, %v8957
      %v8959 = vpop.f32.mrf.mxu0
      %v8960 = vadd.f32 %v8841, %v8959
      %8961 = vmatmul.bf16.gmra.mxu0 %v7469
      %v8962 = vpop.f32.mrf.mxu0
      %v8963 = vadd.f32 %v8844, %v8962
      %v8964 = vpop.f32.mrf.mxu0
      %v8965 = vadd.f32 %v8846, %v8964
      %8966 = vmatmul.bf16.gmra.mxu0 %v7478
      %v8967 = vpop.f32.mrf.mxu0
      %v8968 = vadd.f32 %v8849, %v8967
      %v8969 = vpop.f32.mrf.mxu0
      %v8970 = vadd.f32 %v8851, %v8969
      %8971 = vmatmul.bf16.gmra.mxu0 %v7487
      %v8972 = vpop.f32.mrf.mxu0
      %v8973 = vadd.f32 %v8854, %v8972
      %v8974 = vpop.f32.mrf.mxu0
      %v8975 = vadd.f32 %v8856, %v8974
      %8976 = vmatmul.bf16.gmra.mxu0 %v7496
      %v8977 = vpop.f32.mrf.mxu0
      %v8978 = vadd.f32 %v8859, %v8977
      %v8979 = vpop.f32.mrf.mxu0
      %v8980 = vadd.f32 %v8861, %v8979
      %8981 = vmatmul.bf16.gmra.mxu0 %v7505
      %v8982 = vpop.f32.mrf.mxu0
      %v8983 = vadd.f32 %v8864, %v8982
      %v8984 = vpop.f32.mrf.mxu0
      %v8985 = vadd.f32 %v8866, %v8984
      %8986 = vmatmul.bf16.gmra.mxu0 %v7514
      %v8987 = vpop.f32.mrf.mxu0
      %v8988 = vadd.f32 %v8869, %v8987
      %v8989 = vpop.f32.mrf.mxu0
      %v8990 = vadd.f32 %v8871, %v8989
      %8991 = vmatmul.bf16.gmra.mxu0 %v7523
      %v8992 = vpop.f32.mrf.mxu0
      %v8993 = vadd.f32 %v8874, %v8992
      %v8994 = vpop.f32.mrf.mxu0
      %v8995 = vadd.f32 %v8876, %v8994
      %8996 = vmatmul.bf16.gmra.mxu0 %v7532
      %v8997 = vpop.f32.mrf.mxu0
      %v8998 = vadd.f32 %v8879, %v8997
      %v8999 = vpop.f32.mrf.mxu0
      %v9000 = vadd.f32 %v8881, %v8999
      %9001 = vmatmul.bf16.gmra.mxu0 %v7541
      %v9002 = vpop.f32.mrf.mxu0
      %v9003 = vadd.f32 %v8884, %v9002
      %v9004 = vpop.f32.mrf.mxu0
      %v9005 = vadd.f32 %v8886, %v9004
      %9006 = vdwg.mxu0
      %9007 = vmatpush.bf16.msra.mxu0 %v8093
      %9008 = vmatpush.bf16.msra.mxu0 %v8092
      %9009 = vmatpush.bf16.msra.mxu0 %v8091
      %9010 = vmatpush.bf16.msra.mxu0 %v8090
      %9011 = vmatpush.bf16.msra.mxu0 %v8089
      %9012 = vmatpush.bf16.msra.mxu0 %v8088
      %9013 = vmatpush.bf16.msra.mxu0 %v8087
      %9014 = vmatpush.bf16.msra.mxu0 %v8086
      %9015 = vmatmul.bf16.gmra.mxu0 %v7353
      %v9016 = vpop.f32.mrf.mxu0
      %v9017 = vadd.f32 %v8898, %v9016
      %v9018 = vpop.f32.mrf.mxu0
      %v9019 = vadd.f32 %v8900, %v9018
      %9020 = vmatmul.bf16.gmra.mxu0 %v7362
      %v9021 = vpop.f32.mrf.mxu0
      %v9022 = vadd.f32 %v8903, %v9021
      %v9023 = vpop.f32.mrf.mxu0
      %v9024 = vadd.f32 %v8905, %v9023
      %9025 = vmatmul.bf16.gmra.mxu0 %v7371
      %v9026 = vpop.f32.mrf.mxu0
      %v9027 = vadd.f32 %v8908, %v9026
      %v9028 = vpop.f32.mrf.mxu0
      %v9029 = vadd.f32 %v8910, %v9028
      %9030 = vmatmul.bf16.gmra.mxu0 %v7380
      %v9031 = vpop.f32.mrf.mxu0
      %v9032 = vadd.f32 %v8913, %v9031
      %v9033 = vpop.f32.mrf.mxu0
      %v9034 = vadd.f32 %v8915, %v9033
      %9035 = vmatmul.bf16.gmra.mxu0 %v7389
      %v9036 = vpop.f32.mrf.mxu0
      %v9037 = vadd.f32 %v8918, %v9036
      %v9038 = vpop.f32.mrf.mxu0
      %v9039 = vadd.f32 %v8920, %v9038
      %9040 = vmatmul.bf16.gmra.mxu0 %v7398
      %v9041 = vpop.f32.mrf.mxu0
      %v9042 = vadd.f32 %v8923, %v9041
      %v9043 = vpop.f32.mrf.mxu0
      %v9044 = vadd.f32 %v8925, %v9043
      %9045 = vmatmul.bf16.gmra.mxu0 %v7407
      %v9046 = vpop.f32.mrf.mxu0
      %v9047 = vadd.f32 %v8928, %v9046
      %v9048 = vpop.f32.mrf.mxu0
      %v9049 = vadd.f32 %v8930, %v9048
      %9050 = vmatmul.bf16.gmra.mxu0 %v7416
      %v9051 = vpop.f32.mrf.mxu0
      %v9052 = vadd.f32 %v8933, %v9051
      %v9053 = vpop.f32.mrf.mxu0
      %v9054 = vadd.f32 %v8935, %v9053
      %9055 = vmatmul.bf16.gmra.mxu0 %v7425
      %v9056 = vpop.f32.mrf.mxu0
      %v9057 = vadd.f32 %v8938, %v9056
      %v9058 = vpop.f32.mrf.mxu0
      %v9059 = vadd.f32 %v8940, %v9058
      %9060 = vmatmul.bf16.gmra.mxu0 %v7434
      %v9061 = vpop.f32.mrf.mxu0
      %v9062 = vadd.f32 %v8943, %v9061
      %v9063 = vpop.f32.mrf.mxu0
      %v9064 = vadd.f32 %v8945, %v9063
      %9065 = vmatmul.bf16.gmra.mxu0 %v7443
      %v9066 = vpop.f32.mrf.mxu0
      %v9067 = vadd.f32 %v8948, %v9066
      %v9068 = vpop.f32.mrf.mxu0
      %v9069 = vadd.f32 %v8950, %v9068
      %9070 = vmatmul.bf16.gmra.mxu0 %v7452
      %v9071 = vpop.f32.mrf.mxu0
      %v9072 = vadd.f32 %v8953, %v9071
      %v9073 = vpop.f32.mrf.mxu0
      %v9074 = vadd.f32 %v8955, %v9073
      %9075 = vmatmul.bf16.gmra.mxu0 %v7461
      %v9076 = vpop.f32.mrf.mxu0
      %v9077 = vadd.f32 %v8958, %v9076
      %v9078 = vpop.f32.mrf.mxu0
      %v9079 = vadd.f32 %v8960, %v9078
      %9080 = vmatmul.bf16.gmra.mxu0 %v7470
      %v9081 = vpop.f32.mrf.mxu0
      %v9082 = vadd.f32 %v8963, %v9081
      %v9083 = vpop.f32.mrf.mxu0
      %v9084 = vadd.f32 %v8965, %v9083
      %9085 = vmatmul.bf16.gmra.mxu0 %v7479
      %v9086 = vpop.f32.mrf.mxu0
      %v9087 = vadd.f32 %v8968, %v9086
      %v9088 = vpop.f32.mrf.mxu0
      %v9089 = vadd.f32 %v8970, %v9088
      %9090 = vmatmul.bf16.gmra.mxu0 %v7488
      %v9091 = vpop.f32.mrf.mxu0
      %v9092 = vadd.f32 %v8973, %v9091
      %v9093 = vpop.f32.mrf.mxu0
      %v9094 = vadd.f32 %v8975, %v9093
      %9095 = vmatmul.bf16.gmra.mxu0 %v7497
      %v9096 = vpop.f32.mrf.mxu0
      %v9097 = vadd.f32 %v8978, %v9096
      %v9098 = vpop.f32.mrf.mxu0
      %v9099 = vadd.f32 %v8980, %v9098
      %9100 = vmatmul.bf16.gmra.mxu0 %v7506
      %v9101 = vpop.f32.mrf.mxu0
      %v9102 = vadd.f32 %v8983, %v9101
      %v9103 = vpop.f32.mrf.mxu0
      %v9104 = vadd.f32 %v8985, %v9103
      %9105 = vmatmul.bf16.gmra.mxu0 %v7515
      %v9106 = vpop.f32.mrf.mxu0
      %v9107 = vadd.f32 %v8988, %v9106
      %v9108 = vpop.f32.mrf.mxu0
      %v9109 = vadd.f32 %v8990, %v9108
      %9110 = vmatmul.bf16.gmra.mxu0 %v7524
      %v9111 = vpop.f32.mrf.mxu0
      %v9112 = vadd.f32 %v8993, %v9111
      %v9113 = vpop.f32.mrf.mxu0
      %v9114 = vadd.f32 %v8995, %v9113
      %9115 = vmatmul.bf16.gmra.mxu0 %v7533
      %v9116 = vpop.f32.mrf.mxu0
      %v9117 = vadd.f32 %v8998, %v9116
      %v9118 = vpop.f32.mrf.mxu0
      %v9119 = vadd.f32 %v9000, %v9118
      %9120 = vmatmul.bf16.gmra.mxu0 %v7542
      %v9121 = vpop.f32.mrf.mxu0
      %v9122 = vadd.f32 %v9003, %v9121
      %v9123 = vpop.f32.mrf.mxu0
      %v9124 = vadd.f32 %v9005, %v9123
      %9125 = vdwg.mxu0
      %9126 = vmatpush.bf16.msra.mxu0 %v8101
      %9127 = vmatpush.bf16.msra.mxu0 %v8100
      %9128 = vmatpush.bf16.msra.mxu0 %v8099
      %9129 = vmatpush.bf16.msra.mxu0 %v8098
      %9130 = vmatpush.bf16.msra.mxu0 %v8097
      %9131 = vmatpush.bf16.msra.mxu0 %v8096
      %9132 = vmatpush.bf16.msra.mxu0 %v8095
      %9133 = vmatpush.bf16.msra.mxu0 %v8094
      %9134 = vmatmul.bf16.gmra.mxu0 %v7354
      %v9135 = vpop.f32.mrf.mxu0
      %v9136 = vadd.f32 %v9017, %v9135
      %v9137 = vpop.f32.mrf.mxu0
      %v9138 = vadd.f32 %v9019, %v9137
      %9139 = vmatmul.bf16.gmra.mxu0 %v7363
      %v9140 = vpop.f32.mrf.mxu0
      %v9141 = vadd.f32 %v9022, %v9140
      %v9142 = vpop.f32.mrf.mxu0
      %v9143 = vadd.f32 %v9024, %v9142
      %9144 = vmatmul.bf16.gmra.mxu0 %v7372
      %v9145 = vpop.f32.mrf.mxu0
      %v9146 = vadd.f32 %v9027, %v9145
      %v9147 = vpop.f32.mrf.mxu0
      %v9148 = vadd.f32 %v9029, %v9147
      %9149 = vmatmul.bf16.gmra.mxu0 %v7381
      %v9150 = vpop.f32.mrf.mxu0
      %v9151 = vadd.f32 %v9032, %v9150
      %v9152 = vpop.f32.mrf.mxu0
      %v9153 = vadd.f32 %v9034, %v9152
      %9154 = vmatmul.bf16.gmra.mxu0 %v7390
      %v9155 = vpop.f32.mrf.mxu0
      %v9156 = vadd.f32 %v9037, %v9155
      %v9157 = vpop.f32.mrf.mxu0
      %v9158 = vadd.f32 %v9039, %v9157
      %9159 = vmatmul.bf16.gmra.mxu0 %v7399
      %v9160 = vpop.f32.mrf.mxu0
      %v9161 = vadd.f32 %v9042, %v9160
      %v9162 = vpop.f32.mrf.mxu0
      %v9163 = vadd.f32 %v9044, %v9162
      %9164 = vmatmul.bf16.gmra.mxu0 %v7408
      %v9165 = vpop.f32.mrf.mxu0
      %v9166 = vadd.f32 %v9047, %v9165
      %v9167 = vpop.f32.mrf.mxu0
      %v9168 = vadd.f32 %v9049, %v9167
      %9169 = vmatmul.bf16.gmra.mxu0 %v7417
      %v9170 = vpop.f32.mrf.mxu0
      %v9171 = vadd.f32 %v9052, %v9170
      %v9172 = vpop.f32.mrf.mxu0
      %v9173 = vadd.f32 %v9054, %v9172
      %9174 = vmatmul.bf16.gmra.mxu0 %v7426
      %v9175 = vpop.f32.mrf.mxu0
      %v9176 = vadd.f32 %v9057, %v9175
      %v9177 = vpop.f32.mrf.mxu0
      %v9178 = vadd.f32 %v9059, %v9177
      %9179 = vmatmul.bf16.gmra.mxu0 %v7435
      %v9180 = vpop.f32.mrf.mxu0
      %v9181 = vadd.f32 %v9062, %v9180
      %v9182 = vpop.f32.mrf.mxu0
      %v9183 = vadd.f32 %v9064, %v9182
      %9184 = vmatmul.bf16.gmra.mxu0 %v7444
      %v9185 = vpop.f32.mrf.mxu0
      %v9186 = vadd.f32 %v9067, %v9185
      %v9187 = vpop.f32.mrf.mxu0
      %v9188 = vadd.f32 %v9069, %v9187
      %9189 = vmatmul.bf16.gmra.mxu0 %v7453
      %v9190 = vpop.f32.mrf.mxu0
      %v9191 = vadd.f32 %v9072, %v9190
      %v9192 = vpop.f32.mrf.mxu0
      %v9193 = vadd.f32 %v9074, %v9192
      %9194 = vmatmul.bf16.gmra.mxu0 %v7462
      %v9195 = vpop.f32.mrf.mxu0
      %v9196 = vadd.f32 %v9077, %v9195
      %v9197 = vpop.f32.mrf.mxu0
      %v9198 = vadd.f32 %v9079, %v9197
      %9199 = vmatmul.bf16.gmra.mxu0 %v7471
      %v9200 = vpop.f32.mrf.mxu0
      %v9201 = vadd.f32 %v9082, %v9200
      %v9202 = vpop.f32.mrf.mxu0
      %v9203 = vadd.f32 %v9084, %v9202
      %9204 = vmatmul.bf16.gmra.mxu0 %v7480
      %v9205 = vpop.f32.mrf.mxu0
      %v9206 = vadd.f32 %v9087, %v9205
      %v9207 = vpop.f32.mrf.mxu0
      %v9208 = vadd.f32 %v9089, %v9207
      %9209 = vmatmul.bf16.gmra.mxu0 %v7489
      %v9210 = vpop.f32.mrf.mxu0
      %v9211 = vadd.f32 %v9092, %v9210
      %v9212 = vpop.f32.mrf.mxu0
      %v9213 = vadd.f32 %v9094, %v9212
      %9214 = vmatmul.bf16.gmra.mxu0 %v7498
      %v9215 = vpop.f32.mrf.mxu0
      %v9216 = vadd.f32 %v9097, %v9215
      %v9217 = vpop.f32.mrf.mxu0
      %v9218 = vadd.f32 %v9099, %v9217
      %9219 = vmatmul.bf16.gmra.mxu0 %v7507
      %v9220 = vpop.f32.mrf.mxu0
      %v9221 = vadd.f32 %v9102, %v9220
      %v9222 = vpop.f32.mrf.mxu0
      %v9223 = vadd.f32 %v9104, %v9222
      %9224 = vmatmul.bf16.gmra.mxu0 %v7516
      %v9225 = vpop.f32.mrf.mxu0
      %v9226 = vadd.f32 %v9107, %v9225
      %v9227 = vpop.f32.mrf.mxu0
      %v9228 = vadd.f32 %v9109, %v9227
      %9229 = vmatmul.bf16.gmra.mxu0 %v7525
      %v9230 = vpop.f32.mrf.mxu0
      %v9231 = vadd.f32 %v9112, %v9230
      %v9232 = vpop.f32.mrf.mxu0
      %v9233 = vadd.f32 %v9114, %v9232
      %9234 = vmatmul.bf16.gmra.mxu0 %v7534
      %v9235 = vpop.f32.mrf.mxu0
      %v9236 = vadd.f32 %v9117, %v9235
      %v9237 = vpop.f32.mrf.mxu0
      %v9238 = vadd.f32 %v9119, %v9237
      %9239 = vmatmul.bf16.gmra.mxu0 %v7543
      %v9240 = vpop.f32.mrf.mxu0
      %v9241 = vadd.f32 %v9122, %v9240
      %v9242 = vpop.f32.mrf.mxu0
      %v9243 = vadd.f32 %v9124, %v9242
      %9244 = vdwg.mxu0
      %v9245 = vpack.c.bf16 %v9136, %v9136
      %v9246 = vpack.c.bf16 %v9138, %v9138
      %v9247 = vpack.c.bf16 %v9141, %v9141
      %v9248 = vpack.c.bf16 %v9143, %v9143
      %v9249 = vpack.c.bf16 %v9146, %v9146
      %v9250 = vpack.c.bf16 %v9148, %v9148
      %v9251 = vpack.c.bf16 %v9151, %v9151
      %v9252 = vpack.c.bf16 %v9153, %v9153
      %v9253 = vpack.c.bf16 %v9156, %v9156
      %v9254 = vpack.c.bf16 %v9158, %v9158
      %v9255 = vpack.c.bf16 %v9161, %v9161
      %v9256 = vpack.c.bf16 %v9163, %v9163
      %v9257 = vpack.c.bf16 %v9166, %v9166
      %v9258 = vpack.c.bf16 %v9168, %v9168
      %v9259 = vpack.c.bf16 %v9171, %v9171
      %v9260 = vpack.c.bf16 %v9173, %v9173
      %v9261 = vpack.c.bf16 %v9176, %v9176
      %v9262 = vpack.c.bf16 %v9178, %v9178
      %v9263 = vpack.c.bf16 %v9181, %v9181
      %v9264 = vpack.c.bf16 %v9183, %v9183
      %v9265 = vpack.c.bf16 %v9186, %v9186
      %v9266 = vpack.c.bf16 %v9188, %v9188
      %v9267 = vpack.c.bf16 %v9191, %v9191
      %v9268 = vpack.c.bf16 %v9193, %v9193
      %v9269 = vpack.c.bf16 %v9196, %v9196
      %v9270 = vpack.c.bf16 %v9198, %v9198
      %v9271 = vpack.c.bf16 %v9201, %v9201
      %v9272 = vpack.c.bf16 %v9203, %v9203
      %v9273 = vpack.c.bf16 %v9206, %v9206
      %v9274 = vpack.c.bf16 %v9208, %v9208
      %v9275 = vpack.c.bf16 %v9211, %v9211
      %v9276 = vpack.c.bf16 %v9213, %v9213
      %v9277 = vpack.c.bf16 %v9216, %v9216
      %v9278 = vpack.c.bf16 %v9218, %v9218
      %v9279 = vpack.c.bf16 %v9221, %v9221
      %v9280 = vpack.c.bf16 %v9223, %v9223
      %v9281 = vpack.c.bf16 %v9226, %v9226
      %v9282 = vpack.c.bf16 %v9228, %v9228
      %v9283 = vpack.c.bf16 %v9231, %v9231
      %v9284 = vpack.c.bf16 %v9233, %v9233
      %v9285 = vpack.c.bf16 %v9236, %v9236
      %v9286 = vpack.c.bf16 %v9238, %v9238
      %v9287 = vpack.c.bf16 %v9241, %v9241
      %v9288 = vpack.c.bf16 %v9243, %v9243
      %9289 = vst [vmem:[%s414] sm:$0xf] %v9245
      %9290 = vst [vmem:[%s414 + $0x4] sm:$0xf] %v9246
      %9291 = vst [vmem:[%s414 + $0x8] sm:$0xf] %v9247
      %9292 = vst [vmem:[%s414 + $0xc] sm:$0xf] %v9248
      %9293 = vst [vmem:[%s414 + $0x10] sm:$0xf] %v9249
      %9294 = vst [vmem:[%s414 + $0x14] sm:$0xf] %v9250
      %9295 = vst [vmem:[%s414 + $0x18] sm:$0xf] %v9251
      %9296 = vst [vmem:[%s414 + $0x1c] sm:$0xf] %v9252
      %9297 = vst [vmem:[%s414 + $0x20] sm:$0xf] %v9253
      %9298 = vst [vmem:[%s414 + $0x24] sm:$0xf] %v9254
      %9299 = vst [vmem:[%s414 + $0x28] sm:$0xf] %v9255
      %9300 = vst [vmem:[%s414 + $0x2c] sm:$0xf] %v9256
      %9301 = vst [vmem:[%s414 + $0x30] sm:$0xf] %v9257
      %9302 = vst [vmem:[%s414 + $0x34] sm:$0xf] %v9258
      %9303 = vst [vmem:[%s414 + $0x38] sm:$0xf] %v9259
      %9304 = vst [vmem:[%s414 + $0x3c] sm:$0xf] %v9260
      %9305 = vst [vmem:[%s414 + $0x40] sm:$0xf] %v9261
      %9306 = vst [vmem:[%s414 + $0x44] sm:$0xf] %v9262
      %9307 = vst [vmem:[%s414 + $0x48] sm:$0xf] %v9263
      %9308 = vst [vmem:[%s414 + $0x4c] sm:$0xf] %v9264
      %9309 = vst [vmem:[%s414 + $0x50] sm:$0xf] %v9265
      %9310 = vst [vmem:[%s414 + $0x54] sm:$0xf] %v9266
      %9311 = vst [vmem:[%s414 + $0x58] sm:$0xf] %v9267
      %9312 = vst [vmem:[%s414 + $0x5c] sm:$0xf] %v9268
      %9313 = vst [vmem:[%s414 + $0x60] sm:$0xf] %v9269
      %9314 = vst [vmem:[%s414 + $0x64] sm:$0xf] %v9270
      %9315 = vst [vmem:[%s414 + $0x68] sm:$0xf] %v9271
      %9316 = vst [vmem:[%s414 + $0x6c] sm:$0xf] %v9272
      %9317 = vst [vmem:[%s414 + $0x70] sm:$0xf] %v9273
      %9318 = vst [vmem:[%s414 + $0x74] sm:$0xf] %v9274
      %9319 = vst [vmem:[%s414 + $0x78] sm:$0xf] %v9275
      %9320 = vst [vmem:[%s414 + $0x7c] sm:$0xf] %v9276
      %9321 = vst [vmem:[%s414 + $0x80] sm:$0xf] %v9277
      %9322 = vst [vmem:[%s414 + $0x84] sm:$0xf] %v9278
      %9323 = vst [vmem:[%s414 + $0x88] sm:$0xf] %v9279
      %9324 = vst [vmem:[%s414 + $0x8c] sm:$0xf] %v9280
      %9325 = vst [vmem:[%s414 + $0x90] sm:$0xf] %v9281
      %9326 = vst [vmem:[%s414 + $0x94] sm:$0xf] %v9282
      %9327 = vst [vmem:[%s414 + $0x98] sm:$0xf] %v9283
      %9328 = vst [vmem:[%s414 + $0x9c] sm:$0xf] %v9284
      %9329 = vst [vmem:[%s414 + $0xa0] sm:$0xf] %v9285
      %9330 = vst [vmem:[%s414 + $0xa4] sm:$0xf] %v9286
      %9331 = vst [vmem:[%s414 + $0xa8] sm:$0xf] %v9287
      %9332 = vst [vmem:[%s414 + $0xac] sm:$0xf] %v9288
      %v9333 = vunpack.c.l.bf16 %v9245
      %v9334 = vunpack.c.l.bf16 %v9246
      %v9335 = vunpack.c.l.bf16 %v9247
      %v9336 = vunpack.c.l.bf16 %v9248
      %v9337 = vunpack.c.l.bf16 %v9249
      %v9338 = vunpack.c.l.bf16 %v9250
      %v9339 = vunpack.c.l.bf16 %v9251
      %v9340 = vunpack.c.l.bf16 %v9252
      %v9341 = vunpack.c.l.bf16 %v9253
      %v9342 = vunpack.c.l.bf16 %v9254
      %v9343 = vunpack.c.l.bf16 %v9255
      %v9344 = vunpack.c.l.bf16 %v9256
      %v9345 = vunpack.c.l.bf16 %v9257
      %v9346 = vunpack.c.l.bf16 %v9258
      %v9347 = vunpack.c.l.bf16 %v9259
      %v9348 = vunpack.c.l.bf16 %v9260
      %v9349 = vunpack.c.l.bf16 %v9261
      %v9350 = vunpack.c.l.bf16 %v9262
      %v9351 = vunpack.c.l.bf16 %v9263
      %v9352 = vunpack.c.l.bf16 %v9264
      %v9353 = vunpack.c.l.bf16 %v9265
      %v9354 = vunpack.c.l.bf16 %v9266
      %v9355 = vunpack.c.l.bf16 %v9267
      %v9356 = vunpack.c.l.bf16 %v9268
      %v9357 = vunpack.c.l.bf16 %v9269
      %v9358 = vunpack.c.l.bf16 %v9270
      %v9359 = vunpack.c.l.bf16 %v9271
      %v9360 = vunpack.c.l.bf16 %v9272
      %v9361 = vunpack.c.l.bf16 %v9273
      %v9362 = vunpack.c.l.bf16 %v9274
      %v9363 = vunpack.c.l.bf16 %v9275
      %v9364 = vunpack.c.l.bf16 %v9276
      %v9365 = vunpack.c.l.bf16 %v9277
      %v9366 = vunpack.c.l.bf16 %v9278
      %v9367 = vunpack.c.l.bf16 %v9279
      %v9368 = vunpack.c.l.bf16 %v9280
      %v9369 = vunpack.c.l.bf16 %v9281
      %v9370 = vunpack.c.l.bf16 %v9282
      %v9371 = vunpack.c.l.bf16 %v9283
      %v9372 = vunpack.c.l.bf16 %v9284
      %v9373 = vunpack.c.l.bf16 %v9285
      %v9374 = vunpack.c.l.bf16 %v9286
      %v9375 = vunpack.c.l.bf16 %v9287
      %v9376 = vunpack.c.l.bf16 %v9288
      %v9377 = vmul.f32 %v9333, %v1676
      %v9378 = vmul.f32 %v9334, %v1677
      %v9379 = vmul.f32 %v9335, %v1678
      %v9380 = vmul.f32 %v9336, %v1679
      %v9381 = vmul.f32 %v9337, %v1680
      %v9382 = vmul.f32 %v9338, %v1681
      %v9383 = vmul.f32 %v9339, %v1682
      %v9384 = vmul.f32 %v9340, %v1683
      %v9385 = vmul.f32 %v9341, %v1684
      %v9386 = vmul.f32 %v9342, %v1685
      %v9387 = vmul.f32 %v9343, %v1686
      %v9388 = vmul.f32 %v9344, %v1687
      %v9389 = vmul.f32 %v9345, %v1688
      %v9390 = vmul.f32 %v9346, %v1689
      %v9391 = vmul.f32 %v9347, %v1690
      %v9392 = vmul.f32 %v9348, %v1691
      %v9393 = vmul.f32 %v9349, %v1692
      %v9394 = vmul.f32 %v9350, %v1693
      %v9395 = vmul.f32 %v9351, %v1694
      %v9396 = vmul.f32 %v9352, %v1695
      %v9397 = vmul.f32 %v9353, %v1696
      %v9398 = vmul.f32 %v9354, %v1697
      %v9399 = vmul.f32 %v9355, %v1698
      %v9400 = vmul.f32 %v9356, %v1699
      %v9401 = vmul.f32 %v9357, %v1700
      %v9402 = vmul.f32 %v9358, %v1701
      %v9403 = vmul.f32 %v9359, %v1702
      %v9404 = vmul.f32 %v9360, %v1703
      %v9405 = vmul.f32 %v9361, %v1704
      %v9406 = vmul.f32 %v9362, %v1705
      %v9407 = vmul.f32 %v9363, %v1706
      %v9408 = vmul.f32 %v9364, %v1707
      %v9409 = vmul.f32 %v9365, %v1708
      %v9410 = vmul.f32 %v9366, %v1709
      %v9411 = vmul.f32 %v9367, %v1710
      %v9412 = vmul.f32 %v9368, %v1711
      %v9413 = vmul.f32 %v9369, %v1712
      %v9414 = vmul.f32 %v9370, %v1713
      %v9415 = vmul.f32 %v9371, %v1714
      %v9416 = vmul.f32 %v9372, %v1715
      %v9417 = vmul.f32 %v9373, %v1716
      %v9418 = vmul.f32 %v9374, %v1717
      %v9419 = vmul.f32 %v9375, %v1718
      %v9420 = vmul.f32 %v9376, %v1719
      %9421 = vst [vmem:[%s419] sm:$0xff] 0.0
      %v9422 = vadd.f32 %v9377, %v9378
      %v9423 = vadd.f32 %v9422, %v9379
      %v9424 = vadd.f32 %v9423, %v9380
      %v9425 = vadd.f32 %v9424, %v9381
      %v9426 = vadd.f32 %v9425, %v9382
      %v9427 = vadd.f32 %v9426, %v9383
      %v9428 = vadd.f32 %v9427, %v9384
      %v9429 = vadd.f32 %v9428, %v9385
      %v9430 = vadd.f32 %v9429, %v9386
      %v9431 = vadd.f32 %v9430, %v9387
      %v9432 = vadd.f32 %v9431, %v9388
      %v9433 = vadd.f32 %v9432, %v9389
      %v9434 = vadd.f32 %v9433, %v9390
      %v9435 = vadd.f32 %v9434, %v9391
      %v9436 = vadd.f32 %v9435, %v9392
      %v9437 = vadd.f32 %v9436, %v9393
      %v9438 = vadd.f32 %v9437, %v9394
      %v9439 = vadd.f32 %v9438, %v9395
      %v9440 = vadd.f32 %v9439, %v9396
      %v9441 = vadd.f32 %v9440, %v9397
      %v9442 = vadd.f32 %v9441, %v9398
      %v9443 = vadd.f32 %v9442, %v9399
      %v9444 = vadd.f32 %v9443, %v9400
      %v9445 = vadd.f32 %v9444, %v9401
      %v9446 = vadd.f32 %v9445, %v9402
      %v9447 = vadd.f32 %v9446, %v9403
      %v9448 = vadd.f32 %v9447, %v9404
      %v9449 = vadd.f32 %v9448, %v9405
      %v9450 = vadd.f32 %v9449, %v9406
      %v9451 = vadd.f32 %v9450, %v9407
      %v9452 = vadd.f32 %v9451, %v9408
      %v9453 = vadd.f32 %v9452, %v9409
      %v9454 = vadd.f32 %v9453, %v9410
      %v9455 = vadd.f32 %v9454, %v9411
      %v9456 = vadd.f32 %v9455, %v9412
      %v9457 = vadd.f32 %v9456, %v9413
      %v9458 = vadd.f32 %v9457, %v9414
      %v9459 = vadd.f32 %v9458, %v9415
      %v9460 = vadd.f32 %v9459, %v9416
      %v9461 = vadd.f32 %v9460, %v9417
      %v9462 = vadd.f32 %v9461, %v9418
      %v9463 = vadd.f32 %v9462, %v9419
      %v9464 = vadd.f32 %v9463, %v9420
      %v9465 = vrot.slane %v9464, 4
      %v9466 = vadd.f32 %v9464, %v9465
      %v9467 = vrot.slane %v9466, 2
      %v9468 = vadd.f32 %v9466, %v9467
      %v9469 = vrot.slane %v9468, 1
      %v9470 = vadd.f32 %v9468, %v9469
      %9471 = vst [vmem:[%s419] sm:$0x1] %v9470
      %v9472 = vmul.f32 %v9377, %v9333
      %v9473 = vmul.f32 %v9378, %v9334
      %v9474 = vmul.f32 %v9379, %v9335
      %v9475 = vmul.f32 %v9380, %v9336
      %v9476 = vmul.f32 %v9381, %v9337
      %v9477 = vmul.f32 %v9382, %v9338
      %v9478 = vmul.f32 %v9383, %v9339
      %v9479 = vmul.f32 %v9384, %v9340
      %v9480 = vmul.f32 %v9385, %v9341
      %v9481 = vmul.f32 %v9386, %v9342
      %v9482 = vmul.f32 %v9387, %v9343
      %v9483 = vmul.f32 %v9388, %v9344
      %v9484 = vmul.f32 %v9389, %v9345
      %v9485 = vmul.f32 %v9390, %v9346
      %v9486 = vmul.f32 %v9391, %v9347
      %v9487 = vmul.f32 %v9392, %v9348
      %v9488 = vmul.f32 %v9393, %v9349
      %v9489 = vmul.f32 %v9394, %v9350
      %v9490 = vmul.f32 %v9395, %v9351
      %v9491 = vmul.f32 %v9396, %v9352
      %v9492 = vmul.f32 %v9397, %v9353
      %v9493 = vmul.f32 %v9398, %v9354
      %v9494 = vmul.f32 %v9399, %v9355
      %v9495 = vmul.f32 %v9400, %v9356
      %v9496 = vmul.f32 %v9401, %v9357
      %v9497 = vmul.f32 %v9402, %v9358
      %v9498 = vmul.f32 %v9403, %v9359
      %v9499 = vmul.f32 %v9404, %v9360
      %v9500 = vmul.f32 %v9405, %v9361
      %v9501 = vmul.f32 %v9406, %v9362
      %v9502 = vmul.f32 %v9407, %v9363
      %v9503 = vmul.f32 %v9408, %v9364
      %v9504 = vmul.f32 %v9409, %v9365
      %v9505 = vmul.f32 %v9410, %v9366
      %v9506 = vmul.f32 %v9411, %v9367
      %v9507 = vmul.f32 %v9412, %v9368
      %v9508 = vmul.f32 %v9413, %v9369
      %v9509 = vmul.f32 %v9414, %v9370
      %v9510 = vmul.f32 %v9415, %v9371
      %v9511 = vmul.f32 %v9416, %v9372
      %v9512 = vmul.f32 %v9417, %v9373
      %v9513 = vmul.f32 %v9418, %v9374
      %v9514 = vmul.f32 %v9419, %v9375
      %v9515 = vmul.f32 %v9420, %v9376
      %v9516 = vadd.f32 %v9472, %v9473
      %v9517 = vadd.f32 %v9516, %v9474
      %v9518 = vadd.f32 %v9517, %v9475
      %v9519 = vadd.f32 %v9518, %v9476
      %v9520 = vadd.f32 %v9519, %v9477
      %v9521 = vadd.f32 %v9520, %v9478
      %v9522 = vadd.f32 %v9521, %v9479
      %v9523 = vadd.f32 %v9522, %v9480
      %v9524 = vadd.f32 %v9523, %v9481
      %v9525 = vadd.f32 %v9524, %v9482
      %v9526 = vadd.f32 %v9525, %v9483
      %v9527 = vadd.f32 %v9526, %v9484
      %v9528 = vadd.f32 %v9527, %v9485
      %v9529 = vadd.f32 %v9528, %v9486
      %v9530 = vadd.f32 %v9529, %v9487
      %v9531 = vadd.f32 %v9530, %v9488
      %v9532 = vadd.f32 %v9531, %v9489
      %v9533 = vadd.f32 %v9532, %v9490
      %v9534 = vadd.f32 %v9533, %v9491
      %v9535 = vadd.f32 %v9534, %v9492
      %v9536 = vadd.f32 %v9535, %v9493
      %v9537 = vadd.f32 %v9536, %v9494
      %v9538 = vadd.f32 %v9537, %v9495
      %v9539 = vadd.f32 %v9538, %v9496
      %v9540 = vadd.f32 %v9539, %v9497
      %v9541 = vadd.f32 %v9540, %v9498
      %v9542 = vadd.f32 %v9541, %v9499
      %v9543 = vadd.f32 %v9542, %v9500
      %v9544 = vadd.f32 %v9543, %v9501
      %v9545 = vadd.f32 %v9544, %v9502
      %v9546 = vadd.f32 %v9545, %v9503
      %v9547 = vadd.f32 %v9546, %v9504
      %v9548 = vadd.f32 %v9547, %v9505
      %v9549 = vadd.f32 %v9548, %v9506
      %v9550 = vadd.f32 %v9549, %v9507
      %v9551 = vadd.f32 %v9550, %v9508
      %v9552 = vadd.f32 %v9551, %v9509
      %v9553 = vadd.f32 %v9552, %v9510
      %v9554 = vadd.f32 %v9553, %v9511
      %v9555 = vadd.f32 %v9554, %v9512
      %v9556 = vadd.f32 %v9555, %v9513
      %v9557 = vadd.f32 %v9556, %v9514
      %v9558 = vadd.f32 %v9557, %v9515
      %v9559 = vrot.slane %v9558, 4
      %v9560 = vadd.f32 %v9558, %v9559
      %v9561 = vrot.slane %v9560, 2
      %v9562 = vadd.f32 %v9560, %v9561
      %v9563 = vrot.slane %v9562, 1
      %v9564 = vadd.f32 %v9562, %v9563
      %9565 = vst [vmem:[%s419 + $0x1] sm:$0x1] %v9564
      %s9566 = smul.u32 44, %s20
      %p9567 = scmp.lt.s32.totalorder %s9566, 87
      %s9568 = scalar_select %p9567, %s9566, 87
      %s9569 = smul.addr %s9568, 4
      %s9570 = scalar_lea.vmem %s7, %s9569
      %p9571 = scmp.lt.s32.totalorder %s20, 1
      %s9572 = scalar_select %p9571, %s20, 1
      %s9573 = smul.addr %s9572, 8
      %s9574 = scalar_lea.vmem %s8, %s9573
      // Predicated region
      $region49: #{conv_block_nd_forward.3} parent=47 // pred_check
        %p9575 = pneg %p216
      $region50: #{conv_block_nd_forward.3} parent=47 // pred_check_branch
        %9577 = sbr.rel (%p9575) target = $region52
      $region51: #{conv_block_nd_forward.3} parent=47 // pred_region
        %s9578 = smul.u32 44, %s20
      $region52: #{conv_block_nd_forward.3} parent=47 // pred_fallthru
        _
      // Predicated region
      $region53: #{conv_block_nd_forward.3} parent=47 // pred_check
        %p9579 = pneg %p242
      $region54: #{conv_block_nd_forward.3} parent=47 // pred_check_branch
        %9581 = sbr.rel (%p9579) target = $region56
      $region55: #{conv_block_nd_forward.3} parent=47 // pred_region
        _
      $region56: #{conv_block_nd_forward.3} parent=47 // pred_fallthru
        _
    $region48: #{conv_block_nd_forward.3} parent=5 // pred_fallthru
      _
    %p9582 = scmp.le.s32.totalorder 2, %s15
    // Predicated region
    $region57: #{conv_block_nd_forward.3} parent=5 // pred_check
      %p9583 = pneg %p9582
    $region58: #{conv_block_nd_forward.3} parent=5 // pred_check_branch
      %9585 = sbr.rel (%p9583) target = $region60
    $region59: #{conv_block_nd_forward.3} parent=5 // pred_region
      %s9586 = ssub.s32 %s15, 2
      // Predicated region
      $region61: #{conv_block_nd_forward.3} parent=59 // pred_check
        %p9587 = pneg %p222
      $region62: #{conv_block_nd_forward.3} parent=59 // pred_check_branch
        %9589 = sbr.rel (%p9587) target = $region64
      $region63: #{conv_block_nd_forward.3} parent=59 // pred_region
        %s9590 = smul.u32 44, %s21
        %p9591 = scmp.lt.s32.totalorder %s9590, 87
        %s9592 = scalar_select %p9591, %s9590, 87
        %s9593 = smul.addr %s9592, 4
        %s9594 = scalar_lea.vmem %s7, %s9593
      $region64: #{conv_block_nd_forward.3} parent=59 // pred_fallthru
        _
      // Predicated region
      $region65: #{conv_block_nd_forward.3} parent=59 // pred_check
        %p9595 = pneg %p248
      $region66: #{conv_block_nd_forward.3} parent=59 // pred_check_branch
        %9597 = sbr.rel (%p9595) target = $region68
      $region67: #{conv_block_nd_forward.3} parent=59 // pred_region
        %p9598 = scmp.lt.s32.totalorder %s21, 1
        %s9599 = scalar_select %p9598, %s21, 1
        %s9600 = smul.addr %s9599, 8
        %s9601 = scalar_lea.vmem %s8, %s9600
      $region68: #{conv_block_nd_forward.3} parent=59 // pred_fallthru
        _
    $region60: #{conv_block_nd_forward.3} parent=5 // pred_fallthru
      _
  $region6: #{conv_block_nd_forward.3} parent=0 // loop_footer
    %s19 = sadd.s32 1, %s15
  $region7: #{conv_block_nd_forward.3} parent=0 // loop_footer_branch
    %14 = sbr.rel target = $region3
  $region8: #{conv_block_nd_forward.3} parent=0 // loop_exit
    _

</llo_original>
